<compile_context>
chip_gen: v5e
topology: v5e:2x2
jax: 0.10.0
libtpu: 0.0.40
codegen_flags: <defaults>
</compile_context>

<pallas_src>
import jax
import jax.numpy as jnp
from jax import lax
from jax.experimental import pallas as pl
from jax.experimental.pallas import tpu as pltpu


# ----------------------------------------------------------------------------
# Pallas kernels
# ----------------------------------------------------------------------------
def _conv_relu_kernel(p_ref, w_ref, b_ref, o_ref):
    # p: (bm, 9*Cin) bf16   w: (9*Cin, Cout) bf16   b: (1, Cout) f32
    acc = jnp.dot(p_ref[...], w_ref[...], preferred_element_type=jnp.float32)
    acc = acc + b_ref[...]
    o_ref[...] = jnp.maximum(acc, 0.0).astype(o_ref.dtype)


def conv_matmul(p, w, b, *, blocks_m=1, out_dtype=jnp.bfloat16):
    """relu(p @ w + b) as a single fused Pallas matmul (batch folded into M)."""
    M, K = p.shape
    N = w.shape[1]
    bm = M // blocks_m
    return pl.pallas_call(
        _conv_relu_kernel,
        out_shape=jax.ShapeDtypeStruct((M, N), out_dtype),
        grid=(blocks_m,),
        in_specs=[
            pl.BlockSpec((bm, K), lambda i: (i, 0)),
            pl.BlockSpec((K, N), lambda i: (0, 0)),
            pl.BlockSpec((1, N), lambda i: (0, 0)),
        ],
        out_specs=pl.BlockSpec((bm, N), lambda i: (i, 0)),
        compiler_params=pltpu.CompilerParams(
            dimension_semantics=("parallel",)),
    )(p, w, b)


def _head_kernel(p4_ref, w4_ref, b4_ref, wfc_ref, bfc_ref, wh_ref, bh_ref,
                 o_ref, o4_sc):
    # p4: (n_pos*B, 9*128) bf16, rows ordered (spatial position, batch)
    # w4: (9*128, 256) bf16   b4: (1, 256) f32
    # wfc: (n_pos, 256, L) bf16 (fc weight regrouped to match NCHW flatten)
    # wh:  (L, 2L) bf16 (fc_mu | fc_log_sigma)    output: (B, 2L) f32
    B = o_ref.shape[0]
    L = bfc_ref.shape[1]
    n_pos = p4_ref.shape[0] // B

    # conv4 (no ReLU per the nn.Sequential) -- kept entirely in VMEM.
    o4_sc[...] = (jnp.dot(p4_ref[...], w4_ref[...],
                          preferred_element_type=jnp.float32) + b4_ref[...])

    # fc over the flattened (C, H, W) features, accumulated position by
    # position so no in-kernel relayout/reshape of the activation is needed.
    acc = jnp.zeros((B, L), jnp.float32)
    for p in range(n_pos):
        lhs = o4_sc[p * B:(p + 1) * B, :].astype(jnp.bfloat16)
        acc = acc + jnp.dot(lhs, wfc_ref[p],
                            preferred_element_type=jnp.float32)
    fc = acc + bfc_ref[...]

    heads = jnp.dot(fc.astype(jnp.bfloat16), wh_ref[...],
                    preferred_element_type=jnp.float32) + bh_ref[...]
    o_ref[...] = heads


def head_call(p4, w4, b4, wfc, bfc, wh, bh):
    M4, K4 = p4.shape
    N4 = w4.shape[1]
    n_pos, _, L = wfc.shape
    B = M4 // n_pos
    return pl.pallas_call(
        _head_kernel,
        out_shape=jax.ShapeDtypeStruct((B, 2 * L), jnp.float32),
        grid=(1,),
        in_specs=[
            pl.BlockSpec((M4, K4), lambda i: (0, 0)),
            pl.BlockSpec((K4, N4), lambda i: (0, 0)),
            pl.BlockSpec((1, N4), lambda i: (0, 0)),
            pl.BlockSpec((n_pos, N4, L), lambda i: (0, 0, 0)),
            pl.BlockSpec((1, L), lambda i: (0, 0)),
            pl.BlockSpec((L, 2 * L), lambda i: (0, 0)),
            pl.BlockSpec((1, 2 * L), lambda i: (0, 0)),
        ],
        out_specs=pl.BlockSpec((B, 2 * L), lambda i: (0, 0)),
        scratch_shapes=[pltpu.VMEM((M4, N4), jnp.float32)],
        compiler_params=pltpu.CompilerParams(
            dimension_semantics=("arbitrary",)),
    )(p4, w4, b4, wfc, bfc, wh, bh)


# ----------------------------------------------------------------------------
# XLA glue: 3x3 / pad=1 im2col (stride 1 or 2)
# ----------------------------------------------------------------------------
def im2col_3x3(x, stride):
    """x: (B, H, W, C) -> (B, H//s, W//s, 9*C) patches, features ordered (kh, kw, c)."""
    B, H, W, C = x.shape
    Ho, Wo = H // stride, W // stride
    xp = jnp.pad(x, ((0, 0), (1, 1), (1, 1), (0, 0)))
    cols = []
    for kh in range(3):
        for kw in range(3):
            cols.append(
                xp[:, kh: kh + (Ho - 1) * stride + 1: stride,
                      kw: kw + (Wo - 1) * stride + 1: stride, :])
    return jnp.concatenate(cols, axis=-1)


# ----------------------------------------------------------------------------
# VAEEncoder forward (Pallas) and pure-JAX reference
# ----------------------------------------------------------------------------
def vae_encoder_forward(x_nchw, kp):
    B = x_nchw.shape[0]
    h = jnp.transpose(x_nchw, (0, 2, 3, 1))                  # NHWC
    strides = (1, 2, 2, 2)

    # conv1..conv3: one fused matmul + bias + ReLU kernel each.
    for i in range(3):
        w, b = kp["convs"][i]
        p = im2col_3x3(h, strides[i]).astype(jnp.bfloat16)   # (B, Ho, Wo, 9*Cin)
        _, Ho, Wo, K = p.shape
        M = B * Ho * Wo
        blocks_m = 2 if (M % 16 == 0 and M // 2 >= 256) else 1
        o = conv_matmul(p.reshape(M, K), w, b, blocks_m=blocks_m)
        h = o.reshape(B, Ho, Wo, w.shape[1])

    # conv4 (no ReLU) + fc + fc_mu / fc_log_sigma fused into one kernel.
    w4, b4 = kp["convs"][3]
    p4 = im2col_3x3(h, 2)                                    # (B, 4, 4, 9*128)
    _, Ho, Wo, K4 = p4.shape
    p4 = jnp.transpose(p4, (1, 2, 0, 3)).reshape(Ho * Wo * B, K4)
    p4 = p4.astype(jnp.bfloat16)
    heads = head_call(p4, w4, b4, kp["wfc"], kp["bfc"],
                      kp["wheads"], kp["bheads"])
    L = kp["bfc"].shape[1]
    return heads[:, :L], heads[:, L:]


def reference_forward(x_nchw, pt):
    """Pure-JAX/XLA f32 reference with PyTorch semantics."""
    dn = ("NHWC", "HWIO", "NHWC")
    strides = (1, 2, 2, 2)
    h = jnp.transpose(x_nchw, (0, 2, 3, 1))
    for i, (w, b) in enumerate(pt["convs"]):
        w_hwio = jnp.transpose(w, (2, 3, 1, 0))
        h = lax.conv_general_dilated(
            h, w_hwio, (strides[i], strides[i]), ((1, 1), (1, 1)),
            dimension_numbers=dn) + b
        if i < 3:
            h = jax.nn.relu(h)
    B = x_nchw.shape[0]
    flat = jnp.transpose(h, (0, 3, 1, 2)).reshape(B, -1)     # NCHW flatten (torch .view)
    fc = flat @ pt["fc_w"].T + pt["fc_b"]
    mu = fc @ pt["mu_w"].T + pt["mu_b"]
    ls = fc @ pt["ls_w"].T + pt["ls_b"]
    return mu, ls


# ----------------------------------------------------------------------------
# Parameters: PyTorch layouts, converted to kernel layouts
# ----------------------------------------------------------------------------
def init_params(key, latent_dim):
    ks = jax.random.split(key, 14)

    def nrm(k, shape, scale):
        return scale * jax.random.normal(k, shape, dtype=jnp.float32)

    cfg = [(32, 3), (64, 32), (128, 64), (256, 128)]          # (C_out, C_in)
    convs = []
    for i, (co, ci) in enumerate(cfg):
        w = nrm(ks[2 * i], (co, ci, 3, 3), 1.0 / (9 * ci) ** 0.5)
        b = nrm(ks[2 * i + 1], (co,), 0.05)
        convs.append((w, b))

    pt = {
        "convs": convs,
        "fc_w": nrm(ks[8], (latent_dim, 4096), 1.0 / 4096 ** 0.5),
        "fc_b": nrm(ks[9], (latent_dim,), 0.05),
        "mu_w": nrm(ks[10], (latent_dim, latent_dim), 1.0 / latent_dim ** 0.5),
        "ls_w": nrm(ks[11], (latent_dim, latent_dim), 1.0 / latent_dim ** 0.5),
        "mu_b": nrm(ks[12], (latent_dim,), 0.05),
        "ls_b": nrm(ks[13], (latent_dim,), 0.05),
    }
    return pt


def prepare_kernel_params(pt, latent_dim):
    kp = {"convs": []}
    for w, b in pt["convs"]:
        co, ci, kh, kw = w.shape
        w_k = jnp.transpose(w, (2, 3, 1, 0)).reshape(kh * kw * ci, co)
        kp["convs"].append((w_k.astype(jnp.bfloat16),
                            b.reshape(1, co).astype(jnp.float32)))
    L = latent_dim
    fc_w = pt["fc_w"]                                        # (L, 4096); flat idx = c*16 + p
    n_pos = fc_w.shape[1] // 256
    kp["wfc"] = jnp.transpose(fc_w.reshape(L, 256, n_pos),
                              (2, 1, 0)).astype(jnp.bfloat16)  # (n_pos, 256, L)
    kp["bfc"] = pt["fc_b"].reshape(1, L).astype(jnp.float32)
    kp["wheads"] = jnp.concatenate([pt["mu_w"].T, pt["ls_w"].T],
                                   axis=1).astype(jnp.bfloat16)  # (L, 2L)
    kp["bheads"] = jnp.concatenate([pt["mu_b"], pt["ls_b"]]
                                   ).reshape(1, 2 * L).astype(jnp.float32)
    return kp


# ----------------------------------------------------------------------------
if __name__ == "__main__":
    latent_dim = 32
    batch = 2
    input_shape = (3, 32, 32)

    key = jax.random.PRNGKey(0)
    k_params, k_x = jax.random.split(key)
    pt = init_params(k_params, latent_dim)
    kparams = prepare_kernel_params(pt, latent_dim)
    x = jax.random.normal(k_x, (batch,) + input_shape, dtype=jnp.float32)

    fwd = jax.jit(vae_encoder_forward)
    mu, log_sigma = jax.block_until_ready(fwd(x, kparams))

    assert mu.shape == (batch, latent_dim), mu.shape
    assert log_sigma.shape == (batch, latent_dim), log_sigma.shape

    ref_mu, ref_ls = jax.block_until_ready(jax.jit(reference_forward)(x, pt))
    err_mu = float(jnp.max(jnp.abs(mu - ref_mu)))
    err_ls = float(jnp.max(jnp.abs(log_sigma - ref_ls)))
    assert jnp.allclose(mu, ref_mu, atol=3e-2, rtol=5e-2), err_mu
    assert jnp.allclose(log_sigma, ref_ls, atol=3e-2, rtol=5e-2), err_ls

    print("KERNEL_OK")
</pallas_src>

<mosaic_0001>
module attributes {stable_mosaic.version = 11 : i64} {
  func.func @_conv_relu_kernel(%arg0: i32, %arg1: memref<1024x27xbf16, #tpu.memory_space<vmem>>, %arg2: memref<27x32xbf16, #tpu.memory_space<vmem>>, %arg3: memref<1x32xf32, #tpu.memory_space<vmem>>, %arg4: memref<1024x32xbf16, #tpu.memory_space<vmem>>) attributes {dimension_semantics = [#tpu.dimension_semantics<parallel>], iteration_bounds = array<i64: 2>, scalar_prefetch = 0 : i64, scratch_operands = 0 : i64, tpu.core_type = #tpu.core_type<tc>, window_params = [{transform_indices = @transform_0, window_bounds = array<i64: 1024, 27>}, {pipeline_mode = #tpu.pipeline_mode<synchronous>, transform_indices = @transform_1, window_bounds = array<i64: 27, 32>}, {pipeline_mode = #tpu.pipeline_mode<synchronous>, transform_indices = @transform_2, window_bounds = array<i64: 1, 32>}, {transform_indices = @transform_3, window_bounds = array<i64: 1024, 32>}]} {
    %c0 = arith.constant 0 : index
    %c0_0 = arith.constant 0 : index
    %0 = vector.load %arg1[%c0, %c0_0] : memref<1024x27xbf16, #tpu.memory_space<vmem>>, vector<1024x27xbf16>
    %c0_1 = arith.constant 0 : index
    %c0_2 = arith.constant 0 : index
    %1 = vector.load %arg2[%c0_1, %c0_2] : memref<27x32xbf16, #tpu.memory_space<vmem>>, vector<27x32xbf16>
    %cst = arith.constant dense<0.000000e+00> : vector<1024x32xf32>
    %2 = tpu.matmul %0, %1, %cst {dimension_numbers = #tpu.dot_dimension_numbers<[1], [0], [0], [1], [0, 0, 1, 1], [], []>} : vector<1024x27xbf16>, vector<27x32xbf16>, vector<1024x32xf32> -> vector<1024x32xf32>
    %c0_3 = arith.constant 0 : index
    %c0_4 = arith.constant 0 : index
    %3 = vector.load %arg3[%c0_3, %c0_4] : memref<1x32xf32, #tpu.memory_space<vmem>>, vector<1x32xf32>
    %4 = vector.broadcast %3 : vector<1x32xf32> to vector<1024x32xf32>
    %5 = arith.addf %2, %4 : vector<1024x32xf32>
    %cst_5 = arith.constant 0.000000e+00 : f32
    %6 = vector.broadcast %cst_5 : f32 to vector<1024x32xf32>
    %7 = arith.maximumf %5, %6 : vector<1024x32xf32>
    %8 = arith.truncf %7 : vector<1024x32xf32> to vector<1024x32xbf16>
    %c0_6 = arith.constant 0 : index
    %c0_7 = arith.constant 0 : index
    %9 = vector.load %arg4[%c0_6, %c0_7] : memref<1024x32xbf16, #tpu.memory_space<vmem>>, vector<1024x32xbf16>
    tpu.vector_store %arg4[%c0_6, %c0_7], %8 {strides = array<i32>} : memref<1024x32xbf16, #tpu.memory_space<vmem>>, vector<1024x32xbf16>,
    return
  }
  func.func @transform_0(%arg0: i32) -> (i32, i32) {
    %c0_i32 = arith.constant 0 : i32
    %c0_i32_0 = arith.constant 0 : i32
    return %arg0, %c0_i32 : i32, i32
  }
  func.func @transform_1(%arg0: i32) -> (i32, i32) {
    %c0_i32 = arith.constant 0 : i32
    %c0_i32_0 = arith.constant 0 : i32
    %c0_i32_1 = arith.constant 0 : i32
    return %c0_i32, %c0_i32_0 : i32, i32
  }
  func.func @transform_2(%arg0: i32) -> (i32, i32) {
    %c0_i32 = arith.constant 0 : i32
    %c0_i32_0 = arith.constant 0 : i32
    %c0_i32_1 = arith.constant 0 : i32
    return %c0_i32, %c0_i32_0 : i32, i32
  }
  func.func @transform_3(%arg0: i32) -> (i32, i32) {
    %c0_i32 = arith.constant 0 : i32
    %c0_i32_0 = arith.constant 0 : i32
    return %arg0, %c0_i32 : i32, i32
  }
}

module attributes {stable_mosaic.version = 11 : i64} {
  func.func @_conv_relu_kernel(%arg0: i32, %arg1: memref<256x288xbf16, #tpu.memory_space<vmem>>, %arg2: memref<288x64xbf16, #tpu.memory_space<vmem>>, %arg3: memref<1x64xf32, #tpu.memory_space<vmem>>, %arg4: memref<256x64xbf16, #tpu.memory_space<vmem>>) attributes {dimension_semantics = [#tpu.dimension_semantics<parallel>], iteration_bounds = array<i64: 2>, scalar_prefetch = 0 : i64, scratch_operands = 0 : i64, tpu.core_type = #tpu.core_type<tc>, window_params = [{transform_indices = @transform_0, window_bounds = array<i64: 256, 288>}, {pipeline_mode = #tpu.pipeline_mode<synchronous>, transform_indices = @transform_1, window_bounds = array<i64: 288, 64>}, {pipeline_mode = #tpu.pipeline_mode<synchronous>, transform_indices = @transform_2, window_bounds = array<i64: 1, 64>}, {transform_indices = @transform_3, window_bounds = array<i64: 256, 64>}]} {
    %c0 = arith.constant 0 : index
    %c0_0 = arith.constant 0 : index
    %0 = vector.load %arg1[%c0, %c0_0] : memref<256x288xbf16, #tpu.memory_space<vmem>>, vector<256x288xbf16>
    %c0_1 = arith.constant 0 : index
    %c0_2 = arith.constant 0 : index
    %1 = vector.load %arg2[%c0_1, %c0_2] : memref<288x64xbf16, #tpu.memory_space<vmem>>, vector<288x64xbf16>
    %cst = arith.constant dense<0.000000e+00> : vector<256x64xf32>
    %2 = tpu.matmul %0, %1, %cst {dimension_numbers = #tpu.dot_dimension_numbers<[1], [0], [0], [1], [0, 0, 1, 1], [], []>} : vector<256x288xbf16>, vector<288x64xbf16>, vector<256x64xf32> -> vector<256x64xf32>
    %c0_3 = arith.constant 0 : index
    %c0_4 = arith.constant 0 : index
    %3 = vector.load %arg3[%c0_3, %c0_4] : memref<1x64xf32, #tpu.memory_space<vmem>>, vector<1x64xf32>
    %4 = vector.broadcast %3 : vector<1x64xf32> to vector<256x64xf32>
    %5 = arith.addf %2, %4 : vector<256x64xf32>
    %cst_5 = arith.constant 0.000000e+00 : f32
    %6 = vector.broadcast %cst_5 : f32 to vector<256x64xf32>
    %7 = arith.maximumf %5, %6 : vector<256x64xf32>
    %8 = arith.truncf %7 : vector<256x64xf32> to vector<256x64xbf16>
    %c0_6 = arith.constant 0 : index
    %c0_7 = arith.constant 0 : index
    %9 = vector.load %arg4[%c0_6, %c0_7] : memref<256x64xbf16, #tpu.memory_space<vmem>>, vector<256x64xbf16>
    tpu.vector_store %arg4[%c0_6, %c0_7], %8 {strides = array<i32>} : memref<256x64xbf16, #tpu.memory_space<vmem>>, vector<256x64xbf16>,
    return
  }
  func.func @transform_0(%arg0: i32) -> (i32, i32) {
    %c0_i32 = arith.constant 0 : i32
    %c0_i32_0 = arith.constant 0 : i32
    return %arg0, %c0_i32 : i32, i32
  }
  func.func @transform_1(%arg0: i32) -> (i32, i32) {
    %c0_i32 = arith.constant 0 : i32
    %c0_i32_0 = arith.constant 0 : i32
    %c0_i32_1 = arith.constant 0 : i32
    return %c0_i32, %c0_i32_0 : i32, i32
  }
  func.func @transform_2(%arg0: i32) -> (i32, i32) {
    %c0_i32 = arith.constant 0 : i32
    %c0_i32_0 = arith.constant 0 : i32
    %c0_i32_1 = arith.constant 0 : i32
    return %c0_i32, %c0_i32_0 : i32, i32
  }
  func.func @transform_3(%arg0: i32) -> (i32, i32) {
    %c0_i32 = arith.constant 0 : i32
    %c0_i32_0 = arith.constant 0 : i32
    return %arg0, %c0_i32 : i32, i32
  }
}

module attributes {stable_mosaic.version = 11 : i64} {
  func.func @_conv_relu_kernel(%arg0: i32, %arg1: memref<128x576xbf16, #tpu.memory_space<vmem>>, %arg2: memref<576x128xbf16, #tpu.memory_space<vmem>>, %arg3: memref<1x128xf32, #tpu.memory_space<vmem>>, %arg4: memref<128x128xbf16, #tpu.memory_space<vmem>>) attributes {dimension_semantics = [#tpu.dimension_semantics<parallel>], iteration_bounds = array<i64: 1>, scalar_prefetch = 0 : i64, scratch_operands = 0 : i64, tpu.core_type = #tpu.core_type<tc>, window_params = [{transform_indices = @transform_0, window_bounds = array<i64: 128, 576>}, {pipeline_mode = #tpu.pipeline_mode<synchronous>, transform_indices = @transform_1, window_bounds = array<i64: 576, 128>}, {pipeline_mode = #tpu.pipeline_mode<synchronous>, transform_indices = @transform_2, window_bounds = array<i64: 1, 128>}, {transform_indices = @transform_3, window_bounds = array<i64: 128, 128>}]} {
    %c0 = arith.constant 0 : index
    %c0_0 = arith.constant 0 : index
    %0 = vector.load %arg1[%c0, %c0_0] : memref<128x576xbf16, #tpu.memory_space<vmem>>, vector<128x576xbf16>
    %c0_1 = arith.constant 0 : index
    %c0_2 = arith.constant 0 : index
    %1 = vector.load %arg2[%c0_1, %c0_2] : memref<576x128xbf16, #tpu.memory_space<vmem>>, vector<576x128xbf16>
    %cst = arith.constant dense<0.000000e+00> : vector<128x128xf32>
    %2 = tpu.matmul %0, %1, %cst {dimension_numbers = #tpu.dot_dimension_numbers<[1], [0], [0], [1], [0, 0, 1, 1], [], []>} : vector<128x576xbf16>, vector<576x128xbf16>, vector<128x128xf32> -> vector<128x128xf32>
    %c0_3 = arith.constant 0 : index
    %c0_4 = arith.constant 0 : index
    %3 = vector.load %arg3[%c0_3, %c0_4] : memref<1x128xf32, #tpu.memory_space<vmem>>, vector<1x128xf32>
    %4 = vector.broadcast %3 : vector<1x128xf32> to vector<128x128xf32>
    %5 = arith.addf %2, %4 : vector<128x128xf32>
    %cst_5 = arith.constant 0.000000e+00 : f32
    %6 = vector.broadcast %cst_5 : f32 to vector<128x128xf32>
    %7 = arith.maximumf %5, %6 : vector<128x128xf32>
    %8 = arith.truncf %7 : vector<128x128xf32> to vector<128x128xbf16>
    %c0_6 = arith.constant 0 : index
    %c0_7 = arith.constant 0 : index
    %9 = vector.load %arg4[%c0_6, %c0_7] : memref<128x128xbf16, #tpu.memory_space<vmem>>, vector<128x128xbf16>
    tpu.vector_store %arg4[%c0_6, %c0_7], %8 {strides = array<i32>} : memref<128x128xbf16, #tpu.memory_space<vmem>>, vector<128x128xbf16>,
    return
  }
  func.func @transform_0(%arg0: i32) -> (i32, i32) {
    %c0_i32 = arith.constant 0 : i32
    %c0_i32_0 = arith.constant 0 : i32
    return %arg0, %c0_i32 : i32, i32
  }
  func.func @transform_1(%arg0: i32) -> (i32, i32) {
    %c0_i32 = arith.constant 0 : i32
    %c0_i32_0 = arith.constant 0 : i32
    %c0_i32_1 = arith.constant 0 : i32
    return %c0_i32, %c0_i32_0 : i32, i32
  }
  func.func @transform_2(%arg0: i32) -> (i32, i32) {
    %c0_i32 = arith.constant 0 : i32
    %c0_i32_0 = arith.constant 0 : i32
    %c0_i32_1 = arith.constant 0 : i32
    return %c0_i32, %c0_i32_0 : i32, i32
  }
  func.func @transform_3(%arg0: i32) -> (i32, i32) {
    %c0_i32 = arith.constant 0 : i32
    %c0_i32_0 = arith.constant 0 : i32
    return %arg0, %c0_i32 : i32, i32
  }
}

module attributes {stable_mosaic.version = 11 : i64} {
  func.func @_head_kernel(%arg0: i32, %arg1: memref<32x1152xbf16, #tpu.memory_space<vmem>>, %arg2: memref<1152x256xbf16, #tpu.memory_space<vmem>>, %arg3: memref<1x256xf32, #tpu.memory_space<vmem>>, %arg4: memref<16x256x32xbf16, #tpu.memory_space<vmem>>, %arg5: memref<1x32xf32, #tpu.memory_space<vmem>>, %arg6: memref<32x64xbf16, #tpu.memory_space<vmem>>, %arg7: memref<1x64xf32, #tpu.memory_space<vmem>>, %arg8: memref<2x64xf32, #tpu.memory_space<vmem>>, %arg9: memref<32x256xf32, #tpu.memory_space<vmem>>) attributes {dimension_semantics = [#tpu.dimension_semantics<arbitrary>], iteration_bounds = array<i64: 1>, scalar_prefetch = 0 : i64, scratch_operands = 1 : i64, tpu.core_type = #tpu.core_type<tc>, window_params = [{pipeline_mode = #tpu.pipeline_mode<synchronous>, transform_indices = @transform_0, window_bounds = array<i64: 32, 1152>}, {pipeline_mode = #tpu.pipeline_mode<synchronous>, transform_indices = @transform_1, window_bounds = array<i64: 1152, 256>}, {pipeline_mode = #tpu.pipeline_mode<synchronous>, transform_indices = @transform_2, window_bounds = array<i64: 1, 256>}, {pipeline_mode = #tpu.pipeline_mode<synchronous>, transform_indices = @transform_3, window_bounds = array<i64: 16, 256, 32>}, {pipeline_mode = #tpu.pipeline_mode<synchronous>, transform_indices = @transform_4, window_bounds = array<i64: 1, 32>}, {pipeline_mode = #tpu.pipeline_mode<synchronous>, transform_indices = @transform_5, window_bounds = array<i64: 32, 64>}, {pipeline_mode = #tpu.pipeline_mode<synchronous>, transform_indices = @transform_6, window_bounds = array<i64: 1, 64>}, {pipeline_mode = #tpu.pipeline_mode<synchronous>, transform_indices = @transform_7, window_bounds = array<i64: 2, 64>}]} {
    %c0 = arith.constant 0 : index
    %c0_0 = arith.constant 0 : index
    %0 = vector.load %arg1[%c0, %c0_0] : memref<32x1152xbf16, #tpu.memory_space<vmem>>, vector<32x1152xbf16>
    %c0_1 = arith.constant 0 : index
    %c0_2 = arith.constant 0 : index
    %1 = vector.load %arg2[%c0_1, %c0_2] : memref<1152x256xbf16, #tpu.memory_space<vmem>>, vector<1152x256xbf16>
    %cst = arith.constant dense<0.000000e+00> : vector<32x256xf32>
    %2 = tpu.matmul %0, %1, %cst {dimension_numbers = #tpu.dot_dimension_numbers<[1], [0], [0], [1], [0, 0, 1, 1], [], []>} : vector<32x1152xbf16>, vector<1152x256xbf16>, vector<32x256xf32> -> vector<32x256xf32>
    %c0_3 = arith.constant 0 : index
    %c0_4 = arith.constant 0 : index
    %3 = vector.load %arg3[%c0_3, %c0_4] : memref<1x256xf32, #tpu.memory_space<vmem>>, vector<1x256xf32>
    %4 = vector.broadcast %3 : vector<1x256xf32> to vector<32x256xf32>
    %5 = arith.addf %2, %4 : vector<32x256xf32>
    %c0_5 = arith.constant 0 : index
    %c0_6 = arith.constant 0 : index
    %6 = vector.load %arg9[%c0_5, %c0_6] : memref<32x256xf32, #tpu.memory_space<vmem>>, vector<32x256xf32>
    tpu.vector_store %arg9[%c0_5, %c0_6], %5 {strides = array<i32>} : memref<32x256xf32, #tpu.memory_space<vmem>>, vector<32x256xf32>,
    %cst_7 = arith.constant 0.000000e+00 : f32
    %7 = vector.broadcast %cst_7 : f32 to vector<2x32xf32>
    %c0_8 = arith.constant 0 : index
    %c0_9 = arith.constant 0 : index
    %8 = vector.load %arg9[%c0_8, %c0_9] : memref<32x256xf32, #tpu.memory_space<vmem>>, vector<2x256xf32>
    %9 = arith.truncf %8 : vector<2x256xf32> to vector<2x256xbf16>
    %c0_10 = arith.constant 0 : index
    %c0_11 = arith.constant 0 : index
    %c0_12 = arith.constant 0 : index
    %10 = vector.load %arg4[%c0_10, %c0_11, %c0_12] : memref<16x256x32xbf16, #tpu.memory_space<vmem>>, vector<1x256x32xbf16>
    %11 = vector.shape_cast %10 : vector<1x256x32xbf16> to vector<256x32xbf16>
    %cst_13 = arith.constant dense<0.000000e+00> : vector<2x32xf32>
    %12 = tpu.matmul %9, %11, %cst_13 {dimension_numbers = #tpu.dot_dimension_numbers<[1], [0], [0], [1], [0, 0, 1, 1], [], []>} : vector<2x256xbf16>, vector<256x32xbf16>, vector<2x32xf32> -> vector<2x32xf32>
    %13 = arith.addf %7, %12 : vector<2x32xf32>
    %c2 = arith.constant 2 : index
    %c0_14 = arith.constant 0 : index
    %14 = vector.load %arg9[%c2, %c0_14] : memref<32x256xf32, #tpu.memory_space<vmem>>, vector<2x256xf32>
    %15 = arith.truncf %14 : vector<2x256xf32> to vector<2x256xbf16>
    %c1 = arith.constant 1 : index
    %c0_15 = arith.constant 0 : index
    %c0_16 = arith.constant 0 : index
    %16 = vector.load %arg4[%c1, %c0_15, %c0_16] : memref<16x256x32xbf16, #tpu.memory_space<vmem>>, vector<1x256x32xbf16>
    %17 = vector.shape_cast %16 : vector<1x256x32xbf16> to vector<256x32xbf16>
    %cst_17 = arith.constant dense<0.000000e+00> : vector<2x32xf32>
    %18 = tpu.matmul %15, %17, %cst_17 {dimension_numbers = #tpu.dot_dimension_numbers<[1], [0], [0], [1], [0, 0, 1, 1], [], []>} : vector<2x256xbf16>, vector<256x32xbf16>, vector<2x32xf32> -> vector<2x32xf32>
    %19 = arith.addf %13, %18 : vector<2x32xf32>
    %c4 = arith.constant 4 : index
    %c0_18 = arith.constant 0 : index
    %20 = vector.load %arg9[%c4, %c0_18] : memref<32x256xf32, #tpu.memory_space<vmem>>, vector<2x256xf32>
    %21 = arith.truncf %20 : vector<2x256xf32> to vector<2x256xbf16>
    %c2_19 = arith.constant 2 : index
    %c0_20 = arith.constant 0 : index
    %c0_21 = arith.constant 0 : index
    %22 = vector.load %arg4[%c2_19, %c0_20, %c0_21] : memref<16x256x32xbf16, #tpu.memory_space<vmem>>, vector<1x256x32xbf16>
    %23 = vector.shape_cast %22 : vector<1x256x32xbf16> to vector<256x32xbf16>
    %cst_22 = arith.constant dense<0.000000e+00> : vector<2x32xf32>
    %24 = tpu.matmul %21, %23, %cst_22 {dimension_numbers = #tpu.dot_dimension_numbers<[1], [0], [0], [1], [0, 0, 1, 1], [], []>} : vector<2x256xbf16>, vector<256x32xbf16>, vector<2x32xf32> -> vector<2x32xf32>
    %25 = arith.addf %19, %24 : vector<2x32xf32>
    %c6 = arith.constant 6 : index
    %c0_23 = arith.constant 0 : index
    %26 = vector.load %arg9[%c6, %c0_23] : memref<32x256xf32, #tpu.memory_space<vmem>>, vector<2x256xf32>
    %27 = arith.truncf %26 : vector<2x256xf32> to vector<2x256xbf16>
    %c3 = arith.constant 3 : index
    %c0_24 = arith.constant 0 : index
    %c0_25 = arith.constant 0 : index
    %28 = vector.load %arg4[%c3, %c0_24, %c0_25] : memref<16x256x32xbf16, #tpu.memory_space<vmem>>, vector<1x256x32xbf16>
    %29 = vector.shape_cast %28 : vector<1x256x32xbf16> to vector<256x32xbf16>
    %cst_26 = arith.constant dense<0.000000e+00> : vector<2x32xf32>
    %30 = tpu.matmul %27, %29, %cst_26 {dimension_numbers = #tpu.dot_dimension_numbers<[1], [0], [0], [1], [0, 0, 1, 1], [], []>} : vector<2x256xbf16>, vector<256x32xbf16>, vector<2x32xf32> -> vector<2x32xf32>
    %31 = arith.addf %25, %30 : vector<2x32xf32>
    %c8 = arith.constant 8 : index
    %c0_27 = arith.constant 0 : index
    %32 = vector.load %arg9[%c8, %c0_27] : memref<32x256xf32, #tpu.memory_space<vmem>>, vector<2x256xf32>
    %33 = arith.truncf %32 : vector<2x256xf32> to vector<2x256xbf16>
    %c4_28 = arith.constant 4 : index
    %c0_29 = arith.constant 0 : index
    %c0_30 = arith.constant 0 : index
    %34 = vector.load %arg4[%c4_28, %c0_29, %c0_30] : memref<16x256x32xbf16, #tpu.memory_space<vmem>>, vector<1x256x32xbf16>
    %35 = vector.shape_cast %34 : vector<1x256x32xbf16> to vector<256x32xbf16>
    %cst_31 = arith.constant dense<0.000000e+00> : vector<2x32xf32>
    %36 = tpu.matmul %33, %35, %cst_31 {dimension_numbers = #tpu.dot_dimension_numbers<[1], [0], [0], [1], [0, 0, 1, 1], [], []>} : vector<2x256xbf16>, vector<256x32xbf16>, vector<2x32xf32> -> vector<2x32xf32>
    %37 = arith.addf %31, %36 : vector<2x32xf32>
    %c10 = arith.constant 10 : index
    %c0_32 = arith.constant 0 : index
    %38 = vector.load %arg9[%c10, %c0_32] : memref<32x256xf32, #tpu.memory_space<vmem>>, vector<2x256xf32>
    %39 = arith.truncf %38 : vector<2x256xf32> to vector<2x256xbf16>
    %c5 = arith.constant 5 : index
    %c0_33 = arith.constant 0 : index
    %c0_34 = arith.constant 0 : index
    %40 = vector.load %arg4[%c5, %c0_33, %c0_34] : memref<16x256x32xbf16, #tpu.memory_space<vmem>>, vector<1x256x32xbf16>
    %41 = vector.shape_cast %40 : vector<1x256x32xbf16> to vector<256x32xbf16>
    %cst_35 = arith.constant dense<0.000000e+00> : vector<2x32xf32>
    %42 = tpu.matmul %39, %41, %cst_35 {dimension_numbers = #tpu.dot_dimension_numbers<[1], [0], [0], [1], [0, 0, 1, 1], [], []>} : vector<2x256xbf16>, vector<256x32xbf16>, vector<2x32xf32> -> vector<2x32xf32>
    %43 = arith.addf %37, %42 : vector<2x32xf32>
    %c12 = arith.constant 12 : index
    %c0_36 = arith.constant 0 : index
    %44 = vector.load %arg9[%c12, %c0_36] : memref<32x256xf32, #tpu.memory_space<vmem>>, vector<2x256xf32>
    %45 = arith.truncf %44 : vector<2x256xf32> to vector<2x256xbf16>
    %c6_37 = arith.constant 6 : index
    %c0_38 = arith.constant 0 : index
    %c0_39 = arith.constant 0 : index
    %46 = vector.load %arg4[%c6_37, %c0_38, %c0_39] : memref<16x256x32xbf16, #tpu.memory_space<vmem>>, vector<1x256x32xbf16>
    %47 = vector.shape_cast %46 : vector<1x256x32xbf16> to vector<256x32xbf16>
    %cst_40 = arith.constant dense<0.000000e+00> : vector<2x32xf32>
    %48 = tpu.matmul %45, %47, %cst_40 {dimension_numbers = #tpu.dot_dimension_numbers<[1], [0], [0], [1], [0, 0, 1, 1], [], []>} : vector<2x256xbf16>, vector<256x32xbf16>, vector<2x32xf32> -> vector<2x32xf32>
    %49 = arith.addf %43, %48 : vector<2x32xf32>
    %c14 = arith.constant 14 : index
    %c0_41 = arith.constant 0 : index
    %50 = vector.load %arg9[%c14, %c0_41] : memref<32x256xf32, #tpu.memory_space<vmem>>, vector<2x256xf32>
    %51 = arith.truncf %50 : vector<2x256xf32> to vector<2x256xbf16>
    %c7 = arith.constant 7 : index
    %c0_42 = arith.constant 0 : index
    %c0_43 = arith.constant 0 : index
    %52 = vector.load %arg4[%c7, %c0_42, %c0_43] : memref<16x256x32xbf16, #tpu.memory_space<vmem>>, vector<1x256x32xbf16>
    %53 = vector.shape_cast %52 : vector<1x256x32xbf16> to vector<256x32xbf16>
    %cst_44 = arith.constant dense<0.000000e+00> : vector<2x32xf32>
    %54 = tpu.matmul %51, %53, %cst_44 {dimension_numbers = #tpu.dot_dimension_numbers<[1], [0], [0], [1], [0, 0, 1, 1], [], []>} : vector<2x256xbf16>, vector<256x32xbf16>, vector<2x32xf32> -> vector<2x32xf32>
    %55 = arith.addf %49, %54 : vector<2x32xf32>
    %c16 = arith.constant 16 : index
    %c0_45 = arith.constant 0 : index
    %56 = vector.load %arg9[%c16, %c0_45] : memref<32x256xf32, #tpu.memory_space<vmem>>, vector<2x256xf32>
    %57 = arith.truncf %56 : vector<2x256xf32> to vector<2x256xbf16>
    %c8_46 = arith.constant 8 : index
    %c0_47 = arith.constant 0 : index
    %c0_48 = arith.constant 0 : index
    %58 = vector.load %arg4[%c8_46, %c0_47, %c0_48] : memref<16x256x32xbf16, #tpu.memory_space<vmem>>, vector<1x256x32xbf16>
    %59 = vector.shape_cast %58 : vector<1x256x32xbf16> to vector<256x32xbf16>
    %cst_49 = arith.constant dense<0.000000e+00> : vector<2x32xf32>
    %60 = tpu.matmul %57, %59, %cst_49 {dimension_numbers = #tpu.dot_dimension_numbers<[1], [0], [0], [1], [0, 0, 1, 1], [], []>} : vector<2x256xbf16>, vector<256x32xbf16>, vector<2x32xf32> -> vector<2x32xf32>
    %61 = arith.addf %55, %60 : vector<2x32xf32>
    %c18 = arith.constant 18 : index
    %c0_50 = arith.constant 0 : index
    %62 = vector.load %arg9[%c18, %c0_50] : memref<32x256xf32, #tpu.memory_space<vmem>>, vector<2x256xf32>
    %63 = arith.truncf %62 : vector<2x256xf32> to vector<2x256xbf16>
    %c9 = arith.constant 9 : index
    %c0_51 = arith.constant 0 : index
    %c0_52 = arith.constant 0 : index
    %64 = vector.load %arg4[%c9, %c0_51, %c0_52] : memref<16x256x32xbf16, #tpu.memory_space<vmem>>, vector<1x256x32xbf16>
    %65 = vector.shape_cast %64 : vector<1x256x32xbf16> to vector<256x32xbf16>
    %cst_53 = arith.constant dense<0.000000e+00> : vector<2x32xf32>
    %66 = tpu.matmul %63, %65, %cst_53 {dimension_numbers = #tpu.dot_dimension_numbers<[1], [0], [0], [1], [0, 0, 1, 1], [], []>} : vector<2x256xbf16>, vector<256x32xbf16>, vector<2x32xf32> -> vector<2x32xf32>
    %67 = arith.addf %61, %66 : vector<2x32xf32>
    %c20 = arith.constant 20 : index
    %c0_54 = arith.constant 0 : index
    %68 = vector.load %arg9[%c20, %c0_54] : memref<32x256xf32, #tpu.memory_space<vmem>>, vector<2x256xf32>
    %69 = arith.truncf %68 : vector<2x256xf32> to vector<2x256xbf16>
    %c10_55 = arith.constant 10 : index
    %c0_56 = arith.constant 0 : index
    %c0_57 = arith.constant 0 : index
    %70 = vector.load %arg4[%c10_55, %c0_56, %c0_57] : memref<16x256x32xbf16, #tpu.memory_space<vmem>>, vector<1x256x32xbf16>
    %71 = vector.shape_cast %70 : vector<1x256x32xbf16> to vector<256x32xbf16>
    %cst_58 = arith.constant dense<0.000000e+00> : vector<2x32xf32>
    %72 = tpu.matmul %69, %71, %cst_58 {dimension_numbers = #tpu.dot_dimension_numbers<[1], [0], [0], [1], [0, 0, 1, 1], [], []>} : vector<2x256xbf16>, vector<256x32xbf16>, vector<2x32xf32> -> vector<2x32xf32>
    %73 = arith.addf %67, %72 : vector<2x32xf32>
    %c22 = arith.constant 22 : index
    %c0_59 = arith.constant 0 : index
    %74 = vector.load %arg9[%c22, %c0_59] : memref<32x256xf32, #tpu.memory_space<vmem>>, vector<2x256xf32>
    %75 = arith.truncf %74 : vector<2x256xf32> to vector<2x256xbf16>
    %c11 = arith.constant 11 : index
    %c0_60 = arith.constant 0 : index
    %c0_61 = arith.constant 0 : index
    %76 = vector.load %arg4[%c11, %c0_60, %c0_61] : memref<16x256x32xbf16, #tpu.memory_space<vmem>>, vector<1x256x32xbf16>
    %77 = vector.shape_cast %76 : vector<1x256x32xbf16> to vector<256x32xbf16>
    %cst_62 = arith.constant dense<0.000000e+00> : vector<2x32xf32>
    %78 = tpu.matmul %75, %77, %cst_62 {dimension_numbers = #tpu.dot_dimension_numbers<[1], [0], [0], [1], [0, 0, 1, 1], [], []>} : vector<2x256xbf16>, vector<256x32xbf16>, vector<2x32xf32> -> vector<2x32xf32>
    %79 = arith.addf %73, %78 : vector<2x32xf32>
    %c24 = arith.constant 24 : index
    %c0_63 = arith.constant 0 : index
    %80 = vector.load %arg9[%c24, %c0_63] : memref<32x256xf32, #tpu.memory_space<vmem>>, vector<2x256xf32>
    %81 = arith.truncf %80 : vector<2x256xf32> to vector<2x256xbf16>
    %c12_64 = arith.constant 12 : index
    %c0_65 = arith.constant 0 : index
    %c0_66 = arith.constant 0 : index
    %82 = vector.load %arg4[%c12_64, %c0_65, %c0_66] : memref<16x256x32xbf16, #tpu.memory_space<vmem>>, vector<1x256x32xbf16>
    %83 = vector.shape_cast %82 : vector<1x256x32xbf16> to vector<256x32xbf16>
    %cst_67 = arith.constant dense<0.000000e+00> : vector<2x32xf32>
    %84 = tpu.matmul %81, %83, %cst_67 {dimension_numbers = #tpu.dot_dimension_numbers<[1], [0], [0], [1], [0, 0, 1, 1], [], []>} : vector<2x256xbf16>, vector<256x32xbf16>, vector<2x32xf32> -> vector<2x32xf32>
    %85 = arith.addf %79, %84 : vector<2x32xf32>
    %c26 = arith.constant 26 : index
    %c0_68 = arith.constant 0 : index
    %86 = vector.load %arg9[%c26, %c0_68] : memref<32x256xf32, #tpu.memory_space<vmem>>, vector<2x256xf32>
    %87 = arith.truncf %86 : vector<2x256xf32> to vector<2x256xbf16>
    %c13 = arith.constant 13 : index
    %c0_69 = arith.constant 0 : index
    %c0_70 = arith.constant 0 : index
    %88 = vector.load %arg4[%c13, %c0_69, %c0_70] : memref<16x256x32xbf16, #tpu.memory_space<vmem>>, vector<1x256x32xbf16>
    %89 = vector.shape_cast %88 : vector<1x256x32xbf16> to vector<256x32xbf16>
    %cst_71 = arith.constant dense<0.000000e+00> : vector<2x32xf32>
    %90 = tpu.matmul %87, %89, %cst_71 {dimension_numbers = #tpu.dot_dimension_numbers<[1], [0], [0], [1], [0, 0, 1, 1], [], []>} : vector<2x256xbf16>, vector<256x32xbf16>, vector<2x32xf32> -> vector<2x32xf32>
    %91 = arith.addf %85, %90 : vector<2x32xf32>
    %c28 = arith.constant 28 : index
    %c0_72 = arith.constant 0 : index
    %92 = vector.load %arg9[%c28, %c0_72] : memref<32x256xf32, #tpu.memory_space<vmem>>, vector<2x256xf32>
    %93 = arith.truncf %92 : vector<2x256xf32> to vector<2x256xbf16>
    %c14_73 = arith.constant 14 : index
    %c0_74 = arith.constant 0 : index
    %c0_75 = arith.constant 0 : index
    %94 = vector.load %arg4[%c14_73, %c0_74, %c0_75] : memref<16x256x32xbf16, #tpu.memory_space<vmem>>, vector<1x256x32xbf16>
    %95 = vector.shape_cast %94 : vector<1x256x32xbf16> to vector<256x32xbf16>
    %cst_76 = arith.constant dense<0.000000e+00> : vector<2x32xf32>
    %96 = tpu.matmul %93, %95, %cst_76 {dimension_numbers = #tpu.dot_dimension_numbers<[1], [0], [0], [1], [0, 0, 1, 1], [], []>} : vector<2x256xbf16>, vector<256x32xbf16>, vector<2x32xf32> -> vector<2x32xf32>
    %97 = arith.addf %91, %96 : vector<2x32xf32>
    %c30 = arith.constant 30 : index
    %c0_77 = arith.constant 0 : index
    %98 = vector.load %arg9[%c30, %c0_77] : memref<32x256xf32, #tpu.memory_space<vmem>>, vector<2x256xf32>
    %99 = arith.truncf %98 : vector<2x256xf32> to vector<2x256xbf16>
    %c15 = arith.constant 15 : index
    %c0_78 = arith.constant 0 : index
    %c0_79 = arith.constant 0 : index
    %100 = vector.load %arg4[%c15, %c0_78, %c0_79] : memref<16x256x32xbf16, #tpu.memory_space<vmem>>, vector<1x256x32xbf16>
    %101 = vector.shape_cast %100 : vector<1x256x32xbf16> to vector<256x32xbf16>
    %cst_80 = arith.constant dense<0.000000e+00> : vector<2x32xf32>
    %102 = tpu.matmul %99, %101, %cst_80 {dimension_numbers = #tpu.dot_dimension_numbers<[1], [0], [0], [1], [0, 0, 1, 1], [], []>} : vector<2x256xbf16>, vector<256x32xbf16>, vector<2x32xf32> -> vector<2x32xf32>
    %103 = arith.addf %97, %102 : vector<2x32xf32>
    %c0_81 = arith.constant 0 : index
    %c0_82 = arith.constant 0 : index
    %104 = vector.load %arg5[%c0_81, %c0_82] : memref<1x32xf32, #tpu.memory_space<vmem>>, vector<1x32xf32>
    %105 = vector.broadcast %104 : vector<1x32xf32> to vector<2x32xf32>
    %106 = arith.addf %103, %105 : vector<2x32xf32>
    %107 = arith.truncf %106 : vector<2x32xf32> to vector<2x32xbf16>
    %c0_83 = arith.constant 0 : index
    %c0_84 = arith.constant 0 : index
    %108 = vector.load %arg6[%c0_83, %c0_84] : memref<32x64xbf16, #tpu.memory_space<vmem>>, vector<32x64xbf16>
    %cst_85 = arith.constant dense<0.000000e+00> : vector<2x64xf32>
    %109 = tpu.matmul %107, %108, %cst_85 {dimension_numbers = #tpu.dot_dimension_numbers<[1], [0], [0], [1], [0, 0, 1, 1], [], []>} : vector<2x32xbf16>, vector<32x64xbf16>, vector<2x64xf32> -> vector<2x64xf32>
    %c0_86 = arith.constant 0 : index
    %c0_87 = arith.constant 0 : index
    %110 = vector.load %arg7[%c0_86, %c0_87] : memref<1x64xf32, #tpu.memory_space<vmem>>, vector<1x64xf32>
    %111 = vector.broadcast %110 : vector<1x64xf32> to vector<2x64xf32>
    %112 = arith.addf %109, %111 : vector<2x64xf32>
    %c0_88 = arith.constant 0 : index
    %c0_89 = arith.constant 0 : index
    %113 = vector.load %arg8[%c0_88, %c0_89] : memref<2x64xf32, #tpu.memory_space<vmem>>, vector<2x64xf32>
    tpu.vector_store %arg8[%c0_88, %c0_89], %112 {strides = array<i32>} : memref<2x64xf32, #tpu.memory_space<vmem>>, vector<2x64xf32>,
    return
  }
  func.func @transform_0(%arg0: i32) -> (i32, i32) {
    %c0_i32 = arith.constant 0 : i32
    %c0_i32_0 = arith.constant 0 : i32
    %c0_i32_1 = arith.constant 0 : i32
    return %c0_i32, %c0_i32_0 : i32, i32
  }
  func.func @transform_1(%arg0: i32) -> (i32, i32) {
    %c0_i32 = arith.constant 0 : i32
    %c0_i32_0 = arith.constant 0 : i32
    %c0_i32_1 = arith.constant 0 : i32
    return %c0_i32, %c0_i32_0 : i32, i32
  }
  func.func @transform_2(%arg0: i32) -> (i32, i32) {
    %c0_i32 = arith.constant 0 : i32
    %c0_i32_0 = arith.constant 0 : i32
    %c0_i32_1 = arith.constant 0 : i32
    return %c0_i32, %c0_i32_0 : i32, i32
  }
  func.func @transform_3(%arg0: i32) -> (i32, i32, i32) {
    %c0_i32 = arith.constant 0 : i32
    %c0_i32_0 = arith.constant 0 : i32
    %c0_i32_1 = arith.constant 0 : i32
    %c0_i32_2 = arith.constant 0 : i32
    return %c0_i32, %c0_i32_0, %c0_i32_1 : i32, i32, i32
  }
  func.func @transform_4(%arg0: i32) -> (i32, i32) {
    %c0_i32 = arith.constant 0 : i32
    %c0_i32_0 = arith.constant 0 : i32
    %c0_i32_1 = arith.constant 0 : i32
    return %c0_i32, %c0_i32_0 : i32, i32
  }
  func.func @transform_5(%arg0: i32) -> (i32, i32) {
    %c0_i32 = arith.constant 0 : i32
    %c0_i32_0 = arith.constant 0 : i32
    %c0_i32_1 = arith.constant 0 : i32
    return %c0_i32, %c0_i32_0 : i32, i32
  }
  func.func @transform_6(%arg0: i32) -> (i32, i32) {
    %c0_i32 = arith.constant 0 : i32
    %c0_i32_0 = arith.constant 0 : i32
    %c0_i32_1 = arith.constant 0 : i32
    return %c0_i32, %c0_i32_0 : i32, i32
  }
  func.func @transform_7(%arg0: i32) -> (i32, i32) {
    %c0_i32 = arith.constant 0 : i32
    %c0_i32_0 = arith.constant 0 : i32
    %c0_i32_1 = arith.constant 0 : i32
    return %c0_i32, %c0_i32_0 : i32, i32
  }
}

</mosaic_0001>

<llo_original>
// kernel: vae_encoder_forward.4
$region0: #{vae_encoder_forward.4}
  #allocation0 [shape = 'u32[]', space=smem, size = 0x4, offset = 0x4, fixed_abs, tag = 'smem constant byte address 0x4 - core index']
  #allocation1 [shape = 'u32[72,128]{1,0:T(1,128)}', space=vmem, size = 0x9000, scoped, tag = 'internal scratch']
  %s0 = inlined_call_operand.vmem [shape: bf16[2048,27], index: 0, kind: input, shape index: {}]
  %s1 = inlined_call_operand.vmem [shape: bf16[27,32], index: 1, kind: input, shape index: {}]
  %s2 = inlined_call_operand.vmem [shape: f32[1,32], index: 2, kind: input, shape index: {}]
  %s3 = inlined_call_operand.vmem [shape: bf16[2048,32], index: 3, kind: output, shape index: {}]
  %s4 = sld [smem:[#allocation0]]
  $region45: #{vae_encoder_forward.4} parent=0
    _
  %s6 = ssub.s32 1, %s4
  %s7 = scalar_select 0, %s6, %s4
  loop: start=0, step=1, limit=4
  $region2: #{vae_encoder_forward.4} parent=0 // loop_pre_header
    _
  $region3: #{vae_encoder_forward.4} parent=0 // loop_header
    %s9 = sphi 0, %s13
    %p10 = scmp.ge.s32.totalorder %s9, 4
    %s19 = sphi 0, %s21
    %s22 = sphi 0, %s19
    %s23 = sphi 0, %s22
    %s39 = sphi 0, %s23
    %s43 = sphi 0, %s43
    %s45 = sphi 0, %s43
    %s46 = sphi 0, %s45
    %s60 = sphi 0, %s46
    %s64 = sphi 0, %s64
    %s66 = sphi 0, %s64
    %s67 = sphi 0, %s66
    %s81 = sphi 0, %s67
    %s87 = sphi 0, %s89
    %s90 = sphi 0, %s87
    %s91 = sphi 0, %s90
    %s107 = sphi 0, %s91
  $region4: #{vae_encoder_forward.4} parent=0 // loop_header_branch
    %12 = sbr.rel (%p10) target = $region8
  $region5: #{vae_encoder_forward.4} parent=0 // loop_body
    %s14 = ssub.s32 %s9, 1
    %s15 = ssub.s32 %s9, 2
    %s16 = sadd.s32 %s9, 1
    %s17 = ssub.s32 %s9, %s16
    %p18 = scmp.eq.s32.totalorder %s17, 0
    %s20 = sadd.s32 %s19, 1
    %s21 = scalar_select %p18, %s19, %s20
    %p24 = pneg %p18
    %p25 = scmp.eq.s32.totalorder %s9, 1
    %p26 = por %p24, %p25
    %p27 = scmp.ne.s32.totalorder %s19, %s22
    %p28 = scmp.eq.s32.totalorder %s9, 0
    %p29 = por %p27, %p28
    %p30 = scmp.ne.s32.totalorder %s19, %s22
    %p31 = scmp.eq.s32.totalorder %s14, 1
    %p32 = por %p30, %p31
    %p33 = scmp.ne.s32.totalorder %s22, %s23
    %p34 = scmp.eq.s32.totalorder %s14, 0
    %p35 = por %p33, %p34
    %p36 = scmp.ne.s32.totalorder %s22, %s23
    %p37 = scmp.eq.s32.totalorder %s15, 1
    %p38 = por %p36, %p37
    %p40 = scmp.ne.s32.totalorder %s23, %s39
    %p41 = scmp.eq.s32.totalorder %s15, 0
    %p42 = por %p40, %p41
    %s44 = sadd.s32 %s43, 1
    %p47 = scmp.eq.s32.totalorder %s9, 1
    %p48 = scmp.ne.s32.totalorder %s43, %s45
    %p49 = scmp.eq.s32.totalorder %s9, 0
    %p50 = por %p48, %p49
    %p51 = scmp.ne.s32.totalorder %s43, %s45
    %p52 = scmp.eq.s32.totalorder %s14, 1
    %p53 = por %p51, %p52
    %p54 = scmp.ne.s32.totalorder %s45, %s46
    %p55 = scmp.eq.s32.totalorder %s14, 0
    %p56 = por %p54, %p55
    %p57 = scmp.ne.s32.totalorder %s45, %s46
    %p58 = scmp.eq.s32.totalorder %s15, 1
    %p59 = por %p57, %p58
    %p61 = scmp.ne.s32.totalorder %s46, %s60
    %p62 = scmp.eq.s32.totalorder %s15, 0
    %p63 = por %p61, %p62
    %s65 = sadd.s32 %s64, 1
    %p68 = scmp.eq.s32.totalorder %s9, 1
    %p69 = scmp.ne.s32.totalorder %s64, %s66
    %p70 = scmp.eq.s32.totalorder %s9, 0
    %p71 = por %p69, %p70
    %p72 = scmp.ne.s32.totalorder %s64, %s66
    %p73 = scmp.eq.s32.totalorder %s14, 1
    %p74 = por %p72, %p73
    %p75 = scmp.ne.s32.totalorder %s66, %s67
    %p76 = scmp.eq.s32.totalorder %s14, 0
    %p77 = por %p75, %p76
    %p78 = scmp.ne.s32.totalorder %s66, %s67
    %p79 = scmp.eq.s32.totalorder %s15, 1
    %p80 = por %p78, %p79
    %p82 = scmp.ne.s32.totalorder %s67, %s81
    %p83 = scmp.eq.s32.totalorder %s15, 0
    %p84 = por %p82, %p83
    %s85 = ssub.s32 %s9, %s16
    %p86 = scmp.eq.s32.totalorder %s85, 0
    %s88 = sadd.s32 %s87, 1
    %s89 = scalar_select %p86, %s87, %s88
    %p92 = pneg %p86
    %p93 = scmp.eq.s32.totalorder %s9, 1
    %p94 = por %p92, %p93
    %p95 = scmp.ne.s32.totalorder %s87, %s90
    %p96 = scmp.eq.s32.totalorder %s9, 0
    %p97 = por %p95, %p96
    %p98 = scmp.ne.s32.totalorder %s87, %s90
    %p99 = scmp.eq.s32.totalorder %s14, 1
    %p100 = por %p98, %p99
    %p101 = scmp.ne.s32.totalorder %s90, %s91
    %p102 = scmp.eq.s32.totalorder %s14, 0
    %p103 = por %p101, %p102
    %p104 = scmp.ne.s32.totalorder %s90, %s91
    %p105 = scmp.eq.s32.totalorder %s15, 1
    %p106 = por %p104, %p105
    %p108 = scmp.ne.s32.totalorder %s91, %s107
    %p109 = scmp.eq.s32.totalorder %s15, 0
    %p110 = por %p108, %p109
    %p111 = scmp.le.s32.totalorder 1, %s9
    %p112 = scmp.lt.s32.totalorder %s9, 3
    %p113 = pnand %p111, %p112
    %p114 = pneg %p113
    // Predicated region
    $region9: #{vae_encoder_forward.4} parent=5 // pred_check
      _
    $region10: #{vae_encoder_forward.4} parent=5 // pred_check_branch
      %116 = sbr.rel (%p113) target = $region12
    $region11: #{vae_encoder_forward.4} parent=5 // pred_region
      %s117 = ssub.s32 %s9, 1
      // Predicated region
      $region13: #{vae_encoder_forward.4} parent=11 // pred_check
        %p118 = pneg %p56
      $region14: #{vae_encoder_forward.4} parent=11 // pred_check_branch
        %120 = sbr.rel (%p118) target = $region16
      $region15: #{vae_encoder_forward.4} parent=11 // pred_region
        _
      $region16: #{vae_encoder_forward.4} parent=11 // pred_fallthru
        _
      // Predicated region
      $region17: #{vae_encoder_forward.4} parent=11 // pred_check
        %p121 = pneg %p77
      $region18: #{vae_encoder_forward.4} parent=11 // pred_check_branch
        %123 = sbr.rel (%p121) target = $region20
      $region19: #{vae_encoder_forward.4} parent=11 // pred_region
        _
      $region20: #{vae_encoder_forward.4} parent=11 // pred_fallthru
        _
    $region12: #{vae_encoder_forward.4} parent=5 // pred_fallthru
      _
    %p124 = scmp.lt.s32.totalorder %s9, 2
    // Predicated region
    $region21: #{vae_encoder_forward.4} parent=5 // pred_check
      %p125 = pneg %p124
    $region22: #{vae_encoder_forward.4} parent=5 // pred_check_branch
      %127 = sbr.rel (%p125) target = $region24
    $region23: #{vae_encoder_forward.4} parent=5 // pred_region
      // Predicated region
      $region25: #{vae_encoder_forward.4} parent=23 // pred_check
        %p128 = pneg %p29
      $region26: #{vae_encoder_forward.4} parent=23 // pred_check_branch
        %130 = sbr.rel (%p128) target = $region28
      $region27: #{vae_encoder_forward.4} parent=23 // pred_region
        %s131 = smul.u32 128, %s9
        %p132 = scmp.lt.s32.totalorder %s131, 255
        %s133 = scalar_select %p132, %s131, 255
        %s134 = smul.addr %s133, 4
        %s135 = scalar_lea.vmem %s0, %s134
        %s136 = smul.u32 128, %s9
      $region28: #{vae_encoder_forward.4} parent=23 // pred_fallthru
        _
    $region24: #{vae_encoder_forward.4} parent=5 // pred_fallthru
      _
    %p137 = scmp.le.s32.totalorder 1, %s9
    %p138 = scmp.lt.s32.totalorder %s9, 3
    %p139 = pnand %p137, %p138
    %p140 = pneg %p139
    // Predicated region
    $region29: #{vae_encoder_forward.4} parent=5 // pred_check
      _
    $region30: #{vae_encoder_forward.4} parent=5 // pred_check_branch
      %142 = sbr.rel (%p139) target = $region32
    $region31: #{vae_encoder_forward.4} parent=5 // pred_region
      %s143 = ssub.s32 %s9, 1
      %s144 = smul.u32 128, %s14
      %p145 = scmp.lt.s32.totalorder %s144, 255
      %s146 = scalar_select %p145, %s144, 255
      %s147 = smul.addr %s146, 4
      %s148 = scalar_lea.vmem %s0, %s147
      %p149 = pneg %p35
      %p150 = pneg %p32
      %p151 = pneg %p56
      %p152 = pneg %p53
      %p153 = pneg %p77
      %p154 = pneg %p74
      %p155 = pneg %p103
      %p156 = pneg %p100
      %s157 = smul.u32 128, %s14
      %p158 = scmp.lt.s32.totalorder %s157, 255
      %s159 = scalar_select %p158, %s157, 255
      %s160 = smul.addr %s159, 4
      %s161 = scalar_lea.vmem %s3, %s160
      %s162 = smul.u32 128, %s14
      %p163 = scmp.lt.s32.totalorder %s162, 255
      %s164 = scalar_select %p163, %s162, 255
      %s165 = smul.addr %s164, 4
      %s166 = scalar_lea.vmem %s0, %s165
      %s167 = smul.u32 128, %s14
      %s168 = smul.u32 128, %s14
      %p169 = scmp.lt.s32.totalorder %s168, 255
      %s170 = scalar_select %p169, %s168, 255
      %s171 = smul.addr %s170, 4
      %s172 = scalar_lea.vmem %s3, %s171
      %s173 = smul.u32 128, %s14
      %v175 = vld [vmem:[%s166] sm:$0xf]
      %v176 = vld [vmem:[%s166 + $0x4] sm:$0xf]
      %v177 = vld [vmem:[%s166 + $0x8] sm:$0xf]
      %v178 = vld [vmem:[%s166 + $0xc] sm:$0xf]
      %v179 = vld [vmem:[%s166 + $0x10] sm:$0xf]
      %v180 = vld [vmem:[%s166 + $0x14] sm:$0xf]
      %v181 = vld [vmem:[%s166 + $0x18] sm:$0xf]
      %v182 = vld [vmem:[%s166 + $0x1c] sm:$0xf]
      %v183 = vld [vmem:[%s166 + $0x20] sm:$0xf]
      %v184 = vld [vmem:[%s166 + $0x24] sm:$0xf]
      %v185 = vld [vmem:[%s166 + $0x28] sm:$0xf]
      %v186 = vld [vmem:[%s166 + $0x2c] sm:$0xf]
      %v187 = vld [vmem:[%s166 + $0x30] sm:$0xf]
      %v188 = vld [vmem:[%s166 + $0x34] sm:$0xf]
      %v189 = vld [vmem:[%s166 + $0x38] sm:$0xf]
      %v190 = vld [vmem:[%s166 + $0x3c] sm:$0xf]
      %v191 = vld [vmem:[%s166 + $0x40] sm:$0xf]
      %v192 = vld [vmem:[%s166 + $0x44] sm:$0xf]
      %v193 = vld [vmem:[%s166 + $0x48] sm:$0xf]
      %v194 = vld [vmem:[%s166 + $0x4c] sm:$0xf]
      %v195 = vld [vmem:[%s166 + $0x50] sm:$0xf]
      %v196 = vld [vmem:[%s166 + $0x54] sm:$0xf]
      %v197 = vld [vmem:[%s166 + $0x58] sm:$0xf]
      %v198 = vld [vmem:[%s166 + $0x5c] sm:$0xf]
      %v199 = vld [vmem:[%s166 + $0x60] sm:$0xf]
      %v200 = vld [vmem:[%s166 + $0x64] sm:$0xf]
      %v201 = vld [vmem:[%s166 + $0x68] sm:$0xf]
      %v202 = vld [vmem:[%s166 + $0x6c] sm:$0xf]
      %v203 = vld [vmem:[%s166 + $0x70] sm:$0xf]
      %v204 = vld [vmem:[%s166 + $0x74] sm:$0xf]
      %v205 = vld [vmem:[%s166 + $0x78] sm:$0xf]
      %v206 = vld [vmem:[%s166 + $0x7c] sm:$0xf]
      %v207 = vld [vmem:[%s166 + $0x80] sm:$0xf]
      %v208 = vld [vmem:[%s166 + $0x84] sm:$0xf]
      %v209 = vld [vmem:[%s166 + $0x88] sm:$0xf]
      %v210 = vld [vmem:[%s166 + $0x8c] sm:$0xf]
      %v211 = vld [vmem:[%s166 + $0x90] sm:$0xf]
      %v212 = vld [vmem:[%s166 + $0x94] sm:$0xf]
      %v213 = vld [vmem:[%s166 + $0x98] sm:$0xf]
      %v214 = vld [vmem:[%s166 + $0x9c] sm:$0xf]
      %v215 = vld [vmem:[%s166 + $0xa0] sm:$0xf]
      %v216 = vld [vmem:[%s166 + $0xa4] sm:$0xf]
      %v217 = vld [vmem:[%s166 + $0xa8] sm:$0xf]
      %v218 = vld [vmem:[%s166 + $0xac] sm:$0xf]
      %v219 = vld [vmem:[%s166 + $0xb0] sm:$0xf]
      %v220 = vld [vmem:[%s166 + $0xb4] sm:$0xf]
      %v221 = vld [vmem:[%s166 + $0xb8] sm:$0xf]
      %v222 = vld [vmem:[%s166 + $0xbc] sm:$0xf]
      %v223 = vld [vmem:[%s166 + $0xc0] sm:$0xf]
      %v224 = vld [vmem:[%s166 + $0xc4] sm:$0xf]
      %v225 = vld [vmem:[%s166 + $0xc8] sm:$0xf]
      %v226 = vld [vmem:[%s166 + $0xcc] sm:$0xf]
      %v227 = vld [vmem:[%s166 + $0xd0] sm:$0xf]
      %v228 = vld [vmem:[%s166 + $0xd4] sm:$0xf]
      %v229 = vld [vmem:[%s166 + $0xd8] sm:$0xf]
      %v230 = vld [vmem:[%s166 + $0xdc] sm:$0xf]
      %v231 = vld [vmem:[%s166 + $0xe0] sm:$0xf]
      %v232 = vld [vmem:[%s166 + $0xe4] sm:$0xf]
      %v233 = vld [vmem:[%s166 + $0xe8] sm:$0xf]
      %v234 = vld [vmem:[%s166 + $0xec] sm:$0xf]
      %v235 = vld [vmem:[%s166 + $0xf0] sm:$0xf]
      %v236 = vld [vmem:[%s166 + $0xf4] sm:$0xf]
      %v237 = vld [vmem:[%s166 + $0xf8] sm:$0xf]
      %v238 = vld [vmem:[%s166 + $0xfc] sm:$0xf]
      %v239 = vld [vmem:[%s166 + $0x100] sm:$0xf]
      %v240 = vld [vmem:[%s166 + $0x104] sm:$0xf]
      %v241 = vld [vmem:[%s166 + $0x108] sm:$0xf]
      %v242 = vld [vmem:[%s166 + $0x10c] sm:$0xf]
      %v243 = vld [vmem:[%s166 + $0x110] sm:$0xf]
      %v244 = vld [vmem:[%s166 + $0x114] sm:$0xf]
      %v245 = vld [vmem:[%s166 + $0x118] sm:$0xf]
      %v246 = vld [vmem:[%s166 + $0x11c] sm:$0xf]
      %v247 = vld [vmem:[%s166 + $0x120] sm:$0xf]
      %v248 = vld [vmem:[%s166 + $0x124] sm:$0xf]
      %v249 = vld [vmem:[%s166 + $0x128] sm:$0xf]
      %v250 = vld [vmem:[%s166 + $0x12c] sm:$0xf]
      %v251 = vld [vmem:[%s166 + $0x130] sm:$0xf]
      %v252 = vld [vmem:[%s166 + $0x134] sm:$0xf]
      %v253 = vld [vmem:[%s166 + $0x138] sm:$0xf]
      %v254 = vld [vmem:[%s166 + $0x13c] sm:$0xf]
      %v255 = vld [vmem:[%s166 + $0x140] sm:$0xf]
      %v256 = vld [vmem:[%s166 + $0x144] sm:$0xf]
      %v257 = vld [vmem:[%s166 + $0x148] sm:$0xf]
      %v258 = vld [vmem:[%s166 + $0x14c] sm:$0xf]
      %v259 = vld [vmem:[%s166 + $0x150] sm:$0xf]
      %v260 = vld [vmem:[%s166 + $0x154] sm:$0xf]
      %v261 = vld [vmem:[%s166 + $0x158] sm:$0xf]
      %v262 = vld [vmem:[%s166 + $0x15c] sm:$0xf]
      %v263 = vld [vmem:[%s166 + $0x160] sm:$0xf]
      %v264 = vld [vmem:[%s166 + $0x164] sm:$0xf]
      %v265 = vld [vmem:[%s166 + $0x168] sm:$0xf]
      %v266 = vld [vmem:[%s166 + $0x16c] sm:$0xf]
      %v267 = vld [vmem:[%s166 + $0x170] sm:$0xf]
      %v268 = vld [vmem:[%s166 + $0x174] sm:$0xf]
      %v269 = vld [vmem:[%s166 + $0x178] sm:$0xf]
      %v270 = vld [vmem:[%s166 + $0x17c] sm:$0xf]
      %v271 = vld [vmem:[%s166 + $0x180] sm:$0xf]
      %v272 = vld [vmem:[%s166 + $0x184] sm:$0xf]
      %v273 = vld [vmem:[%s166 + $0x188] sm:$0xf]
      %v274 = vld [vmem:[%s166 + $0x18c] sm:$0xf]
      %v275 = vld [vmem:[%s166 + $0x190] sm:$0xf]
      %v276 = vld [vmem:[%s166 + $0x194] sm:$0xf]
      %v277 = vld [vmem:[%s166 + $0x198] sm:$0xf]
      %v278 = vld [vmem:[%s166 + $0x19c] sm:$0xf]
      %v279 = vld [vmem:[%s166 + $0x1a0] sm:$0xf]
      %v280 = vld [vmem:[%s166 + $0x1a4] sm:$0xf]
      %v281 = vld [vmem:[%s166 + $0x1a8] sm:$0xf]
      %v282 = vld [vmem:[%s166 + $0x1ac] sm:$0xf]
      %v283 = vld [vmem:[%s166 + $0x1b0] sm:$0xf]
      %v284 = vld [vmem:[%s166 + $0x1b4] sm:$0xf]
      %v285 = vld [vmem:[%s166 + $0x1b8] sm:$0xf]
      %v286 = vld [vmem:[%s166 + $0x1bc] sm:$0xf]
      %v287 = vld [vmem:[%s166 + $0x1c0] sm:$0xf]
      %v288 = vld [vmem:[%s166 + $0x1c4] sm:$0xf]
      %v289 = vld [vmem:[%s166 + $0x1c8] sm:$0xf]
      %v290 = vld [vmem:[%s166 + $0x1cc] sm:$0xf]
      %v291 = vld [vmem:[%s166 + $0x1d0] sm:$0xf]
      %v292 = vld [vmem:[%s166 + $0x1d4] sm:$0xf]
      %v293 = vld [vmem:[%s166 + $0x1d8] sm:$0xf]
      %v294 = vld [vmem:[%s166 + $0x1dc] sm:$0xf]
      %v295 = vld [vmem:[%s166 + $0x1e0] sm:$0xf]
      %v296 = vld [vmem:[%s166 + $0x1e4] sm:$0xf]
      %v297 = vld [vmem:[%s166 + $0x1e8] sm:$0xf]
      %v298 = vld [vmem:[%s166 + $0x1ec] sm:$0xf]
      %v299 = vld [vmem:[%s166 + $0x1f0] sm:$0xf]
      %v300 = vld [vmem:[%s166 + $0x1f4] sm:$0xf]
      %v301 = vld [vmem:[%s166 + $0x1f8] sm:$0xf]
      %v302 = vld [vmem:[%s166 + $0x1fc] sm:$0xf]
      %v303 = vld [vmem:[%s1] sm:$0xf]
      %v304 = vld [vmem:[%s1 + $0x4] sm:$0xf]
      %v305 = vld [vmem:[%s1 + $0x8] sm:$0xf]
      %v306 = vld [vmem:[%s1 + $0xc] sm:$0x3]
      %v307 = vld [vmem:[%s2] sm:$0x1]
      %v309 = vperm.slane %v307, 0
      %v439 = vunpack.c.l.b16 %v175
      %v440 = vunpack.c.l.b16 %v176
      %v441 = vunpack.c.l.b16 %v177
      %v442 = vunpack.c.l.b16 %v178
      %v443 = vunpack.c.l.b16 %v179
      %v444 = vunpack.c.l.b16 %v180
      %v445 = vunpack.c.l.b16 %v181
      %v446 = vunpack.c.l.b16 %v182
      %v447 = vunpack.c.l.b16 %v183
      %v448 = vunpack.c.l.b16 %v184
      %v449 = vunpack.c.l.b16 %v185
      %v450 = vunpack.c.l.b16 %v186
      %v451 = vunpack.c.l.b16 %v187
      %v452 = vunpack.c.l.b16 %v188
      %v453 = vunpack.c.l.b16 %v189
      %v454 = vunpack.c.l.b16 %v190
      %v455 = vunpack.c.l.b16 %v191
      %v456 = vunpack.c.l.b16 %v192
      %v457 = vunpack.c.l.b16 %v193
      %v458 = vunpack.c.l.b16 %v194
      %v459 = vunpack.c.l.b16 %v195
      %v460 = vunpack.c.l.b16 %v196
      %v461 = vunpack.c.l.b16 %v197
      %v462 = vunpack.c.l.b16 %v198
      %v463 = vunpack.c.l.b16 %v199
      %v464 = vunpack.c.l.b16 %v200
      %v465 = vunpack.c.l.b16 %v201
      %v466 = vunpack.c.l.b16 %v202
      %v467 = vunpack.c.l.b16 %v203
      %v468 = vunpack.c.l.b16 %v204
      %v469 = vunpack.c.l.b16 %v205
      %v470 = vunpack.c.l.b16 %v206
      %v471 = vunpack.c.l.b16 %v207
      %v472 = vunpack.c.l.b16 %v208
      %v473 = vunpack.c.l.b16 %v209
      %v474 = vunpack.c.l.b16 %v210
      %v475 = vunpack.c.l.b16 %v211
      %v476 = vunpack.c.l.b16 %v212
      %v477 = vunpack.c.l.b16 %v213
      %v478 = vunpack.c.l.b16 %v214
      %v479 = vunpack.c.l.b16 %v215
      %v480 = vunpack.c.l.b16 %v216
      %v481 = vunpack.c.l.b16 %v217
      %v482 = vunpack.c.l.b16 %v218
      %v483 = vunpack.c.l.b16 %v219
      %v484 = vunpack.c.l.b16 %v220
      %v485 = vunpack.c.l.b16 %v221
      %v486 = vunpack.c.l.b16 %v222
      %v487 = vunpack.c.l.b16 %v223
      %v488 = vunpack.c.l.b16 %v224
      %v489 = vunpack.c.l.b16 %v225
      %v490 = vunpack.c.l.b16 %v226
      %v491 = vunpack.c.l.b16 %v227
      %v492 = vunpack.c.l.b16 %v228
      %v493 = vunpack.c.l.b16 %v229
      %v494 = vunpack.c.l.b16 %v230
      %v495 = vunpack.c.l.b16 %v231
      %v496 = vunpack.c.l.b16 %v232
      %v497 = vunpack.c.l.b16 %v233
      %v498 = vunpack.c.l.b16 %v234
      %v499 = vunpack.c.l.b16 %v235
      %v500 = vunpack.c.l.b16 %v236
      %v501 = vunpack.c.l.b16 %v237
      %v502 = vunpack.c.l.b16 %v238
      %v503 = vunpack.c.l.b16 %v239
      %v504 = vunpack.c.l.b16 %v240
      %v505 = vunpack.c.l.b16 %v241
      %v506 = vunpack.c.l.b16 %v242
      %v507 = vunpack.c.l.b16 %v243
      %v508 = vunpack.c.l.b16 %v244
      %v509 = vunpack.c.l.b16 %v245
      %v510 = vunpack.c.l.b16 %v246
      %v511 = vunpack.c.l.b16 %v247
      %v512 = vunpack.c.l.b16 %v248
      %v513 = vunpack.c.l.b16 %v249
      %v514 = vunpack.c.l.b16 %v250
      %v515 = vunpack.c.l.b16 %v251
      %v516 = vunpack.c.l.b16 %v252
      %v517 = vunpack.c.l.b16 %v253
      %v518 = vunpack.c.l.b16 %v254
      %v519 = vunpack.c.l.b16 %v255
      %v520 = vunpack.c.l.b16 %v256
      %v521 = vunpack.c.l.b16 %v257
      %v522 = vunpack.c.l.b16 %v258
      %v523 = vunpack.c.l.b16 %v259
      %v524 = vunpack.c.l.b16 %v260
      %v525 = vunpack.c.l.b16 %v261
      %v526 = vunpack.c.l.b16 %v262
      %v527 = vunpack.c.l.b16 %v263
      %v528 = vunpack.c.l.b16 %v264
      %v529 = vunpack.c.l.b16 %v265
      %v530 = vunpack.c.l.b16 %v266
      %v531 = vunpack.c.l.b16 %v267
      %v532 = vunpack.c.l.b16 %v268
      %v533 = vunpack.c.l.b16 %v269
      %v534 = vunpack.c.l.b16 %v270
      %v535 = vunpack.c.l.b16 %v271
      %v536 = vunpack.c.l.b16 %v272
      %v537 = vunpack.c.l.b16 %v273
      %v538 = vunpack.c.l.b16 %v274
      %v539 = vunpack.c.l.b16 %v275
      %v540 = vunpack.c.l.b16 %v276
      %v541 = vunpack.c.l.b16 %v277
      %v542 = vunpack.c.l.b16 %v278
      %v543 = vunpack.c.l.b16 %v279
      %v544 = vunpack.c.l.b16 %v280
      %v545 = vunpack.c.l.b16 %v281
      %v546 = vunpack.c.l.b16 %v282
      %v547 = vunpack.c.l.b16 %v283
      %v548 = vunpack.c.l.b16 %v284
      %v549 = vunpack.c.l.b16 %v285
      %v550 = vunpack.c.l.b16 %v286
      %v551 = vunpack.c.l.b16 %v287
      %v552 = vunpack.c.l.b16 %v288
      %v553 = vunpack.c.l.b16 %v289
      %v554 = vunpack.c.l.b16 %v290
      %v555 = vunpack.c.l.b16 %v291
      %v556 = vunpack.c.l.b16 %v292
      %v557 = vunpack.c.l.b16 %v293
      %v558 = vunpack.c.l.b16 %v294
      %v559 = vunpack.c.l.b16 %v295
      %v560 = vunpack.c.l.b16 %v296
      %v561 = vunpack.c.l.b16 %v297
      %v562 = vunpack.c.l.b16 %v298
      %v563 = vunpack.c.l.b16 %v299
      %v564 = vunpack.c.l.b16 %v300
      %v565 = vunpack.c.l.b16 %v301
      %v566 = vunpack.c.l.b16 %v302
      %v567 = vpack.c.b16 %v440, %v439
      %v568 = vpack.c.b16 %v442, %v441
      %v569 = vpack.c.b16 %v444, %v443
      %v570 = vpack.c.b16 %v446, %v445
      %v571 = vpack.c.b16 %v448, %v447
      %v572 = vpack.c.b16 %v450, %v449
      %v573 = vpack.c.b16 %v452, %v451
      %v574 = vpack.c.b16 %v454, %v453
      %v575 = vpack.c.b16 %v456, %v455
      %v576 = vpack.c.b16 %v458, %v457
      %v577 = vpack.c.b16 %v460, %v459
      %v578 = vpack.c.b16 %v462, %v461
      %v579 = vpack.c.b16 %v464, %v463
      %v580 = vpack.c.b16 %v466, %v465
      %v581 = vpack.c.b16 %v468, %v467
      %v582 = vpack.c.b16 %v470, %v469
      %v583 = vpack.c.b16 %v472, %v471
      %v584 = vpack.c.b16 %v474, %v473
      %v585 = vpack.c.b16 %v476, %v475
      %v586 = vpack.c.b16 %v478, %v477
      %v587 = vpack.c.b16 %v480, %v479
      %v588 = vpack.c.b16 %v482, %v481
      %v589 = vpack.c.b16 %v484, %v483
      %v590 = vpack.c.b16 %v486, %v485
      %v591 = vpack.c.b16 %v488, %v487
      %v592 = vpack.c.b16 %v490, %v489
      %v593 = vpack.c.b16 %v492, %v491
      %v594 = vpack.c.b16 %v494, %v493
      %v595 = vpack.c.b16 %v496, %v495
      %v596 = vpack.c.b16 %v498, %v497
      %v597 = vpack.c.b16 %v500, %v499
      %v598 = vpack.c.b16 %v502, %v501
      %v599 = vpack.c.b16 %v504, %v503
      %v600 = vpack.c.b16 %v506, %v505
      %v601 = vpack.c.b16 %v508, %v507
      %v602 = vpack.c.b16 %v510, %v509
      %v603 = vpack.c.b16 %v512, %v511
      %v604 = vpack.c.b16 %v514, %v513
      %v605 = vpack.c.b16 %v516, %v515
      %v606 = vpack.c.b16 %v518, %v517
      %v607 = vpack.c.b16 %v520, %v519
      %v608 = vpack.c.b16 %v522, %v521
      %v609 = vpack.c.b16 %v524, %v523
      %v610 = vpack.c.b16 %v526, %v525
      %v611 = vpack.c.b16 %v528, %v527
      %v612 = vpack.c.b16 %v530, %v529
      %v613 = vpack.c.b16 %v532, %v531
      %v614 = vpack.c.b16 %v534, %v533
      %v615 = vpack.c.b16 %v536, %v535
      %v616 = vpack.c.b16 %v538, %v537
      %v617 = vpack.c.b16 %v540, %v539
      %v618 = vpack.c.b16 %v542, %v541
      %v619 = vpack.c.b16 %v544, %v543
      %v620 = vpack.c.b16 %v546, %v545
      %v621 = vpack.c.b16 %v548, %v547
      %v622 = vpack.c.b16 %v550, %v549
      %v623 = vpack.c.b16 %v552, %v551
      %v624 = vpack.c.b16 %v554, %v553
      %v625 = vpack.c.b16 %v556, %v555
      %v626 = vpack.c.b16 %v558, %v557
      %v627 = vpack.c.b16 %v560, %v559
      %v628 = vpack.c.b16 %v562, %v561
      %v629 = vpack.c.b16 %v564, %v563
      %v630 = vpack.c.b16 %v566, %v565
      %v635 = vunpack.c.l.b16 %v303
      %v636 = vunpack.c.l.b16 %v304
      %v637 = vunpack.c.l.b16 %v305
      %v638 = vunpack.c.l.b16 %v306
      %v639 = vpack.c.b16 %v636, %v635
      %v640 = vpack.c.b16 %v638, %v637
      %vm642 = vcmask 220160
      %v644 = vsel %vm642, %v567, 0
      %v647 = vsel %vm642, %v568, 0
      %v650 = vsel %vm642, %v569, 0
      %v653 = vsel %vm642, %v570, 0
      %v656 = vsel %vm642, %v571, 0
      %v659 = vsel %vm642, %v572, 0
      %v662 = vsel %vm642, %v573, 0
      %v665 = vsel %vm642, %v574, 0
      %v668 = vsel %vm642, %v575, 0
      %v671 = vsel %vm642, %v576, 0
      %v674 = vsel %vm642, %v577, 0
      %v677 = vsel %vm642, %v578, 0
      %v680 = vsel %vm642, %v579, 0
      %v683 = vsel %vm642, %v580, 0
      %v686 = vsel %vm642, %v581, 0
      %v689 = vsel %vm642, %v582, 0
      %v692 = vsel %vm642, %v583, 0
      %v695 = vsel %vm642, %v584, 0
      %v698 = vsel %vm642, %v585, 0
      %v701 = vsel %vm642, %v586, 0
      %v704 = vsel %vm642, %v587, 0
      %v707 = vsel %vm642, %v588, 0
      %v710 = vsel %vm642, %v589, 0
      %v713 = vsel %vm642, %v590, 0
      %v716 = vsel %vm642, %v591, 0
      %v719 = vsel %vm642, %v592, 0
      %v722 = vsel %vm642, %v593, 0
      %v725 = vsel %vm642, %v594, 0
      %v728 = vsel %vm642, %v595, 0
      %v731 = vsel %vm642, %v596, 0
      %v734 = vsel %vm642, %v597, 0
      %v737 = vsel %vm642, %v598, 0
      %v740 = vsel %vm642, %v599, 0
      %v743 = vsel %vm642, %v600, 0
      %v746 = vsel %vm642, %v601, 0
      %v749 = vsel %vm642, %v602, 0
      %v752 = vsel %vm642, %v603, 0
      %v755 = vsel %vm642, %v604, 0
      %v758 = vsel %vm642, %v605, 0
      %v761 = vsel %vm642, %v606, 0
      %v764 = vsel %vm642, %v607, 0
      %v767 = vsel %vm642, %v608, 0
      %v770 = vsel %vm642, %v609, 0
      %v773 = vsel %vm642, %v610, 0
      %v776 = vsel %vm642, %v611, 0
      %v779 = vsel %vm642, %v612, 0
      %v782 = vsel %vm642, %v613, 0
      %v785 = vsel %vm642, %v614, 0
      %v788 = vsel %vm642, %v615, 0
      %v791 = vsel %vm642, %v616, 0
      %v794 = vsel %vm642, %v617, 0
      %v797 = vsel %vm642, %v618, 0
      %v800 = vsel %vm642, %v619, 0
      %v803 = vsel %vm642, %v620, 0
      %v806 = vsel %vm642, %v621, 0
      %v809 = vsel %vm642, %v622, 0
      %v812 = vsel %vm642, %v623, 0
      %v815 = vsel %vm642, %v624, 0
      %v818 = vsel %vm642, %v625, 0
      %v821 = vsel %vm642, %v626, 0
      %v824 = vsel %vm642, %v627, 0
      %v827 = vsel %vm642, %v628, 0
      %v830 = vsel %vm642, %v629, 0
      %v833 = vsel %vm642, %v630, 0
      %vm835 = vcmask 1044480
      %vm836 = vcmask 1045504
      %v837 = vsel %vm835, 4294967295, 65535
      %v838 = vsel %vm836, %v837, 0
      %v840 = vand.u32 %v640, %v838
      %842 = vmatpush.bf16.msra.mxu0 0
      %843 = vmatpush.bf16.msra.mxu0 0
      %844 = vmatpush.bf16.msra.mxu0 0
      %845 = vmatpush.bf16.msra.mxu0 0
      %846 = vmatpush.bf16.msra.mxu0 0
      %847 = vmatpush.bf16.msra.mxu0 0
      %848 = vmatpush.bf16.msra.mxu0 %v840
      %849 = vmatpush.bf16.msra.mxu0 %v639
      %850 = vmatmul.bf16.gmra.mxu0 %v644
      %v851 = vpop.f32.mrf.mxu0
      %v852 = vadd.f32 %v309, %v851
      %v853 = vpop.f32.mrf.mxu0
      %v854 = vadd.f32 %v309, %v853
      %855 = vmatmul.bf16.gmra.mxu0 %v647
      %v856 = vpop.f32.mrf.mxu0
      %v857 = vadd.f32 %v309, %v856
      %v858 = vpop.f32.mrf.mxu0
      %v859 = vadd.f32 %v309, %v858
      %860 = vmatmul.bf16.gmra.mxu0 %v650
      %v861 = vpop.f32.mrf.mxu0
      %v862 = vadd.f32 %v309, %v861
      %v863 = vpop.f32.mrf.mxu0
      %v864 = vadd.f32 %v309, %v863
      %865 = vmatmul.bf16.gmra.mxu0 %v653
      %v866 = vpop.f32.mrf.mxu0
      %v867 = vadd.f32 %v309, %v866
      %v868 = vpop.f32.mrf.mxu0
      %v869 = vadd.f32 %v309, %v868
      %870 = vmatmul.bf16.gmra.mxu0 %v656
      %v871 = vpop.f32.mrf.mxu0
      %v872 = vadd.f32 %v309, %v871
      %v873 = vpop.f32.mrf.mxu0
      %v874 = vadd.f32 %v309, %v873
      %875 = vmatmul.bf16.gmra.mxu0 %v659
      %v876 = vpop.f32.mrf.mxu0
      %v877 = vadd.f32 %v309, %v876
      %v878 = vpop.f32.mrf.mxu0
      %v879 = vadd.f32 %v309, %v878
      %880 = vmatmul.bf16.gmra.mxu0 %v662
      %v881 = vpop.f32.mrf.mxu0
      %v882 = vadd.f32 %v309, %v881
      %v883 = vpop.f32.mrf.mxu0
      %v884 = vadd.f32 %v309, %v883
      %885 = vmatmul.bf16.gmra.mxu0 %v665
      %v886 = vpop.f32.mrf.mxu0
      %v887 = vadd.f32 %v309, %v886
      %v888 = vpop.f32.mrf.mxu0
      %v889 = vadd.f32 %v309, %v888
      %890 = vmatmul.bf16.gmra.mxu0 %v668
      %v891 = vpop.f32.mrf.mxu0
      %v892 = vadd.f32 %v309, %v891
      %v893 = vpop.f32.mrf.mxu0
      %v894 = vadd.f32 %v309, %v893
      %895 = vmatmul.bf16.gmra.mxu0 %v671
      %v896 = vpop.f32.mrf.mxu0
      %v897 = vadd.f32 %v309, %v896
      %v898 = vpop.f32.mrf.mxu0
      %v899 = vadd.f32 %v309, %v898
      %900 = vmatmul.bf16.gmra.mxu0 %v674
      %v901 = vpop.f32.mrf.mxu0
      %v902 = vadd.f32 %v309, %v901
      %v903 = vpop.f32.mrf.mxu0
      %v904 = vadd.f32 %v309, %v903
      %905 = vmatmul.bf16.gmra.mxu0 %v677
      %v906 = vpop.f32.mrf.mxu0
      %v907 = vadd.f32 %v309, %v906
      %v908 = vpop.f32.mrf.mxu0
      %v909 = vadd.f32 %v309, %v908
      %910 = vmatmul.bf16.gmra.mxu0 %v680
      %v911 = vpop.f32.mrf.mxu0
      %v912 = vadd.f32 %v309, %v911
      %v913 = vpop.f32.mrf.mxu0
      %v914 = vadd.f32 %v309, %v913
      %915 = vmatmul.bf16.gmra.mxu0 %v683
      %v916 = vpop.f32.mrf.mxu0
      %v917 = vadd.f32 %v309, %v916
      %v918 = vpop.f32.mrf.mxu0
      %v919 = vadd.f32 %v309, %v918
      %920 = vmatmul.bf16.gmra.mxu0 %v686
      %v921 = vpop.f32.mrf.mxu0
      %v922 = vadd.f32 %v309, %v921
      %v923 = vpop.f32.mrf.mxu0
      %v924 = vadd.f32 %v309, %v923
      %925 = vmatmul.bf16.gmra.mxu0 %v689
      %v926 = vpop.f32.mrf.mxu0
      %v927 = vadd.f32 %v309, %v926
      %v928 = vpop.f32.mrf.mxu0
      %v929 = vadd.f32 %v309, %v928
      %930 = vmatmul.bf16.gmra.mxu0 %v692
      %v931 = vpop.f32.mrf.mxu0
      %v932 = vadd.f32 %v309, %v931
      %v933 = vpop.f32.mrf.mxu0
      %v934 = vadd.f32 %v309, %v933
      %935 = vmatmul.bf16.gmra.mxu0 %v695
      %v936 = vpop.f32.mrf.mxu0
      %v937 = vadd.f32 %v309, %v936
      %v938 = vpop.f32.mrf.mxu0
      %v939 = vadd.f32 %v309, %v938
      %940 = vmatmul.bf16.gmra.mxu0 %v698
      %v941 = vpop.f32.mrf.mxu0
      %v942 = vadd.f32 %v309, %v941
      %v943 = vpop.f32.mrf.mxu0
      %v944 = vadd.f32 %v309, %v943
      %945 = vmatmul.bf16.gmra.mxu0 %v701
      %v946 = vpop.f32.mrf.mxu0
      %v947 = vadd.f32 %v309, %v946
      %v948 = vpop.f32.mrf.mxu0
      %v949 = vadd.f32 %v309, %v948
      %950 = vmatmul.bf16.gmra.mxu0 %v704
      %v951 = vpop.f32.mrf.mxu0
      %v952 = vadd.f32 %v309, %v951
      %v953 = vpop.f32.mrf.mxu0
      %v954 = vadd.f32 %v309, %v953
      %955 = vmatmul.bf16.gmra.mxu0 %v707
      %v956 = vpop.f32.mrf.mxu0
      %v957 = vadd.f32 %v309, %v956
      %v958 = vpop.f32.mrf.mxu0
      %v959 = vadd.f32 %v309, %v958
      %960 = vmatmul.bf16.gmra.mxu0 %v710
      %v961 = vpop.f32.mrf.mxu0
      %v962 = vadd.f32 %v309, %v961
      %v963 = vpop.f32.mrf.mxu0
      %v964 = vadd.f32 %v309, %v963
      %965 = vmatmul.bf16.gmra.mxu0 %v713
      %v966 = vpop.f32.mrf.mxu0
      %v967 = vadd.f32 %v309, %v966
      %v968 = vpop.f32.mrf.mxu0
      %v969 = vadd.f32 %v309, %v968
      %970 = vmatmul.bf16.gmra.mxu0 %v716
      %v971 = vpop.f32.mrf.mxu0
      %v972 = vadd.f32 %v309, %v971
      %v973 = vpop.f32.mrf.mxu0
      %v974 = vadd.f32 %v309, %v973
      %975 = vmatmul.bf16.gmra.mxu0 %v719
      %v976 = vpop.f32.mrf.mxu0
      %v977 = vadd.f32 %v309, %v976
      %v978 = vpop.f32.mrf.mxu0
      %v979 = vadd.f32 %v309, %v978
      %980 = vmatmul.bf16.gmra.mxu0 %v722
      %v981 = vpop.f32.mrf.mxu0
      %v982 = vadd.f32 %v309, %v981
      %v983 = vpop.f32.mrf.mxu0
      %v984 = vadd.f32 %v309, %v983
      %985 = vmatmul.bf16.gmra.mxu0 %v725
      %v986 = vpop.f32.mrf.mxu0
      %v987 = vadd.f32 %v309, %v986
      %v988 = vpop.f32.mrf.mxu0
      %v989 = vadd.f32 %v309, %v988
      %990 = vmatmul.bf16.gmra.mxu0 %v728
      %v991 = vpop.f32.mrf.mxu0
      %v992 = vadd.f32 %v309, %v991
      %v993 = vpop.f32.mrf.mxu0
      %v994 = vadd.f32 %v309, %v993
      %995 = vmatmul.bf16.gmra.mxu0 %v731
      %v996 = vpop.f32.mrf.mxu0
      %v997 = vadd.f32 %v309, %v996
      %v998 = vpop.f32.mrf.mxu0
      %v999 = vadd.f32 %v309, %v998
      %1000 = vmatmul.bf16.gmra.mxu0 %v734
      %v1001 = vpop.f32.mrf.mxu0
      %v1002 = vadd.f32 %v309, %v1001
      %v1003 = vpop.f32.mrf.mxu0
      %v1004 = vadd.f32 %v309, %v1003
      %1005 = vmatmul.bf16.gmra.mxu0 %v737
      %v1006 = vpop.f32.mrf.mxu0
      %v1007 = vadd.f32 %v309, %v1006
      %v1008 = vpop.f32.mrf.mxu0
      %v1009 = vadd.f32 %v309, %v1008
      %1010 = vmatmul.bf16.gmra.mxu0 %v740
      %v1011 = vpop.f32.mrf.mxu0
      %v1012 = vadd.f32 %v309, %v1011
      %v1013 = vpop.f32.mrf.mxu0
      %v1014 = vadd.f32 %v309, %v1013
      %1015 = vmatmul.bf16.gmra.mxu0 %v743
      %v1016 = vpop.f32.mrf.mxu0
      %v1017 = vadd.f32 %v309, %v1016
      %v1018 = vpop.f32.mrf.mxu0
      %v1019 = vadd.f32 %v309, %v1018
      %1020 = vmatmul.bf16.gmra.mxu0 %v746
      %v1021 = vpop.f32.mrf.mxu0
      %v1022 = vadd.f32 %v309, %v1021
      %v1023 = vpop.f32.mrf.mxu0
      %v1024 = vadd.f32 %v309, %v1023
      %1025 = vmatmul.bf16.gmra.mxu0 %v749
      %v1026 = vpop.f32.mrf.mxu0
      %v1027 = vadd.f32 %v309, %v1026
      %v1028 = vpop.f32.mrf.mxu0
      %v1029 = vadd.f32 %v309, %v1028
      %1030 = vmatmul.bf16.gmra.mxu0 %v752
      %v1031 = vpop.f32.mrf.mxu0
      %v1032 = vadd.f32 %v309, %v1031
      %v1033 = vpop.f32.mrf.mxu0
      %v1034 = vadd.f32 %v309, %v1033
      %1035 = vmatmul.bf16.gmra.mxu0 %v755
      %v1036 = vpop.f32.mrf.mxu0
      %v1037 = vadd.f32 %v309, %v1036
      %v1038 = vpop.f32.mrf.mxu0
      %v1039 = vadd.f32 %v309, %v1038
      %1040 = vmatmul.bf16.gmra.mxu0 %v758
      %v1041 = vpop.f32.mrf.mxu0
      %v1042 = vadd.f32 %v309, %v1041
      %v1043 = vpop.f32.mrf.mxu0
      %v1044 = vadd.f32 %v309, %v1043
      %1045 = vmatmul.bf16.gmra.mxu0 %v761
      %v1046 = vpop.f32.mrf.mxu0
      %v1047 = vadd.f32 %v309, %v1046
      %v1048 = vpop.f32.mrf.mxu0
      %v1049 = vadd.f32 %v309, %v1048
      %1050 = vmatmul.bf16.gmra.mxu0 %v764
      %v1051 = vpop.f32.mrf.mxu0
      %v1052 = vadd.f32 %v309, %v1051
      %v1053 = vpop.f32.mrf.mxu0
      %v1054 = vadd.f32 %v309, %v1053
      %1055 = vmatmul.bf16.gmra.mxu0 %v767
      %v1056 = vpop.f32.mrf.mxu0
      %v1057 = vadd.f32 %v309, %v1056
      %v1058 = vpop.f32.mrf.mxu0
      %v1059 = vadd.f32 %v309, %v1058
      %1060 = vmatmul.bf16.gmra.mxu0 %v770
      %v1061 = vpop.f32.mrf.mxu0
      %v1062 = vadd.f32 %v309, %v1061
      %v1063 = vpop.f32.mrf.mxu0
      %v1064 = vadd.f32 %v309, %v1063
      %1065 = vmatmul.bf16.gmra.mxu0 %v773
      %v1066 = vpop.f32.mrf.mxu0
      %v1067 = vadd.f32 %v309, %v1066
      %v1068 = vpop.f32.mrf.mxu0
      %v1069 = vadd.f32 %v309, %v1068
      %1070 = vmatmul.bf16.gmra.mxu0 %v776
      %v1071 = vpop.f32.mrf.mxu0
      %v1072 = vadd.f32 %v309, %v1071
      %v1073 = vpop.f32.mrf.mxu0
      %v1074 = vadd.f32 %v309, %v1073
      %1075 = vmatmul.bf16.gmra.mxu0 %v779
      %v1076 = vpop.f32.mrf.mxu0
      %v1077 = vadd.f32 %v309, %v1076
      %v1078 = vpop.f32.mrf.mxu0
      %v1079 = vadd.f32 %v309, %v1078
      %1080 = vmatmul.bf16.gmra.mxu0 %v782
      %v1081 = vpop.f32.mrf.mxu0
      %v1082 = vadd.f32 %v309, %v1081
      %v1083 = vpop.f32.mrf.mxu0
      %v1084 = vadd.f32 %v309, %v1083
      %1085 = vmatmul.bf16.gmra.mxu0 %v785
      %v1086 = vpop.f32.mrf.mxu0
      %v1087 = vadd.f32 %v309, %v1086
      %v1088 = vpop.f32.mrf.mxu0
      %v1089 = vadd.f32 %v309, %v1088
      %1090 = vmatmul.bf16.gmra.mxu0 %v788
      %v1091 = vpop.f32.mrf.mxu0
      %v1092 = vadd.f32 %v309, %v1091
      %v1093 = vpop.f32.mrf.mxu0
      %v1094 = vadd.f32 %v309, %v1093
      %1095 = vmatmul.bf16.gmra.mxu0 %v791
      %v1096 = vpop.f32.mrf.mxu0
      %v1097 = vadd.f32 %v309, %v1096
      %v1098 = vpop.f32.mrf.mxu0
      %v1099 = vadd.f32 %v309, %v1098
      %1100 = vmatmul.bf16.gmra.mxu0 %v794
      %v1101 = vpop.f32.mrf.mxu0
      %v1102 = vadd.f32 %v309, %v1101
      %v1103 = vpop.f32.mrf.mxu0
      %v1104 = vadd.f32 %v309, %v1103
      %1105 = vmatmul.bf16.gmra.mxu0 %v797
      %v1106 = vpop.f32.mrf.mxu0
      %v1107 = vadd.f32 %v309, %v1106
      %v1108 = vpop.f32.mrf.mxu0
      %v1109 = vadd.f32 %v309, %v1108
      %1110 = vmatmul.bf16.gmra.mxu0 %v800
      %v1111 = vpop.f32.mrf.mxu0
      %v1112 = vadd.f32 %v309, %v1111
      %v1113 = vpop.f32.mrf.mxu0
      %v1114 = vadd.f32 %v309, %v1113
      %1115 = vmatmul.bf16.gmra.mxu0 %v803
      %v1116 = vpop.f32.mrf.mxu0
      %v1117 = vadd.f32 %v309, %v1116
      %v1118 = vpop.f32.mrf.mxu0
      %v1119 = vadd.f32 %v309, %v1118
      %1120 = vmatmul.bf16.gmra.mxu0 %v806
      %v1121 = vpop.f32.mrf.mxu0
      %v1122 = vadd.f32 %v309, %v1121
      %v1123 = vpop.f32.mrf.mxu0
      %v1124 = vadd.f32 %v309, %v1123
      %1125 = vmatmul.bf16.gmra.mxu0 %v809
      %v1126 = vpop.f32.mrf.mxu0
      %v1127 = vadd.f32 %v309, %v1126
      %v1128 = vpop.f32.mrf.mxu0
      %v1129 = vadd.f32 %v309, %v1128
      %1130 = vmatmul.bf16.gmra.mxu0 %v812
      %v1131 = vpop.f32.mrf.mxu0
      %v1132 = vadd.f32 %v309, %v1131
      %v1133 = vpop.f32.mrf.mxu0
      %v1134 = vadd.f32 %v309, %v1133
      %1135 = vmatmul.bf16.gmra.mxu0 %v815
      %v1136 = vpop.f32.mrf.mxu0
      %v1137 = vadd.f32 %v309, %v1136
      %v1138 = vpop.f32.mrf.mxu0
      %v1139 = vadd.f32 %v309, %v1138
      %1140 = vmatmul.bf16.gmra.mxu0 %v818
      %v1141 = vpop.f32.mrf.mxu0
      %v1142 = vadd.f32 %v309, %v1141
      %v1143 = vpop.f32.mrf.mxu0
      %v1144 = vadd.f32 %v309, %v1143
      %1145 = vmatmul.bf16.gmra.mxu0 %v821
      %v1146 = vpop.f32.mrf.mxu0
      %v1147 = vadd.f32 %v309, %v1146
      %v1148 = vpop.f32.mrf.mxu0
      %v1149 = vadd.f32 %v309, %v1148
      %1150 = vmatmul.bf16.gmra.mxu0 %v824
      %v1151 = vpop.f32.mrf.mxu0
      %v1152 = vadd.f32 %v309, %v1151
      %v1153 = vpop.f32.mrf.mxu0
      %v1154 = vadd.f32 %v309, %v1153
      %1155 = vmatmul.bf16.gmra.mxu0 %v827
      %v1156 = vpop.f32.mrf.mxu0
      %v1157 = vadd.f32 %v309, %v1156
      %v1158 = vpop.f32.mrf.mxu0
      %v1159 = vadd.f32 %v309, %v1158
      %1160 = vmatmul.bf16.gmra.mxu0 %v830
      %v1161 = vpop.f32.mrf.mxu0
      %v1162 = vadd.f32 %v309, %v1161
      %v1163 = vpop.f32.mrf.mxu0
      %v1164 = vadd.f32 %v309, %v1163
      %1165 = vmatmul.bf16.gmra.mxu0 %v833
      %v1166 = vpop.f32.mrf.mxu0
      %v1167 = vadd.f32 %v309, %v1166
      %v1168 = vpop.f32.mrf.mxu0
      %v1169 = vadd.f32 %v309, %v1168
      %1170 = vdwg.mxu0
      %v1171 = vmax.f32 %v852, 0.0
      %v1172 = vmax.f32 %v854, 0.0
      %v1173 = vmax.f32 %v857, 0.0
      %v1174 = vmax.f32 %v859, 0.0
      %v1175 = vmax.f32 %v862, 0.0
      %v1176 = vmax.f32 %v864, 0.0
      %v1177 = vmax.f32 %v867, 0.0
      %v1178 = vmax.f32 %v869, 0.0
      %v1179 = vmax.f32 %v872, 0.0
      %v1180 = vmax.f32 %v874, 0.0
      %v1181 = vmax.f32 %v877, 0.0
      %v1182 = vmax.f32 %v879, 0.0
      %v1183 = vmax.f32 %v882, 0.0
      %v1184 = vmax.f32 %v884, 0.0
      %v1185 = vmax.f32 %v887, 0.0
      %v1186 = vmax.f32 %v889, 0.0
      %v1187 = vmax.f32 %v892, 0.0
      %v1188 = vmax.f32 %v894, 0.0
      %v1189 = vmax.f32 %v897, 0.0
      %v1190 = vmax.f32 %v899, 0.0
      %v1191 = vmax.f32 %v902, 0.0
      %v1192 = vmax.f32 %v904, 0.0
      %v1193 = vmax.f32 %v907, 0.0
      %v1194 = vmax.f32 %v909, 0.0
      %v1195 = vmax.f32 %v912, 0.0
      %v1196 = vmax.f32 %v914, 0.0
      %v1197 = vmax.f32 %v917, 0.0
      %v1198 = vmax.f32 %v919, 0.0
      %v1199 = vmax.f32 %v922, 0.0
      %v1200 = vmax.f32 %v924, 0.0
      %v1201 = vmax.f32 %v927, 0.0
      %v1202 = vmax.f32 %v929, 0.0
      %v1203 = vmax.f32 %v932, 0.0
      %v1204 = vmax.f32 %v934, 0.0
      %v1205 = vmax.f32 %v937, 0.0
      %v1206 = vmax.f32 %v939, 0.0
      %v1207 = vmax.f32 %v942, 0.0
      %v1208 = vmax.f32 %v944, 0.0
      %v1209 = vmax.f32 %v947, 0.0
      %v1210 = vmax.f32 %v949, 0.0
      %v1211 = vmax.f32 %v952, 0.0
      %v1212 = vmax.f32 %v954, 0.0
      %v1213 = vmax.f32 %v957, 0.0
      %v1214 = vmax.f32 %v959, 0.0
      %v1215 = vmax.f32 %v962, 0.0
      %v1216 = vmax.f32 %v964, 0.0
      %v1217 = vmax.f32 %v967, 0.0
      %v1218 = vmax.f32 %v969, 0.0
      %v1219 = vmax.f32 %v972, 0.0
      %v1220 = vmax.f32 %v974, 0.0
      %v1221 = vmax.f32 %v977, 0.0
      %v1222 = vmax.f32 %v979, 0.0
      %v1223 = vmax.f32 %v982, 0.0
      %v1224 = vmax.f32 %v984, 0.0
      %v1225 = vmax.f32 %v987, 0.0
      %v1226 = vmax.f32 %v989, 0.0
      %v1227 = vmax.f32 %v992, 0.0
      %v1228 = vmax.f32 %v994, 0.0
      %v1229 = vmax.f32 %v997, 0.0
      %v1230 = vmax.f32 %v999, 0.0
      %v1231 = vmax.f32 %v1002, 0.0
      %v1232 = vmax.f32 %v1004, 0.0
      %v1233 = vmax.f32 %v1007, 0.0
      %v1234 = vmax.f32 %v1009, 0.0
      %v1235 = vmax.f32 %v1012, 0.0
      %v1236 = vmax.f32 %v1014, 0.0
      %v1237 = vmax.f32 %v1017, 0.0
      %v1238 = vmax.f32 %v1019, 0.0
      %v1239 = vmax.f32 %v1022, 0.0
      %v1240 = vmax.f32 %v1024, 0.0
      %v1241 = vmax.f32 %v1027, 0.0
      %v1242 = vmax.f32 %v1029, 0.0
      %v1243 = vmax.f32 %v1032, 0.0
      %v1244 = vmax.f32 %v1034, 0.0
      %v1245 = vmax.f32 %v1037, 0.0
      %v1246 = vmax.f32 %v1039, 0.0
      %v1247 = vmax.f32 %v1042, 0.0
      %v1248 = vmax.f32 %v1044, 0.0
      %v1249 = vmax.f32 %v1047, 0.0
      %v1250 = vmax.f32 %v1049, 0.0
      %v1251 = vmax.f32 %v1052, 0.0
      %v1252 = vmax.f32 %v1054, 0.0
      %v1253 = vmax.f32 %v1057, 0.0
      %v1254 = vmax.f32 %v1059, 0.0
      %v1255 = vmax.f32 %v1062, 0.0
      %v1256 = vmax.f32 %v1064, 0.0
      %v1257 = vmax.f32 %v1067, 0.0
      %v1258 = vmax.f32 %v1069, 0.0
      %v1259 = vmax.f32 %v1072, 0.0
      %v1260 = vmax.f32 %v1074, 0.0
      %v1261 = vmax.f32 %v1077, 0.0
      %v1262 = vmax.f32 %v1079, 0.0
      %v1263 = vmax.f32 %v1082, 0.0
      %v1264 = vmax.f32 %v1084, 0.0
      %v1265 = vmax.f32 %v1087, 0.0
      %v1266 = vmax.f32 %v1089, 0.0
      %v1267 = vmax.f32 %v1092, 0.0
      %v1268 = vmax.f32 %v1094, 0.0
      %v1269 = vmax.f32 %v1097, 0.0
      %v1270 = vmax.f32 %v1099, 0.0
      %v1271 = vmax.f32 %v1102, 0.0
      %v1272 = vmax.f32 %v1104, 0.0
      %v1273 = vmax.f32 %v1107, 0.0
      %v1274 = vmax.f32 %v1109, 0.0
      %v1275 = vmax.f32 %v1112, 0.0
      %v1276 = vmax.f32 %v1114, 0.0
      %v1277 = vmax.f32 %v1117, 0.0
      %v1278 = vmax.f32 %v1119, 0.0
      %v1279 = vmax.f32 %v1122, 0.0
      %v1280 = vmax.f32 %v1124, 0.0
      %v1281 = vmax.f32 %v1127, 0.0
      %v1282 = vmax.f32 %v1129, 0.0
      %v1283 = vmax.f32 %v1132, 0.0
      %v1284 = vmax.f32 %v1134, 0.0
      %v1285 = vmax.f32 %v1137, 0.0
      %v1286 = vmax.f32 %v1139, 0.0
      %v1287 = vmax.f32 %v1142, 0.0
      %v1288 = vmax.f32 %v1144, 0.0
      %v1289 = vmax.f32 %v1147, 0.0
      %v1290 = vmax.f32 %v1149, 0.0
      %v1291 = vmax.f32 %v1152, 0.0
      %v1292 = vmax.f32 %v1154, 0.0
      %v1293 = vmax.f32 %v1157, 0.0
      %v1294 = vmax.f32 %v1159, 0.0
      %v1295 = vmax.f32 %v1162, 0.0
      %v1296 = vmax.f32 %v1164, 0.0
      %v1297 = vmax.f32 %v1167, 0.0
      %v1298 = vmax.f32 %v1169, 0.0
      %v1299 = vpack.c.bf16 %v1171, %v1171
      %v1300 = vpack.c.bf16 %v1172, %v1172
      %v1301 = vpack.c.bf16 %v1173, %v1173
      %v1302 = vpack.c.bf16 %v1174, %v1174
      %v1303 = vpack.c.bf16 %v1175, %v1175
      %v1304 = vpack.c.bf16 %v1176, %v1176
      %v1305 = vpack.c.bf16 %v1177, %v1177
      %v1306 = vpack.c.bf16 %v1178, %v1178
      %v1307 = vpack.c.bf16 %v1179, %v1179
      %v1308 = vpack.c.bf16 %v1180, %v1180
      %v1309 = vpack.c.bf16 %v1181, %v1181
      %v1310 = vpack.c.bf16 %v1182, %v1182
      %v1311 = vpack.c.bf16 %v1183, %v1183
      %v1312 = vpack.c.bf16 %v1184, %v1184
      %v1313 = vpack.c.bf16 %v1185, %v1185
      %v1314 = vpack.c.bf16 %v1186, %v1186
      %v1315 = vpack.c.bf16 %v1187, %v1187
      %v1316 = vpack.c.bf16 %v1188, %v1188
      %v1317 = vpack.c.bf16 %v1189, %v1189
      %v1318 = vpack.c.bf16 %v1190, %v1190
      %v1319 = vpack.c.bf16 %v1191, %v1191
      %v1320 = vpack.c.bf16 %v1192, %v1192
      %v1321 = vpack.c.bf16 %v1193, %v1193
      %v1322 = vpack.c.bf16 %v1194, %v1194
      %v1323 = vpack.c.bf16 %v1195, %v1195
      %v1324 = vpack.c.bf16 %v1196, %v1196
      %v1325 = vpack.c.bf16 %v1197, %v1197
      %v1326 = vpack.c.bf16 %v1198, %v1198
      %v1327 = vpack.c.bf16 %v1199, %v1199
      %v1328 = vpack.c.bf16 %v1200, %v1200
      %v1329 = vpack.c.bf16 %v1201, %v1201
      %v1330 = vpack.c.bf16 %v1202, %v1202
      %v1331 = vpack.c.bf16 %v1203, %v1203
      %v1332 = vpack.c.bf16 %v1204, %v1204
      %v1333 = vpack.c.bf16 %v1205, %v1205
      %v1334 = vpack.c.bf16 %v1206, %v1206
      %v1335 = vpack.c.bf16 %v1207, %v1207
      %v1336 = vpack.c.bf16 %v1208, %v1208
      %v1337 = vpack.c.bf16 %v1209, %v1209
      %v1338 = vpack.c.bf16 %v1210, %v1210
      %v1339 = vpack.c.bf16 %v1211, %v1211
      %v1340 = vpack.c.bf16 %v1212, %v1212
      %v1341 = vpack.c.bf16 %v1213, %v1213
      %v1342 = vpack.c.bf16 %v1214, %v1214
      %v1343 = vpack.c.bf16 %v1215, %v1215
      %v1344 = vpack.c.bf16 %v1216, %v1216
      %v1345 = vpack.c.bf16 %v1217, %v1217
      %v1346 = vpack.c.bf16 %v1218, %v1218
      %v1347 = vpack.c.bf16 %v1219, %v1219
      %v1348 = vpack.c.bf16 %v1220, %v1220
      %v1349 = vpack.c.bf16 %v1221, %v1221
      %v1350 = vpack.c.bf16 %v1222, %v1222
      %v1351 = vpack.c.bf16 %v1223, %v1223
      %v1352 = vpack.c.bf16 %v1224, %v1224
      %v1353 = vpack.c.bf16 %v1225, %v1225
      %v1354 = vpack.c.bf16 %v1226, %v1226
      %v1355 = vpack.c.bf16 %v1227, %v1227
      %v1356 = vpack.c.bf16 %v1228, %v1228
      %v1357 = vpack.c.bf16 %v1229, %v1229
      %v1358 = vpack.c.bf16 %v1230, %v1230
      %v1359 = vpack.c.bf16 %v1231, %v1231
      %v1360 = vpack.c.bf16 %v1232, %v1232
      %v1361 = vpack.c.bf16 %v1233, %v1233
      %v1362 = vpack.c.bf16 %v1234, %v1234
      %v1363 = vpack.c.bf16 %v1235, %v1235
      %v1364 = vpack.c.bf16 %v1236, %v1236
      %v1365 = vpack.c.bf16 %v1237, %v1237
      %v1366 = vpack.c.bf16 %v1238, %v1238
      %v1367 = vpack.c.bf16 %v1239, %v1239
      %v1368 = vpack.c.bf16 %v1240, %v1240
      %v1369 = vpack.c.bf16 %v1241, %v1241
      %v1370 = vpack.c.bf16 %v1242, %v1242
      %v1371 = vpack.c.bf16 %v1243, %v1243
      %v1372 = vpack.c.bf16 %v1244, %v1244
      %v1373 = vpack.c.bf16 %v1245, %v1245
      %v1374 = vpack.c.bf16 %v1246, %v1246
      %v1375 = vpack.c.bf16 %v1247, %v1247
      %v1376 = vpack.c.bf16 %v1248, %v1248
      %v1377 = vpack.c.bf16 %v1249, %v1249
      %v1378 = vpack.c.bf16 %v1250, %v1250
      %v1379 = vpack.c.bf16 %v1251, %v1251
      %v1380 = vpack.c.bf16 %v1252, %v1252
      %v1381 = vpack.c.bf16 %v1253, %v1253
      %v1382 = vpack.c.bf16 %v1254, %v1254
      %v1383 = vpack.c.bf16 %v1255, %v1255
      %v1384 = vpack.c.bf16 %v1256, %v1256
      %v1385 = vpack.c.bf16 %v1257, %v1257
      %v1386 = vpack.c.bf16 %v1258, %v1258
      %v1387 = vpack.c.bf16 %v1259, %v1259
      %v1388 = vpack.c.bf16 %v1260, %v1260
      %v1389 = vpack.c.bf16 %v1261, %v1261
      %v1390 = vpack.c.bf16 %v1262, %v1262
      %v1391 = vpack.c.bf16 %v1263, %v1263
      %v1392 = vpack.c.bf16 %v1264, %v1264
      %v1393 = vpack.c.bf16 %v1265, %v1265
      %v1394 = vpack.c.bf16 %v1266, %v1266
      %v1395 = vpack.c.bf16 %v1267, %v1267
      %v1396 = vpack.c.bf16 %v1268, %v1268
      %v1397 = vpack.c.bf16 %v1269, %v1269
      %v1398 = vpack.c.bf16 %v1270, %v1270
      %v1399 = vpack.c.bf16 %v1271, %v1271
      %v1400 = vpack.c.bf16 %v1272, %v1272
      %v1401 = vpack.c.bf16 %v1273, %v1273
      %v1402 = vpack.c.bf16 %v1274, %v1274
      %v1403 = vpack.c.bf16 %v1275, %v1275
      %v1404 = vpack.c.bf16 %v1276, %v1276
      %v1405 = vpack.c.bf16 %v1277, %v1277
      %v1406 = vpack.c.bf16 %v1278, %v1278
      %v1407 = vpack.c.bf16 %v1279, %v1279
      %v1408 = vpack.c.bf16 %v1280, %v1280
      %v1409 = vpack.c.bf16 %v1281, %v1281
      %v1410 = vpack.c.bf16 %v1282, %v1282
      %v1411 = vpack.c.bf16 %v1283, %v1283
      %v1412 = vpack.c.bf16 %v1284, %v1284
      %v1413 = vpack.c.bf16 %v1285, %v1285
      %v1414 = vpack.c.bf16 %v1286, %v1286
      %v1415 = vpack.c.bf16 %v1287, %v1287
      %v1416 = vpack.c.bf16 %v1288, %v1288
      %v1417 = vpack.c.bf16 %v1289, %v1289
      %v1418 = vpack.c.bf16 %v1290, %v1290
      %v1419 = vpack.c.bf16 %v1291, %v1291
      %v1420 = vpack.c.bf16 %v1292, %v1292
      %v1421 = vpack.c.bf16 %v1293, %v1293
      %v1422 = vpack.c.bf16 %v1294, %v1294
      %v1423 = vpack.c.bf16 %v1295, %v1295
      %v1424 = vpack.c.bf16 %v1296, %v1296
      %v1425 = vpack.c.bf16 %v1297, %v1297
      %v1426 = vpack.c.bf16 %v1298, %v1298
      %vm1427 = vcmask 257024
      %1428 = vst.msk [vmem:[%s172] sm:$0xf] %vm1427, %v1299
      %1429 = vst.msk [vmem:[%s172 + $0x4] sm:$0xf] %vm1427, %v1300
      %1430 = vst.msk [vmem:[%s172 + $0x8] sm:$0xf] %vm1427, %v1301
      %1431 = vst.msk [vmem:[%s172 + $0xc] sm:$0xf] %vm1427, %v1302
      %1432 = vst.msk [vmem:[%s172 + $0x10] sm:$0xf] %vm1427, %v1303
      %1433 = vst.msk [vmem:[%s172 + $0x14] sm:$0xf] %vm1427, %v1304
      %1434 = vst.msk [vmem:[%s172 + $0x18] sm:$0xf] %vm1427, %v1305
      %1435 = vst.msk [vmem:[%s172 + $0x1c] sm:$0xf] %vm1427, %v1306
      %1436 = vst.msk [vmem:[%s172 + $0x20] sm:$0xf] %vm1427, %v1307
      %1437 = vst.msk [vmem:[%s172 + $0x24] sm:$0xf] %vm1427, %v1308
      %1438 = vst.msk [vmem:[%s172 + $0x28] sm:$0xf] %vm1427, %v1309
      %1439 = vst.msk [vmem:[%s172 + $0x2c] sm:$0xf] %vm1427, %v1310
      %1440 = vst.msk [vmem:[%s172 + $0x30] sm:$0xf] %vm1427, %v1311
      %1441 = vst.msk [vmem:[%s172 + $0x34] sm:$0xf] %vm1427, %v1312
      %1442 = vst.msk [vmem:[%s172 + $0x38] sm:$0xf] %vm1427, %v1313
      %1443 = vst.msk [vmem:[%s172 + $0x3c] sm:$0xf] %vm1427, %v1314
      %1444 = vst.msk [vmem:[%s172 + $0x40] sm:$0xf] %vm1427, %v1315
      %1445 = vst.msk [vmem:[%s172 + $0x44] sm:$0xf] %vm1427, %v1316
      %1446 = vst.msk [vmem:[%s172 + $0x48] sm:$0xf] %vm1427, %v1317
      %1447 = vst.msk [vmem:[%s172 + $0x4c] sm:$0xf] %vm1427, %v1318
      %1448 = vst.msk [vmem:[%s172 + $0x50] sm:$0xf] %vm1427, %v1319
      %1449 = vst.msk [vmem:[%s172 + $0x54] sm:$0xf] %vm1427, %v1320
      %1450 = vst.msk [vmem:[%s172 + $0x58] sm:$0xf] %vm1427, %v1321
      %1451 = vst.msk [vmem:[%s172 + $0x5c] sm:$0xf] %vm1427, %v1322
      %1452 = vst.msk [vmem:[%s172 + $0x60] sm:$0xf] %vm1427, %v1323
      %1453 = vst.msk [vmem:[%s172 + $0x64] sm:$0xf] %vm1427, %v1324
      %1454 = vst.msk [vmem:[%s172 + $0x68] sm:$0xf] %vm1427, %v1325
      %1455 = vst.msk [vmem:[%s172 + $0x6c] sm:$0xf] %vm1427, %v1326
      %1456 = vst.msk [vmem:[%s172 + $0x70] sm:$0xf] %vm1427, %v1327
      %1457 = vst.msk [vmem:[%s172 + $0x74] sm:$0xf] %vm1427, %v1328
      %1458 = vst.msk [vmem:[%s172 + $0x78] sm:$0xf] %vm1427, %v1329
      %1459 = vst.msk [vmem:[%s172 + $0x7c] sm:$0xf] %vm1427, %v1330
      %1460 = vst.msk [vmem:[%s172 + $0x80] sm:$0xf] %vm1427, %v1331
      %1461 = vst.msk [vmem:[%s172 + $0x84] sm:$0xf] %vm1427, %v1332
      %1462 = vst.msk [vmem:[%s172 + $0x88] sm:$0xf] %vm1427, %v1333
      %1463 = vst.msk [vmem:[%s172 + $0x8c] sm:$0xf] %vm1427, %v1334
      %1464 = vst.msk [vmem:[%s172 + $0x90] sm:$0xf] %vm1427, %v1335
      %1465 = vst.msk [vmem:[%s172 + $0x94] sm:$0xf] %vm1427, %v1336
      %1466 = vst.msk [vmem:[%s172 + $0x98] sm:$0xf] %vm1427, %v1337
      %1467 = vst.msk [vmem:[%s172 + $0x9c] sm:$0xf] %vm1427, %v1338
      %1468 = vst.msk [vmem:[%s172 + $0xa0] sm:$0xf] %vm1427, %v1339
      %1469 = vst.msk [vmem:[%s172 + $0xa4] sm:$0xf] %vm1427, %v1340
      %1470 = vst.msk [vmem:[%s172 + $0xa8] sm:$0xf] %vm1427, %v1341
      %1471 = vst.msk [vmem:[%s172 + $0xac] sm:$0xf] %vm1427, %v1342
      %1472 = vst.msk [vmem:[%s172 + $0xb0] sm:$0xf] %vm1427, %v1343
      %1473 = vst.msk [vmem:[%s172 + $0xb4] sm:$0xf] %vm1427, %v1344
      %1474 = vst.msk [vmem:[%s172 + $0xb8] sm:$0xf] %vm1427, %v1345
      %1475 = vst.msk [vmem:[%s172 + $0xbc] sm:$0xf] %vm1427, %v1346
      %1476 = vst.msk [vmem:[%s172 + $0xc0] sm:$0xf] %vm1427, %v1347
      %1477 = vst.msk [vmem:[%s172 + $0xc4] sm:$0xf] %vm1427, %v1348
      %1478 = vst.msk [vmem:[%s172 + $0xc8] sm:$0xf] %vm1427, %v1349
      %1479 = vst.msk [vmem:[%s172 + $0xcc] sm:$0xf] %vm1427, %v1350
      %1480 = vst.msk [vmem:[%s172 + $0xd0] sm:$0xf] %vm1427, %v1351
      %1481 = vst.msk [vmem:[%s172 + $0xd4] sm:$0xf] %vm1427, %v1352
      %1482 = vst.msk [vmem:[%s172 + $0xd8] sm:$0xf] %vm1427, %v1353
      %1483 = vst.msk [vmem:[%s172 + $0xdc] sm:$0xf] %vm1427, %v1354
      %1484 = vst.msk [vmem:[%s172 + $0xe0] sm:$0xf] %vm1427, %v1355
      %1485 = vst.msk [vmem:[%s172 + $0xe4] sm:$0xf] %vm1427, %v1356
      %1486 = vst.msk [vmem:[%s172 + $0xe8] sm:$0xf] %vm1427, %v1357
      %1487 = vst.msk [vmem:[%s172 + $0xec] sm:$0xf] %vm1427, %v1358
      %1488 = vst.msk [vmem:[%s172 + $0xf0] sm:$0xf] %vm1427, %v1359
      %1489 = vst.msk [vmem:[%s172 + $0xf4] sm:$0xf] %vm1427, %v1360
      %1490 = vst.msk [vmem:[%s172 + $0xf8] sm:$0xf] %vm1427, %v1361
      %1491 = vst.msk [vmem:[%s172 + $0xfc] sm:$0xf] %vm1427, %v1362
      %1492 = vst.msk [vmem:[%s172 + $0x100] sm:$0xf] %vm1427, %v1363
      %1493 = vst.msk [vmem:[%s172 + $0x104] sm:$0xf] %vm1427, %v1364
      %1494 = vst.msk [vmem:[%s172 + $0x108] sm:$0xf] %vm1427, %v1365
      %1495 = vst.msk [vmem:[%s172 + $0x10c] sm:$0xf] %vm1427, %v1366
      %1496 = vst.msk [vmem:[%s172 + $0x110] sm:$0xf] %vm1427, %v1367
      %1497 = vst.msk [vmem:[%s172 + $0x114] sm:$0xf] %vm1427, %v1368
      %1498 = vst.msk [vmem:[%s172 + $0x118] sm:$0xf] %vm1427, %v1369
      %1499 = vst.msk [vmem:[%s172 + $0x11c] sm:$0xf] %vm1427, %v1370
      %1500 = vst.msk [vmem:[%s172 + $0x120] sm:$0xf] %vm1427, %v1371
      %1501 = vst.msk [vmem:[%s172 + $0x124] sm:$0xf] %vm1427, %v1372
      %1502 = vst.msk [vmem:[%s172 + $0x128] sm:$0xf] %vm1427, %v1373
      %1503 = vst.msk [vmem:[%s172 + $0x12c] sm:$0xf] %vm1427, %v1374
      %1504 = vst.msk [vmem:[%s172 + $0x130] sm:$0xf] %vm1427, %v1375
      %1505 = vst.msk [vmem:[%s172 + $0x134] sm:$0xf] %vm1427, %v1376
      %1506 = vst.msk [vmem:[%s172 + $0x138] sm:$0xf] %vm1427, %v1377
      %1507 = vst.msk [vmem:[%s172 + $0x13c] sm:$0xf] %vm1427, %v1378
      %1508 = vst.msk [vmem:[%s172 + $0x140] sm:$0xf] %vm1427, %v1379
      %1509 = vst.msk [vmem:[%s172 + $0x144] sm:$0xf] %vm1427, %v1380
      %1510 = vst.msk [vmem:[%s172 + $0x148] sm:$0xf] %vm1427, %v1381
      %1511 = vst.msk [vmem:[%s172 + $0x14c] sm:$0xf] %vm1427, %v1382
      %1512 = vst.msk [vmem:[%s172 + $0x150] sm:$0xf] %vm1427, %v1383
      %1513 = vst.msk [vmem:[%s172 + $0x154] sm:$0xf] %vm1427, %v1384
      %1514 = vst.msk [vmem:[%s172 + $0x158] sm:$0xf] %vm1427, %v1385
      %1515 = vst.msk [vmem:[%s172 + $0x15c] sm:$0xf] %vm1427, %v1386
      %1516 = vst.msk [vmem:[%s172 + $0x160] sm:$0xf] %vm1427, %v1387
      %1517 = vst.msk [vmem:[%s172 + $0x164] sm:$0xf] %vm1427, %v1388
      %1518 = vst.msk [vmem:[%s172 + $0x168] sm:$0xf] %vm1427, %v1389
      %1519 = vst.msk [vmem:[%s172 + $0x16c] sm:$0xf] %vm1427, %v1390
      %1520 = vst.msk [vmem:[%s172 + $0x170] sm:$0xf] %vm1427, %v1391
      %1521 = vst.msk [vmem:[%s172 + $0x174] sm:$0xf] %vm1427, %v1392
      %1522 = vst.msk [vmem:[%s172 + $0x178] sm:$0xf] %vm1427, %v1393
      %1523 = vst.msk [vmem:[%s172 + $0x17c] sm:$0xf] %vm1427, %v1394
      %1524 = vst.msk [vmem:[%s172 + $0x180] sm:$0xf] %vm1427, %v1395
      %1525 = vst.msk [vmem:[%s172 + $0x184] sm:$0xf] %vm1427, %v1396
      %1526 = vst.msk [vmem:[%s172 + $0x188] sm:$0xf] %vm1427, %v1397
      %1527 = vst.msk [vmem:[%s172 + $0x18c] sm:$0xf] %vm1427, %v1398
      %1528 = vst.msk [vmem:[%s172 + $0x190] sm:$0xf] %vm1427, %v1399
      %1529 = vst.msk [vmem:[%s172 + $0x194] sm:$0xf] %vm1427, %v1400
      %1530 = vst.msk [vmem:[%s172 + $0x198] sm:$0xf] %vm1427, %v1401
      %1531 = vst.msk [vmem:[%s172 + $0x19c] sm:$0xf] %vm1427, %v1402
      %1532 = vst.msk [vmem:[%s172 + $0x1a0] sm:$0xf] %vm1427, %v1403
      %1533 = vst.msk [vmem:[%s172 + $0x1a4] sm:$0xf] %vm1427, %v1404
      %1534 = vst.msk [vmem:[%s172 + $0x1a8] sm:$0xf] %vm1427, %v1405
      %1535 = vst.msk [vmem:[%s172 + $0x1ac] sm:$0xf] %vm1427, %v1406
      %1536 = vst.msk [vmem:[%s172 + $0x1b0] sm:$0xf] %vm1427, %v1407
      %1537 = vst.msk [vmem:[%s172 + $0x1b4] sm:$0xf] %vm1427, %v1408
      %1538 = vst.msk [vmem:[%s172 + $0x1b8] sm:$0xf] %vm1427, %v1409
      %1539 = vst.msk [vmem:[%s172 + $0x1bc] sm:$0xf] %vm1427, %v1410
      %1540 = vst.msk [vmem:[%s172 + $0x1c0] sm:$0xf] %vm1427, %v1411
      %1541 = vst.msk [vmem:[%s172 + $0x1c4] sm:$0xf] %vm1427, %v1412
      %1542 = vst.msk [vmem:[%s172 + $0x1c8] sm:$0xf] %vm1427, %v1413
      %1543 = vst.msk [vmem:[%s172 + $0x1cc] sm:$0xf] %vm1427, %v1414
      %1544 = vst.msk [vmem:[%s172 + $0x1d0] sm:$0xf] %vm1427, %v1415
      %1545 = vst.msk [vmem:[%s172 + $0x1d4] sm:$0xf] %vm1427, %v1416
      %1546 = vst.msk [vmem:[%s172 + $0x1d8] sm:$0xf] %vm1427, %v1417
      %1547 = vst.msk [vmem:[%s172 + $0x1dc] sm:$0xf] %vm1427, %v1418
      %1548 = vst.msk [vmem:[%s172 + $0x1e0] sm:$0xf] %vm1427, %v1419
      %1549 = vst.msk [vmem:[%s172 + $0x1e4] sm:$0xf] %vm1427, %v1420
      %1550 = vst.msk [vmem:[%s172 + $0x1e8] sm:$0xf] %vm1427, %v1421
      %1551 = vst.msk [vmem:[%s172 + $0x1ec] sm:$0xf] %vm1427, %v1422
      %1552 = vst.msk [vmem:[%s172 + $0x1f0] sm:$0xf] %vm1427, %v1423
      %1553 = vst.msk [vmem:[%s172 + $0x1f4] sm:$0xf] %vm1427, %v1424
      %1554 = vst.msk [vmem:[%s172 + $0x1f8] sm:$0xf] %vm1427, %v1425
      %1555 = vst.msk [vmem:[%s172 + $0x1fc] sm:$0xf] %vm1427, %v1426
      %s1556 = smul.u32 128, %s14
      %p1557 = scmp.lt.s32.totalorder %s1556, 255
      %s1558 = scalar_select %p1557, %s1556, 255
      %s1559 = smul.addr %s1558, 4
      %s1560 = scalar_lea.vmem %s3, %s1559
      // Predicated region
      $region33: #{vae_encoder_forward.4} parent=31 // pred_check
        %p1561 = pneg %p100
      $region34: #{vae_encoder_forward.4} parent=31 // pred_check_branch
        %1563 = sbr.rel (%p1561) target = $region36
      $region35: #{vae_encoder_forward.4} parent=31 // pred_region
        %s1564 = smul.u32 128, %s14
      $region36: #{vae_encoder_forward.4} parent=31 // pred_fallthru
        _
    $region32: #{vae_encoder_forward.4} parent=5 // pred_fallthru
      _
    %p1565 = scmp.le.s32.totalorder 2, %s9
    // Predicated region
    $region37: #{vae_encoder_forward.4} parent=5 // pred_check
      %p1566 = pneg %p1565
    $region38: #{vae_encoder_forward.4} parent=5 // pred_check_branch
      %1568 = sbr.rel (%p1566) target = $region40
    $region39: #{vae_encoder_forward.4} parent=5 // pred_region
      %s1569 = ssub.s32 %s9, 2
      // Predicated region
      $region41: #{vae_encoder_forward.4} parent=39 // pred_check
        %p1570 = pneg %p106
      $region42: #{vae_encoder_forward.4} parent=39 // pred_check_branch
        %1572 = sbr.rel (%p1570) target = $region44
      $region43: #{vae_encoder_forward.4} parent=39 // pred_region
        %s1573 = smul.u32 128, %s15
        %p1574 = scmp.lt.s32.totalorder %s1573, 255
        %s1575 = scalar_select %p1574, %s1573, 255
        %s1576 = smul.addr %s1575, 4
        %s1577 = scalar_lea.vmem %s3, %s1576
      $region44: #{vae_encoder_forward.4} parent=39 // pred_fallthru
        _
    $region40: #{vae_encoder_forward.4} parent=5 // pred_fallthru
      _
  $region6: #{vae_encoder_forward.4} parent=0 // loop_footer
    %s13 = sadd.s32 1, %s9
  $region7: #{vae_encoder_forward.4} parent=0 // loop_footer_branch
    %8 = sbr.rel target = $region3
  $region8: #{vae_encoder_forward.4} parent=0 // loop_exit
    _

// kernel: vae_encoder_forward.5
$region0: #{vae_encoder_forward.5}
  #allocation0 [shape = 'u32[]', space=smem, size = 0x4, offset = 0x4, fixed_abs, tag = 'smem constant byte address 0x4 - core index']
  #allocation1 [shape = 'u32[72,128]{1,0:T(1,128)}', space=vmem, size = 0x9000, scoped, tag = 'internal scratch']
  %s0 = inlined_call_operand.vmem [shape: bf16[512,288], index: 0, kind: input, shape index: {}]
  %s1 = inlined_call_operand.vmem [shape: bf16[288,64], index: 1, kind: input, shape index: {}]
  %s2 = inlined_call_operand.vmem [shape: f32[1,64], index: 2, kind: input, shape index: {}]
  %s3 = inlined_call_operand.vmem [shape: bf16[512,64], index: 3, kind: output, shape index: {}]
  %s4 = sld [smem:[#allocation0]]
  $region45: #{vae_encoder_forward.5} parent=0
    _
  %s6 = ssub.s32 1, %s4
  %s7 = scalar_select 0, %s6, %s4
  loop: start=0, step=1, limit=4
  $region2: #{vae_encoder_forward.5} parent=0 // loop_pre_header
    _
  $region3: #{vae_encoder_forward.5} parent=0 // loop_header
    %s9 = sphi 0, %s13
    %p10 = scmp.ge.s32.totalorder %s9, 4
    %s19 = sphi 0, %s21
    %s22 = sphi 0, %s19
    %s23 = sphi 0, %s22
    %s39 = sphi 0, %s23
    %s43 = sphi 0, %s43
    %s45 = sphi 0, %s43
    %s46 = sphi 0, %s45
    %s60 = sphi 0, %s46
    %s64 = sphi 0, %s64
    %s66 = sphi 0, %s64
    %s67 = sphi 0, %s66
    %s81 = sphi 0, %s67
    %s87 = sphi 0, %s89
    %s90 = sphi 0, %s87
    %s91 = sphi 0, %s90
    %s107 = sphi 0, %s91
  $region4: #{vae_encoder_forward.5} parent=0 // loop_header_branch
    %12 = sbr.rel (%p10) target = $region8
  $region5: #{vae_encoder_forward.5} parent=0 // loop_body
    %s14 = ssub.s32 %s9, 1
    %s15 = ssub.s32 %s9, 2
    %s16 = sadd.s32 %s9, 1
    %s17 = ssub.s32 %s9, %s16
    %p18 = scmp.eq.s32.totalorder %s17, 0
    %s20 = sadd.s32 %s19, 1
    %s21 = scalar_select %p18, %s19, %s20
    %p24 = pneg %p18
    %p25 = scmp.eq.s32.totalorder %s9, 1
    %p26 = por %p24, %p25
    %p27 = scmp.ne.s32.totalorder %s19, %s22
    %p28 = scmp.eq.s32.totalorder %s9, 0
    %p29 = por %p27, %p28
    %p30 = scmp.ne.s32.totalorder %s19, %s22
    %p31 = scmp.eq.s32.totalorder %s14, 1
    %p32 = por %p30, %p31
    %p33 = scmp.ne.s32.totalorder %s22, %s23
    %p34 = scmp.eq.s32.totalorder %s14, 0
    %p35 = por %p33, %p34
    %p36 = scmp.ne.s32.totalorder %s22, %s23
    %p37 = scmp.eq.s32.totalorder %s15, 1
    %p38 = por %p36, %p37
    %p40 = scmp.ne.s32.totalorder %s23, %s39
    %p41 = scmp.eq.s32.totalorder %s15, 0
    %p42 = por %p40, %p41
    %s44 = sadd.s32 %s43, 1
    %p47 = scmp.eq.s32.totalorder %s9, 1
    %p48 = scmp.ne.s32.totalorder %s43, %s45
    %p49 = scmp.eq.s32.totalorder %s9, 0
    %p50 = por %p48, %p49
    %p51 = scmp.ne.s32.totalorder %s43, %s45
    %p52 = scmp.eq.s32.totalorder %s14, 1
    %p53 = por %p51, %p52
    %p54 = scmp.ne.s32.totalorder %s45, %s46
    %p55 = scmp.eq.s32.totalorder %s14, 0
    %p56 = por %p54, %p55
    %p57 = scmp.ne.s32.totalorder %s45, %s46
    %p58 = scmp.eq.s32.totalorder %s15, 1
    %p59 = por %p57, %p58
    %p61 = scmp.ne.s32.totalorder %s46, %s60
    %p62 = scmp.eq.s32.totalorder %s15, 0
    %p63 = por %p61, %p62
    %s65 = sadd.s32 %s64, 1
    %p68 = scmp.eq.s32.totalorder %s9, 1
    %p69 = scmp.ne.s32.totalorder %s64, %s66
    %p70 = scmp.eq.s32.totalorder %s9, 0
    %p71 = por %p69, %p70
    %p72 = scmp.ne.s32.totalorder %s64, %s66
    %p73 = scmp.eq.s32.totalorder %s14, 1
    %p74 = por %p72, %p73
    %p75 = scmp.ne.s32.totalorder %s66, %s67
    %p76 = scmp.eq.s32.totalorder %s14, 0
    %p77 = por %p75, %p76
    %p78 = scmp.ne.s32.totalorder %s66, %s67
    %p79 = scmp.eq.s32.totalorder %s15, 1
    %p80 = por %p78, %p79
    %p82 = scmp.ne.s32.totalorder %s67, %s81
    %p83 = scmp.eq.s32.totalorder %s15, 0
    %p84 = por %p82, %p83
    %s85 = ssub.s32 %s9, %s16
    %p86 = scmp.eq.s32.totalorder %s85, 0
    %s88 = sadd.s32 %s87, 1
    %s89 = scalar_select %p86, %s87, %s88
    %p92 = pneg %p86
    %p93 = scmp.eq.s32.totalorder %s9, 1
    %p94 = por %p92, %p93
    %p95 = scmp.ne.s32.totalorder %s87, %s90
    %p96 = scmp.eq.s32.totalorder %s9, 0
    %p97 = por %p95, %p96
    %p98 = scmp.ne.s32.totalorder %s87, %s90
    %p99 = scmp.eq.s32.totalorder %s14, 1
    %p100 = por %p98, %p99
    %p101 = scmp.ne.s32.totalorder %s90, %s91
    %p102 = scmp.eq.s32.totalorder %s14, 0
    %p103 = por %p101, %p102
    %p104 = scmp.ne.s32.totalorder %s90, %s91
    %p105 = scmp.eq.s32.totalorder %s15, 1
    %p106 = por %p104, %p105
    %p108 = scmp.ne.s32.totalorder %s91, %s107
    %p109 = scmp.eq.s32.totalorder %s15, 0
    %p110 = por %p108, %p109
    %p111 = scmp.le.s32.totalorder 1, %s9
    %p112 = scmp.lt.s32.totalorder %s9, 3
    %p113 = pnand %p111, %p112
    %p114 = pneg %p113
    // Predicated region
    $region9: #{vae_encoder_forward.5} parent=5 // pred_check
      _
    $region10: #{vae_encoder_forward.5} parent=5 // pred_check_branch
      %116 = sbr.rel (%p113) target = $region12
    $region11: #{vae_encoder_forward.5} parent=5 // pred_region
      %s117 = ssub.s32 %s9, 1
      // Predicated region
      $region13: #{vae_encoder_forward.5} parent=11 // pred_check
        %p118 = pneg %p56
      $region14: #{vae_encoder_forward.5} parent=11 // pred_check_branch
        %120 = sbr.rel (%p118) target = $region16
      $region15: #{vae_encoder_forward.5} parent=11 // pred_region
        _
      $region16: #{vae_encoder_forward.5} parent=11 // pred_fallthru
        _
      // Predicated region
      $region17: #{vae_encoder_forward.5} parent=11 // pred_check
        %p121 = pneg %p77
      $region18: #{vae_encoder_forward.5} parent=11 // pred_check_branch
        %123 = sbr.rel (%p121) target = $region20
      $region19: #{vae_encoder_forward.5} parent=11 // pred_region
        _
      $region20: #{vae_encoder_forward.5} parent=11 // pred_fallthru
        _
    $region12: #{vae_encoder_forward.5} parent=5 // pred_fallthru
      _
    %p124 = scmp.lt.s32.totalorder %s9, 2
    // Predicated region
    $region21: #{vae_encoder_forward.5} parent=5 // pred_check
      %p125 = pneg %p124
    $region22: #{vae_encoder_forward.5} parent=5 // pred_check_branch
      %127 = sbr.rel (%p125) target = $region24
    $region23: #{vae_encoder_forward.5} parent=5 // pred_region
      // Predicated region
      $region25: #{vae_encoder_forward.5} parent=23 // pred_check
        %p128 = pneg %p29
      $region26: #{vae_encoder_forward.5} parent=23 // pred_check_branch
        %130 = sbr.rel (%p128) target = $region28
      $region27: #{vae_encoder_forward.5} parent=23 // pred_region
        %s131 = smul.u32 32, %s9
        %p132 = scmp.lt.s32.totalorder %s131, 63
        %s133 = scalar_select %p132, %s131, 63
        %s134 = smul.addr %s133, 3
        %s135 = smul.addr %s134, 4
        %s136 = scalar_lea.vmem %s0, %s135
        %s137 = smul.u32 32, %s9
      $region28: #{vae_encoder_forward.5} parent=23 // pred_fallthru
        _
    $region24: #{vae_encoder_forward.5} parent=5 // pred_fallthru
      _
    %p138 = scmp.le.s32.totalorder 1, %s9
    %p139 = scmp.lt.s32.totalorder %s9, 3
    %p140 = pnand %p138, %p139
    %p141 = pneg %p140
    // Predicated region
    $region29: #{vae_encoder_forward.5} parent=5 // pred_check
      _
    $region30: #{vae_encoder_forward.5} parent=5 // pred_check_branch
      %143 = sbr.rel (%p140) target = $region32
    $region31: #{vae_encoder_forward.5} parent=5 // pred_region
      %s144 = ssub.s32 %s9, 1
      %s145 = smul.u32 32, %s14
      %p146 = scmp.lt.s32.totalorder %s145, 63
      %s147 = scalar_select %p146, %s145, 63
      %s148 = smul.addr %s147, 3
      %s149 = smul.addr %s148, 4
      %s150 = scalar_lea.vmem %s0, %s149
      %p151 = pneg %p35
      %p152 = pneg %p32
      %p153 = pneg %p56
      %p154 = pneg %p53
      %p155 = pneg %p77
      %p156 = pneg %p74
      %p157 = pneg %p103
      %p158 = pneg %p100
      %s159 = smul.u32 32, %s14
      %p160 = scmp.lt.s32.totalorder %s159, 63
      %s161 = scalar_select %p160, %s159, 63
      %s162 = smul.addr %s161, 4
      %s163 = scalar_lea.vmem %s3, %s162
      %s164 = smul.u32 32, %s14
      %p165 = scmp.lt.s32.totalorder %s164, 63
      %s166 = scalar_select %p165, %s164, 63
      %s167 = smul.addr %s166, 3
      %s168 = smul.addr %s167, 4
      %s169 = scalar_lea.vmem %s0, %s168
      %s170 = smul.u32 32, %s14
      %s171 = smul.u32 32, %s14
      %p172 = scmp.lt.s32.totalorder %s171, 63
      %s173 = scalar_select %p172, %s171, 63
      %s174 = smul.addr %s173, 4
      %s175 = scalar_lea.vmem %s3, %s174
      %s176 = smul.u32 32, %s14
      %v178 = vld [vmem:[%s169] sm:$0xff]
      %v179 = vld [vmem:[%s169 + $0x8] sm:$0xf]
      %v180 = vld [vmem:[%s169 + $0xc] sm:$0xff]
      %v181 = vld [vmem:[%s169 + $0x14] sm:$0xf]
      %v182 = vld [vmem:[%s169 + $0x18] sm:$0xff]
      %v183 = vld [vmem:[%s169 + $0x20] sm:$0xf]
      %v184 = vld [vmem:[%s169 + $0x24] sm:$0xff]
      %v185 = vld [vmem:[%s169 + $0x2c] sm:$0xf]
      %v186 = vld [vmem:[%s169 + $0x30] sm:$0xff]
      %v187 = vld [vmem:[%s169 + $0x38] sm:$0xf]
      %v188 = vld [vmem:[%s169 + $0x3c] sm:$0xff]
      %v189 = vld [vmem:[%s169 + $0x44] sm:$0xf]
      %v190 = vld [vmem:[%s169 + $0x48] sm:$0xff]
      %v191 = vld [vmem:[%s169 + $0x50] sm:$0xf]
      %v192 = vld [vmem:[%s169 + $0x54] sm:$0xff]
      %v193 = vld [vmem:[%s169 + $0x5c] sm:$0xf]
      %v194 = vld [vmem:[%s169 + $0x60] sm:$0xff]
      %v195 = vld [vmem:[%s169 + $0x68] sm:$0xf]
      %v196 = vld [vmem:[%s169 + $0x6c] sm:$0xff]
      %v197 = vld [vmem:[%s169 + $0x74] sm:$0xf]
      %v198 = vld [vmem:[%s169 + $0x78] sm:$0xff]
      %v199 = vld [vmem:[%s169 + $0x80] sm:$0xf]
      %v200 = vld [vmem:[%s169 + $0x84] sm:$0xff]
      %v201 = vld [vmem:[%s169 + $0x8c] sm:$0xf]
      %v202 = vld [vmem:[%s169 + $0x90] sm:$0xff]
      %v203 = vld [vmem:[%s169 + $0x98] sm:$0xf]
      %v204 = vld [vmem:[%s169 + $0x9c] sm:$0xff]
      %v205 = vld [vmem:[%s169 + $0xa4] sm:$0xf]
      %v206 = vld [vmem:[%s169 + $0xa8] sm:$0xff]
      %v207 = vld [vmem:[%s169 + $0xb0] sm:$0xf]
      %v208 = vld [vmem:[%s169 + $0xb4] sm:$0xff]
      %v209 = vld [vmem:[%s169 + $0xbc] sm:$0xf]
      %v210 = vld [vmem:[%s169 + $0xc0] sm:$0xff]
      %v211 = vld [vmem:[%s169 + $0xc8] sm:$0xf]
      %v212 = vld [vmem:[%s169 + $0xcc] sm:$0xff]
      %v213 = vld [vmem:[%s169 + $0xd4] sm:$0xf]
      %v214 = vld [vmem:[%s169 + $0xd8] sm:$0xff]
      %v215 = vld [vmem:[%s169 + $0xe0] sm:$0xf]
      %v216 = vld [vmem:[%s169 + $0xe4] sm:$0xff]
      %v217 = vld [vmem:[%s169 + $0xec] sm:$0xf]
      %v218 = vld [vmem:[%s169 + $0xf0] sm:$0xff]
      %v219 = vld [vmem:[%s169 + $0xf8] sm:$0xf]
      %v220 = vld [vmem:[%s169 + $0xfc] sm:$0xff]
      %v221 = vld [vmem:[%s169 + $0x104] sm:$0xf]
      %v222 = vld [vmem:[%s169 + $0x108] sm:$0xff]
      %v223 = vld [vmem:[%s169 + $0x110] sm:$0xf]
      %v224 = vld [vmem:[%s169 + $0x114] sm:$0xff]
      %v225 = vld [vmem:[%s169 + $0x11c] sm:$0xf]
      %v226 = vld [vmem:[%s169 + $0x120] sm:$0xff]
      %v227 = vld [vmem:[%s169 + $0x128] sm:$0xf]
      %v228 = vld [vmem:[%s169 + $0x12c] sm:$0xff]
      %v229 = vld [vmem:[%s169 + $0x134] sm:$0xf]
      %v230 = vld [vmem:[%s169 + $0x138] sm:$0xff]
      %v231 = vld [vmem:[%s169 + $0x140] sm:$0xf]
      %v232 = vld [vmem:[%s169 + $0x144] sm:$0xff]
      %v233 = vld [vmem:[%s169 + $0x14c] sm:$0xf]
      %v234 = vld [vmem:[%s169 + $0x150] sm:$0xff]
      %v235 = vld [vmem:[%s169 + $0x158] sm:$0xf]
      %v236 = vld [vmem:[%s169 + $0x15c] sm:$0xff]
      %v237 = vld [vmem:[%s169 + $0x164] sm:$0xf]
      %v238 = vld [vmem:[%s169 + $0x168] sm:$0xff]
      %v239 = vld [vmem:[%s169 + $0x170] sm:$0xf]
      %v240 = vld [vmem:[%s169 + $0x174] sm:$0xff]
      %v241 = vld [vmem:[%s169 + $0x17c] sm:$0xf]
      %v242 = vld [vmem:[%s1] sm:$0xf]
      %v243 = vld [vmem:[%s1 + $0x4] sm:$0xf]
      %v244 = vld [vmem:[%s1 + $0x8] sm:$0xf]
      %v245 = vld [vmem:[%s1 + $0xc] sm:$0xf]
      %v246 = vld [vmem:[%s1 + $0x10] sm:$0xf]
      %v247 = vld [vmem:[%s1 + $0x14] sm:$0xf]
      %v248 = vld [vmem:[%s1 + $0x18] sm:$0xf]
      %v249 = vld [vmem:[%s1 + $0x1c] sm:$0xf]
      %v250 = vld [vmem:[%s1 + $0x20] sm:$0xf]
      %v251 = vld [vmem:[%s1 + $0x24] sm:$0xf]
      %v252 = vld [vmem:[%s1 + $0x28] sm:$0xf]
      %v253 = vld [vmem:[%s1 + $0x2c] sm:$0xf]
      %v254 = vld [vmem:[%s1 + $0x30] sm:$0xf]
      %v255 = vld [vmem:[%s1 + $0x34] sm:$0xf]
      %v256 = vld [vmem:[%s1 + $0x38] sm:$0xf]
      %v257 = vld [vmem:[%s1 + $0x3c] sm:$0xf]
      %v258 = vld [vmem:[%s1 + $0x40] sm:$0xf]
      %v259 = vld [vmem:[%s1 + $0x44] sm:$0xf]
      %v260 = vld [vmem:[%s1 + $0x48] sm:$0xf]
      %v261 = vld [vmem:[%s1 + $0x4c] sm:$0xf]
      %v262 = vld [vmem:[%s1 + $0x50] sm:$0xf]
      %v263 = vld [vmem:[%s1 + $0x54] sm:$0xf]
      %v264 = vld [vmem:[%s1 + $0x58] sm:$0xf]
      %v265 = vld [vmem:[%s1 + $0x5c] sm:$0xf]
      %v266 = vld [vmem:[%s1 + $0x60] sm:$0xf]
      %v267 = vld [vmem:[%s1 + $0x64] sm:$0xf]
      %v268 = vld [vmem:[%s1 + $0x68] sm:$0xf]
      %v269 = vld [vmem:[%s1 + $0x6c] sm:$0xf]
      %v270 = vld [vmem:[%s1 + $0x70] sm:$0xf]
      %v271 = vld [vmem:[%s1 + $0x74] sm:$0xf]
      %v272 = vld [vmem:[%s1 + $0x78] sm:$0xf]
      %v273 = vld [vmem:[%s1 + $0x7c] sm:$0xf]
      %v274 = vld [vmem:[%s1 + $0x80] sm:$0xf]
      %v275 = vld [vmem:[%s1 + $0x84] sm:$0xf]
      %v276 = vld [vmem:[%s1 + $0x88] sm:$0xf]
      %v277 = vld [vmem:[%s1 + $0x8c] sm:$0xf]
      %v278 = vld [vmem:[%s2] sm:$0x1]
      %v280 = vperm.slane %v278, 0
      %v346 = vunpack.c.l.b16 %v178
      %v347 = vunpack.c.h.b16 %v178
      %v348 = vunpack.c.l.b16 %v179
      %v349 = vunpack.c.l.b16 %v180
      %v350 = vunpack.c.h.b16 %v180
      %v351 = vunpack.c.l.b16 %v181
      %v352 = vunpack.c.l.b16 %v182
      %v353 = vunpack.c.h.b16 %v182
      %v354 = vunpack.c.l.b16 %v183
      %v355 = vunpack.c.l.b16 %v184
      %v356 = vunpack.c.h.b16 %v184
      %v357 = vunpack.c.l.b16 %v185
      %v358 = vunpack.c.l.b16 %v186
      %v359 = vunpack.c.h.b16 %v186
      %v360 = vunpack.c.l.b16 %v187
      %v361 = vunpack.c.l.b16 %v188
      %v362 = vunpack.c.h.b16 %v188
      %v363 = vunpack.c.l.b16 %v189
      %v364 = vunpack.c.l.b16 %v190
      %v365 = vunpack.c.h.b16 %v190
      %v366 = vunpack.c.l.b16 %v191
      %v367 = vunpack.c.l.b16 %v192
      %v368 = vunpack.c.h.b16 %v192
      %v369 = vunpack.c.l.b16 %v193
      %v370 = vunpack.c.l.b16 %v194
      %v371 = vunpack.c.h.b16 %v194
      %v372 = vunpack.c.l.b16 %v195
      %v373 = vunpack.c.l.b16 %v196
      %v374 = vunpack.c.h.b16 %v196
      %v375 = vunpack.c.l.b16 %v197
      %v376 = vunpack.c.l.b16 %v198
      %v377 = vunpack.c.h.b16 %v198
      %v378 = vunpack.c.l.b16 %v199
      %v379 = vunpack.c.l.b16 %v200
      %v380 = vunpack.c.h.b16 %v200
      %v381 = vunpack.c.l.b16 %v201
      %v382 = vunpack.c.l.b16 %v202
      %v383 = vunpack.c.h.b16 %v202
      %v384 = vunpack.c.l.b16 %v203
      %v385 = vunpack.c.l.b16 %v204
      %v386 = vunpack.c.h.b16 %v204
      %v387 = vunpack.c.l.b16 %v205
      %v388 = vunpack.c.l.b16 %v206
      %v389 = vunpack.c.h.b16 %v206
      %v390 = vunpack.c.l.b16 %v207
      %v391 = vunpack.c.l.b16 %v208
      %v392 = vunpack.c.h.b16 %v208
      %v393 = vunpack.c.l.b16 %v209
      %v394 = vunpack.c.l.b16 %v210
      %v395 = vunpack.c.h.b16 %v210
      %v396 = vunpack.c.l.b16 %v211
      %v397 = vunpack.c.l.b16 %v212
      %v398 = vunpack.c.h.b16 %v212
      %v399 = vunpack.c.l.b16 %v213
      %v400 = vunpack.c.l.b16 %v214
      %v401 = vunpack.c.h.b16 %v214
      %v402 = vunpack.c.l.b16 %v215
      %v403 = vunpack.c.l.b16 %v216
      %v404 = vunpack.c.h.b16 %v216
      %v405 = vunpack.c.l.b16 %v217
      %v406 = vunpack.c.l.b16 %v218
      %v407 = vunpack.c.h.b16 %v218
      %v408 = vunpack.c.l.b16 %v219
      %v409 = vunpack.c.l.b16 %v220
      %v410 = vunpack.c.h.b16 %v220
      %v411 = vunpack.c.l.b16 %v221
      %v412 = vunpack.c.l.b16 %v222
      %v413 = vunpack.c.h.b16 %v222
      %v414 = vunpack.c.l.b16 %v223
      %v415 = vunpack.c.l.b16 %v224
      %v416 = vunpack.c.h.b16 %v224
      %v417 = vunpack.c.l.b16 %v225
      %v418 = vunpack.c.l.b16 %v226
      %v419 = vunpack.c.h.b16 %v226
      %v420 = vunpack.c.l.b16 %v227
      %v421 = vunpack.c.l.b16 %v228
      %v422 = vunpack.c.h.b16 %v228
      %v423 = vunpack.c.l.b16 %v229
      %v424 = vunpack.c.l.b16 %v230
      %v425 = vunpack.c.h.b16 %v230
      %v426 = vunpack.c.l.b16 %v231
      %v427 = vunpack.c.l.b16 %v232
      %v428 = vunpack.c.h.b16 %v232
      %v429 = vunpack.c.l.b16 %v233
      %v430 = vunpack.c.l.b16 %v234
      %v431 = vunpack.c.h.b16 %v234
      %v432 = vunpack.c.l.b16 %v235
      %v433 = vunpack.c.l.b16 %v236
      %v434 = vunpack.c.h.b16 %v236
      %v435 = vunpack.c.l.b16 %v237
      %v436 = vunpack.c.l.b16 %v238
      %v437 = vunpack.c.h.b16 %v238
      %v438 = vunpack.c.l.b16 %v239
      %v439 = vunpack.c.l.b16 %v240
      %v440 = vunpack.c.h.b16 %v240
      %v441 = vunpack.c.l.b16 %v241
      %v442 = vpack.c.b16 %v349, %v346
      %v443 = vpack.c.b16 %v350, %v347
      %v444 = vpack.c.b16 %v351, %v348
      %v445 = vpack.c.b16 %v355, %v352
      %v446 = vpack.c.b16 %v356, %v353
      %v447 = vpack.c.b16 %v357, %v354
      %v448 = vpack.c.b16 %v361, %v358
      %v449 = vpack.c.b16 %v362, %v359
      %v450 = vpack.c.b16 %v363, %v360
      %v451 = vpack.c.b16 %v367, %v364
      %v452 = vpack.c.b16 %v368, %v365
      %v453 = vpack.c.b16 %v369, %v366
      %v454 = vpack.c.b16 %v373, %v370
      %v455 = vpack.c.b16 %v374, %v371
      %v456 = vpack.c.b16 %v375, %v372
      %v457 = vpack.c.b16 %v379, %v376
      %v458 = vpack.c.b16 %v380, %v377
      %v459 = vpack.c.b16 %v381, %v378
      %v460 = vpack.c.b16 %v385, %v382
      %v461 = vpack.c.b16 %v386, %v383
      %v462 = vpack.c.b16 %v387, %v384
      %v463 = vpack.c.b16 %v391, %v388
      %v464 = vpack.c.b16 %v392, %v389
      %v465 = vpack.c.b16 %v393, %v390
      %v466 = vpack.c.b16 %v397, %v394
      %v467 = vpack.c.b16 %v398, %v395
      %v468 = vpack.c.b16 %v399, %v396
      %v469 = vpack.c.b16 %v403, %v400
      %v470 = vpack.c.b16 %v404, %v401
      %v471 = vpack.c.b16 %v405, %v402
      %v472 = vpack.c.b16 %v409, %v406
      %v473 = vpack.c.b16 %v410, %v407
      %v474 = vpack.c.b16 %v411, %v408
      %v475 = vpack.c.b16 %v415, %v412
      %v476 = vpack.c.b16 %v416, %v413
      %v477 = vpack.c.b16 %v417, %v414
      %v478 = vpack.c.b16 %v421, %v418
      %v479 = vpack.c.b16 %v422, %v419
      %v480 = vpack.c.b16 %v423, %v420
      %v481 = vpack.c.b16 %v427, %v424
      %v482 = vpack.c.b16 %v428, %v425
      %v483 = vpack.c.b16 %v429, %v426
      %v484 = vpack.c.b16 %v433, %v430
      %v485 = vpack.c.b16 %v434, %v431
      %v486 = vpack.c.b16 %v435, %v432
      %v487 = vpack.c.b16 %v439, %v436
      %v488 = vpack.c.b16 %v440, %v437
      %v489 = vpack.c.b16 %v441, %v438
      %v558 = vunpack.c.l.b16 %v242
      %v559 = vunpack.c.l.b16 %v243
      %v560 = vunpack.c.l.b16 %v244
      %v561 = vunpack.c.l.b16 %v245
      %v562 = vunpack.c.l.b16 %v246
      %v563 = vunpack.c.l.b16 %v247
      %v564 = vunpack.c.l.b16 %v248
      %v565 = vunpack.c.l.b16 %v249
      %v566 = vunpack.c.l.b16 %v250
      %v567 = vunpack.c.l.b16 %v251
      %v568 = vunpack.c.l.b16 %v252
      %v569 = vunpack.c.l.b16 %v253
      %v570 = vunpack.c.l.b16 %v254
      %v571 = vunpack.c.l.b16 %v255
      %v572 = vunpack.c.l.b16 %v256
      %v573 = vunpack.c.l.b16 %v257
      %v574 = vunpack.c.l.b16 %v258
      %v575 = vunpack.c.l.b16 %v259
      %v576 = vunpack.c.l.b16 %v260
      %v577 = vunpack.c.l.b16 %v261
      %v578 = vunpack.c.l.b16 %v262
      %v579 = vunpack.c.l.b16 %v263
      %v580 = vunpack.c.l.b16 %v264
      %v581 = vunpack.c.l.b16 %v265
      %v582 = vunpack.c.l.b16 %v266
      %v583 = vunpack.c.l.b16 %v267
      %v584 = vunpack.c.l.b16 %v268
      %v585 = vunpack.c.l.b16 %v269
      %v586 = vunpack.c.l.b16 %v270
      %v587 = vunpack.c.l.b16 %v271
      %v588 = vunpack.c.l.b16 %v272
      %v589 = vunpack.c.l.b16 %v273
      %v590 = vunpack.c.l.b16 %v274
      %v591 = vunpack.c.l.b16 %v275
      %v592 = vunpack.c.l.b16 %v276
      %v593 = vunpack.c.l.b16 %v277
      %v594 = vpack.c.b16 %v559, %v558
      %v595 = vpack.c.b16 %v561, %v560
      %v596 = vpack.c.b16 %v563, %v562
      %v597 = vpack.c.b16 %v565, %v564
      %v598 = vpack.c.b16 %v567, %v566
      %v599 = vpack.c.b16 %v569, %v568
      %v600 = vpack.c.b16 %v571, %v570
      %v601 = vpack.c.b16 %v573, %v572
      %v602 = vpack.c.b16 %v575, %v574
      %v603 = vpack.c.b16 %v577, %v576
      %v604 = vpack.c.b16 %v579, %v578
      %v605 = vpack.c.b16 %v581, %v580
      %v606 = vpack.c.b16 %v583, %v582
      %v607 = vpack.c.b16 %v585, %v584
      %v608 = vpack.c.b16 %v587, %v586
      %v609 = vpack.c.b16 %v589, %v588
      %v610 = vpack.c.b16 %v591, %v590
      %v611 = vpack.c.b16 %v593, %v592
      %vm630 = vcmask 261120
      %v632 = vsel %vm630, %v444, 0
      %v635 = vsel %vm630, %v447, 0
      %v638 = vsel %vm630, %v450, 0
      %v641 = vsel %vm630, %v453, 0
      %v644 = vsel %vm630, %v456, 0
      %v647 = vsel %vm630, %v459, 0
      %v650 = vsel %vm630, %v462, 0
      %v653 = vsel %vm630, %v465, 0
      %v656 = vsel %vm630, %v468, 0
      %v659 = vsel %vm630, %v471, 0
      %v662 = vsel %vm630, %v474, 0
      %v665 = vsel %vm630, %v477, 0
      %v668 = vsel %vm630, %v480, 0
      %v671 = vsel %vm630, %v483, 0
      %v674 = vsel %vm630, %v486, 0
      %v677 = vsel %vm630, %v489, 0
      %679 = vmatpush.bf16.msra.mxu0 %v601
      %680 = vmatpush.bf16.msra.mxu0 %v600
      %681 = vmatpush.bf16.msra.mxu0 %v599
      %682 = vmatpush.bf16.msra.mxu0 %v598
      %683 = vmatpush.bf16.msra.mxu0 %v597
      %684 = vmatpush.bf16.msra.mxu0 %v596
      %685 = vmatpush.bf16.msra.mxu0 %v595
      %686 = vmatpush.bf16.msra.mxu0 %v594
      %687 = vmatmul.bf16.gmra.mxu0 %v442
      %v688 = vpop.f32.mrf.mxu0
      %v689 = vadd.f32 %v280, %v688
      %v690 = vpop.f32.mrf.mxu0
      %v691 = vadd.f32 %v280, %v690
      %692 = vmatmul.bf16.gmra.mxu0 %v445
      %v693 = vpop.f32.mrf.mxu0
      %v694 = vadd.f32 %v280, %v693
      %v695 = vpop.f32.mrf.mxu0
      %v696 = vadd.f32 %v280, %v695
      %697 = vmatmul.bf16.gmra.mxu0 %v448
      %v698 = vpop.f32.mrf.mxu0
      %v699 = vadd.f32 %v280, %v698
      %v700 = vpop.f32.mrf.mxu0
      %v701 = vadd.f32 %v280, %v700
      %702 = vmatmul.bf16.gmra.mxu0 %v451
      %v703 = vpop.f32.mrf.mxu0
      %v704 = vadd.f32 %v280, %v703
      %v705 = vpop.f32.mrf.mxu0
      %v706 = vadd.f32 %v280, %v705
      %707 = vmatmul.bf16.gmra.mxu0 %v454
      %v708 = vpop.f32.mrf.mxu0
      %v709 = vadd.f32 %v280, %v708
      %v710 = vpop.f32.mrf.mxu0
      %v711 = vadd.f32 %v280, %v710
      %712 = vmatmul.bf16.gmra.mxu0 %v457
      %v713 = vpop.f32.mrf.mxu0
      %v714 = vadd.f32 %v280, %v713
      %v715 = vpop.f32.mrf.mxu0
      %v716 = vadd.f32 %v280, %v715
      %717 = vmatmul.bf16.gmra.mxu0 %v460
      %v718 = vpop.f32.mrf.mxu0
      %v719 = vadd.f32 %v280, %v718
      %v720 = vpop.f32.mrf.mxu0
      %v721 = vadd.f32 %v280, %v720
      %722 = vmatmul.bf16.gmra.mxu0 %v463
      %v723 = vpop.f32.mrf.mxu0
      %v724 = vadd.f32 %v280, %v723
      %v725 = vpop.f32.mrf.mxu0
      %v726 = vadd.f32 %v280, %v725
      %727 = vmatmul.bf16.gmra.mxu0 %v466
      %v728 = vpop.f32.mrf.mxu0
      %v729 = vadd.f32 %v280, %v728
      %v730 = vpop.f32.mrf.mxu0
      %v731 = vadd.f32 %v280, %v730
      %732 = vmatmul.bf16.gmra.mxu0 %v469
      %v733 = vpop.f32.mrf.mxu0
      %v734 = vadd.f32 %v280, %v733
      %v735 = vpop.f32.mrf.mxu0
      %v736 = vadd.f32 %v280, %v735
      %737 = vmatmul.bf16.gmra.mxu0 %v472
      %v738 = vpop.f32.mrf.mxu0
      %v739 = vadd.f32 %v280, %v738
      %v740 = vpop.f32.mrf.mxu0
      %v741 = vadd.f32 %v280, %v740
      %742 = vmatmul.bf16.gmra.mxu0 %v475
      %v743 = vpop.f32.mrf.mxu0
      %v744 = vadd.f32 %v280, %v743
      %v745 = vpop.f32.mrf.mxu0
      %v746 = vadd.f32 %v280, %v745
      %747 = vmatmul.bf16.gmra.mxu0 %v478
      %v748 = vpop.f32.mrf.mxu0
      %v749 = vadd.f32 %v280, %v748
      %v750 = vpop.f32.mrf.mxu0
      %v751 = vadd.f32 %v280, %v750
      %752 = vmatmul.bf16.gmra.mxu0 %v481
      %v753 = vpop.f32.mrf.mxu0
      %v754 = vadd.f32 %v280, %v753
      %v755 = vpop.f32.mrf.mxu0
      %v756 = vadd.f32 %v280, %v755
      %757 = vmatmul.bf16.gmra.mxu0 %v484
      %v758 = vpop.f32.mrf.mxu0
      %v759 = vadd.f32 %v280, %v758
      %v760 = vpop.f32.mrf.mxu0
      %v761 = vadd.f32 %v280, %v760
      %762 = vmatmul.bf16.gmra.mxu0 %v487
      %v763 = vpop.f32.mrf.mxu0
      %v764 = vadd.f32 %v280, %v763
      %v765 = vpop.f32.mrf.mxu0
      %v766 = vadd.f32 %v280, %v765
      %767 = vdwg.mxu0
      %768 = vmatpush.bf16.msra.mxu0 %v609
      %769 = vmatpush.bf16.msra.mxu0 %v608
      %770 = vmatpush.bf16.msra.mxu0 %v607
      %771 = vmatpush.bf16.msra.mxu0 %v606
      %772 = vmatpush.bf16.msra.mxu0 %v605
      %773 = vmatpush.bf16.msra.mxu0 %v604
      %774 = vmatpush.bf16.msra.mxu0 %v603
      %775 = vmatpush.bf16.msra.mxu0 %v602
      %776 = vmatmul.bf16.gmra.mxu0 %v443
      %v777 = vpop.f32.mrf.mxu0
      %v778 = vadd.f32 %v689, %v777
      %v779 = vpop.f32.mrf.mxu0
      %v780 = vadd.f32 %v691, %v779
      %781 = vmatmul.bf16.gmra.mxu0 %v446
      %v782 = vpop.f32.mrf.mxu0
      %v783 = vadd.f32 %v694, %v782
      %v784 = vpop.f32.mrf.mxu0
      %v785 = vadd.f32 %v696, %v784
      %786 = vmatmul.bf16.gmra.mxu0 %v449
      %v787 = vpop.f32.mrf.mxu0
      %v788 = vadd.f32 %v699, %v787
      %v789 = vpop.f32.mrf.mxu0
      %v790 = vadd.f32 %v701, %v789
      %791 = vmatmul.bf16.gmra.mxu0 %v452
      %v792 = vpop.f32.mrf.mxu0
      %v793 = vadd.f32 %v704, %v792
      %v794 = vpop.f32.mrf.mxu0
      %v795 = vadd.f32 %v706, %v794
      %796 = vmatmul.bf16.gmra.mxu0 %v455
      %v797 = vpop.f32.mrf.mxu0
      %v798 = vadd.f32 %v709, %v797
      %v799 = vpop.f32.mrf.mxu0
      %v800 = vadd.f32 %v711, %v799
      %801 = vmatmul.bf16.gmra.mxu0 %v458
      %v802 = vpop.f32.mrf.mxu0
      %v803 = vadd.f32 %v714, %v802
      %v804 = vpop.f32.mrf.mxu0
      %v805 = vadd.f32 %v716, %v804
      %806 = vmatmul.bf16.gmra.mxu0 %v461
      %v807 = vpop.f32.mrf.mxu0
      %v808 = vadd.f32 %v719, %v807
      %v809 = vpop.f32.mrf.mxu0
      %v810 = vadd.f32 %v721, %v809
      %811 = vmatmul.bf16.gmra.mxu0 %v464
      %v812 = vpop.f32.mrf.mxu0
      %v813 = vadd.f32 %v724, %v812
      %v814 = vpop.f32.mrf.mxu0
      %v815 = vadd.f32 %v726, %v814
      %816 = vmatmul.bf16.gmra.mxu0 %v467
      %v817 = vpop.f32.mrf.mxu0
      %v818 = vadd.f32 %v729, %v817
      %v819 = vpop.f32.mrf.mxu0
      %v820 = vadd.f32 %v731, %v819
      %821 = vmatmul.bf16.gmra.mxu0 %v470
      %v822 = vpop.f32.mrf.mxu0
      %v823 = vadd.f32 %v734, %v822
      %v824 = vpop.f32.mrf.mxu0
      %v825 = vadd.f32 %v736, %v824
      %826 = vmatmul.bf16.gmra.mxu0 %v473
      %v827 = vpop.f32.mrf.mxu0
      %v828 = vadd.f32 %v739, %v827
      %v829 = vpop.f32.mrf.mxu0
      %v830 = vadd.f32 %v741, %v829
      %831 = vmatmul.bf16.gmra.mxu0 %v476
      %v832 = vpop.f32.mrf.mxu0
      %v833 = vadd.f32 %v744, %v832
      %v834 = vpop.f32.mrf.mxu0
      %v835 = vadd.f32 %v746, %v834
      %836 = vmatmul.bf16.gmra.mxu0 %v479
      %v837 = vpop.f32.mrf.mxu0
      %v838 = vadd.f32 %v749, %v837
      %v839 = vpop.f32.mrf.mxu0
      %v840 = vadd.f32 %v751, %v839
      %841 = vmatmul.bf16.gmra.mxu0 %v482
      %v842 = vpop.f32.mrf.mxu0
      %v843 = vadd.f32 %v754, %v842
      %v844 = vpop.f32.mrf.mxu0
      %v845 = vadd.f32 %v756, %v844
      %846 = vmatmul.bf16.gmra.mxu0 %v485
      %v847 = vpop.f32.mrf.mxu0
      %v848 = vadd.f32 %v759, %v847
      %v849 = vpop.f32.mrf.mxu0
      %v850 = vadd.f32 %v761, %v849
      %851 = vmatmul.bf16.gmra.mxu0 %v488
      %v852 = vpop.f32.mrf.mxu0
      %v853 = vadd.f32 %v764, %v852
      %v854 = vpop.f32.mrf.mxu0
      %v855 = vadd.f32 %v766, %v854
      %856 = vdwg.mxu0
      %857 = vmatpush.bf16.msra.mxu0 0
      %858 = vmatpush.bf16.msra.mxu0 0
      %859 = vmatpush.bf16.msra.mxu0 0
      %860 = vmatpush.bf16.msra.mxu0 0
      %861 = vmatpush.bf16.msra.mxu0 0
      %862 = vmatpush.bf16.msra.mxu0 0
      %863 = vmatpush.bf16.msra.mxu0 %v611
      %864 = vmatpush.bf16.msra.mxu0 %v610
      %865 = vmatmul.bf16.gmra.mxu0 %v632
      %v866 = vpop.f32.mrf.mxu0
      %v867 = vadd.f32 %v778, %v866
      %v868 = vpop.f32.mrf.mxu0
      %v869 = vadd.f32 %v780, %v868
      %870 = vmatmul.bf16.gmra.mxu0 %v635
      %v871 = vpop.f32.mrf.mxu0
      %v872 = vadd.f32 %v783, %v871
      %v873 = vpop.f32.mrf.mxu0
      %v874 = vadd.f32 %v785, %v873
      %875 = vmatmul.bf16.gmra.mxu0 %v638
      %v876 = vpop.f32.mrf.mxu0
      %v877 = vadd.f32 %v788, %v876
      %v878 = vpop.f32.mrf.mxu0
      %v879 = vadd.f32 %v790, %v878
      %880 = vmatmul.bf16.gmra.mxu0 %v641
      %v881 = vpop.f32.mrf.mxu0
      %v882 = vadd.f32 %v793, %v881
      %v883 = vpop.f32.mrf.mxu0
      %v884 = vadd.f32 %v795, %v883
      %885 = vmatmul.bf16.gmra.mxu0 %v644
      %v886 = vpop.f32.mrf.mxu0
      %v887 = vadd.f32 %v798, %v886
      %v888 = vpop.f32.mrf.mxu0
      %v889 = vadd.f32 %v800, %v888
      %890 = vmatmul.bf16.gmra.mxu0 %v647
      %v891 = vpop.f32.mrf.mxu0
      %v892 = vadd.f32 %v803, %v891
      %v893 = vpop.f32.mrf.mxu0
      %v894 = vadd.f32 %v805, %v893
      %895 = vmatmul.bf16.gmra.mxu0 %v650
      %v896 = vpop.f32.mrf.mxu0
      %v897 = vadd.f32 %v808, %v896
      %v898 = vpop.f32.mrf.mxu0
      %v899 = vadd.f32 %v810, %v898
      %900 = vmatmul.bf16.gmra.mxu0 %v653
      %v901 = vpop.f32.mrf.mxu0
      %v902 = vadd.f32 %v813, %v901
      %v903 = vpop.f32.mrf.mxu0
      %v904 = vadd.f32 %v815, %v903
      %905 = vmatmul.bf16.gmra.mxu0 %v656
      %v906 = vpop.f32.mrf.mxu0
      %v907 = vadd.f32 %v818, %v906
      %v908 = vpop.f32.mrf.mxu0
      %v909 = vadd.f32 %v820, %v908
      %910 = vmatmul.bf16.gmra.mxu0 %v659
      %v911 = vpop.f32.mrf.mxu0
      %v912 = vadd.f32 %v823, %v911
      %v913 = vpop.f32.mrf.mxu0
      %v914 = vadd.f32 %v825, %v913
      %915 = vmatmul.bf16.gmra.mxu0 %v662
      %v916 = vpop.f32.mrf.mxu0
      %v917 = vadd.f32 %v828, %v916
      %v918 = vpop.f32.mrf.mxu0
      %v919 = vadd.f32 %v830, %v918
      %920 = vmatmul.bf16.gmra.mxu0 %v665
      %v921 = vpop.f32.mrf.mxu0
      %v922 = vadd.f32 %v833, %v921
      %v923 = vpop.f32.mrf.mxu0
      %v924 = vadd.f32 %v835, %v923
      %925 = vmatmul.bf16.gmra.mxu0 %v668
      %v926 = vpop.f32.mrf.mxu0
      %v927 = vadd.f32 %v838, %v926
      %v928 = vpop.f32.mrf.mxu0
      %v929 = vadd.f32 %v840, %v928
      %930 = vmatmul.bf16.gmra.mxu0 %v671
      %v931 = vpop.f32.mrf.mxu0
      %v932 = vadd.f32 %v843, %v931
      %v933 = vpop.f32.mrf.mxu0
      %v934 = vadd.f32 %v845, %v933
      %935 = vmatmul.bf16.gmra.mxu0 %v674
      %v936 = vpop.f32.mrf.mxu0
      %v937 = vadd.f32 %v848, %v936
      %v938 = vpop.f32.mrf.mxu0
      %v939 = vadd.f32 %v850, %v938
      %940 = vmatmul.bf16.gmra.mxu0 %v677
      %v941 = vpop.f32.mrf.mxu0
      %v942 = vadd.f32 %v853, %v941
      %v943 = vpop.f32.mrf.mxu0
      %v944 = vadd.f32 %v855, %v943
      %945 = vdwg.mxu0
      %v946 = vmax.f32 %v867, 0.0
      %v947 = vmax.f32 %v869, 0.0
      %v948 = vmax.f32 %v872, 0.0
      %v949 = vmax.f32 %v874, 0.0
      %v950 = vmax.f32 %v877, 0.0
      %v951 = vmax.f32 %v879, 0.0
      %v952 = vmax.f32 %v882, 0.0
      %v953 = vmax.f32 %v884, 0.0
      %v954 = vmax.f32 %v887, 0.0
      %v955 = vmax.f32 %v889, 0.0
      %v956 = vmax.f32 %v892, 0.0
      %v957 = vmax.f32 %v894, 0.0
      %v958 = vmax.f32 %v897, 0.0
      %v959 = vmax.f32 %v899, 0.0
      %v960 = vmax.f32 %v902, 0.0
      %v961 = vmax.f32 %v904, 0.0
      %v962 = vmax.f32 %v907, 0.0
      %v963 = vmax.f32 %v909, 0.0
      %v964 = vmax.f32 %v912, 0.0
      %v965 = vmax.f32 %v914, 0.0
      %v966 = vmax.f32 %v917, 0.0
      %v967 = vmax.f32 %v919, 0.0
      %v968 = vmax.f32 %v922, 0.0
      %v969 = vmax.f32 %v924, 0.0
      %v970 = vmax.f32 %v927, 0.0
      %v971 = vmax.f32 %v929, 0.0
      %v972 = vmax.f32 %v932, 0.0
      %v973 = vmax.f32 %v934, 0.0
      %v974 = vmax.f32 %v937, 0.0
      %v975 = vmax.f32 %v939, 0.0
      %v976 = vmax.f32 %v942, 0.0
      %v977 = vmax.f32 %v944, 0.0
      %v978 = vpack.c.bf16 %v946, %v946
      %v979 = vpack.c.bf16 %v947, %v947
      %v980 = vpack.c.bf16 %v948, %v948
      %v981 = vpack.c.bf16 %v949, %v949
      %v982 = vpack.c.bf16 %v950, %v950
      %v983 = vpack.c.bf16 %v951, %v951
      %v984 = vpack.c.bf16 %v952, %v952
      %v985 = vpack.c.bf16 %v953, %v953
      %v986 = vpack.c.bf16 %v954, %v954
      %v987 = vpack.c.bf16 %v955, %v955
      %v988 = vpack.c.bf16 %v956, %v956
      %v989 = vpack.c.bf16 %v957, %v957
      %v990 = vpack.c.bf16 %v958, %v958
      %v991 = vpack.c.bf16 %v959, %v959
      %v992 = vpack.c.bf16 %v960, %v960
      %v993 = vpack.c.bf16 %v961, %v961
      %v994 = vpack.c.bf16 %v962, %v962
      %v995 = vpack.c.bf16 %v963, %v963
      %v996 = vpack.c.bf16 %v964, %v964
      %v997 = vpack.c.bf16 %v965, %v965
      %v998 = vpack.c.bf16 %v966, %v966
      %v999 = vpack.c.bf16 %v967, %v967
      %v1000 = vpack.c.bf16 %v968, %v968
      %v1001 = vpack.c.bf16 %v969, %v969
      %v1002 = vpack.c.bf16 %v970, %v970
      %v1003 = vpack.c.bf16 %v971, %v971
      %v1004 = vpack.c.bf16 %v972, %v972
      %v1005 = vpack.c.bf16 %v973, %v973
      %v1006 = vpack.c.bf16 %v974, %v974
      %v1007 = vpack.c.bf16 %v975, %v975
      %v1008 = vpack.c.bf16 %v976, %v976
      %v1009 = vpack.c.bf16 %v977, %v977
      %vm1010 = vcmask 519168
      %1011 = vst.msk [vmem:[%s175] sm:$0xf] %vm1010, %v978
      %1012 = vst.msk [vmem:[%s175 + $0x4] sm:$0xf] %vm1010, %v979
      %1013 = vst.msk [vmem:[%s175 + $0x8] sm:$0xf] %vm1010, %v980
      %1014 = vst.msk [vmem:[%s175 + $0xc] sm:$0xf] %vm1010, %v981
      %1015 = vst.msk [vmem:[%s175 + $0x10] sm:$0xf] %vm1010, %v982
      %1016 = vst.msk [vmem:[%s175 + $0x14] sm:$0xf] %vm1010, %v983
      %1017 = vst.msk [vmem:[%s175 + $0x18] sm:$0xf] %vm1010, %v984
      %1018 = vst.msk [vmem:[%s175 + $0x1c] sm:$0xf] %vm1010, %v985
      %1019 = vst.msk [vmem:[%s175 + $0x20] sm:$0xf] %vm1010, %v986
      %1020 = vst.msk [vmem:[%s175 + $0x24] sm:$0xf] %vm1010, %v987
      %1021 = vst.msk [vmem:[%s175 + $0x28] sm:$0xf] %vm1010, %v988
      %1022 = vst.msk [vmem:[%s175 + $0x2c] sm:$0xf] %vm1010, %v989
      %1023 = vst.msk [vmem:[%s175 + $0x30] sm:$0xf] %vm1010, %v990
      %1024 = vst.msk [vmem:[%s175 + $0x34] sm:$0xf] %vm1010, %v991
      %1025 = vst.msk [vmem:[%s175 + $0x38] sm:$0xf] %vm1010, %v992
      %1026 = vst.msk [vmem:[%s175 + $0x3c] sm:$0xf] %vm1010, %v993
      %1027 = vst.msk [vmem:[%s175 + $0x40] sm:$0xf] %vm1010, %v994
      %1028 = vst.msk [vmem:[%s175 + $0x44] sm:$0xf] %vm1010, %v995
      %1029 = vst.msk [vmem:[%s175 + $0x48] sm:$0xf] %vm1010, %v996
      %1030 = vst.msk [vmem:[%s175 + $0x4c] sm:$0xf] %vm1010, %v997
      %1031 = vst.msk [vmem:[%s175 + $0x50] sm:$0xf] %vm1010, %v998
      %1032 = vst.msk [vmem:[%s175 + $0x54] sm:$0xf] %vm1010, %v999
      %1033 = vst.msk [vmem:[%s175 + $0x58] sm:$0xf] %vm1010, %v1000
      %1034 = vst.msk [vmem:[%s175 + $0x5c] sm:$0xf] %vm1010, %v1001
      %1035 = vst.msk [vmem:[%s175 + $0x60] sm:$0xf] %vm1010, %v1002
      %1036 = vst.msk [vmem:[%s175 + $0x64] sm:$0xf] %vm1010, %v1003
      %1037 = vst.msk [vmem:[%s175 + $0x68] sm:$0xf] %vm1010, %v1004
      %1038 = vst.msk [vmem:[%s175 + $0x6c] sm:$0xf] %vm1010, %v1005
      %1039 = vst.msk [vmem:[%s175 + $0x70] sm:$0xf] %vm1010, %v1006
      %1040 = vst.msk [vmem:[%s175 + $0x74] sm:$0xf] %vm1010, %v1007
      %1041 = vst.msk [vmem:[%s175 + $0x78] sm:$0xf] %vm1010, %v1008
      %1042 = vst.msk [vmem:[%s175 + $0x7c] sm:$0xf] %vm1010, %v1009
      %s1043 = smul.u32 32, %s14
      %p1044 = scmp.lt.s32.totalorder %s1043, 63
      %s1045 = scalar_select %p1044, %s1043, 63
      %s1046 = smul.addr %s1045, 4
      %s1047 = scalar_lea.vmem %s3, %s1046
      // Predicated region
      $region33: #{vae_encoder_forward.5} parent=31 // pred_check
        %p1048 = pneg %p100
      $region34: #{vae_encoder_forward.5} parent=31 // pred_check_branch
        %1050 = sbr.rel (%p1048) target = $region36
      $region35: #{vae_encoder_forward.5} parent=31 // pred_region
        %s1051 = smul.u32 32, %s14
      $region36: #{vae_encoder_forward.5} parent=31 // pred_fallthru
        _
    $region32: #{vae_encoder_forward.5} parent=5 // pred_fallthru
      _
    %p1052 = scmp.le.s32.totalorder 2, %s9
    // Predicated region
    $region37: #{vae_encoder_forward.5} parent=5 // pred_check
      %p1053 = pneg %p1052
    $region38: #{vae_encoder_forward.5} parent=5 // pred_check_branch
      %1055 = sbr.rel (%p1053) target = $region40
    $region39: #{vae_encoder_forward.5} parent=5 // pred_region
      %s1056 = ssub.s32 %s9, 2
      // Predicated region
      $region41: #{vae_encoder_forward.5} parent=39 // pred_check
        %p1057 = pneg %p106
      $region42: #{vae_encoder_forward.5} parent=39 // pred_check_branch
        %1059 = sbr.rel (%p1057) target = $region44
      $region43: #{vae_encoder_forward.5} parent=39 // pred_region
        %s1060 = smul.u32 32, %s15
        %p1061 = scmp.lt.s32.totalorder %s1060, 63
        %s1062 = scalar_select %p1061, %s1060, 63
        %s1063 = smul.addr %s1062, 4
        %s1064 = scalar_lea.vmem %s3, %s1063
      $region44: #{vae_encoder_forward.5} parent=39 // pred_fallthru
        _
    $region40: #{vae_encoder_forward.5} parent=5 // pred_fallthru
      _
  $region6: #{vae_encoder_forward.5} parent=0 // loop_footer
    %s13 = sadd.s32 1, %s9
  $region7: #{vae_encoder_forward.5} parent=0 // loop_footer_branch
    %8 = sbr.rel target = $region3
  $region8: #{vae_encoder_forward.5} parent=0 // loop_exit
    _

// kernel: vae_encoder_forward.6
$region0: #{vae_encoder_forward.6}
  #allocation0 [shape = 'u32[]', space=smem, size = 0x4, offset = 0x4, fixed_abs, tag = 'smem constant byte address 0x4 - core index']
  #allocation1 [shape = 'u32[72,128]{1,0:T(1,128)}', space=vmem, size = 0x9000, scoped, tag = 'internal scratch']
  %s0 = inlined_call_operand.vmem [shape: bf16[128,576], index: 0, kind: input, shape index: {}]
  %s1 = inlined_call_operand.vmem [shape: bf16[576,128], index: 1, kind: input, shape index: {}]
  %s2 = inlined_call_operand.vmem [shape: f32[1,128], index: 2, kind: input, shape index: {}]
  %s3 = inlined_call_operand.vmem [shape: bf16[128,128], index: 3, kind: output, shape index: {}]
  %s4 = sld [smem:[#allocation0]]
  $region22: #{vae_encoder_forward.6} parent=0
    _
  %s6 = ssub.s32 1, %s4
  %s7 = scalar_select 0, %s6, %s4
  // Predicated region
  $region2: #{vae_encoder_forward.6} parent=0 // pred_check
    _
  $region3: #{vae_encoder_forward.6} parent=0 // pred_check_branch
    %9 = sbr.rel (0) target = $region5
  $region4: #{vae_encoder_forward.6} parent=0 // pred_region
    _
  $region5: #{vae_encoder_forward.6} parent=0 // pred_fallthru
    _
  // Predicated region
  $region6: #{vae_encoder_forward.6} parent=0 // pred_check
    _
  $region7: #{vae_encoder_forward.6} parent=0 // pred_check_branch
    %11 = sbr.rel (0) target = $region9
  $region8: #{vae_encoder_forward.6} parent=0 // pred_region
    _
  $region9: #{vae_encoder_forward.6} parent=0 // pred_fallthru
    _
  // Predicated region
  $region10: #{vae_encoder_forward.6} parent=0 // pred_check
    _
  $region11: #{vae_encoder_forward.6} parent=0 // pred_check_branch
    %13 = sbr.rel (0) target = $region13
  $region12: #{vae_encoder_forward.6} parent=0 // pred_region
    _
  $region13: #{vae_encoder_forward.6} parent=0 // pred_fallthru
    _
  %v15 = vld [vmem:[%s0] sm:$0xff]
  %v16 = vld [vmem:[%s0 + $0x8] sm:$0xff]
  %v17 = vld [vmem:[%s0 + $0x10] sm:$0xf]
  %v18 = vld [vmem:[%s0 + $0x14] sm:$0xff]
  %v19 = vld [vmem:[%s0 + $0x1c] sm:$0xff]
  %v20 = vld [vmem:[%s0 + $0x24] sm:$0xf]
  %v21 = vld [vmem:[%s0 + $0x28] sm:$0xff]
  %v22 = vld [vmem:[%s0 + $0x30] sm:$0xff]
  %v23 = vld [vmem:[%s0 + $0x38] sm:$0xf]
  %v24 = vld [vmem:[%s0 + $0x3c] sm:$0xff]
  %v25 = vld [vmem:[%s0 + $0x44] sm:$0xff]
  %v26 = vld [vmem:[%s0 + $0x4c] sm:$0xf]
  %v27 = vld [vmem:[%s0 + $0x50] sm:$0xff]
  %v28 = vld [vmem:[%s0 + $0x58] sm:$0xff]
  %v29 = vld [vmem:[%s0 + $0x60] sm:$0xf]
  %v30 = vld [vmem:[%s0 + $0x64] sm:$0xff]
  %v31 = vld [vmem:[%s0 + $0x6c] sm:$0xff]
  %v32 = vld [vmem:[%s0 + $0x74] sm:$0xf]
  %v33 = vld [vmem:[%s0 + $0x78] sm:$0xff]
  %v34 = vld [vmem:[%s0 + $0x80] sm:$0xff]
  %v35 = vld [vmem:[%s0 + $0x88] sm:$0xf]
  %v36 = vld [vmem:[%s0 + $0x8c] sm:$0xff]
  %v37 = vld [vmem:[%s0 + $0x94] sm:$0xff]
  %v38 = vld [vmem:[%s0 + $0x9c] sm:$0xf]
  %v39 = vld [vmem:[%s0 + $0xa0] sm:$0xff]
  %v40 = vld [vmem:[%s0 + $0xa8] sm:$0xff]
  %v41 = vld [vmem:[%s0 + $0xb0] sm:$0xf]
  %v42 = vld [vmem:[%s0 + $0xb4] sm:$0xff]
  %v43 = vld [vmem:[%s0 + $0xbc] sm:$0xff]
  %v44 = vld [vmem:[%s0 + $0xc4] sm:$0xf]
  %v45 = vld [vmem:[%s0 + $0xc8] sm:$0xff]
  %v46 = vld [vmem:[%s0 + $0xd0] sm:$0xff]
  %v47 = vld [vmem:[%s0 + $0xd8] sm:$0xf]
  %v48 = vld [vmem:[%s0 + $0xdc] sm:$0xff]
  %v49 = vld [vmem:[%s0 + $0xe4] sm:$0xff]
  %v50 = vld [vmem:[%s0 + $0xec] sm:$0xf]
  %v51 = vld [vmem:[%s0 + $0xf0] sm:$0xff]
  %v52 = vld [vmem:[%s0 + $0xf8] sm:$0xff]
  %v53 = vld [vmem:[%s0 + $0x100] sm:$0xf]
  %v54 = vld [vmem:[%s0 + $0x104] sm:$0xff]
  %v55 = vld [vmem:[%s0 + $0x10c] sm:$0xff]
  %v56 = vld [vmem:[%s0 + $0x114] sm:$0xf]
  %v57 = vld [vmem:[%s0 + $0x118] sm:$0xff]
  %v58 = vld [vmem:[%s0 + $0x120] sm:$0xff]
  %v59 = vld [vmem:[%s0 + $0x128] sm:$0xf]
  %v60 = vld [vmem:[%s0 + $0x12c] sm:$0xff]
  %v61 = vld [vmem:[%s0 + $0x134] sm:$0xff]
  %v62 = vld [vmem:[%s0 + $0x13c] sm:$0xf]
  %v63 = vld [vmem:[%s1] sm:$0xf]
  %v64 = vld [vmem:[%s1 + $0x4] sm:$0xf]
  %v65 = vld [vmem:[%s1 + $0x8] sm:$0xf]
  %v66 = vld [vmem:[%s1 + $0xc] sm:$0xf]
  %v67 = vld [vmem:[%s1 + $0x10] sm:$0xf]
  %v68 = vld [vmem:[%s1 + $0x14] sm:$0xf]
  %v69 = vld [vmem:[%s1 + $0x18] sm:$0xf]
  %v70 = vld [vmem:[%s1 + $0x1c] sm:$0xf]
  %v71 = vld [vmem:[%s1 + $0x20] sm:$0xf]
  %v72 = vld [vmem:[%s1 + $0x24] sm:$0xf]
  %v73 = vld [vmem:[%s1 + $0x28] sm:$0xf]
  %v74 = vld [vmem:[%s1 + $0x2c] sm:$0xf]
  %v75 = vld [vmem:[%s1 + $0x30] sm:$0xf]
  %v76 = vld [vmem:[%s1 + $0x34] sm:$0xf]
  %v77 = vld [vmem:[%s1 + $0x38] sm:$0xf]
  %v78 = vld [vmem:[%s1 + $0x3c] sm:$0xf]
  %v79 = vld [vmem:[%s1 + $0x40] sm:$0xf]
  %v80 = vld [vmem:[%s1 + $0x44] sm:$0xf]
  %v81 = vld [vmem:[%s1 + $0x48] sm:$0xf]
  %v82 = vld [vmem:[%s1 + $0x4c] sm:$0xf]
  %v83 = vld [vmem:[%s1 + $0x50] sm:$0xf]
  %v84 = vld [vmem:[%s1 + $0x54] sm:$0xf]
  %v85 = vld [vmem:[%s1 + $0x58] sm:$0xf]
  %v86 = vld [vmem:[%s1 + $0x5c] sm:$0xf]
  %v87 = vld [vmem:[%s1 + $0x60] sm:$0xf]
  %v88 = vld [vmem:[%s1 + $0x64] sm:$0xf]
  %v89 = vld [vmem:[%s1 + $0x68] sm:$0xf]
  %v90 = vld [vmem:[%s1 + $0x6c] sm:$0xf]
  %v91 = vld [vmem:[%s1 + $0x70] sm:$0xf]
  %v92 = vld [vmem:[%s1 + $0x74] sm:$0xf]
  %v93 = vld [vmem:[%s1 + $0x78] sm:$0xf]
  %v94 = vld [vmem:[%s1 + $0x7c] sm:$0xf]
  %v95 = vld [vmem:[%s1 + $0x80] sm:$0xf]
  %v96 = vld [vmem:[%s1 + $0x84] sm:$0xf]
  %v97 = vld [vmem:[%s1 + $0x88] sm:$0xf]
  %v98 = vld [vmem:[%s1 + $0x8c] sm:$0xf]
  %v99 = vld [vmem:[%s1 + $0x90] sm:$0xf]
  %v100 = vld [vmem:[%s1 + $0x94] sm:$0xf]
  %v101 = vld [vmem:[%s1 + $0x98] sm:$0xf]
  %v102 = vld [vmem:[%s1 + $0x9c] sm:$0xf]
  %v103 = vld [vmem:[%s1 + $0xa0] sm:$0xf]
  %v104 = vld [vmem:[%s1 + $0xa4] sm:$0xf]
  %v105 = vld [vmem:[%s1 + $0xa8] sm:$0xf]
  %v106 = vld [vmem:[%s1 + $0xac] sm:$0xf]
  %v107 = vld [vmem:[%s1 + $0xb0] sm:$0xf]
  %v108 = vld [vmem:[%s1 + $0xb4] sm:$0xf]
  %v109 = vld [vmem:[%s1 + $0xb8] sm:$0xf]
  %v110 = vld [vmem:[%s1 + $0xbc] sm:$0xf]
  %v111 = vld [vmem:[%s1 + $0xc0] sm:$0xf]
  %v112 = vld [vmem:[%s1 + $0xc4] sm:$0xf]
  %v113 = vld [vmem:[%s1 + $0xc8] sm:$0xf]
  %v114 = vld [vmem:[%s1 + $0xcc] sm:$0xf]
  %v115 = vld [vmem:[%s1 + $0xd0] sm:$0xf]
  %v116 = vld [vmem:[%s1 + $0xd4] sm:$0xf]
  %v117 = vld [vmem:[%s1 + $0xd8] sm:$0xf]
  %v118 = vld [vmem:[%s1 + $0xdc] sm:$0xf]
  %v119 = vld [vmem:[%s1 + $0xe0] sm:$0xf]
  %v120 = vld [vmem:[%s1 + $0xe4] sm:$0xf]
  %v121 = vld [vmem:[%s1 + $0xe8] sm:$0xf]
  %v122 = vld [vmem:[%s1 + $0xec] sm:$0xf]
  %v123 = vld [vmem:[%s1 + $0xf0] sm:$0xf]
  %v124 = vld [vmem:[%s1 + $0xf4] sm:$0xf]
  %v125 = vld [vmem:[%s1 + $0xf8] sm:$0xf]
  %v126 = vld [vmem:[%s1 + $0xfc] sm:$0xf]
  %v127 = vld [vmem:[%s1 + $0x100] sm:$0xf]
  %v128 = vld [vmem:[%s1 + $0x104] sm:$0xf]
  %v129 = vld [vmem:[%s1 + $0x108] sm:$0xf]
  %v130 = vld [vmem:[%s1 + $0x10c] sm:$0xf]
  %v131 = vld [vmem:[%s1 + $0x110] sm:$0xf]
  %v132 = vld [vmem:[%s1 + $0x114] sm:$0xf]
  %v133 = vld [vmem:[%s1 + $0x118] sm:$0xf]
  %v134 = vld [vmem:[%s1 + $0x11c] sm:$0xf]
  %v135 = vld [vmem:[%s2] sm:$0x1]
  %v137 = vperm.slane %v135, 0
  %v187 = vunpack.c.l.b16 %v15
  %v188 = vunpack.c.h.b16 %v15
  %v189 = vunpack.c.l.b16 %v16
  %v190 = vunpack.c.h.b16 %v16
  %v191 = vunpack.c.l.b16 %v17
  %v192 = vunpack.c.l.b16 %v18
  %v193 = vunpack.c.h.b16 %v18
  %v194 = vunpack.c.l.b16 %v19
  %v195 = vunpack.c.h.b16 %v19
  %v196 = vunpack.c.l.b16 %v20
  %v197 = vunpack.c.l.b16 %v21
  %v198 = vunpack.c.h.b16 %v21
  %v199 = vunpack.c.l.b16 %v22
  %v200 = vunpack.c.h.b16 %v22
  %v201 = vunpack.c.l.b16 %v23
  %v202 = vunpack.c.l.b16 %v24
  %v203 = vunpack.c.h.b16 %v24
  %v204 = vunpack.c.l.b16 %v25
  %v205 = vunpack.c.h.b16 %v25
  %v206 = vunpack.c.l.b16 %v26
  %v207 = vunpack.c.l.b16 %v27
  %v208 = vunpack.c.h.b16 %v27
  %v209 = vunpack.c.l.b16 %v28
  %v210 = vunpack.c.h.b16 %v28
  %v211 = vunpack.c.l.b16 %v29
  %v212 = vunpack.c.l.b16 %v30
  %v213 = vunpack.c.h.b16 %v30
  %v214 = vunpack.c.l.b16 %v31
  %v215 = vunpack.c.h.b16 %v31
  %v216 = vunpack.c.l.b16 %v32
  %v217 = vunpack.c.l.b16 %v33
  %v218 = vunpack.c.h.b16 %v33
  %v219 = vunpack.c.l.b16 %v34
  %v220 = vunpack.c.h.b16 %v34
  %v221 = vunpack.c.l.b16 %v35
  %v222 = vunpack.c.l.b16 %v36
  %v223 = vunpack.c.h.b16 %v36
  %v224 = vunpack.c.l.b16 %v37
  %v225 = vunpack.c.h.b16 %v37
  %v226 = vunpack.c.l.b16 %v38
  %v227 = vunpack.c.l.b16 %v39
  %v228 = vunpack.c.h.b16 %v39
  %v229 = vunpack.c.l.b16 %v40
  %v230 = vunpack.c.h.b16 %v40
  %v231 = vunpack.c.l.b16 %v41
  %v232 = vunpack.c.l.b16 %v42
  %v233 = vunpack.c.h.b16 %v42
  %v234 = vunpack.c.l.b16 %v43
  %v235 = vunpack.c.h.b16 %v43
  %v236 = vunpack.c.l.b16 %v44
  %v237 = vunpack.c.l.b16 %v45
  %v238 = vunpack.c.h.b16 %v45
  %v239 = vunpack.c.l.b16 %v46
  %v240 = vunpack.c.h.b16 %v46
  %v241 = vunpack.c.l.b16 %v47
  %v242 = vunpack.c.l.b16 %v48
  %v243 = vunpack.c.h.b16 %v48
  %v244 = vunpack.c.l.b16 %v49
  %v245 = vunpack.c.h.b16 %v49
  %v246 = vunpack.c.l.b16 %v50
  %v247 = vunpack.c.l.b16 %v51
  %v248 = vunpack.c.h.b16 %v51
  %v249 = vunpack.c.l.b16 %v52
  %v250 = vunpack.c.h.b16 %v52
  %v251 = vunpack.c.l.b16 %v53
  %v252 = vunpack.c.l.b16 %v54
  %v253 = vunpack.c.h.b16 %v54
  %v254 = vunpack.c.l.b16 %v55
  %v255 = vunpack.c.h.b16 %v55
  %v256 = vunpack.c.l.b16 %v56
  %v257 = vunpack.c.l.b16 %v57
  %v258 = vunpack.c.h.b16 %v57
  %v259 = vunpack.c.l.b16 %v58
  %v260 = vunpack.c.h.b16 %v58
  %v261 = vunpack.c.l.b16 %v59
  %v262 = vunpack.c.l.b16 %v60
  %v263 = vunpack.c.h.b16 %v60
  %v264 = vunpack.c.l.b16 %v61
  %v265 = vunpack.c.h.b16 %v61
  %v266 = vunpack.c.l.b16 %v62
  %v267 = vpack.c.b16 %v192, %v187
  %v268 = vpack.c.b16 %v193, %v188
  %v269 = vpack.c.b16 %v194, %v189
  %v270 = vpack.c.b16 %v195, %v190
  %v271 = vpack.c.b16 %v196, %v191
  %v272 = vpack.c.b16 %v202, %v197
  %v273 = vpack.c.b16 %v203, %v198
  %v274 = vpack.c.b16 %v204, %v199
  %v275 = vpack.c.b16 %v205, %v200
  %v276 = vpack.c.b16 %v206, %v201
  %v277 = vpack.c.b16 %v212, %v207
  %v278 = vpack.c.b16 %v213, %v208
  %v279 = vpack.c.b16 %v214, %v209
  %v280 = vpack.c.b16 %v215, %v210
  %v281 = vpack.c.b16 %v216, %v211
  %v282 = vpack.c.b16 %v222, %v217
  %v283 = vpack.c.b16 %v223, %v218
  %v284 = vpack.c.b16 %v224, %v219
  %v285 = vpack.c.b16 %v225, %v220
  %v286 = vpack.c.b16 %v226, %v221
  %v287 = vpack.c.b16 %v232, %v227
  %v288 = vpack.c.b16 %v233, %v228
  %v289 = vpack.c.b16 %v234, %v229
  %v290 = vpack.c.b16 %v235, %v230
  %v291 = vpack.c.b16 %v236, %v231
  %v292 = vpack.c.b16 %v242, %v237
  %v293 = vpack.c.b16 %v243, %v238
  %v294 = vpack.c.b16 %v244, %v239
  %v295 = vpack.c.b16 %v245, %v240
  %v296 = vpack.c.b16 %v246, %v241
  %v297 = vpack.c.b16 %v252, %v247
  %v298 = vpack.c.b16 %v253, %v248
  %v299 = vpack.c.b16 %v254, %v249
  %v300 = vpack.c.b16 %v255, %v250
  %v301 = vpack.c.b16 %v256, %v251
  %v302 = vpack.c.b16 %v262, %v257
  %v303 = vpack.c.b16 %v263, %v258
  %v304 = vpack.c.b16 %v264, %v259
  %v305 = vpack.c.b16 %v265, %v260
  %v306 = vpack.c.b16 %v266, %v261
  %v411 = vunpack.c.l.b16 %v63
  %v412 = vunpack.c.l.b16 %v64
  %v413 = vunpack.c.l.b16 %v65
  %v414 = vunpack.c.l.b16 %v66
  %v415 = vunpack.c.l.b16 %v67
  %v416 = vunpack.c.l.b16 %v68
  %v417 = vunpack.c.l.b16 %v69
  %v418 = vunpack.c.l.b16 %v70
  %v419 = vunpack.c.l.b16 %v71
  %v420 = vunpack.c.l.b16 %v72
  %v421 = vunpack.c.l.b16 %v73
  %v422 = vunpack.c.l.b16 %v74
  %v423 = vunpack.c.l.b16 %v75
  %v424 = vunpack.c.l.b16 %v76
  %v425 = vunpack.c.l.b16 %v77
  %v426 = vunpack.c.l.b16 %v78
  %v427 = vunpack.c.l.b16 %v79
  %v428 = vunpack.c.l.b16 %v80
  %v429 = vunpack.c.l.b16 %v81
  %v430 = vunpack.c.l.b16 %v82
  %v431 = vunpack.c.l.b16 %v83
  %v432 = vunpack.c.l.b16 %v84
  %v433 = vunpack.c.l.b16 %v85
  %v434 = vunpack.c.l.b16 %v86
  %v435 = vunpack.c.l.b16 %v87
  %v436 = vunpack.c.l.b16 %v88
  %v437 = vunpack.c.l.b16 %v89
  %v438 = vunpack.c.l.b16 %v90
  %v439 = vunpack.c.l.b16 %v91
  %v440 = vunpack.c.l.b16 %v92
  %v441 = vunpack.c.l.b16 %v93
  %v442 = vunpack.c.l.b16 %v94
  %v443 = vunpack.c.l.b16 %v95
  %v444 = vunpack.c.l.b16 %v96
  %v445 = vunpack.c.l.b16 %v97
  %v446 = vunpack.c.l.b16 %v98
  %v447 = vunpack.c.l.b16 %v99
  %v448 = vunpack.c.l.b16 %v100
  %v449 = vunpack.c.l.b16 %v101
  %v450 = vunpack.c.l.b16 %v102
  %v451 = vunpack.c.l.b16 %v103
  %v452 = vunpack.c.l.b16 %v104
  %v453 = vunpack.c.l.b16 %v105
  %v454 = vunpack.c.l.b16 %v106
  %v455 = vunpack.c.l.b16 %v107
  %v456 = vunpack.c.l.b16 %v108
  %v457 = vunpack.c.l.b16 %v109
  %v458 = vunpack.c.l.b16 %v110
  %v459 = vunpack.c.l.b16 %v111
  %v460 = vunpack.c.l.b16 %v112
  %v461 = vunpack.c.l.b16 %v113
  %v462 = vunpack.c.l.b16 %v114
  %v463 = vunpack.c.l.b16 %v115
  %v464 = vunpack.c.l.b16 %v116
  %v465 = vunpack.c.l.b16 %v117
  %v466 = vunpack.c.l.b16 %v118
  %v467 = vunpack.c.l.b16 %v119
  %v468 = vunpack.c.l.b16 %v120
  %v469 = vunpack.c.l.b16 %v121
  %v470 = vunpack.c.l.b16 %v122
  %v471 = vunpack.c.l.b16 %v123
  %v472 = vunpack.c.l.b16 %v124
  %v473 = vunpack.c.l.b16 %v125
  %v474 = vunpack.c.l.b16 %v126
  %v475 = vunpack.c.l.b16 %v127
  %v476 = vunpack.c.l.b16 %v128
  %v477 = vunpack.c.l.b16 %v129
  %v478 = vunpack.c.l.b16 %v130
  %v479 = vunpack.c.l.b16 %v131
  %v480 = vunpack.c.l.b16 %v132
  %v481 = vunpack.c.l.b16 %v133
  %v482 = vunpack.c.l.b16 %v134
  %v483 = vpack.c.b16 %v412, %v411
  %v484 = vpack.c.b16 %v414, %v413
  %v485 = vpack.c.b16 %v416, %v415
  %v486 = vpack.c.b16 %v418, %v417
  %v487 = vpack.c.b16 %v420, %v419
  %v488 = vpack.c.b16 %v422, %v421
  %v489 = vpack.c.b16 %v424, %v423
  %v490 = vpack.c.b16 %v426, %v425
  %v491 = vpack.c.b16 %v428, %v427
  %v492 = vpack.c.b16 %v430, %v429
  %v493 = vpack.c.b16 %v432, %v431
  %v494 = vpack.c.b16 %v434, %v433
  %v495 = vpack.c.b16 %v436, %v435
  %v496 = vpack.c.b16 %v438, %v437
  %v497 = vpack.c.b16 %v440, %v439
  %v498 = vpack.c.b16 %v442, %v441
  %v499 = vpack.c.b16 %v444, %v443
  %v500 = vpack.c.b16 %v446, %v445
  %v501 = vpack.c.b16 %v448, %v447
  %v502 = vpack.c.b16 %v450, %v449
  %v503 = vpack.c.b16 %v452, %v451
  %v504 = vpack.c.b16 %v454, %v453
  %v505 = vpack.c.b16 %v456, %v455
  %v506 = vpack.c.b16 %v458, %v457
  %v507 = vpack.c.b16 %v460, %v459
  %v508 = vpack.c.b16 %v462, %v461
  %v509 = vpack.c.b16 %v464, %v463
  %v510 = vpack.c.b16 %v466, %v465
  %v511 = vpack.c.b16 %v468, %v467
  %v512 = vpack.c.b16 %v470, %v469
  %v513 = vpack.c.b16 %v472, %v471
  %v514 = vpack.c.b16 %v474, %v473
  %v515 = vpack.c.b16 %v476, %v475
  %v516 = vpack.c.b16 %v478, %v477
  %v517 = vpack.c.b16 %v480, %v479
  %v518 = vpack.c.b16 %v482, %v481
  %vm555 = vcmask 523264
  %v557 = vsel %vm555, %v271, 0
  %v560 = vsel %vm555, %v276, 0
  %v563 = vsel %vm555, %v281, 0
  %v566 = vsel %vm555, %v286, 0
  %v569 = vsel %vm555, %v291, 0
  %v572 = vsel %vm555, %v296, 0
  %v575 = vsel %vm555, %v301, 0
  %v578 = vsel %vm555, %v306, 0
  %580 = vmatpush.bf16.msra.mxu0 %v490
  %581 = vmatpush.bf16.msra.mxu0 %v489
  %582 = vmatpush.bf16.msra.mxu0 %v488
  %583 = vmatpush.bf16.msra.mxu0 %v487
  %584 = vmatpush.bf16.msra.mxu0 %v486
  %585 = vmatpush.bf16.msra.mxu0 %v485
  %586 = vmatpush.bf16.msra.mxu0 %v484
  %587 = vmatpush.bf16.msra.mxu0 %v483
  %588 = vmatmul.bf16.gmra.mxu0 %v267
  %v589 = vpop.f32.mrf.mxu0
  %v590 = vadd.f32 %v137, %v589
  %v591 = vpop.f32.mrf.mxu0
  %v592 = vadd.f32 %v137, %v591
  %593 = vmatmul.bf16.gmra.mxu0 %v272
  %v594 = vpop.f32.mrf.mxu0
  %v595 = vadd.f32 %v137, %v594
  %v596 = vpop.f32.mrf.mxu0
  %v597 = vadd.f32 %v137, %v596
  %598 = vmatmul.bf16.gmra.mxu0 %v277
  %v599 = vpop.f32.mrf.mxu0
  %v600 = vadd.f32 %v137, %v599
  %v601 = vpop.f32.mrf.mxu0
  %v602 = vadd.f32 %v137, %v601
  %603 = vmatmul.bf16.gmra.mxu0 %v282
  %v604 = vpop.f32.mrf.mxu0
  %v605 = vadd.f32 %v137, %v604
  %v606 = vpop.f32.mrf.mxu0
  %v607 = vadd.f32 %v137, %v606
  %608 = vmatmul.bf16.gmra.mxu0 %v287
  %v609 = vpop.f32.mrf.mxu0
  %v610 = vadd.f32 %v137, %v609
  %v611 = vpop.f32.mrf.mxu0
  %v612 = vadd.f32 %v137, %v611
  %613 = vmatmul.bf16.gmra.mxu0 %v292
  %v614 = vpop.f32.mrf.mxu0
  %v615 = vadd.f32 %v137, %v614
  %v616 = vpop.f32.mrf.mxu0
  %v617 = vadd.f32 %v137, %v616
  %618 = vmatmul.bf16.gmra.mxu0 %v297
  %v619 = vpop.f32.mrf.mxu0
  %v620 = vadd.f32 %v137, %v619
  %v621 = vpop.f32.mrf.mxu0
  %v622 = vadd.f32 %v137, %v621
  %623 = vmatmul.bf16.gmra.mxu0 %v302
  %v624 = vpop.f32.mrf.mxu0
  %v625 = vadd.f32 %v137, %v624
  %v626 = vpop.f32.mrf.mxu0
  %v627 = vadd.f32 %v137, %v626
  %628 = vdwg.mxu0
  %629 = vmatpush.bf16.msra.mxu0 %v498
  %630 = vmatpush.bf16.msra.mxu0 %v497
  %631 = vmatpush.bf16.msra.mxu0 %v496
  %632 = vmatpush.bf16.msra.mxu0 %v495
  %633 = vmatpush.bf16.msra.mxu0 %v494
  %634 = vmatpush.bf16.msra.mxu0 %v493
  %635 = vmatpush.bf16.msra.mxu0 %v492
  %636 = vmatpush.bf16.msra.mxu0 %v491
  %637 = vmatmul.bf16.gmra.mxu0 %v268
  %v638 = vpop.f32.mrf.mxu0
  %v639 = vadd.f32 %v590, %v638
  %v640 = vpop.f32.mrf.mxu0
  %v641 = vadd.f32 %v592, %v640
  %642 = vmatmul.bf16.gmra.mxu0 %v273
  %v643 = vpop.f32.mrf.mxu0
  %v644 = vadd.f32 %v595, %v643
  %v645 = vpop.f32.mrf.mxu0
  %v646 = vadd.f32 %v597, %v645
  %647 = vmatmul.bf16.gmra.mxu0 %v278
  %v648 = vpop.f32.mrf.mxu0
  %v649 = vadd.f32 %v600, %v648
  %v650 = vpop.f32.mrf.mxu0
  %v651 = vadd.f32 %v602, %v650
  %652 = vmatmul.bf16.gmra.mxu0 %v283
  %v653 = vpop.f32.mrf.mxu0
  %v654 = vadd.f32 %v605, %v653
  %v655 = vpop.f32.mrf.mxu0
  %v656 = vadd.f32 %v607, %v655
  %657 = vmatmul.bf16.gmra.mxu0 %v288
  %v658 = vpop.f32.mrf.mxu0
  %v659 = vadd.f32 %v610, %v658
  %v660 = vpop.f32.mrf.mxu0
  %v661 = vadd.f32 %v612, %v660
  %662 = vmatmul.bf16.gmra.mxu0 %v293
  %v663 = vpop.f32.mrf.mxu0
  %v664 = vadd.f32 %v615, %v663
  %v665 = vpop.f32.mrf.mxu0
  %v666 = vadd.f32 %v617, %v665
  %667 = vmatmul.bf16.gmra.mxu0 %v298
  %v668 = vpop.f32.mrf.mxu0
  %v669 = vadd.f32 %v620, %v668
  %v670 = vpop.f32.mrf.mxu0
  %v671 = vadd.f32 %v622, %v670
  %672 = vmatmul.bf16.gmra.mxu0 %v303
  %v673 = vpop.f32.mrf.mxu0
  %v674 = vadd.f32 %v625, %v673
  %v675 = vpop.f32.mrf.mxu0
  %v676 = vadd.f32 %v627, %v675
  %677 = vdwg.mxu0
  %678 = vmatpush.bf16.msra.mxu0 %v506
  %679 = vmatpush.bf16.msra.mxu0 %v505
  %680 = vmatpush.bf16.msra.mxu0 %v504
  %681 = vmatpush.bf16.msra.mxu0 %v503
  %682 = vmatpush.bf16.msra.mxu0 %v502
  %683 = vmatpush.bf16.msra.mxu0 %v501
  %684 = vmatpush.bf16.msra.mxu0 %v500
  %685 = vmatpush.bf16.msra.mxu0 %v499
  %686 = vmatmul.bf16.gmra.mxu0 %v269
  %v687 = vpop.f32.mrf.mxu0
  %v688 = vadd.f32 %v639, %v687
  %v689 = vpop.f32.mrf.mxu0
  %v690 = vadd.f32 %v641, %v689
  %691 = vmatmul.bf16.gmra.mxu0 %v274
  %v692 = vpop.f32.mrf.mxu0
  %v693 = vadd.f32 %v644, %v692
  %v694 = vpop.f32.mrf.mxu0
  %v695 = vadd.f32 %v646, %v694
  %696 = vmatmul.bf16.gmra.mxu0 %v279
  %v697 = vpop.f32.mrf.mxu0
  %v698 = vadd.f32 %v649, %v697
  %v699 = vpop.f32.mrf.mxu0
  %v700 = vadd.f32 %v651, %v699
  %701 = vmatmul.bf16.gmra.mxu0 %v284
  %v702 = vpop.f32.mrf.mxu0
  %v703 = vadd.f32 %v654, %v702
  %v704 = vpop.f32.mrf.mxu0
  %v705 = vadd.f32 %v656, %v704
  %706 = vmatmul.bf16.gmra.mxu0 %v289
  %v707 = vpop.f32.mrf.mxu0
  %v708 = vadd.f32 %v659, %v707
  %v709 = vpop.f32.mrf.mxu0
  %v710 = vadd.f32 %v661, %v709
  %711 = vmatmul.bf16.gmra.mxu0 %v294
  %v712 = vpop.f32.mrf.mxu0
  %v713 = vadd.f32 %v664, %v712
  %v714 = vpop.f32.mrf.mxu0
  %v715 = vadd.f32 %v666, %v714
  %716 = vmatmul.bf16.gmra.mxu0 %v299
  %v717 = vpop.f32.mrf.mxu0
  %v718 = vadd.f32 %v669, %v717
  %v719 = vpop.f32.mrf.mxu0
  %v720 = vadd.f32 %v671, %v719
  %721 = vmatmul.bf16.gmra.mxu0 %v304
  %v722 = vpop.f32.mrf.mxu0
  %v723 = vadd.f32 %v674, %v722
  %v724 = vpop.f32.mrf.mxu0
  %v725 = vadd.f32 %v676, %v724
  %726 = vdwg.mxu0
  %727 = vmatpush.bf16.msra.mxu0 %v514
  %728 = vmatpush.bf16.msra.mxu0 %v513
  %729 = vmatpush.bf16.msra.mxu0 %v512
  %730 = vmatpush.bf16.msra.mxu0 %v511
  %731 = vmatpush.bf16.msra.mxu0 %v510
  %732 = vmatpush.bf16.msra.mxu0 %v509
  %733 = vmatpush.bf16.msra.mxu0 %v508
  %734 = vmatpush.bf16.msra.mxu0 %v507
  %735 = vmatmul.bf16.gmra.mxu0 %v270
  %v736 = vpop.f32.mrf.mxu0
  %v737 = vadd.f32 %v688, %v736
  %v738 = vpop.f32.mrf.mxu0
  %v739 = vadd.f32 %v690, %v738
  %740 = vmatmul.bf16.gmra.mxu0 %v275
  %v741 = vpop.f32.mrf.mxu0
  %v742 = vadd.f32 %v693, %v741
  %v743 = vpop.f32.mrf.mxu0
  %v744 = vadd.f32 %v695, %v743
  %745 = vmatmul.bf16.gmra.mxu0 %v280
  %v746 = vpop.f32.mrf.mxu0
  %v747 = vadd.f32 %v698, %v746
  %v748 = vpop.f32.mrf.mxu0
  %v749 = vadd.f32 %v700, %v748
  %750 = vmatmul.bf16.gmra.mxu0 %v285
  %v751 = vpop.f32.mrf.mxu0
  %v752 = vadd.f32 %v703, %v751
  %v753 = vpop.f32.mrf.mxu0
  %v754 = vadd.f32 %v705, %v753
  %755 = vmatmul.bf16.gmra.mxu0 %v290
  %v756 = vpop.f32.mrf.mxu0
  %v757 = vadd.f32 %v708, %v756
  %v758 = vpop.f32.mrf.mxu0
  %v759 = vadd.f32 %v710, %v758
  %760 = vmatmul.bf16.gmra.mxu0 %v295
  %v761 = vpop.f32.mrf.mxu0
  %v762 = vadd.f32 %v713, %v761
  %v763 = vpop.f32.mrf.mxu0
  %v764 = vadd.f32 %v715, %v763
  %765 = vmatmul.bf16.gmra.mxu0 %v300
  %v766 = vpop.f32.mrf.mxu0
  %v767 = vadd.f32 %v718, %v766
  %v768 = vpop.f32.mrf.mxu0
  %v769 = vadd.f32 %v720, %v768
  %770 = vmatmul.bf16.gmra.mxu0 %v305
  %v771 = vpop.f32.mrf.mxu0
  %v772 = vadd.f32 %v723, %v771
  %v773 = vpop.f32.mrf.mxu0
  %v774 = vadd.f32 %v725, %v773
  %775 = vdwg.mxu0
  %776 = vmatpush.bf16.msra.mxu0 0
  %777 = vmatpush.bf16.msra.mxu0 0
  %778 = vmatpush.bf16.msra.mxu0 0
  %779 = vmatpush.bf16.msra.mxu0 0
  %780 = vmatpush.bf16.msra.mxu0 %v518
  %781 = vmatpush.bf16.msra.mxu0 %v517
  %782 = vmatpush.bf16.msra.mxu0 %v516
  %783 = vmatpush.bf16.msra.mxu0 %v515
  %784 = vmatmul.bf16.gmra.mxu0 %v557
  %v785 = vpop.f32.mrf.mxu0
  %v786 = vadd.f32 %v737, %v785
  %v787 = vpop.f32.mrf.mxu0
  %v788 = vadd.f32 %v739, %v787
  %789 = vmatmul.bf16.gmra.mxu0 %v560
  %v790 = vpop.f32.mrf.mxu0
  %v791 = vadd.f32 %v742, %v790
  %v792 = vpop.f32.mrf.mxu0
  %v793 = vadd.f32 %v744, %v792
  %794 = vmatmul.bf16.gmra.mxu0 %v563
  %v795 = vpop.f32.mrf.mxu0
  %v796 = vadd.f32 %v747, %v795
  %v797 = vpop.f32.mrf.mxu0
  %v798 = vadd.f32 %v749, %v797
  %799 = vmatmul.bf16.gmra.mxu0 %v566
  %v800 = vpop.f32.mrf.mxu0
  %v801 = vadd.f32 %v752, %v800
  %v802 = vpop.f32.mrf.mxu0
  %v803 = vadd.f32 %v754, %v802
  %804 = vmatmul.bf16.gmra.mxu0 %v569
  %v805 = vpop.f32.mrf.mxu0
  %v806 = vadd.f32 %v757, %v805
  %v807 = vpop.f32.mrf.mxu0
  %v808 = vadd.f32 %v759, %v807
  %809 = vmatmul.bf16.gmra.mxu0 %v572
  %v810 = vpop.f32.mrf.mxu0
  %v811 = vadd.f32 %v762, %v810
  %v812 = vpop.f32.mrf.mxu0
  %v813 = vadd.f32 %v764, %v812
  %814 = vmatmul.bf16.gmra.mxu0 %v575
  %v815 = vpop.f32.mrf.mxu0
  %v816 = vadd.f32 %v767, %v815
  %v817 = vpop.f32.mrf.mxu0
  %v818 = vadd.f32 %v769, %v817
  %819 = vmatmul.bf16.gmra.mxu0 %v578
  %v820 = vpop.f32.mrf.mxu0
  %v821 = vadd.f32 %v772, %v820
  %v822 = vpop.f32.mrf.mxu0
  %v823 = vadd.f32 %v774, %v822
  %824 = vdwg.mxu0
  %v825 = vmax.f32 %v786, 0.0
  %v826 = vmax.f32 %v788, 0.0
  %v827 = vmax.f32 %v791, 0.0
  %v828 = vmax.f32 %v793, 0.0
  %v829 = vmax.f32 %v796, 0.0
  %v830 = vmax.f32 %v798, 0.0
  %v831 = vmax.f32 %v801, 0.0
  %v832 = vmax.f32 %v803, 0.0
  %v833 = vmax.f32 %v806, 0.0
  %v834 = vmax.f32 %v808, 0.0
  %v835 = vmax.f32 %v811, 0.0
  %v836 = vmax.f32 %v813, 0.0
  %v837 = vmax.f32 %v816, 0.0
  %v838 = vmax.f32 %v818, 0.0
  %v839 = vmax.f32 %v821, 0.0
  %v840 = vmax.f32 %v823, 0.0
  %v841 = vpack.c.bf16 %v825, %v825
  %v842 = vpack.c.bf16 %v826, %v826
  %v843 = vpack.c.bf16 %v827, %v827
  %v844 = vpack.c.bf16 %v828, %v828
  %v845 = vpack.c.bf16 %v829, %v829
  %v846 = vpack.c.bf16 %v830, %v830
  %v847 = vpack.c.bf16 %v831, %v831
  %v848 = vpack.c.bf16 %v832, %v832
  %v849 = vpack.c.bf16 %v833, %v833
  %v850 = vpack.c.bf16 %v834, %v834
  %v851 = vpack.c.bf16 %v835, %v835
  %v852 = vpack.c.bf16 %v836, %v836
  %v853 = vpack.c.bf16 %v837, %v837
  %v854 = vpack.c.bf16 %v838, %v838
  %v855 = vpack.c.bf16 %v839, %v839
  %v856 = vpack.c.bf16 %v840, %v840
  %857 = vst [vmem:[%s3] sm:$0xf] %v841
  %858 = vst [vmem:[%s3 + $0x4] sm:$0xf] %v842
  %859 = vst [vmem:[%s3 + $0x8] sm:$0xf] %v843
  %860 = vst [vmem:[%s3 + $0xc] sm:$0xf] %v844
  %861 = vst [vmem:[%s3 + $0x10] sm:$0xf] %v845
  %862 = vst [vmem:[%s3 + $0x14] sm:$0xf] %v846
  %863 = vst [vmem:[%s3 + $0x18] sm:$0xf] %v847
  %864 = vst [vmem:[%s3 + $0x1c] sm:$0xf] %v848
  %865 = vst [vmem:[%s3 + $0x20] sm:$0xf] %v849
  %866 = vst [vmem:[%s3 + $0x24] sm:$0xf] %v850
  %867 = vst [vmem:[%s3 + $0x28] sm:$0xf] %v851
  %868 = vst [vmem:[%s3 + $0x2c] sm:$0xf] %v852
  %869 = vst [vmem:[%s3 + $0x30] sm:$0xf] %v853
  %870 = vst [vmem:[%s3 + $0x34] sm:$0xf] %v854
  %871 = vst [vmem:[%s3 + $0x38] sm:$0xf] %v855
  %872 = vst [vmem:[%s3 + $0x3c] sm:$0xf] %v856
  // Predicated region
  $region14: #{vae_encoder_forward.6} parent=0 // pred_check
    _
  $region15: #{vae_encoder_forward.6} parent=0 // pred_check_branch
    %874 = sbr.rel (0) target = $region17
  $region16: #{vae_encoder_forward.6} parent=0 // pred_region
    _
  $region17: #{vae_encoder_forward.6} parent=0 // pred_fallthru
    _
  // Predicated region
  $region18: #{vae_encoder_forward.6} parent=0 // pred_check
    _
  $region19: #{vae_encoder_forward.6} parent=0 // pred_check_branch
    %876 = sbr.rel (0) target = $region21
  $region20: #{vae_encoder_forward.6} parent=0 // pred_region
    _
  $region21: #{vae_encoder_forward.6} parent=0 // pred_fallthru
    _

// kernel: vae_encoder_forward.7
$region0: #{vae_encoder_forward.7}
  #allocation0 [shape = 'u32[]', space=smem, size = 0x4, offset = 0x4, fixed_abs, tag = 'smem constant byte address 0x4 - core index']
  #allocation1 [shape = 'u32[72,128]{1,0:T(1,128)}', space=vmem, size = 0x9000, scoped, tag = 'internal scratch']
  #allocation2 [shape = 'f32[32,256]{1,0:T(8,128)}', space=vmem, size = 0x8000, scoped, tag = 'scratch operand']
  %s0 = inlined_call_operand.vmem [shape: bf16[32,1152], index: 0, kind: input, shape index: {}]
  %s1 = inlined_call_operand.vmem [shape: bf16[1152,256], index: 1, kind: input, shape index: {}]
  %s2 = inlined_call_operand.vmem [shape: f32[1,256], index: 2, kind: input, shape index: {}]
  %s3 = inlined_call_operand.vmem [shape: bf16[16,256,32], index: 3, kind: input, shape index: {}]
  %s4 = inlined_call_operand.vmem [shape: f32[1,32], index: 4, kind: input, shape index: {}]
  %s5 = inlined_call_operand.vmem [shape: bf16[32,64], index: 5, kind: input, shape index: {}]
  %s6 = inlined_call_operand.vmem [shape: f32[1,64], index: 6, kind: input, shape index: {}]
  %s7 = inlined_call_operand.vmem [shape: f32[2,64], index: 7, kind: output, shape index: {}]
  %s8 = sld [smem:[#allocation0]]
  $region38: #{vae_encoder_forward.7} parent=0
    _
  %s10 = ssub.s32 1, %s8
  %s11 = scalar_select 0, %s10, %s8
  // Predicated region
  $region2: #{vae_encoder_forward.7} parent=0 // pred_check
    _
  $region3: #{vae_encoder_forward.7} parent=0 // pred_check_branch
    %13 = sbr.rel (0) target = $region5
  $region4: #{vae_encoder_forward.7} parent=0 // pred_region
    _
  $region5: #{vae_encoder_forward.7} parent=0 // pred_fallthru
    _
  // Predicated region
  $region6: #{vae_encoder_forward.7} parent=0 // pred_check
    _
  $region7: #{vae_encoder_forward.7} parent=0 // pred_check_branch
    %15 = sbr.rel (0) target = $region9
  $region8: #{vae_encoder_forward.7} parent=0 // pred_region
    _
  $region9: #{vae_encoder_forward.7} parent=0 // pred_fallthru
    _
  // Predicated region
  $region10: #{vae_encoder_forward.7} parent=0 // pred_check
    _
  $region11: #{vae_encoder_forward.7} parent=0 // pred_check_branch
    %17 = sbr.rel (0) target = $region13
  $region12: #{vae_encoder_forward.7} parent=0 // pred_region
    _
  $region13: #{vae_encoder_forward.7} parent=0 // pred_fallthru
    _
  // Predicated region
  $region14: #{vae_encoder_forward.7} parent=0 // pred_check
    _
  $region15: #{vae_encoder_forward.7} parent=0 // pred_check_branch
    %19 = sbr.rel (0) target = $region17
  $region16: #{vae_encoder_forward.7} parent=0 // pred_region
    _
  $region17: #{vae_encoder_forward.7} parent=0 // pred_fallthru
    _
  // Predicated region
  $region18: #{vae_encoder_forward.7} parent=0 // pred_check
    _
  $region19: #{vae_encoder_forward.7} parent=0 // pred_check_branch
    %21 = sbr.rel (0) target = $region21
  $region20: #{vae_encoder_forward.7} parent=0 // pred_region
    _
  $region21: #{vae_encoder_forward.7} parent=0 // pred_fallthru
    _
  // Predicated region
  $region22: #{vae_encoder_forward.7} parent=0 // pred_check
    _
  $region23: #{vae_encoder_forward.7} parent=0 // pred_check_branch
    %23 = sbr.rel (0) target = $region25
  $region24: #{vae_encoder_forward.7} parent=0 // pred_region
    _
  $region25: #{vae_encoder_forward.7} parent=0 // pred_fallthru
    _
  // Predicated region
  $region26: #{vae_encoder_forward.7} parent=0 // pred_check
    _
  $region27: #{vae_encoder_forward.7} parent=0 // pred_check_branch
    %25 = sbr.rel (0) target = $region29
  $region28: #{vae_encoder_forward.7} parent=0 // pred_region
    _
  $region29: #{vae_encoder_forward.7} parent=0 // pred_fallthru
    _
  %v27 = vld [vmem:[%s0] sm:$0xff]
  %v28 = vld [vmem:[%s0 + $0x8] sm:$0xff]
  %v29 = vld [vmem:[%s0 + $0x10] sm:$0xff]
  %v30 = vld [vmem:[%s0 + $0x18] sm:$0xff]
  %v31 = vld [vmem:[%s0 + $0x20] sm:$0xf]
  %v32 = vld [vmem:[%s0 + $0x24] sm:$0xff]
  %v33 = vld [vmem:[%s0 + $0x2c] sm:$0xff]
  %v34 = vld [vmem:[%s0 + $0x34] sm:$0xff]
  %v35 = vld [vmem:[%s0 + $0x3c] sm:$0xff]
  %v36 = vld [vmem:[%s0 + $0x44] sm:$0xf]
  %v37 = vld [vmem:[%s0 + $0x48] sm:$0xff]
  %v38 = vld [vmem:[%s0 + $0x50] sm:$0xff]
  %v39 = vld [vmem:[%s0 + $0x58] sm:$0xff]
  %v40 = vld [vmem:[%s0 + $0x60] sm:$0xff]
  %v41 = vld [vmem:[%s0 + $0x68] sm:$0xf]
  %v42 = vld [vmem:[%s0 + $0x6c] sm:$0xff]
  %v43 = vld [vmem:[%s0 + $0x74] sm:$0xff]
  %v44 = vld [vmem:[%s0 + $0x7c] sm:$0xff]
  %v45 = vld [vmem:[%s0 + $0x84] sm:$0xff]
  %v46 = vld [vmem:[%s0 + $0x8c] sm:$0xf]
  %v47 = vld [vmem:[%s1] sm:$0xff]
  %v48 = vld [vmem:[%s1 + $0x8] sm:$0xff]
  %v49 = vld [vmem:[%s1 + $0x10] sm:$0xff]
  %v50 = vld [vmem:[%s1 + $0x18] sm:$0xff]
  %v51 = vld [vmem:[%s1 + $0x20] sm:$0xff]
  %v52 = vld [vmem:[%s1 + $0x28] sm:$0xff]
  %v53 = vld [vmem:[%s1 + $0x30] sm:$0xff]
  %v54 = vld [vmem:[%s1 + $0x38] sm:$0xff]
  %v55 = vld [vmem:[%s1 + $0x40] sm:$0xff]
  %v56 = vld [vmem:[%s1 + $0x48] sm:$0xff]
  %v57 = vld [vmem:[%s1 + $0x50] sm:$0xff]
  %v58 = vld [vmem:[%s1 + $0x58] sm:$0xff]
  %v59 = vld [vmem:[%s1 + $0x60] sm:$0xff]
  %v60 = vld [vmem:[%s1 + $0x68] sm:$0xff]
  %v61 = vld [vmem:[%s1 + $0x70] sm:$0xff]
  %v62 = vld [vmem:[%s1 + $0x78] sm:$0xff]
  %v63 = vld [vmem:[%s1 + $0x80] sm:$0xff]
  %v64 = vld [vmem:[%s1 + $0x88] sm:$0xff]
  %v65 = vld [vmem:[%s1 + $0x90] sm:$0xff]
  %v66 = vld [vmem:[%s1 + $0x98] sm:$0xff]
  %v67 = vld [vmem:[%s1 + $0xa0] sm:$0xff]
  %v68 = vld [vmem:[%s1 + $0xa8] sm:$0xff]
  %v69 = vld [vmem:[%s1 + $0xb0] sm:$0xff]
  %v70 = vld [vmem:[%s1 + $0xb8] sm:$0xff]
  %v71 = vld [vmem:[%s1 + $0xc0] sm:$0xff]
  %v72 = vld [vmem:[%s1 + $0xc8] sm:$0xff]
  %v73 = vld [vmem:[%s1 + $0xd0] sm:$0xff]
  %v74 = vld [vmem:[%s1 + $0xd8] sm:$0xff]
  %v75 = vld [vmem:[%s1 + $0xe0] sm:$0xff]
  %v76 = vld [vmem:[%s1 + $0xe8] sm:$0xff]
  %v77 = vld [vmem:[%s1 + $0xf0] sm:$0xff]
  %v78 = vld [vmem:[%s1 + $0xf8] sm:$0xff]
  %v79 = vld [vmem:[%s1 + $0x100] sm:$0xff]
  %v80 = vld [vmem:[%s1 + $0x108] sm:$0xff]
  %v81 = vld [vmem:[%s1 + $0x110] sm:$0xff]
  %v82 = vld [vmem:[%s1 + $0x118] sm:$0xff]
  %v83 = vld [vmem:[%s1 + $0x120] sm:$0xff]
  %v84 = vld [vmem:[%s1 + $0x128] sm:$0xff]
  %v85 = vld [vmem:[%s1 + $0x130] sm:$0xff]
  %v86 = vld [vmem:[%s1 + $0x138] sm:$0xff]
  %v87 = vld [vmem:[%s1 + $0x140] sm:$0xff]
  %v88 = vld [vmem:[%s1 + $0x148] sm:$0xff]
  %v89 = vld [vmem:[%s1 + $0x150] sm:$0xff]
  %v90 = vld [vmem:[%s1 + $0x158] sm:$0xff]
  %v91 = vld [vmem:[%s1 + $0x160] sm:$0xff]
  %v92 = vld [vmem:[%s1 + $0x168] sm:$0xff]
  %v93 = vld [vmem:[%s1 + $0x170] sm:$0xff]
  %v94 = vld [vmem:[%s1 + $0x178] sm:$0xff]
  %v95 = vld [vmem:[%s1 + $0x180] sm:$0xff]
  %v96 = vld [vmem:[%s1 + $0x188] sm:$0xff]
  %v97 = vld [vmem:[%s1 + $0x190] sm:$0xff]
  %v98 = vld [vmem:[%s1 + $0x198] sm:$0xff]
  %v99 = vld [vmem:[%s1 + $0x1a0] sm:$0xff]
  %v100 = vld [vmem:[%s1 + $0x1a8] sm:$0xff]
  %v101 = vld [vmem:[%s1 + $0x1b0] sm:$0xff]
  %v102 = vld [vmem:[%s1 + $0x1b8] sm:$0xff]
  %v103 = vld [vmem:[%s1 + $0x1c0] sm:$0xff]
  %v104 = vld [vmem:[%s1 + $0x1c8] sm:$0xff]
  %v105 = vld [vmem:[%s1 + $0x1d0] sm:$0xff]
  %v106 = vld [vmem:[%s1 + $0x1d8] sm:$0xff]
  %v107 = vld [vmem:[%s1 + $0x1e0] sm:$0xff]
  %v108 = vld [vmem:[%s1 + $0x1e8] sm:$0xff]
  %v109 = vld [vmem:[%s1 + $0x1f0] sm:$0xff]
  %v110 = vld [vmem:[%s1 + $0x1f8] sm:$0xff]
  %v111 = vld [vmem:[%s1 + $0x200] sm:$0xff]
  %v112 = vld [vmem:[%s1 + $0x208] sm:$0xff]
  %v113 = vld [vmem:[%s1 + $0x210] sm:$0xff]
  %v114 = vld [vmem:[%s1 + $0x218] sm:$0xff]
  %v115 = vld [vmem:[%s1 + $0x220] sm:$0xff]
  %v116 = vld [vmem:[%s1 + $0x228] sm:$0xff]
  %v117 = vld [vmem:[%s1 + $0x230] sm:$0xff]
  %v118 = vld [vmem:[%s1 + $0x238] sm:$0xff]
  %v119 = vld [vmem:[%s1 + $0x240] sm:$0xff]
  %v120 = vld [vmem:[%s1 + $0x248] sm:$0xff]
  %v121 = vld [vmem:[%s1 + $0x250] sm:$0xff]
  %v122 = vld [vmem:[%s1 + $0x258] sm:$0xff]
  %v123 = vld [vmem:[%s1 + $0x260] sm:$0xff]
  %v124 = vld [vmem:[%s1 + $0x268] sm:$0xff]
  %v125 = vld [vmem:[%s1 + $0x270] sm:$0xff]
  %v126 = vld [vmem:[%s1 + $0x278] sm:$0xff]
  %v127 = vld [vmem:[%s1 + $0x280] sm:$0xff]
  %v128 = vld [vmem:[%s1 + $0x288] sm:$0xff]
  %v129 = vld [vmem:[%s1 + $0x290] sm:$0xff]
  %v130 = vld [vmem:[%s1 + $0x298] sm:$0xff]
  %v131 = vld [vmem:[%s1 + $0x2a0] sm:$0xff]
  %v132 = vld [vmem:[%s1 + $0x2a8] sm:$0xff]
  %v133 = vld [vmem:[%s1 + $0x2b0] sm:$0xff]
  %v134 = vld [vmem:[%s1 + $0x2b8] sm:$0xff]
  %v135 = vld [vmem:[%s1 + $0x2c0] sm:$0xff]
  %v136 = vld [vmem:[%s1 + $0x2c8] sm:$0xff]
  %v137 = vld [vmem:[%s1 + $0x2d0] sm:$0xff]
  %v138 = vld [vmem:[%s1 + $0x2d8] sm:$0xff]
  %v139 = vld [vmem:[%s1 + $0x2e0] sm:$0xff]
  %v140 = vld [vmem:[%s1 + $0x2e8] sm:$0xff]
  %v141 = vld [vmem:[%s1 + $0x2f0] sm:$0xff]
  %v142 = vld [vmem:[%s1 + $0x2f8] sm:$0xff]
  %v143 = vld [vmem:[%s1 + $0x300] sm:$0xff]
  %v144 = vld [vmem:[%s1 + $0x308] sm:$0xff]
  %v145 = vld [vmem:[%s1 + $0x310] sm:$0xff]
  %v146 = vld [vmem:[%s1 + $0x318] sm:$0xff]
  %v147 = vld [vmem:[%s1 + $0x320] sm:$0xff]
  %v148 = vld [vmem:[%s1 + $0x328] sm:$0xff]
  %v149 = vld [vmem:[%s1 + $0x330] sm:$0xff]
  %v150 = vld [vmem:[%s1 + $0x338] sm:$0xff]
  %v151 = vld [vmem:[%s1 + $0x340] sm:$0xff]
  %v152 = vld [vmem:[%s1 + $0x348] sm:$0xff]
  %v153 = vld [vmem:[%s1 + $0x350] sm:$0xff]
  %v154 = vld [vmem:[%s1 + $0x358] sm:$0xff]
  %v155 = vld [vmem:[%s1 + $0x360] sm:$0xff]
  %v156 = vld [vmem:[%s1 + $0x368] sm:$0xff]
  %v157 = vld [vmem:[%s1 + $0x370] sm:$0xff]
  %v158 = vld [vmem:[%s1 + $0x378] sm:$0xff]
  %v159 = vld [vmem:[%s1 + $0x380] sm:$0xff]
  %v160 = vld [vmem:[%s1 + $0x388] sm:$0xff]
  %v161 = vld [vmem:[%s1 + $0x390] sm:$0xff]
  %v162 = vld [vmem:[%s1 + $0x398] sm:$0xff]
  %v163 = vld [vmem:[%s1 + $0x3a0] sm:$0xff]
  %v164 = vld [vmem:[%s1 + $0x3a8] sm:$0xff]
  %v165 = vld [vmem:[%s1 + $0x3b0] sm:$0xff]
  %v166 = vld [vmem:[%s1 + $0x3b8] sm:$0xff]
  %v167 = vld [vmem:[%s1 + $0x3c0] sm:$0xff]
  %v168 = vld [vmem:[%s1 + $0x3c8] sm:$0xff]
  %v169 = vld [vmem:[%s1 + $0x3d0] sm:$0xff]
  %v170 = vld [vmem:[%s1 + $0x3d8] sm:$0xff]
  %v171 = vld [vmem:[%s1 + $0x3e0] sm:$0xff]
  %v172 = vld [vmem:[%s1 + $0x3e8] sm:$0xff]
  %v173 = vld [vmem:[%s1 + $0x3f0] sm:$0xff]
  %v174 = vld [vmem:[%s1 + $0x3f8] sm:$0xff]
  %v175 = vld [vmem:[%s1 + $0x400] sm:$0xff]
  %v176 = vld [vmem:[%s1 + $0x408] sm:$0xff]
  %v177 = vld [vmem:[%s1 + $0x410] sm:$0xff]
  %v178 = vld [vmem:[%s1 + $0x418] sm:$0xff]
  %v179 = vld [vmem:[%s1 + $0x420] sm:$0xff]
  %v180 = vld [vmem:[%s1 + $0x428] sm:$0xff]
  %v181 = vld [vmem:[%s1 + $0x430] sm:$0xff]
  %v182 = vld [vmem:[%s1 + $0x438] sm:$0xff]
  %v183 = vld [vmem:[%s1 + $0x440] sm:$0xff]
  %v184 = vld [vmem:[%s1 + $0x448] sm:$0xff]
  %v185 = vld [vmem:[%s1 + $0x450] sm:$0xff]
  %v186 = vld [vmem:[%s1 + $0x458] sm:$0xff]
  %v187 = vld [vmem:[%s1 + $0x460] sm:$0xff]
  %v188 = vld [vmem:[%s1 + $0x468] sm:$0xff]
  %v189 = vld [vmem:[%s1 + $0x470] sm:$0xff]
  %v190 = vld [vmem:[%s1 + $0x478] sm:$0xff]
  %v191 = vld [vmem:[%s2] sm:$0x3]
  %v193 = vperm.slane %v191, 0
  %v194 = vperm.slane %v191, 1
  %v217 = vunpack.c.l.b16 %v27
  %v218 = vunpack.c.h.b16 %v27
  %v219 = vunpack.c.l.b16 %v28
  %v220 = vunpack.c.h.b16 %v28
  %v221 = vunpack.c.l.b16 %v29
  %v222 = vunpack.c.h.b16 %v29
  %v223 = vunpack.c.l.b16 %v30
  %v224 = vunpack.c.h.b16 %v30
  %v225 = vunpack.c.l.b16 %v31
  %v226 = vunpack.c.l.b16 %v32
  %v227 = vunpack.c.h.b16 %v32
  %v228 = vunpack.c.l.b16 %v33
  %v229 = vunpack.c.h.b16 %v33
  %v230 = vunpack.c.l.b16 %v34
  %v231 = vunpack.c.h.b16 %v34
  %v232 = vunpack.c.l.b16 %v35
  %v233 = vunpack.c.h.b16 %v35
  %v234 = vunpack.c.l.b16 %v36
  %v235 = vunpack.c.l.b16 %v37
  %v236 = vunpack.c.h.b16 %v37
  %v237 = vunpack.c.l.b16 %v38
  %v238 = vunpack.c.h.b16 %v38
  %v239 = vunpack.c.l.b16 %v39
  %v240 = vunpack.c.h.b16 %v39
  %v241 = vunpack.c.l.b16 %v40
  %v242 = vunpack.c.h.b16 %v40
  %v243 = vunpack.c.l.b16 %v41
  %v244 = vunpack.c.l.b16 %v42
  %v245 = vunpack.c.h.b16 %v42
  %v246 = vunpack.c.l.b16 %v43
  %v247 = vunpack.c.h.b16 %v43
  %v248 = vunpack.c.l.b16 %v44
  %v249 = vunpack.c.h.b16 %v44
  %v250 = vunpack.c.l.b16 %v45
  %v251 = vunpack.c.h.b16 %v45
  %v252 = vunpack.c.l.b16 %v46
  %v253 = vpack.c.b16 %v226, %v217
  %v254 = vpack.c.b16 %v227, %v218
  %v255 = vpack.c.b16 %v228, %v219
  %v256 = vpack.c.b16 %v229, %v220
  %v257 = vpack.c.b16 %v230, %v221
  %v258 = vpack.c.b16 %v231, %v222
  %v259 = vpack.c.b16 %v232, %v223
  %v260 = vpack.c.b16 %v233, %v224
  %v261 = vpack.c.b16 %v234, %v225
  %v262 = vpack.c.b16 %v244, %v235
  %v263 = vpack.c.b16 %v245, %v236
  %v264 = vpack.c.b16 %v246, %v237
  %v265 = vpack.c.b16 %v247, %v238
  %v266 = vpack.c.b16 %v248, %v239
  %v267 = vpack.c.b16 %v249, %v240
  %v268 = vpack.c.b16 %v250, %v241
  %v269 = vpack.c.b16 %v251, %v242
  %v270 = vpack.c.b16 %v252, %v243
  %v433 = vunpack.c.l.b16 %v47
  %v434 = vunpack.c.h.b16 %v47
  %v435 = vunpack.c.l.b16 %v48
  %v436 = vunpack.c.h.b16 %v48
  %v437 = vunpack.c.l.b16 %v49
  %v438 = vunpack.c.h.b16 %v49
  %v439 = vunpack.c.l.b16 %v50
  %v440 = vunpack.c.h.b16 %v50
  %v441 = vunpack.c.l.b16 %v51
  %v442 = vunpack.c.h.b16 %v51
  %v443 = vunpack.c.l.b16 %v52
  %v444 = vunpack.c.h.b16 %v52
  %v445 = vunpack.c.l.b16 %v53
  %v446 = vunpack.c.h.b16 %v53
  %v447 = vunpack.c.l.b16 %v54
  %v448 = vunpack.c.h.b16 %v54
  %v449 = vunpack.c.l.b16 %v55
  %v450 = vunpack.c.h.b16 %v55
  %v451 = vunpack.c.l.b16 %v56
  %v452 = vunpack.c.h.b16 %v56
  %v453 = vunpack.c.l.b16 %v57
  %v454 = vunpack.c.h.b16 %v57
  %v455 = vunpack.c.l.b16 %v58
  %v456 = vunpack.c.h.b16 %v58
  %v457 = vunpack.c.l.b16 %v59
  %v458 = vunpack.c.h.b16 %v59
  %v459 = vunpack.c.l.b16 %v60
  %v460 = vunpack.c.h.b16 %v60
  %v461 = vunpack.c.l.b16 %v61
  %v462 = vunpack.c.h.b16 %v61
  %v463 = vunpack.c.l.b16 %v62
  %v464 = vunpack.c.h.b16 %v62
  %v465 = vunpack.c.l.b16 %v63
  %v466 = vunpack.c.h.b16 %v63
  %v467 = vunpack.c.l.b16 %v64
  %v468 = vunpack.c.h.b16 %v64
  %v469 = vunpack.c.l.b16 %v65
  %v470 = vunpack.c.h.b16 %v65
  %v471 = vunpack.c.l.b16 %v66
  %v472 = vunpack.c.h.b16 %v66
  %v473 = vunpack.c.l.b16 %v67
  %v474 = vunpack.c.h.b16 %v67
  %v475 = vunpack.c.l.b16 %v68
  %v476 = vunpack.c.h.b16 %v68
  %v477 = vunpack.c.l.b16 %v69
  %v478 = vunpack.c.h.b16 %v69
  %v479 = vunpack.c.l.b16 %v70
  %v480 = vunpack.c.h.b16 %v70
  %v481 = vunpack.c.l.b16 %v71
  %v482 = vunpack.c.h.b16 %v71
  %v483 = vunpack.c.l.b16 %v72
  %v484 = vunpack.c.h.b16 %v72
  %v485 = vunpack.c.l.b16 %v73
  %v486 = vunpack.c.h.b16 %v73
  %v487 = vunpack.c.l.b16 %v74
  %v488 = vunpack.c.h.b16 %v74
  %v489 = vunpack.c.l.b16 %v75
  %v490 = vunpack.c.h.b16 %v75
  %v491 = vunpack.c.l.b16 %v76
  %v492 = vunpack.c.h.b16 %v76
  %v493 = vunpack.c.l.b16 %v77
  %v494 = vunpack.c.h.b16 %v77
  %v495 = vunpack.c.l.b16 %v78
  %v496 = vunpack.c.h.b16 %v78
  %v497 = vunpack.c.l.b16 %v79
  %v498 = vunpack.c.h.b16 %v79
  %v499 = vunpack.c.l.b16 %v80
  %v500 = vunpack.c.h.b16 %v80
  %v501 = vunpack.c.l.b16 %v81
  %v502 = vunpack.c.h.b16 %v81
  %v503 = vunpack.c.l.b16 %v82
  %v504 = vunpack.c.h.b16 %v82
  %v505 = vunpack.c.l.b16 %v83
  %v506 = vunpack.c.h.b16 %v83
  %v507 = vunpack.c.l.b16 %v84
  %v508 = vunpack.c.h.b16 %v84
  %v509 = vunpack.c.l.b16 %v85
  %v510 = vunpack.c.h.b16 %v85
  %v511 = vunpack.c.l.b16 %v86
  %v512 = vunpack.c.h.b16 %v86
  %v513 = vunpack.c.l.b16 %v87
  %v514 = vunpack.c.h.b16 %v87
  %v515 = vunpack.c.l.b16 %v88
  %v516 = vunpack.c.h.b16 %v88
  %v517 = vunpack.c.l.b16 %v89
  %v518 = vunpack.c.h.b16 %v89
  %v519 = vunpack.c.l.b16 %v90
  %v520 = vunpack.c.h.b16 %v90
  %v521 = vunpack.c.l.b16 %v91
  %v522 = vunpack.c.h.b16 %v91
  %v523 = vunpack.c.l.b16 %v92
  %v524 = vunpack.c.h.b16 %v92
  %v525 = vunpack.c.l.b16 %v93
  %v526 = vunpack.c.h.b16 %v93
  %v527 = vunpack.c.l.b16 %v94
  %v528 = vunpack.c.h.b16 %v94
  %v529 = vunpack.c.l.b16 %v95
  %v530 = vunpack.c.h.b16 %v95
  %v531 = vunpack.c.l.b16 %v96
  %v532 = vunpack.c.h.b16 %v96
  %v533 = vunpack.c.l.b16 %v97
  %v534 = vunpack.c.h.b16 %v97
  %v535 = vunpack.c.l.b16 %v98
  %v536 = vunpack.c.h.b16 %v98
  %v537 = vunpack.c.l.b16 %v99
  %v538 = vunpack.c.h.b16 %v99
  %v539 = vunpack.c.l.b16 %v100
  %v540 = vunpack.c.h.b16 %v100
  %v541 = vunpack.c.l.b16 %v101
  %v542 = vunpack.c.h.b16 %v101
  %v543 = vunpack.c.l.b16 %v102
  %v544 = vunpack.c.h.b16 %v102
  %v545 = vunpack.c.l.b16 %v103
  %v546 = vunpack.c.h.b16 %v103
  %v547 = vunpack.c.l.b16 %v104
  %v548 = vunpack.c.h.b16 %v104
  %v549 = vunpack.c.l.b16 %v105
  %v550 = vunpack.c.h.b16 %v105
  %v551 = vunpack.c.l.b16 %v106
  %v552 = vunpack.c.h.b16 %v106
  %v553 = vunpack.c.l.b16 %v107
  %v554 = vunpack.c.h.b16 %v107
  %v555 = vunpack.c.l.b16 %v108
  %v556 = vunpack.c.h.b16 %v108
  %v557 = vunpack.c.l.b16 %v109
  %v558 = vunpack.c.h.b16 %v109
  %v559 = vunpack.c.l.b16 %v110
  %v560 = vunpack.c.h.b16 %v110
  %v561 = vunpack.c.l.b16 %v111
  %v562 = vunpack.c.h.b16 %v111
  %v563 = vunpack.c.l.b16 %v112
  %v564 = vunpack.c.h.b16 %v112
  %v565 = vunpack.c.l.b16 %v113
  %v566 = vunpack.c.h.b16 %v113
  %v567 = vunpack.c.l.b16 %v114
  %v568 = vunpack.c.h.b16 %v114
  %v569 = vunpack.c.l.b16 %v115
  %v570 = vunpack.c.h.b16 %v115
  %v571 = vunpack.c.l.b16 %v116
  %v572 = vunpack.c.h.b16 %v116
  %v573 = vunpack.c.l.b16 %v117
  %v574 = vunpack.c.h.b16 %v117
  %v575 = vunpack.c.l.b16 %v118
  %v576 = vunpack.c.h.b16 %v118
  %v577 = vunpack.c.l.b16 %v119
  %v578 = vunpack.c.h.b16 %v119
  %v579 = vunpack.c.l.b16 %v120
  %v580 = vunpack.c.h.b16 %v120
  %v581 = vunpack.c.l.b16 %v121
  %v582 = vunpack.c.h.b16 %v121
  %v583 = vunpack.c.l.b16 %v122
  %v584 = vunpack.c.h.b16 %v122
  %v585 = vunpack.c.l.b16 %v123
  %v586 = vunpack.c.h.b16 %v123
  %v587 = vunpack.c.l.b16 %v124
  %v588 = vunpack.c.h.b16 %v124
  %v589 = vunpack.c.l.b16 %v125
  %v590 = vunpack.c.h.b16 %v125
  %v591 = vunpack.c.l.b16 %v126
  %v592 = vunpack.c.h.b16 %v126
  %v593 = vunpack.c.l.b16 %v127
  %v594 = vunpack.c.h.b16 %v127
  %v595 = vunpack.c.l.b16 %v128
  %v596 = vunpack.c.h.b16 %v128
  %v597 = vunpack.c.l.b16 %v129
  %v598 = vunpack.c.h.b16 %v129
  %v599 = vunpack.c.l.b16 %v130
  %v600 = vunpack.c.h.b16 %v130
  %v601 = vunpack.c.l.b16 %v131
  %v602 = vunpack.c.h.b16 %v131
  %v603 = vunpack.c.l.b16 %v132
  %v604 = vunpack.c.h.b16 %v132
  %v605 = vunpack.c.l.b16 %v133
  %v606 = vunpack.c.h.b16 %v133
  %v607 = vunpack.c.l.b16 %v134
  %v608 = vunpack.c.h.b16 %v134
  %v609 = vunpack.c.l.b16 %v135
  %v610 = vunpack.c.h.b16 %v135
  %v611 = vunpack.c.l.b16 %v136
  %v612 = vunpack.c.h.b16 %v136
  %v613 = vunpack.c.l.b16 %v137
  %v614 = vunpack.c.h.b16 %v137
  %v615 = vunpack.c.l.b16 %v138
  %v616 = vunpack.c.h.b16 %v138
  %v617 = vunpack.c.l.b16 %v139
  %v618 = vunpack.c.h.b16 %v139
  %v619 = vunpack.c.l.b16 %v140
  %v620 = vunpack.c.h.b16 %v140
  %v621 = vunpack.c.l.b16 %v141
  %v622 = vunpack.c.h.b16 %v141
  %v623 = vunpack.c.l.b16 %v142
  %v624 = vunpack.c.h.b16 %v142
  %v625 = vunpack.c.l.b16 %v143
  %v626 = vunpack.c.h.b16 %v143
  %v627 = vunpack.c.l.b16 %v144
  %v628 = vunpack.c.h.b16 %v144
  %v629 = vunpack.c.l.b16 %v145
  %v630 = vunpack.c.h.b16 %v145
  %v631 = vunpack.c.l.b16 %v146
  %v632 = vunpack.c.h.b16 %v146
  %v633 = vunpack.c.l.b16 %v147
  %v634 = vunpack.c.h.b16 %v147
  %v635 = vunpack.c.l.b16 %v148
  %v636 = vunpack.c.h.b16 %v148
  %v637 = vunpack.c.l.b16 %v149
  %v638 = vunpack.c.h.b16 %v149
  %v639 = vunpack.c.l.b16 %v150
  %v640 = vunpack.c.h.b16 %v150
  %v641 = vunpack.c.l.b16 %v151
  %v642 = vunpack.c.h.b16 %v151
  %v643 = vunpack.c.l.b16 %v152
  %v644 = vunpack.c.h.b16 %v152
  %v645 = vunpack.c.l.b16 %v153
  %v646 = vunpack.c.h.b16 %v153
  %v647 = vunpack.c.l.b16 %v154
  %v648 = vunpack.c.h.b16 %v154
  %v649 = vunpack.c.l.b16 %v155
  %v650 = vunpack.c.h.b16 %v155
  %v651 = vunpack.c.l.b16 %v156
  %v652 = vunpack.c.h.b16 %v156
  %v653 = vunpack.c.l.b16 %v157
  %v654 = vunpack.c.h.b16 %v157
  %v655 = vunpack.c.l.b16 %v158
  %v656 = vunpack.c.h.b16 %v158
  %v657 = vunpack.c.l.b16 %v159
  %v658 = vunpack.c.h.b16 %v159
  %v659 = vunpack.c.l.b16 %v160
  %v660 = vunpack.c.h.b16 %v160
  %v661 = vunpack.c.l.b16 %v161
  %v662 = vunpack.c.h.b16 %v161
  %v663 = vunpack.c.l.b16 %v162
  %v664 = vunpack.c.h.b16 %v162
  %v665 = vunpack.c.l.b16 %v163
  %v666 = vunpack.c.h.b16 %v163
  %v667 = vunpack.c.l.b16 %v164
  %v668 = vunpack.c.h.b16 %v164
  %v669 = vunpack.c.l.b16 %v165
  %v670 = vunpack.c.h.b16 %v165
  %v671 = vunpack.c.l.b16 %v166
  %v672 = vunpack.c.h.b16 %v166
  %v673 = vunpack.c.l.b16 %v167
  %v674 = vunpack.c.h.b16 %v167
  %v675 = vunpack.c.l.b16 %v168
  %v676 = vunpack.c.h.b16 %v168
  %v677 = vunpack.c.l.b16 %v169
  %v678 = vunpack.c.h.b16 %v169
  %v679 = vunpack.c.l.b16 %v170
  %v680 = vunpack.c.h.b16 %v170
  %v681 = vunpack.c.l.b16 %v171
  %v682 = vunpack.c.h.b16 %v171
  %v683 = vunpack.c.l.b16 %v172
  %v684 = vunpack.c.h.b16 %v172
  %v685 = vunpack.c.l.b16 %v173
  %v686 = vunpack.c.h.b16 %v173
  %v687 = vunpack.c.l.b16 %v174
  %v688 = vunpack.c.h.b16 %v174
  %v689 = vunpack.c.l.b16 %v175
  %v690 = vunpack.c.h.b16 %v175
  %v691 = vunpack.c.l.b16 %v176
  %v692 = vunpack.c.h.b16 %v176
  %v693 = vunpack.c.l.b16 %v177
  %v694 = vunpack.c.h.b16 %v177
  %v695 = vunpack.c.l.b16 %v178
  %v696 = vunpack.c.h.b16 %v178
  %v697 = vunpack.c.l.b16 %v179
  %v698 = vunpack.c.h.b16 %v179
  %v699 = vunpack.c.l.b16 %v180
  %v700 = vunpack.c.h.b16 %v180
  %v701 = vunpack.c.l.b16 %v181
  %v702 = vunpack.c.h.b16 %v181
  %v703 = vunpack.c.l.b16 %v182
  %v704 = vunpack.c.h.b16 %v182
  %v705 = vunpack.c.l.b16 %v183
  %v706 = vunpack.c.h.b16 %v183
  %v707 = vunpack.c.l.b16 %v184
  %v708 = vunpack.c.h.b16 %v184
  %v709 = vunpack.c.l.b16 %v185
  %v710 = vunpack.c.h.b16 %v185
  %v711 = vunpack.c.l.b16 %v186
  %v712 = vunpack.c.h.b16 %v186
  %v713 = vunpack.c.l.b16 %v187
  %v714 = vunpack.c.h.b16 %v187
  %v715 = vunpack.c.l.b16 %v188
  %v716 = vunpack.c.h.b16 %v188
  %v717 = vunpack.c.l.b16 %v189
  %v718 = vunpack.c.h.b16 %v189
  %v719 = vunpack.c.l.b16 %v190
  %v720 = vunpack.c.h.b16 %v190
  %v721 = vpack.c.b16 %v435, %v433
  %v722 = vpack.c.b16 %v436, %v434
  %v723 = vpack.c.b16 %v439, %v437
  %v724 = vpack.c.b16 %v440, %v438
  %v725 = vpack.c.b16 %v443, %v441
  %v726 = vpack.c.b16 %v444, %v442
  %v727 = vpack.c.b16 %v447, %v445
  %v728 = vpack.c.b16 %v448, %v446
  %v729 = vpack.c.b16 %v451, %v449
  %v730 = vpack.c.b16 %v452, %v450
  %v731 = vpack.c.b16 %v455, %v453
  %v732 = vpack.c.b16 %v456, %v454
  %v733 = vpack.c.b16 %v459, %v457
  %v734 = vpack.c.b16 %v460, %v458
  %v735 = vpack.c.b16 %v463, %v461
  %v736 = vpack.c.b16 %v464, %v462
  %v737 = vpack.c.b16 %v467, %v465
  %v738 = vpack.c.b16 %v468, %v466
  %v739 = vpack.c.b16 %v471, %v469
  %v740 = vpack.c.b16 %v472, %v470
  %v741 = vpack.c.b16 %v475, %v473
  %v742 = vpack.c.b16 %v476, %v474
  %v743 = vpack.c.b16 %v479, %v477
  %v744 = vpack.c.b16 %v480, %v478
  %v745 = vpack.c.b16 %v483, %v481
  %v746 = vpack.c.b16 %v484, %v482
  %v747 = vpack.c.b16 %v487, %v485
  %v748 = vpack.c.b16 %v488, %v486
  %v749 = vpack.c.b16 %v491, %v489
  %v750 = vpack.c.b16 %v492, %v490
  %v751 = vpack.c.b16 %v495, %v493
  %v752 = vpack.c.b16 %v496, %v494
  %v753 = vpack.c.b16 %v499, %v497
  %v754 = vpack.c.b16 %v500, %v498
  %v755 = vpack.c.b16 %v503, %v501
  %v756 = vpack.c.b16 %v504, %v502
  %v757 = vpack.c.b16 %v507, %v505
  %v758 = vpack.c.b16 %v508, %v506
  %v759 = vpack.c.b16 %v511, %v509
  %v760 = vpack.c.b16 %v512, %v510
  %v761 = vpack.c.b16 %v515, %v513
  %v762 = vpack.c.b16 %v516, %v514
  %v763 = vpack.c.b16 %v519, %v517
  %v764 = vpack.c.b16 %v520, %v518
  %v765 = vpack.c.b16 %v523, %v521
  %v766 = vpack.c.b16 %v524, %v522
  %v767 = vpack.c.b16 %v527, %v525
  %v768 = vpack.c.b16 %v528, %v526
  %v769 = vpack.c.b16 %v531, %v529
  %v770 = vpack.c.b16 %v532, %v530
  %v771 = vpack.c.b16 %v535, %v533
  %v772 = vpack.c.b16 %v536, %v534
  %v773 = vpack.c.b16 %v539, %v537
  %v774 = vpack.c.b16 %v540, %v538
  %v775 = vpack.c.b16 %v543, %v541
  %v776 = vpack.c.b16 %v544, %v542
  %v777 = vpack.c.b16 %v547, %v545
  %v778 = vpack.c.b16 %v548, %v546
  %v779 = vpack.c.b16 %v551, %v549
  %v780 = vpack.c.b16 %v552, %v550
  %v781 = vpack.c.b16 %v555, %v553
  %v782 = vpack.c.b16 %v556, %v554
  %v783 = vpack.c.b16 %v559, %v557
  %v784 = vpack.c.b16 %v560, %v558
  %v785 = vpack.c.b16 %v563, %v561
  %v786 = vpack.c.b16 %v564, %v562
  %v787 = vpack.c.b16 %v567, %v565
  %v788 = vpack.c.b16 %v568, %v566
  %v789 = vpack.c.b16 %v571, %v569
  %v790 = vpack.c.b16 %v572, %v570
  %v791 = vpack.c.b16 %v575, %v573
  %v792 = vpack.c.b16 %v576, %v574
  %v793 = vpack.c.b16 %v579, %v577
  %v794 = vpack.c.b16 %v580, %v578
  %v795 = vpack.c.b16 %v583, %v581
  %v796 = vpack.c.b16 %v584, %v582
  %v797 = vpack.c.b16 %v587, %v585
  %v798 = vpack.c.b16 %v588, %v586
  %v799 = vpack.c.b16 %v591, %v589
  %v800 = vpack.c.b16 %v592, %v590
  %v801 = vpack.c.b16 %v595, %v593
  %v802 = vpack.c.b16 %v596, %v594
  %v803 = vpack.c.b16 %v599, %v597
  %v804 = vpack.c.b16 %v600, %v598
  %v805 = vpack.c.b16 %v603, %v601
  %v806 = vpack.c.b16 %v604, %v602
  %v807 = vpack.c.b16 %v607, %v605
  %v808 = vpack.c.b16 %v608, %v606
  %v809 = vpack.c.b16 %v611, %v609
  %v810 = vpack.c.b16 %v612, %v610
  %v811 = vpack.c.b16 %v615, %v613
  %v812 = vpack.c.b16 %v616, %v614
  %v813 = vpack.c.b16 %v619, %v617
  %v814 = vpack.c.b16 %v620, %v618
  %v815 = vpack.c.b16 %v623, %v621
  %v816 = vpack.c.b16 %v624, %v622
  %v817 = vpack.c.b16 %v627, %v625
  %v818 = vpack.c.b16 %v628, %v626
  %v819 = vpack.c.b16 %v631, %v629
  %v820 = vpack.c.b16 %v632, %v630
  %v821 = vpack.c.b16 %v635, %v633
  %v822 = vpack.c.b16 %v636, %v634
  %v823 = vpack.c.b16 %v639, %v637
  %v824 = vpack.c.b16 %v640, %v638
  %v825 = vpack.c.b16 %v643, %v641
  %v826 = vpack.c.b16 %v644, %v642
  %v827 = vpack.c.b16 %v647, %v645
  %v828 = vpack.c.b16 %v648, %v646
  %v829 = vpack.c.b16 %v651, %v649
  %v830 = vpack.c.b16 %v652, %v650
  %v831 = vpack.c.b16 %v655, %v653
  %v832 = vpack.c.b16 %v656, %v654
  %v833 = vpack.c.b16 %v659, %v657
  %v834 = vpack.c.b16 %v660, %v658
  %v835 = vpack.c.b16 %v663, %v661
  %v836 = vpack.c.b16 %v664, %v662
  %v837 = vpack.c.b16 %v667, %v665
  %v838 = vpack.c.b16 %v668, %v666
  %v839 = vpack.c.b16 %v671, %v669
  %v840 = vpack.c.b16 %v672, %v670
  %v841 = vpack.c.b16 %v675, %v673
  %v842 = vpack.c.b16 %v676, %v674
  %v843 = vpack.c.b16 %v679, %v677
  %v844 = vpack.c.b16 %v680, %v678
  %v845 = vpack.c.b16 %v683, %v681
  %v846 = vpack.c.b16 %v684, %v682
  %v847 = vpack.c.b16 %v687, %v685
  %v848 = vpack.c.b16 %v688, %v686
  %v849 = vpack.c.b16 %v691, %v689
  %v850 = vpack.c.b16 %v692, %v690
  %v851 = vpack.c.b16 %v695, %v693
  %v852 = vpack.c.b16 %v696, %v694
  %v853 = vpack.c.b16 %v699, %v697
  %v854 = vpack.c.b16 %v700, %v698
  %v855 = vpack.c.b16 %v703, %v701
  %v856 = vpack.c.b16 %v704, %v702
  %v857 = vpack.c.b16 %v707, %v705
  %v858 = vpack.c.b16 %v708, %v706
  %v859 = vpack.c.b16 %v711, %v709
  %v860 = vpack.c.b16 %v712, %v710
  %v861 = vpack.c.b16 %v715, %v713
  %v862 = vpack.c.b16 %v716, %v714
  %v863 = vpack.c.b16 %v719, %v717
  %v864 = vpack.c.b16 %v720, %v718
  %1009 = vmatpush.bf16.msra.mxu0 %v735
  %1010 = vmatpush.bf16.msra.mxu0 %v733
  %1011 = vmatpush.bf16.msra.mxu0 %v731
  %1012 = vmatpush.bf16.msra.mxu0 %v729
  %1013 = vmatpush.bf16.msra.mxu0 %v727
  %1014 = vmatpush.bf16.msra.mxu0 %v725
  %1015 = vmatpush.bf16.msra.mxu0 %v723
  %1016 = vmatpush.bf16.msra.mxu0 %v721
  %1017 = vmatmul.bf16.gmra.mxu0 %v253
  %v1018 = vpop.f32.mrf.mxu0
  %v1019 = vadd.f32 %v193, %v1018
  %v1020 = vpop.f32.mrf.mxu0
  %v1021 = vadd.f32 %v193, %v1020
  %1022 = vmatmul.bf16.gmra.mxu0 %v262
  %v1023 = vpop.f32.mrf.mxu0
  %v1024 = vadd.f32 %v193, %v1023
  %v1025 = vpop.f32.mrf.mxu0
  %v1026 = vadd.f32 %v193, %v1025
  %1027 = vdwg.mxu0
  %1028 = vmatpush.bf16.msra.mxu0 %v751
  %1029 = vmatpush.bf16.msra.mxu0 %v749
  %1030 = vmatpush.bf16.msra.mxu0 %v747
  %1031 = vmatpush.bf16.msra.mxu0 %v745
  %1032 = vmatpush.bf16.msra.mxu0 %v743
  %1033 = vmatpush.bf16.msra.mxu0 %v741
  %1034 = vmatpush.bf16.msra.mxu0 %v739
  %1035 = vmatpush.bf16.msra.mxu0 %v737
  %1036 = vmatmul.bf16.gmra.mxu0 %v254
  %v1037 = vpop.f32.mrf.mxu0
  %v1038 = vadd.f32 %v1019, %v1037
  %v1039 = vpop.f32.mrf.mxu0
  %v1040 = vadd.f32 %v1021, %v1039
  %1041 = vmatmul.bf16.gmra.mxu0 %v263
  %v1042 = vpop.f32.mrf.mxu0
  %v1043 = vadd.f32 %v1024, %v1042
  %v1044 = vpop.f32.mrf.mxu0
  %v1045 = vadd.f32 %v1026, %v1044
  %1046 = vdwg.mxu0
  %1047 = vmatpush.bf16.msra.mxu0 %v767
  %1048 = vmatpush.bf16.msra.mxu0 %v765
  %1049 = vmatpush.bf16.msra.mxu0 %v763
  %1050 = vmatpush.bf16.msra.mxu0 %v761
  %1051 = vmatpush.bf16.msra.mxu0 %v759
  %1052 = vmatpush.bf16.msra.mxu0 %v757
  %1053 = vmatpush.bf16.msra.mxu0 %v755
  %1054 = vmatpush.bf16.msra.mxu0 %v753
  %1055 = vmatmul.bf16.gmra.mxu0 %v255
  %v1056 = vpop.f32.mrf.mxu0
  %v1057 = vadd.f32 %v1038, %v1056
  %v1058 = vpop.f32.mrf.mxu0
  %v1059 = vadd.f32 %v1040, %v1058
  %1060 = vmatmul.bf16.gmra.mxu0 %v264
  %v1061 = vpop.f32.mrf.mxu0
  %v1062 = vadd.f32 %v1043, %v1061
  %v1063 = vpop.f32.mrf.mxu0
  %v1064 = vadd.f32 %v1045, %v1063
  %1065 = vdwg.mxu0
  %1066 = vmatpush.bf16.msra.mxu0 %v783
  %1067 = vmatpush.bf16.msra.mxu0 %v781
  %1068 = vmatpush.bf16.msra.mxu0 %v779
  %1069 = vmatpush.bf16.msra.mxu0 %v777
  %1070 = vmatpush.bf16.msra.mxu0 %v775
  %1071 = vmatpush.bf16.msra.mxu0 %v773
  %1072 = vmatpush.bf16.msra.mxu0 %v771
  %1073 = vmatpush.bf16.msra.mxu0 %v769
  %1074 = vmatmul.bf16.gmra.mxu0 %v256
  %v1075 = vpop.f32.mrf.mxu0
  %v1076 = vadd.f32 %v1057, %v1075
  %v1077 = vpop.f32.mrf.mxu0
  %v1078 = vadd.f32 %v1059, %v1077
  %1079 = vmatmul.bf16.gmra.mxu0 %v265
  %v1080 = vpop.f32.mrf.mxu0
  %v1081 = vadd.f32 %v1062, %v1080
  %v1082 = vpop.f32.mrf.mxu0
  %v1083 = vadd.f32 %v1064, %v1082
  %1084 = vdwg.mxu0
  %1085 = vmatpush.bf16.msra.mxu0 %v799
  %1086 = vmatpush.bf16.msra.mxu0 %v797
  %1087 = vmatpush.bf16.msra.mxu0 %v795
  %1088 = vmatpush.bf16.msra.mxu0 %v793
  %1089 = vmatpush.bf16.msra.mxu0 %v791
  %1090 = vmatpush.bf16.msra.mxu0 %v789
  %1091 = vmatpush.bf16.msra.mxu0 %v787
  %1092 = vmatpush.bf16.msra.mxu0 %v785
  %1093 = vmatmul.bf16.gmra.mxu0 %v257
  %v1094 = vpop.f32.mrf.mxu0
  %v1095 = vadd.f32 %v1076, %v1094
  %v1096 = vpop.f32.mrf.mxu0
  %v1097 = vadd.f32 %v1078, %v1096
  %1098 = vmatmul.bf16.gmra.mxu0 %v266
  %v1099 = vpop.f32.mrf.mxu0
  %v1100 = vadd.f32 %v1081, %v1099
  %v1101 = vpop.f32.mrf.mxu0
  %v1102 = vadd.f32 %v1083, %v1101
  %1103 = vdwg.mxu0
  %1104 = vmatpush.bf16.msra.mxu0 %v815
  %1105 = vmatpush.bf16.msra.mxu0 %v813
  %1106 = vmatpush.bf16.msra.mxu0 %v811
  %1107 = vmatpush.bf16.msra.mxu0 %v809
  %1108 = vmatpush.bf16.msra.mxu0 %v807
  %1109 = vmatpush.bf16.msra.mxu0 %v805
  %1110 = vmatpush.bf16.msra.mxu0 %v803
  %1111 = vmatpush.bf16.msra.mxu0 %v801
  %1112 = vmatmul.bf16.gmra.mxu0 %v258
  %v1113 = vpop.f32.mrf.mxu0
  %v1114 = vadd.f32 %v1095, %v1113
  %v1115 = vpop.f32.mrf.mxu0
  %v1116 = vadd.f32 %v1097, %v1115
  %1117 = vmatmul.bf16.gmra.mxu0 %v267
  %v1118 = vpop.f32.mrf.mxu0
  %v1119 = vadd.f32 %v1100, %v1118
  %v1120 = vpop.f32.mrf.mxu0
  %v1121 = vadd.f32 %v1102, %v1120
  %1122 = vdwg.mxu0
  %1123 = vmatpush.bf16.msra.mxu0 %v831
  %1124 = vmatpush.bf16.msra.mxu0 %v829
  %1125 = vmatpush.bf16.msra.mxu0 %v827
  %1126 = vmatpush.bf16.msra.mxu0 %v825
  %1127 = vmatpush.bf16.msra.mxu0 %v823
  %1128 = vmatpush.bf16.msra.mxu0 %v821
  %1129 = vmatpush.bf16.msra.mxu0 %v819
  %1130 = vmatpush.bf16.msra.mxu0 %v817
  %1131 = vmatmul.bf16.gmra.mxu0 %v259
  %v1132 = vpop.f32.mrf.mxu0
  %v1133 = vadd.f32 %v1114, %v1132
  %v1134 = vpop.f32.mrf.mxu0
  %v1135 = vadd.f32 %v1116, %v1134
  %1136 = vmatmul.bf16.gmra.mxu0 %v268
  %v1137 = vpop.f32.mrf.mxu0
  %v1138 = vadd.f32 %v1119, %v1137
  %v1139 = vpop.f32.mrf.mxu0
  %v1140 = vadd.f32 %v1121, %v1139
  %1141 = vdwg.mxu0
  %1142 = vmatpush.bf16.msra.mxu0 %v847
  %1143 = vmatpush.bf16.msra.mxu0 %v845
  %1144 = vmatpush.bf16.msra.mxu0 %v843
  %1145 = vmatpush.bf16.msra.mxu0 %v841
  %1146 = vmatpush.bf16.msra.mxu0 %v839
  %1147 = vmatpush.bf16.msra.mxu0 %v837
  %1148 = vmatpush.bf16.msra.mxu0 %v835
  %1149 = vmatpush.bf16.msra.mxu0 %v833
  %1150 = vmatmul.bf16.gmra.mxu0 %v260
  %v1151 = vpop.f32.mrf.mxu0
  %v1152 = vadd.f32 %v1133, %v1151
  %v1153 = vpop.f32.mrf.mxu0
  %v1154 = vadd.f32 %v1135, %v1153
  %1155 = vmatmul.bf16.gmra.mxu0 %v269
  %v1156 = vpop.f32.mrf.mxu0
  %v1157 = vadd.f32 %v1138, %v1156
  %v1158 = vpop.f32.mrf.mxu0
  %v1159 = vadd.f32 %v1140, %v1158
  %1160 = vdwg.mxu0
  %1161 = vmatpush.bf16.msra.mxu0 %v863
  %1162 = vmatpush.bf16.msra.mxu0 %v861
  %1163 = vmatpush.bf16.msra.mxu0 %v859
  %1164 = vmatpush.bf16.msra.mxu0 %v857
  %1165 = vmatpush.bf16.msra.mxu0 %v855
  %1166 = vmatpush.bf16.msra.mxu0 %v853
  %1167 = vmatpush.bf16.msra.mxu0 %v851
  %1168 = vmatpush.bf16.msra.mxu0 %v849
  %1169 = vmatmul.bf16.gmra.mxu0 %v261
  %v1170 = vpop.f32.mrf.mxu0
  %v1171 = vadd.f32 %v1152, %v1170
  %v1172 = vpop.f32.mrf.mxu0
  %v1173 = vadd.f32 %v1154, %v1172
  %1174 = vmatmul.bf16.gmra.mxu0 %v270
  %v1175 = vpop.f32.mrf.mxu0
  %v1176 = vadd.f32 %v1157, %v1175
  %v1177 = vpop.f32.mrf.mxu0
  %v1178 = vadd.f32 %v1159, %v1177
  %1179 = vdwg.mxu0
  %1180 = vmatpush.bf16.msra.mxu0 %v736
  %1181 = vmatpush.bf16.msra.mxu0 %v734
  %1182 = vmatpush.bf16.msra.mxu0 %v732
  %1183 = vmatpush.bf16.msra.mxu0 %v730
  %1184 = vmatpush.bf16.msra.mxu0 %v728
  %1185 = vmatpush.bf16.msra.mxu0 %v726
  %1186 = vmatpush.bf16.msra.mxu0 %v724
  %1187 = vmatpush.bf16.msra.mxu0 %v722
  %1188 = vmatmul.bf16.gmra.mxu0 %v253
  %v1189 = vpop.f32.mrf.mxu0
  %v1190 = vadd.f32 %v194, %v1189
  %v1191 = vpop.f32.mrf.mxu0
  %v1192 = vadd.f32 %v194, %v1191
  %1193 = vmatmul.bf16.gmra.mxu0 %v262
  %v1194 = vpop.f32.mrf.mxu0
  %v1195 = vadd.f32 %v194, %v1194
  %v1196 = vpop.f32.mrf.mxu0
  %v1197 = vadd.f32 %v194, %v1196
  %1198 = vdwg.mxu0
  %1199 = vmatpush.bf16.msra.mxu0 %v752
  %1200 = vmatpush.bf16.msra.mxu0 %v750
  %1201 = vmatpush.bf16.msra.mxu0 %v748
  %1202 = vmatpush.bf16.msra.mxu0 %v746
  %1203 = vmatpush.bf16.msra.mxu0 %v744
  %1204 = vmatpush.bf16.msra.mxu0 %v742
  %1205 = vmatpush.bf16.msra.mxu0 %v740
  %1206 = vmatpush.bf16.msra.mxu0 %v738
  %1207 = vmatmul.bf16.gmra.mxu0 %v254
  %v1208 = vpop.f32.mrf.mxu0
  %v1209 = vadd.f32 %v1190, %v1208
  %v1210 = vpop.f32.mrf.mxu0
  %v1211 = vadd.f32 %v1192, %v1210
  %1212 = vmatmul.bf16.gmra.mxu0 %v263
  %v1213 = vpop.f32.mrf.mxu0
  %v1214 = vadd.f32 %v1195, %v1213
  %v1215 = vpop.f32.mrf.mxu0
  %v1216 = vadd.f32 %v1197, %v1215
  %1217 = vdwg.mxu0
  %1218 = vmatpush.bf16.msra.mxu0 %v768
  %1219 = vmatpush.bf16.msra.mxu0 %v766
  %1220 = vmatpush.bf16.msra.mxu0 %v764
  %1221 = vmatpush.bf16.msra.mxu0 %v762
  %1222 = vmatpush.bf16.msra.mxu0 %v760
  %1223 = vmatpush.bf16.msra.mxu0 %v758
  %1224 = vmatpush.bf16.msra.mxu0 %v756
  %1225 = vmatpush.bf16.msra.mxu0 %v754
  %1226 = vmatmul.bf16.gmra.mxu0 %v255
  %v1227 = vpop.f32.mrf.mxu0
  %v1228 = vadd.f32 %v1209, %v1227
  %v1229 = vpop.f32.mrf.mxu0
  %v1230 = vadd.f32 %v1211, %v1229
  %1231 = vmatmul.bf16.gmra.mxu0 %v264
  %v1232 = vpop.f32.mrf.mxu0
  %v1233 = vadd.f32 %v1214, %v1232
  %v1234 = vpop.f32.mrf.mxu0
  %v1235 = vadd.f32 %v1216, %v1234
  %1236 = vdwg.mxu0
  %1237 = vmatpush.bf16.msra.mxu0 %v784
  %1238 = vmatpush.bf16.msra.mxu0 %v782
  %1239 = vmatpush.bf16.msra.mxu0 %v780
  %1240 = vmatpush.bf16.msra.mxu0 %v778
  %1241 = vmatpush.bf16.msra.mxu0 %v776
  %1242 = vmatpush.bf16.msra.mxu0 %v774
  %1243 = vmatpush.bf16.msra.mxu0 %v772
  %1244 = vmatpush.bf16.msra.mxu0 %v770
  %1245 = vmatmul.bf16.gmra.mxu0 %v256
  %v1246 = vpop.f32.mrf.mxu0
  %v1247 = vadd.f32 %v1228, %v1246
  %v1248 = vpop.f32.mrf.mxu0
  %v1249 = vadd.f32 %v1230, %v1248
  %1250 = vmatmul.bf16.gmra.mxu0 %v265
  %v1251 = vpop.f32.mrf.mxu0
  %v1252 = vadd.f32 %v1233, %v1251
  %v1253 = vpop.f32.mrf.mxu0
  %v1254 = vadd.f32 %v1235, %v1253
  %1255 = vdwg.mxu0
  %1256 = vmatpush.bf16.msra.mxu0 %v800
  %1257 = vmatpush.bf16.msra.mxu0 %v798
  %1258 = vmatpush.bf16.msra.mxu0 %v796
  %1259 = vmatpush.bf16.msra.mxu0 %v794
  %1260 = vmatpush.bf16.msra.mxu0 %v792
  %1261 = vmatpush.bf16.msra.mxu0 %v790
  %1262 = vmatpush.bf16.msra.mxu0 %v788
  %1263 = vmatpush.bf16.msra.mxu0 %v786
  %1264 = vmatmul.bf16.gmra.mxu0 %v257
  %v1265 = vpop.f32.mrf.mxu0
  %v1266 = vadd.f32 %v1247, %v1265
  %v1267 = vpop.f32.mrf.mxu0
  %v1268 = vadd.f32 %v1249, %v1267
  %1269 = vmatmul.bf16.gmra.mxu0 %v266
  %v1270 = vpop.f32.mrf.mxu0
  %v1271 = vadd.f32 %v1252, %v1270
  %v1272 = vpop.f32.mrf.mxu0
  %v1273 = vadd.f32 %v1254, %v1272
  %1274 = vdwg.mxu0
  %1275 = vmatpush.bf16.msra.mxu0 %v816
  %1276 = vmatpush.bf16.msra.mxu0 %v814
  %1277 = vmatpush.bf16.msra.mxu0 %v812
  %1278 = vmatpush.bf16.msra.mxu0 %v810
  %1279 = vmatpush.bf16.msra.mxu0 %v808
  %1280 = vmatpush.bf16.msra.mxu0 %v806
  %1281 = vmatpush.bf16.msra.mxu0 %v804
  %1282 = vmatpush.bf16.msra.mxu0 %v802
  %1283 = vmatmul.bf16.gmra.mxu0 %v258
  %v1284 = vpop.f32.mrf.mxu0
  %v1285 = vadd.f32 %v1266, %v1284
  %v1286 = vpop.f32.mrf.mxu0
  %v1287 = vadd.f32 %v1268, %v1286
  %1288 = vmatmul.bf16.gmra.mxu0 %v267
  %v1289 = vpop.f32.mrf.mxu0
  %v1290 = vadd.f32 %v1271, %v1289
  %v1291 = vpop.f32.mrf.mxu0
  %v1292 = vadd.f32 %v1273, %v1291
  %1293 = vdwg.mxu0
  %1294 = vmatpush.bf16.msra.mxu0 %v832
  %1295 = vmatpush.bf16.msra.mxu0 %v830
  %1296 = vmatpush.bf16.msra.mxu0 %v828
  %1297 = vmatpush.bf16.msra.mxu0 %v826
  %1298 = vmatpush.bf16.msra.mxu0 %v824
  %1299 = vmatpush.bf16.msra.mxu0 %v822
  %1300 = vmatpush.bf16.msra.mxu0 %v820
  %1301 = vmatpush.bf16.msra.mxu0 %v818
  %1302 = vmatmul.bf16.gmra.mxu0 %v259
  %v1303 = vpop.f32.mrf.mxu0
  %v1304 = vadd.f32 %v1285, %v1303
  %v1305 = vpop.f32.mrf.mxu0
  %v1306 = vadd.f32 %v1287, %v1305
  %1307 = vmatmul.bf16.gmra.mxu0 %v268
  %v1308 = vpop.f32.mrf.mxu0
  %v1309 = vadd.f32 %v1290, %v1308
  %v1310 = vpop.f32.mrf.mxu0
  %v1311 = vadd.f32 %v1292, %v1310
  %1312 = vdwg.mxu0
  %1313 = vmatpush.bf16.msra.mxu0 %v848
  %1314 = vmatpush.bf16.msra.mxu0 %v846
  %1315 = vmatpush.bf16.msra.mxu0 %v844
  %1316 = vmatpush.bf16.msra.mxu0 %v842
  %1317 = vmatpush.bf16.msra.mxu0 %v840
  %1318 = vmatpush.bf16.msra.mxu0 %v838
  %1319 = vmatpush.bf16.msra.mxu0 %v836
  %1320 = vmatpush.bf16.msra.mxu0 %v834
  %1321 = vmatmul.bf16.gmra.mxu0 %v260
  %v1322 = vpop.f32.mrf.mxu0
  %v1323 = vadd.f32 %v1304, %v1322
  %v1324 = vpop.f32.mrf.mxu0
  %v1325 = vadd.f32 %v1306, %v1324
  %1326 = vmatmul.bf16.gmra.mxu0 %v269
  %v1327 = vpop.f32.mrf.mxu0
  %v1328 = vadd.f32 %v1309, %v1327
  %v1329 = vpop.f32.mrf.mxu0
  %v1330 = vadd.f32 %v1311, %v1329
  %1331 = vdwg.mxu0
  %1332 = vmatpush.bf16.msra.mxu0 %v864
  %1333 = vmatpush.bf16.msra.mxu0 %v862
  %1334 = vmatpush.bf16.msra.mxu0 %v860
  %1335 = vmatpush.bf16.msra.mxu0 %v858
  %1336 = vmatpush.bf16.msra.mxu0 %v856
  %1337 = vmatpush.bf16.msra.mxu0 %v854
  %1338 = vmatpush.bf16.msra.mxu0 %v852
  %1339 = vmatpush.bf16.msra.mxu0 %v850
  %1340 = vmatmul.bf16.gmra.mxu0 %v261
  %v1341 = vpop.f32.mrf.mxu0
  %v1342 = vadd.f32 %v1323, %v1341
  %v1343 = vpop.f32.mrf.mxu0
  %v1344 = vadd.f32 %v1325, %v1343
  %1345 = vmatmul.bf16.gmra.mxu0 %v270
  %v1346 = vpop.f32.mrf.mxu0
  %v1347 = vadd.f32 %v1328, %v1346
  %v1348 = vpop.f32.mrf.mxu0
  %v1349 = vadd.f32 %v1330, %v1348
  %1350 = vdwg.mxu0
  %1351 = vst [vmem:[#allocation2] sm:$0xff] %v1171
  %1352 = vst [vmem:[#allocation2 + $0x8] sm:$0xff] %v1342
  %1353 = vst [vmem:[#allocation2 + $0x10] sm:$0xff] %v1173
  %1354 = vst [vmem:[#allocation2 + $0x18] sm:$0xff] %v1344
  %1355 = vst [vmem:[#allocation2 + $0x20] sm:$0xff] %v1176
  %1356 = vst [vmem:[#allocation2 + $0x28] sm:$0xff] %v1347
  %1357 = vst [vmem:[#allocation2 + $0x30] sm:$0xff] %v1178
  %1358 = vst [vmem:[#allocation2 + $0x38] sm:$0xff] %v1349
  %v1359 = vld [vmem:[#allocation2] sm:$0x3]
  %v1360 = vld [vmem:[#allocation2 + $0x8] sm:$0x3]
  %v1361 = vpack.c.bf16 %v1359, %v1359
  %v1362 = vpack.c.bf16 %v1360, %v1360
  %v1363 = vld [vmem:[%s3] sm:$0xf]
  %v1364 = vld [vmem:[%s3 + $0x4] sm:$0xf]
  %v1365 = vld [vmem:[%s3 + $0x8] sm:$0xf]
  %v1366 = vld [vmem:[%s3 + $0xc] sm:$0xf]
  %v1367 = vld [vmem:[%s3 + $0x10] sm:$0xf]
  %v1368 = vld [vmem:[%s3 + $0x14] sm:$0xf]
  %v1369 = vld [vmem:[%s3 + $0x18] sm:$0xf]
  %v1370 = vld [vmem:[%s3 + $0x1c] sm:$0xf]
  %v1371 = vld [vmem:[%s3 + $0x20] sm:$0xf]
  %v1372 = vld [vmem:[%s3 + $0x24] sm:$0xf]
  %v1373 = vld [vmem:[%s3 + $0x28] sm:$0xf]
  %v1374 = vld [vmem:[%s3 + $0x2c] sm:$0xf]
  %v1375 = vld [vmem:[%s3 + $0x30] sm:$0xf]
  %v1376 = vld [vmem:[%s3 + $0x34] sm:$0xf]
  %v1377 = vld [vmem:[%s3 + $0x38] sm:$0xf]
  %v1378 = vld [vmem:[%s3 + $0x3c] sm:$0xf]
  %v1379 = vld [vmem:[%s3 + $0x40] sm:$0xf]
  %v1380 = vld [vmem:[%s3 + $0x44] sm:$0xf]
  %v1381 = vld [vmem:[%s3 + $0x48] sm:$0xf]
  %v1382 = vld [vmem:[%s3 + $0x4c] sm:$0xf]
  %v1383 = vld [vmem:[%s3 + $0x50] sm:$0xf]
  %v1384 = vld [vmem:[%s3 + $0x54] sm:$0xf]
  %v1385 = vld [vmem:[%s3 + $0x58] sm:$0xf]
  %v1386 = vld [vmem:[%s3 + $0x5c] sm:$0xf]
  %v1387 = vld [vmem:[%s3 + $0x60] sm:$0xf]
  %v1388 = vld [vmem:[%s3 + $0x64] sm:$0xf]
  %v1389 = vld [vmem:[%s3 + $0x68] sm:$0xf]
  %v1390 = vld [vmem:[%s3 + $0x6c] sm:$0xf]
  %v1391 = vld [vmem:[%s3 + $0x70] sm:$0xf]
  %v1392 = vld [vmem:[%s3 + $0x74] sm:$0xf]
  %v1393 = vld [vmem:[%s3 + $0x78] sm:$0xf]
  %v1394 = vld [vmem:[%s3 + $0x7c] sm:$0xf]
  %v1395 = vld [vmem:[#allocation2] sm:$0xc]
  %v1396 = vld [vmem:[#allocation2 + $0x8] sm:$0xc]
  %v1397 = vpack.c.bf16 %v1395, %v1395
  %v1398 = vpack.c.bf16 %v1396, %v1396
  %s1399 = scalar_lea.vmem %s3, 128
  %v1400 = vld [vmem:[%s1399] sm:$0xf]
  %v1401 = vld [vmem:[%s1399 + $0x4] sm:$0xf]
  %v1402 = vld [vmem:[%s1399 + $0x8] sm:$0xf]
  %v1403 = vld [vmem:[%s1399 + $0xc] sm:$0xf]
  %v1404 = vld [vmem:[%s1399 + $0x10] sm:$0xf]
  %v1405 = vld [vmem:[%s1399 + $0x14] sm:$0xf]
  %v1406 = vld [vmem:[%s1399 + $0x18] sm:$0xf]
  %v1407 = vld [vmem:[%s1399 + $0x1c] sm:$0xf]
  %v1408 = vld [vmem:[%s1399 + $0x20] sm:$0xf]
  %v1409 = vld [vmem:[%s1399 + $0x24] sm:$0xf]
  %v1410 = vld [vmem:[%s1399 + $0x28] sm:$0xf]
  %v1411 = vld [vmem:[%s1399 + $0x2c] sm:$0xf]
  %v1412 = vld [vmem:[%s1399 + $0x30] sm:$0xf]
  %v1413 = vld [vmem:[%s1399 + $0x34] sm:$0xf]
  %v1414 = vld [vmem:[%s1399 + $0x38] sm:$0xf]
  %v1415 = vld [vmem:[%s1399 + $0x3c] sm:$0xf]
  %v1416 = vld [vmem:[%s1399 + $0x40] sm:$0xf]
  %v1417 = vld [vmem:[%s1399 + $0x44] sm:$0xf]
  %v1418 = vld [vmem:[%s1399 + $0x48] sm:$0xf]
  %v1419 = vld [vmem:[%s1399 + $0x4c] sm:$0xf]
  %v1420 = vld [vmem:[%s1399 + $0x50] sm:$0xf]
  %v1421 = vld [vmem:[%s1399 + $0x54] sm:$0xf]
  %v1422 = vld [vmem:[%s1399 + $0x58] sm:$0xf]
  %v1423 = vld [vmem:[%s1399 + $0x5c] sm:$0xf]
  %v1424 = vld [vmem:[%s1399 + $0x60] sm:$0xf]
  %v1425 = vld [vmem:[%s1399 + $0x64] sm:$0xf]
  %v1426 = vld [vmem:[%s1399 + $0x68] sm:$0xf]
  %v1427 = vld [vmem:[%s1399 + $0x6c] sm:$0xf]
  %v1428 = vld [vmem:[%s1399 + $0x70] sm:$0xf]
  %v1429 = vld [vmem:[%s1399 + $0x74] sm:$0xf]
  %v1430 = vld [vmem:[%s1399 + $0x78] sm:$0xf]
  %v1431 = vld [vmem:[%s1399 + $0x7c] sm:$0xf]
  %v1434 = vrot.slane %v1397, 1
  %v1435 = vrot.slane %v1398, 1
  %v1470 = vunpack.c.l.b16 %v1400
  %v1471 = vunpack.c.l.b16 %v1401
  %v1472 = vunpack.c.l.b16 %v1402
  %v1473 = vunpack.c.l.b16 %v1403
  %v1474 = vunpack.c.l.b16 %v1404
  %v1475 = vunpack.c.l.b16 %v1405
  %v1476 = vunpack.c.l.b16 %v1406
  %v1477 = vunpack.c.l.b16 %v1407
  %v1478 = vunpack.c.l.b16 %v1408
  %v1479 = vunpack.c.l.b16 %v1409
  %v1480 = vunpack.c.l.b16 %v1410
  %v1481 = vunpack.c.l.b16 %v1411
  %v1482 = vunpack.c.l.b16 %v1412
  %v1483 = vunpack.c.l.b16 %v1413
  %v1484 = vunpack.c.l.b16 %v1414
  %v1485 = vunpack.c.l.b16 %v1415
  %v1486 = vunpack.c.l.b16 %v1416
  %v1487 = vunpack.c.l.b16 %v1417
  %v1488 = vunpack.c.l.b16 %v1418
  %v1489 = vunpack.c.l.b16 %v1419
  %v1490 = vunpack.c.l.b16 %v1420
  %v1491 = vunpack.c.l.b16 %v1421
  %v1492 = vunpack.c.l.b16 %v1422
  %v1493 = vunpack.c.l.b16 %v1423
  %v1494 = vunpack.c.l.b16 %v1424
  %v1495 = vunpack.c.l.b16 %v1425
  %v1496 = vunpack.c.l.b16 %v1426
  %v1497 = vunpack.c.l.b16 %v1427
  %v1498 = vunpack.c.l.b16 %v1428
  %v1499 = vunpack.c.l.b16 %v1429
  %v1500 = vunpack.c.l.b16 %v1430
  %v1501 = vunpack.c.l.b16 %v1431
  %v1502 = vpack.c.b16 %v1471, %v1470
  %v1503 = vpack.c.b16 %v1473, %v1472
  %v1504 = vpack.c.b16 %v1475, %v1474
  %v1505 = vpack.c.b16 %v1477, %v1476
  %v1506 = vpack.c.b16 %v1479, %v1478
  %v1507 = vpack.c.b16 %v1481, %v1480
  %v1508 = vpack.c.b16 %v1483, %v1482
  %v1509 = vpack.c.b16 %v1485, %v1484
  %v1510 = vpack.c.b16 %v1487, %v1486
  %v1511 = vpack.c.b16 %v1489, %v1488
  %v1512 = vpack.c.b16 %v1491, %v1490
  %v1513 = vpack.c.b16 %v1493, %v1492
  %v1514 = vpack.c.b16 %v1495, %v1494
  %v1515 = vpack.c.b16 %v1497, %v1496
  %v1516 = vpack.c.b16 %v1499, %v1498
  %v1517 = vpack.c.b16 %v1501, %v1500
  %1534 = vmatpush.bf16.msra.mxu0 %v1509
  %1535 = vmatpush.bf16.msra.mxu0 %v1508
  %1536 = vmatpush.bf16.msra.mxu0 %v1507
  %1537 = vmatpush.bf16.msra.mxu0 %v1506
  %1538 = vmatpush.bf16.msra.mxu0 %v1505
  %1539 = vmatpush.bf16.msra.mxu0 %v1504
  %1540 = vmatpush.bf16.msra.mxu0 %v1503
  %1541 = vmatpush.bf16.msra.mxu0 %v1502
  %1542 = vmatmul.bf16.gmra.mxu0 %v1434
  %v1543 = vpop.f32.mrf.mxu0
  %v1544 = vadd.f32 0.0, %v1543
  %v1545 = vpop.f32.mrf.mxu0
  %1546 = vdwg.mxu0
  %1547 = vmatpush.bf16.msra.mxu0 %v1517
  %1548 = vmatpush.bf16.msra.mxu0 %v1516
  %1549 = vmatpush.bf16.msra.mxu0 %v1515
  %1550 = vmatpush.bf16.msra.mxu0 %v1514
  %1551 = vmatpush.bf16.msra.mxu0 %v1513
  %1552 = vmatpush.bf16.msra.mxu0 %v1512
  %1553 = vmatpush.bf16.msra.mxu0 %v1511
  %1554 = vmatpush.bf16.msra.mxu0 %v1510
  %1555 = vmatmul.bf16.gmra.mxu0 %v1435
  %v1556 = vpop.f32.mrf.mxu0
  %v1557 = vadd.f32 %v1544, %v1556
  %v1558 = vpop.f32.mrf.mxu0
  %1559 = vdwg.mxu0
  %v1592 = vunpack.c.l.b16 %v1363
  %v1593 = vunpack.c.l.b16 %v1364
  %v1594 = vunpack.c.l.b16 %v1365
  %v1595 = vunpack.c.l.b16 %v1366
  %v1596 = vunpack.c.l.b16 %v1367
  %v1597 = vunpack.c.l.b16 %v1368
  %v1598 = vunpack.c.l.b16 %v1369
  %v1599 = vunpack.c.l.b16 %v1370
  %v1600 = vunpack.c.l.b16 %v1371
  %v1601 = vunpack.c.l.b16 %v1372
  %v1602 = vunpack.c.l.b16 %v1373
  %v1603 = vunpack.c.l.b16 %v1374
  %v1604 = vunpack.c.l.b16 %v1375
  %v1605 = vunpack.c.l.b16 %v1376
  %v1606 = vunpack.c.l.b16 %v1377
  %v1607 = vunpack.c.l.b16 %v1378
  %v1608 = vunpack.c.l.b16 %v1379
  %v1609 = vunpack.c.l.b16 %v1380
  %v1610 = vunpack.c.l.b16 %v1381
  %v1611 = vunpack.c.l.b16 %v1382
  %v1612 = vunpack.c.l.b16 %v1383
  %v1613 = vunpack.c.l.b16 %v1384
  %v1614 = vunpack.c.l.b16 %v1385
  %v1615 = vunpack.c.l.b16 %v1386
  %v1616 = vunpack.c.l.b16 %v1387
  %v1617 = vunpack.c.l.b16 %v1388
  %v1618 = vunpack.c.l.b16 %v1389
  %v1619 = vunpack.c.l.b16 %v1390
  %v1620 = vunpack.c.l.b16 %v1391
  %v1621 = vunpack.c.l.b16 %v1392
  %v1622 = vunpack.c.l.b16 %v1393
  %v1623 = vunpack.c.l.b16 %v1394
  %v1624 = vpack.c.b16 %v1593, %v1592
  %v1625 = vpack.c.b16 %v1595, %v1594
  %v1626 = vpack.c.b16 %v1597, %v1596
  %v1627 = vpack.c.b16 %v1599, %v1598
  %v1628 = vpack.c.b16 %v1601, %v1600
  %v1629 = vpack.c.b16 %v1603, %v1602
  %v1630 = vpack.c.b16 %v1605, %v1604
  %v1631 = vpack.c.b16 %v1607, %v1606
  %v1632 = vpack.c.b16 %v1609, %v1608
  %v1633 = vpack.c.b16 %v1611, %v1610
  %v1634 = vpack.c.b16 %v1613, %v1612
  %v1635 = vpack.c.b16 %v1615, %v1614
  %v1636 = vpack.c.b16 %v1617, %v1616
  %v1637 = vpack.c.b16 %v1619, %v1618
  %v1638 = vpack.c.b16 %v1621, %v1620
  %v1639 = vpack.c.b16 %v1623, %v1622
  %1656 = vmatpush.bf16.msra.mxu0 %v1631
  %1657 = vmatpush.bf16.msra.mxu0 %v1630
  %1658 = vmatpush.bf16.msra.mxu0 %v1629
  %1659 = vmatpush.bf16.msra.mxu0 %v1628
  %1660 = vmatpush.bf16.msra.mxu0 %v1627
  %1661 = vmatpush.bf16.msra.mxu0 %v1626
  %1662 = vmatpush.bf16.msra.mxu0 %v1625
  %1663 = vmatpush.bf16.msra.mxu0 %v1624
  %1664 = vmatmul.bf16.gmra.mxu0 %v1361
  %v1665 = vpop.f32.mrf.mxu0
  %v1666 = vadd.f32 %v1557, %v1665
  %v1667 = vpop.f32.mrf.mxu0
  %1668 = vdwg.mxu0
  %1669 = vmatpush.bf16.msra.mxu0 %v1639
  %1670 = vmatpush.bf16.msra.mxu0 %v1638
  %1671 = vmatpush.bf16.msra.mxu0 %v1637
  %1672 = vmatpush.bf16.msra.mxu0 %v1636
  %1673 = vmatpush.bf16.msra.mxu0 %v1635
  %1674 = vmatpush.bf16.msra.mxu0 %v1634
  %1675 = vmatpush.bf16.msra.mxu0 %v1633
  %1676 = vmatpush.bf16.msra.mxu0 %v1632
  %1677 = vmatmul.bf16.gmra.mxu0 %v1362
  %v1678 = vpop.f32.mrf.mxu0
  %v1679 = vadd.f32 %v1666, %v1678
  %v1680 = vpop.f32.mrf.mxu0
  %1681 = vdwg.mxu0
  %v1682 = vld [vmem:[#allocation2] sm:$0x30]
  %v1683 = vld [vmem:[#allocation2 + $0x8] sm:$0x30]
  %v1684 = vpack.c.bf16 %v1682, %v1682
  %v1685 = vpack.c.bf16 %v1683, %v1683
  %s1686 = scalar_lea.vmem %s3, 256
  %v1687 = vld [vmem:[%s1686] sm:$0xf]
  %v1688 = vld [vmem:[%s1686 + $0x4] sm:$0xf]
  %v1689 = vld [vmem:[%s1686 + $0x8] sm:$0xf]
  %v1690 = vld [vmem:[%s1686 + $0xc] sm:$0xf]
  %v1691 = vld [vmem:[%s1686 + $0x10] sm:$0xf]
  %v1692 = vld [vmem:[%s1686 + $0x14] sm:$0xf]
  %v1693 = vld [vmem:[%s1686 + $0x18] sm:$0xf]
  %v1694 = vld [vmem:[%s1686 + $0x1c] sm:$0xf]
  %v1695 = vld [vmem:[%s1686 + $0x20] sm:$0xf]
  %v1696 = vld [vmem:[%s1686 + $0x24] sm:$0xf]
  %v1697 = vld [vmem:[%s1686 + $0x28] sm:$0xf]
  %v1698 = vld [vmem:[%s1686 + $0x2c] sm:$0xf]
  %v1699 = vld [vmem:[%s1686 + $0x30] sm:$0xf]
  %v1700 = vld [vmem:[%s1686 + $0x34] sm:$0xf]
  %v1701 = vld [vmem:[%s1686 + $0x38] sm:$0xf]
  %v1702 = vld [vmem:[%s1686 + $0x3c] sm:$0xf]
  %v1703 = vld [vmem:[%s1686 + $0x40] sm:$0xf]
  %v1704 = vld [vmem:[%s1686 + $0x44] sm:$0xf]
  %v1705 = vld [vmem:[%s1686 + $0x48] sm:$0xf]
  %v1706 = vld [vmem:[%s1686 + $0x4c] sm:$0xf]
  %v1707 = vld [vmem:[%s1686 + $0x50] sm:$0xf]
  %v1708 = vld [vmem:[%s1686 + $0x54] sm:$0xf]
  %v1709 = vld [vmem:[%s1686 + $0x58] sm:$0xf]
  %v1710 = vld [vmem:[%s1686 + $0x5c] sm:$0xf]
  %v1711 = vld [vmem:[%s1686 + $0x60] sm:$0xf]
  %v1712 = vld [vmem:[%s1686 + $0x64] sm:$0xf]
  %v1713 = vld [vmem:[%s1686 + $0x68] sm:$0xf]
  %v1714 = vld [vmem:[%s1686 + $0x6c] sm:$0xf]
  %v1715 = vld [vmem:[%s1686 + $0x70] sm:$0xf]
  %v1716 = vld [vmem:[%s1686 + $0x74] sm:$0xf]
  %v1717 = vld [vmem:[%s1686 + $0x78] sm:$0xf]
  %v1718 = vld [vmem:[%s1686 + $0x7c] sm:$0xf]
  %v1721 = vrot.slane %v1684, 2
  %v1722 = vrot.slane %v1685, 2
  %v1757 = vunpack.c.l.b16 %v1687
  %v1758 = vunpack.c.l.b16 %v1688
  %v1759 = vunpack.c.l.b16 %v1689
  %v1760 = vunpack.c.l.b16 %v1690
  %v1761 = vunpack.c.l.b16 %v1691
  %v1762 = vunpack.c.l.b16 %v1692
  %v1763 = vunpack.c.l.b16 %v1693
  %v1764 = vunpack.c.l.b16 %v1694
  %v1765 = vunpack.c.l.b16 %v1695
  %v1766 = vunpack.c.l.b16 %v1696
  %v1767 = vunpack.c.l.b16 %v1697
  %v1768 = vunpack.c.l.b16 %v1698
  %v1769 = vunpack.c.l.b16 %v1699
  %v1770 = vunpack.c.l.b16 %v1700
  %v1771 = vunpack.c.l.b16 %v1701
  %v1772 = vunpack.c.l.b16 %v1702
  %v1773 = vunpack.c.l.b16 %v1703
  %v1774 = vunpack.c.l.b16 %v1704
  %v1775 = vunpack.c.l.b16 %v1705
  %v1776 = vunpack.c.l.b16 %v1706
  %v1777 = vunpack.c.l.b16 %v1707
  %v1778 = vunpack.c.l.b16 %v1708
  %v1779 = vunpack.c.l.b16 %v1709
  %v1780 = vunpack.c.l.b16 %v1710
  %v1781 = vunpack.c.l.b16 %v1711
  %v1782 = vunpack.c.l.b16 %v1712
  %v1783 = vunpack.c.l.b16 %v1713
  %v1784 = vunpack.c.l.b16 %v1714
  %v1785 = vunpack.c.l.b16 %v1715
  %v1786 = vunpack.c.l.b16 %v1716
  %v1787 = vunpack.c.l.b16 %v1717
  %v1788 = vunpack.c.l.b16 %v1718
  %v1789 = vpack.c.b16 %v1758, %v1757
  %v1790 = vpack.c.b16 %v1760, %v1759
  %v1791 = vpack.c.b16 %v1762, %v1761
  %v1792 = vpack.c.b16 %v1764, %v1763
  %v1793 = vpack.c.b16 %v1766, %v1765
  %v1794 = vpack.c.b16 %v1768, %v1767
  %v1795 = vpack.c.b16 %v1770, %v1769
  %v1796 = vpack.c.b16 %v1772, %v1771
  %v1797 = vpack.c.b16 %v1774, %v1773
  %v1798 = vpack.c.b16 %v1776, %v1775
  %v1799 = vpack.c.b16 %v1778, %v1777
  %v1800 = vpack.c.b16 %v1780, %v1779
  %v1801 = vpack.c.b16 %v1782, %v1781
  %v1802 = vpack.c.b16 %v1784, %v1783
  %v1803 = vpack.c.b16 %v1786, %v1785
  %v1804 = vpack.c.b16 %v1788, %v1787
  %1821 = vmatpush.bf16.msra.mxu0 %v1796
  %1822 = vmatpush.bf16.msra.mxu0 %v1795
  %1823 = vmatpush.bf16.msra.mxu0 %v1794
  %1824 = vmatpush.bf16.msra.mxu0 %v1793
  %1825 = vmatpush.bf16.msra.mxu0 %v1792
  %1826 = vmatpush.bf16.msra.mxu0 %v1791
  %1827 = vmatpush.bf16.msra.mxu0 %v1790
  %1828 = vmatpush.bf16.msra.mxu0 %v1789
  %1829 = vmatmul.bf16.gmra.mxu0 %v1721
  %v1830 = vpop.f32.mrf.mxu0
  %v1831 = vadd.f32 0.0, %v1830
  %v1832 = vpop.f32.mrf.mxu0
  %1833 = vdwg.mxu0
  %1834 = vmatpush.bf16.msra.mxu0 %v1804
  %1835 = vmatpush.bf16.msra.mxu0 %v1803
  %1836 = vmatpush.bf16.msra.mxu0 %v1802
  %1837 = vmatpush.bf16.msra.mxu0 %v1801
  %1838 = vmatpush.bf16.msra.mxu0 %v1800
  %1839 = vmatpush.bf16.msra.mxu0 %v1799
  %1840 = vmatpush.bf16.msra.mxu0 %v1798
  %1841 = vmatpush.bf16.msra.mxu0 %v1797
  %1842 = vmatmul.bf16.gmra.mxu0 %v1722
  %v1843 = vpop.f32.mrf.mxu0
  %v1844 = vadd.f32 %v1831, %v1843
  %v1845 = vpop.f32.mrf.mxu0
  %1846 = vdwg.mxu0
  %v1847 = vadd.f32 %v1679, %v1844
  %v1848 = vld [vmem:[#allocation2] sm:$0xc0]
  %v1849 = vld [vmem:[#allocation2 + $0x8] sm:$0xc0]
  %v1850 = vpack.c.bf16 %v1848, %v1848
  %v1851 = vpack.c.bf16 %v1849, %v1849
  %s1852 = scalar_lea.vmem %s3, 384
  %v1853 = vld [vmem:[%s1852] sm:$0xf]
  %v1854 = vld [vmem:[%s1852 + $0x4] sm:$0xf]
  %v1855 = vld [vmem:[%s1852 + $0x8] sm:$0xf]
  %v1856 = vld [vmem:[%s1852 + $0xc] sm:$0xf]
  %v1857 = vld [vmem:[%s1852 + $0x10] sm:$0xf]
  %v1858 = vld [vmem:[%s1852 + $0x14] sm:$0xf]
  %v1859 = vld [vmem:[%s1852 + $0x18] sm:$0xf]
  %v1860 = vld [vmem:[%s1852 + $0x1c] sm:$0xf]
  %v1861 = vld [vmem:[%s1852 + $0x20] sm:$0xf]
  %v1862 = vld [vmem:[%s1852 + $0x24] sm:$0xf]
  %v1863 = vld [vmem:[%s1852 + $0x28] sm:$0xf]
  %v1864 = vld [vmem:[%s1852 + $0x2c] sm:$0xf]
  %v1865 = vld [vmem:[%s1852 + $0x30] sm:$0xf]
  %v1866 = vld [vmem:[%s1852 + $0x34] sm:$0xf]
  %v1867 = vld [vmem:[%s1852 + $0x38] sm:$0xf]
  %v1868 = vld [vmem:[%s1852 + $0x3c] sm:$0xf]
  %v1869 = vld [vmem:[%s1852 + $0x40] sm:$0xf]
  %v1870 = vld [vmem:[%s1852 + $0x44] sm:$0xf]
  %v1871 = vld [vmem:[%s1852 + $0x48] sm:$0xf]
  %v1872 = vld [vmem:[%s1852 + $0x4c] sm:$0xf]
  %v1873 = vld [vmem:[%s1852 + $0x50] sm:$0xf]
  %v1874 = vld [vmem:[%s1852 + $0x54] sm:$0xf]
  %v1875 = vld [vmem:[%s1852 + $0x58] sm:$0xf]
  %v1876 = vld [vmem:[%s1852 + $0x5c] sm:$0xf]
  %v1877 = vld [vmem:[%s1852 + $0x60] sm:$0xf]
  %v1878 = vld [vmem:[%s1852 + $0x64] sm:$0xf]
  %v1879 = vld [vmem:[%s1852 + $0x68] sm:$0xf]
  %v1880 = vld [vmem:[%s1852 + $0x6c] sm:$0xf]
  %v1881 = vld [vmem:[%s1852 + $0x70] sm:$0xf]
  %v1882 = vld [vmem:[%s1852 + $0x74] sm:$0xf]
  %v1883 = vld [vmem:[%s1852 + $0x78] sm:$0xf]
  %v1884 = vld [vmem:[%s1852 + $0x7c] sm:$0xf]
  %v1887 = vrot.slane %v1850, 3
  %v1888 = vrot.slane %v1851, 3
  %v1923 = vunpack.c.l.b16 %v1853
  %v1924 = vunpack.c.l.b16 %v1854
  %v1925 = vunpack.c.l.b16 %v1855
  %v1926 = vunpack.c.l.b16 %v1856
  %v1927 = vunpack.c.l.b16 %v1857
  %v1928 = vunpack.c.l.b16 %v1858
  %v1929 = vunpack.c.l.b16 %v1859
  %v1930 = vunpack.c.l.b16 %v1860
  %v1931 = vunpack.c.l.b16 %v1861
  %v1932 = vunpack.c.l.b16 %v1862
  %v1933 = vunpack.c.l.b16 %v1863
  %v1934 = vunpack.c.l.b16 %v1864
  %v1935 = vunpack.c.l.b16 %v1865
  %v1936 = vunpack.c.l.b16 %v1866
  %v1937 = vunpack.c.l.b16 %v1867
  %v1938 = vunpack.c.l.b16 %v1868
  %v1939 = vunpack.c.l.b16 %v1869
  %v1940 = vunpack.c.l.b16 %v1870
  %v1941 = vunpack.c.l.b16 %v1871
  %v1942 = vunpack.c.l.b16 %v1872
  %v1943 = vunpack.c.l.b16 %v1873
  %v1944 = vunpack.c.l.b16 %v1874
  %v1945 = vunpack.c.l.b16 %v1875
  %v1946 = vunpack.c.l.b16 %v1876
  %v1947 = vunpack.c.l.b16 %v1877
  %v1948 = vunpack.c.l.b16 %v1878
  %v1949 = vunpack.c.l.b16 %v1879
  %v1950 = vunpack.c.l.b16 %v1880
  %v1951 = vunpack.c.l.b16 %v1881
  %v1952 = vunpack.c.l.b16 %v1882
  %v1953 = vunpack.c.l.b16 %v1883
  %v1954 = vunpack.c.l.b16 %v1884
  %v1955 = vpack.c.b16 %v1924, %v1923
  %v1956 = vpack.c.b16 %v1926, %v1925
  %v1957 = vpack.c.b16 %v1928, %v1927
  %v1958 = vpack.c.b16 %v1930, %v1929
  %v1959 = vpack.c.b16 %v1932, %v1931
  %v1960 = vpack.c.b16 %v1934, %v1933
  %v1961 = vpack.c.b16 %v1936, %v1935
  %v1962 = vpack.c.b16 %v1938, %v1937
  %v1963 = vpack.c.b16 %v1940, %v1939
  %v1964 = vpack.c.b16 %v1942, %v1941
  %v1965 = vpack.c.b16 %v1944, %v1943
  %v1966 = vpack.c.b16 %v1946, %v1945
  %v1967 = vpack.c.b16 %v1948, %v1947
  %v1968 = vpack.c.b16 %v1950, %v1949
  %v1969 = vpack.c.b16 %v1952, %v1951
  %v1970 = vpack.c.b16 %v1954, %v1953
  %1987 = vmatpush.bf16.msra.mxu0 %v1962
  %1988 = vmatpush.bf16.msra.mxu0 %v1961
  %1989 = vmatpush.bf16.msra.mxu0 %v1960
  %1990 = vmatpush.bf16.msra.mxu0 %v1959
  %1991 = vmatpush.bf16.msra.mxu0 %v1958
  %1992 = vmatpush.bf16.msra.mxu0 %v1957
  %1993 = vmatpush.bf16.msra.mxu0 %v1956
  %1994 = vmatpush.bf16.msra.mxu0 %v1955
  %1995 = vmatmul.bf16.gmra.mxu0 %v1887
  %v1996 = vpop.f32.mrf.mxu0
  %v1997 = vadd.f32 0.0, %v1996
  %v1998 = vpop.f32.mrf.mxu0
  %1999 = vdwg.mxu0
  %2000 = vmatpush.bf16.msra.mxu0 %v1970
  %2001 = vmatpush.bf16.msra.mxu0 %v1969
  %2002 = vmatpush.bf16.msra.mxu0 %v1968
  %2003 = vmatpush.bf16.msra.mxu0 %v1967
  %2004 = vmatpush.bf16.msra.mxu0 %v1966
  %2005 = vmatpush.bf16.msra.mxu0 %v1965
  %2006 = vmatpush.bf16.msra.mxu0 %v1964
  %2007 = vmatpush.bf16.msra.mxu0 %v1963
  %2008 = vmatmul.bf16.gmra.mxu0 %v1888
  %v2009 = vpop.f32.mrf.mxu0
  %v2010 = vadd.f32 %v1997, %v2009
  %v2011 = vpop.f32.mrf.mxu0
  %2012 = vdwg.mxu0
  %v2013 = vadd.f32 %v1847, %v2010
  %v2014 = vld [vmem:[#allocation2 + $0x10] sm:$0x3]
  %v2015 = vld [vmem:[#allocation2 + $0x18] sm:$0x3]
  %v2016 = vpack.c.bf16 %v2014, %v2014
  %v2017 = vpack.c.bf16 %v2015, %v2015
  %s2018 = scalar_lea.vmem %s3, 512
  %v2019 = vld [vmem:[%s2018] sm:$0xf]
  %v2020 = vld [vmem:[%s2018 + $0x4] sm:$0xf]
  %v2021 = vld [vmem:[%s2018 + $0x8] sm:$0xf]
  %v2022 = vld [vmem:[%s2018 + $0xc] sm:$0xf]
  %v2023 = vld [vmem:[%s2018 + $0x10] sm:$0xf]
  %v2024 = vld [vmem:[%s2018 + $0x14] sm:$0xf]
  %v2025 = vld [vmem:[%s2018 + $0x18] sm:$0xf]
  %v2026 = vld [vmem:[%s2018 + $0x1c] sm:$0xf]
  %v2027 = vld [vmem:[%s2018 + $0x20] sm:$0xf]
  %v2028 = vld [vmem:[%s2018 + $0x24] sm:$0xf]
  %v2029 = vld [vmem:[%s2018 + $0x28] sm:$0xf]
  %v2030 = vld [vmem:[%s2018 + $0x2c] sm:$0xf]
  %v2031 = vld [vmem:[%s2018 + $0x30] sm:$0xf]
  %v2032 = vld [vmem:[%s2018 + $0x34] sm:$0xf]
  %v2033 = vld [vmem:[%s2018 + $0x38] sm:$0xf]
  %v2034 = vld [vmem:[%s2018 + $0x3c] sm:$0xf]
  %v2035 = vld [vmem:[%s2018 + $0x40] sm:$0xf]
  %v2036 = vld [vmem:[%s2018 + $0x44] sm:$0xf]
  %v2037 = vld [vmem:[%s2018 + $0x48] sm:$0xf]
  %v2038 = vld [vmem:[%s2018 + $0x4c] sm:$0xf]
  %v2039 = vld [vmem:[%s2018 + $0x50] sm:$0xf]
  %v2040 = vld [vmem:[%s2018 + $0x54] sm:$0xf]
  %v2041 = vld [vmem:[%s2018 + $0x58] sm:$0xf]
  %v2042 = vld [vmem:[%s2018 + $0x5c] sm:$0xf]
  %v2043 = vld [vmem:[%s2018 + $0x60] sm:$0xf]
  %v2044 = vld [vmem:[%s2018 + $0x64] sm:$0xf]
  %v2045 = vld [vmem:[%s2018 + $0x68] sm:$0xf]
  %v2046 = vld [vmem:[%s2018 + $0x6c] sm:$0xf]
  %v2047 = vld [vmem:[%s2018 + $0x70] sm:$0xf]
  %v2048 = vld [vmem:[%s2018 + $0x74] sm:$0xf]
  %v2049 = vld [vmem:[%s2018 + $0x78] sm:$0xf]
  %v2050 = vld [vmem:[%s2018 + $0x7c] sm:$0xf]
  %v2083 = vunpack.c.l.b16 %v2019
  %v2084 = vunpack.c.l.b16 %v2020
  %v2085 = vunpack.c.l.b16 %v2021
  %v2086 = vunpack.c.l.b16 %v2022
  %v2087 = vunpack.c.l.b16 %v2023
  %v2088 = vunpack.c.l.b16 %v2024
  %v2089 = vunpack.c.l.b16 %v2025
  %v2090 = vunpack.c.l.b16 %v2026
  %v2091 = vunpack.c.l.b16 %v2027
  %v2092 = vunpack.c.l.b16 %v2028
  %v2093 = vunpack.c.l.b16 %v2029
  %v2094 = vunpack.c.l.b16 %v2030
  %v2095 = vunpack.c.l.b16 %v2031
  %v2096 = vunpack.c.l.b16 %v2032
  %v2097 = vunpack.c.l.b16 %v2033
  %v2098 = vunpack.c.l.b16 %v2034
  %v2099 = vunpack.c.l.b16 %v2035
  %v2100 = vunpack.c.l.b16 %v2036
  %v2101 = vunpack.c.l.b16 %v2037
  %v2102 = vunpack.c.l.b16 %v2038
  %v2103 = vunpack.c.l.b16 %v2039
  %v2104 = vunpack.c.l.b16 %v2040
  %v2105 = vunpack.c.l.b16 %v2041
  %v2106 = vunpack.c.l.b16 %v2042
  %v2107 = vunpack.c.l.b16 %v2043
  %v2108 = vunpack.c.l.b16 %v2044
  %v2109 = vunpack.c.l.b16 %v2045
  %v2110 = vunpack.c.l.b16 %v2046
  %v2111 = vunpack.c.l.b16 %v2047
  %v2112 = vunpack.c.l.b16 %v2048
  %v2113 = vunpack.c.l.b16 %v2049
  %v2114 = vunpack.c.l.b16 %v2050
  %v2115 = vpack.c.b16 %v2084, %v2083
  %v2116 = vpack.c.b16 %v2086, %v2085
  %v2117 = vpack.c.b16 %v2088, %v2087
  %v2118 = vpack.c.b16 %v2090, %v2089
  %v2119 = vpack.c.b16 %v2092, %v2091
  %v2120 = vpack.c.b16 %v2094, %v2093
  %v2121 = vpack.c.b16 %v2096, %v2095
  %v2122 = vpack.c.b16 %v2098, %v2097
  %v2123 = vpack.c.b16 %v2100, %v2099
  %v2124 = vpack.c.b16 %v2102, %v2101
  %v2125 = vpack.c.b16 %v2104, %v2103
  %v2126 = vpack.c.b16 %v2106, %v2105
  %v2127 = vpack.c.b16 %v2108, %v2107
  %v2128 = vpack.c.b16 %v2110, %v2109
  %v2129 = vpack.c.b16 %v2112, %v2111
  %v2130 = vpack.c.b16 %v2114, %v2113
  %2147 = vmatpush.bf16.msra.mxu0 %v2122
  %2148 = vmatpush.bf16.msra.mxu0 %v2121
  %2149 = vmatpush.bf16.msra.mxu0 %v2120
  %2150 = vmatpush.bf16.msra.mxu0 %v2119
  %2151 = vmatpush.bf16.msra.mxu0 %v2118
  %2152 = vmatpush.bf16.msra.mxu0 %v2117
  %2153 = vmatpush.bf16.msra.mxu0 %v2116
  %2154 = vmatpush.bf16.msra.mxu0 %v2115
  %2155 = vmatmul.bf16.gmra.mxu0 %v2016
  %v2156 = vpop.f32.mrf.mxu0
  %v2157 = vadd.f32 0.0, %v2156
  %v2158 = vpop.f32.mrf.mxu0
  %2159 = vdwg.mxu0
  %2160 = vmatpush.bf16.msra.mxu0 %v2130
  %2161 = vmatpush.bf16.msra.mxu0 %v2129
  %2162 = vmatpush.bf16.msra.mxu0 %v2128
  %2163 = vmatpush.bf16.msra.mxu0 %v2127
  %2164 = vmatpush.bf16.msra.mxu0 %v2126
  %2165 = vmatpush.bf16.msra.mxu0 %v2125
  %2166 = vmatpush.bf16.msra.mxu0 %v2124
  %2167 = vmatpush.bf16.msra.mxu0 %v2123
  %2168 = vmatmul.bf16.gmra.mxu0 %v2017
  %v2169 = vpop.f32.mrf.mxu0
  %v2170 = vadd.f32 %v2157, %v2169
  %v2171 = vpop.f32.mrf.mxu0
  %2172 = vdwg.mxu0
  %v2173 = vadd.f32 %v2013, %v2170
  %v2174 = vld [vmem:[#allocation2 + $0x10] sm:$0xc]
  %v2175 = vld [vmem:[#allocation2 + $0x18] sm:$0xc]
  %v2176 = vpack.c.bf16 %v2174, %v2174
  %v2177 = vpack.c.bf16 %v2175, %v2175
  %s2178 = scalar_lea.vmem %s3, 640
  %v2179 = vld [vmem:[%s2178] sm:$0xf]
  %v2180 = vld [vmem:[%s2178 + $0x4] sm:$0xf]
  %v2181 = vld [vmem:[%s2178 + $0x8] sm:$0xf]
  %v2182 = vld [vmem:[%s2178 + $0xc] sm:$0xf]
  %v2183 = vld [vmem:[%s2178 + $0x10] sm:$0xf]
  %v2184 = vld [vmem:[%s2178 + $0x14] sm:$0xf]
  %v2185 = vld [vmem:[%s2178 + $0x18] sm:$0xf]
  %v2186 = vld [vmem:[%s2178 + $0x1c] sm:$0xf]
  %v2187 = vld [vmem:[%s2178 + $0x20] sm:$0xf]
  %v2188 = vld [vmem:[%s2178 + $0x24] sm:$0xf]
  %v2189 = vld [vmem:[%s2178 + $0x28] sm:$0xf]
  %v2190 = vld [vmem:[%s2178 + $0x2c] sm:$0xf]
  %v2191 = vld [vmem:[%s2178 + $0x30] sm:$0xf]
  %v2192 = vld [vmem:[%s2178 + $0x34] sm:$0xf]
  %v2193 = vld [vmem:[%s2178 + $0x38] sm:$0xf]
  %v2194 = vld [vmem:[%s2178 + $0x3c] sm:$0xf]
  %v2195 = vld [vmem:[%s2178 + $0x40] sm:$0xf]
  %v2196 = vld [vmem:[%s2178 + $0x44] sm:$0xf]
  %v2197 = vld [vmem:[%s2178 + $0x48] sm:$0xf]
  %v2198 = vld [vmem:[%s2178 + $0x4c] sm:$0xf]
  %v2199 = vld [vmem:[%s2178 + $0x50] sm:$0xf]
  %v2200 = vld [vmem:[%s2178 + $0x54] sm:$0xf]
  %v2201 = vld [vmem:[%s2178 + $0x58] sm:$0xf]
  %v2202 = vld [vmem:[%s2178 + $0x5c] sm:$0xf]
  %v2203 = vld [vmem:[%s2178 + $0x60] sm:$0xf]
  %v2204 = vld [vmem:[%s2178 + $0x64] sm:$0xf]
  %v2205 = vld [vmem:[%s2178 + $0x68] sm:$0xf]
  %v2206 = vld [vmem:[%s2178 + $0x6c] sm:$0xf]
  %v2207 = vld [vmem:[%s2178 + $0x70] sm:$0xf]
  %v2208 = vld [vmem:[%s2178 + $0x74] sm:$0xf]
  %v2209 = vld [vmem:[%s2178 + $0x78] sm:$0xf]
  %v2210 = vld [vmem:[%s2178 + $0x7c] sm:$0xf]
  %v2213 = vrot.slane %v2176, 1
  %v2214 = vrot.slane %v2177, 1
  %v2249 = vunpack.c.l.b16 %v2179
  %v2250 = vunpack.c.l.b16 %v2180
  %v2251 = vunpack.c.l.b16 %v2181
  %v2252 = vunpack.c.l.b16 %v2182
  %v2253 = vunpack.c.l.b16 %v2183
  %v2254 = vunpack.c.l.b16 %v2184
  %v2255 = vunpack.c.l.b16 %v2185
  %v2256 = vunpack.c.l.b16 %v2186
  %v2257 = vunpack.c.l.b16 %v2187
  %v2258 = vunpack.c.l.b16 %v2188
  %v2259 = vunpack.c.l.b16 %v2189
  %v2260 = vunpack.c.l.b16 %v2190
  %v2261 = vunpack.c.l.b16 %v2191
  %v2262 = vunpack.c.l.b16 %v2192
  %v2263 = vunpack.c.l.b16 %v2193
  %v2264 = vunpack.c.l.b16 %v2194
  %v2265 = vunpack.c.l.b16 %v2195
  %v2266 = vunpack.c.l.b16 %v2196
  %v2267 = vunpack.c.l.b16 %v2197
  %v2268 = vunpack.c.l.b16 %v2198
  %v2269 = vunpack.c.l.b16 %v2199
  %v2270 = vunpack.c.l.b16 %v2200
  %v2271 = vunpack.c.l.b16 %v2201
  %v2272 = vunpack.c.l.b16 %v2202
  %v2273 = vunpack.c.l.b16 %v2203
  %v2274 = vunpack.c.l.b16 %v2204
  %v2275 = vunpack.c.l.b16 %v2205
  %v2276 = vunpack.c.l.b16 %v2206
  %v2277 = vunpack.c.l.b16 %v2207
  %v2278 = vunpack.c.l.b16 %v2208
  %v2279 = vunpack.c.l.b16 %v2209
  %v2280 = vunpack.c.l.b16 %v2210
  %v2281 = vpack.c.b16 %v2250, %v2249
  %v2282 = vpack.c.b16 %v2252, %v2251
  %v2283 = vpack.c.b16 %v2254, %v2253
  %v2284 = vpack.c.b16 %v2256, %v2255
  %v2285 = vpack.c.b16 %v2258, %v2257
  %v2286 = vpack.c.b16 %v2260, %v2259
  %v2287 = vpack.c.b16 %v2262, %v2261
  %v2288 = vpack.c.b16 %v2264, %v2263
  %v2289 = vpack.c.b16 %v2266, %v2265
  %v2290 = vpack.c.b16 %v2268, %v2267
  %v2291 = vpack.c.b16 %v2270, %v2269
  %v2292 = vpack.c.b16 %v2272, %v2271
  %v2293 = vpack.c.b16 %v2274, %v2273
  %v2294 = vpack.c.b16 %v2276, %v2275
  %v2295 = vpack.c.b16 %v2278, %v2277
  %v2296 = vpack.c.b16 %v2280, %v2279
  %2313 = vmatpush.bf16.msra.mxu0 %v2288
  %2314 = vmatpush.bf16.msra.mxu0 %v2287
  %2315 = vmatpush.bf16.msra.mxu0 %v2286
  %2316 = vmatpush.bf16.msra.mxu0 %v2285
  %2317 = vmatpush.bf16.msra.mxu0 %v2284
  %2318 = vmatpush.bf16.msra.mxu0 %v2283
  %2319 = vmatpush.bf16.msra.mxu0 %v2282
  %2320 = vmatpush.bf16.msra.mxu0 %v2281
  %2321 = vmatmul.bf16.gmra.mxu0 %v2213
  %v2322 = vpop.f32.mrf.mxu0
  %v2323 = vadd.f32 0.0, %v2322
  %v2324 = vpop.f32.mrf.mxu0
  %2325 = vdwg.mxu0
  %2326 = vmatpush.bf16.msra.mxu0 %v2296
  %2327 = vmatpush.bf16.msra.mxu0 %v2295
  %2328 = vmatpush.bf16.msra.mxu0 %v2294
  %2329 = vmatpush.bf16.msra.mxu0 %v2293
  %2330 = vmatpush.bf16.msra.mxu0 %v2292
  %2331 = vmatpush.bf16.msra.mxu0 %v2291
  %2332 = vmatpush.bf16.msra.mxu0 %v2290
  %2333 = vmatpush.bf16.msra.mxu0 %v2289
  %2334 = vmatmul.bf16.gmra.mxu0 %v2214
  %v2335 = vpop.f32.mrf.mxu0
  %v2336 = vadd.f32 %v2323, %v2335
  %v2337 = vpop.f32.mrf.mxu0
  %2338 = vdwg.mxu0
  %v2339 = vadd.f32 %v2173, %v2336
  %v2340 = vld [vmem:[#allocation2 + $0x10] sm:$0x30]
  %v2341 = vld [vmem:[#allocation2 + $0x18] sm:$0x30]
  %v2342 = vpack.c.bf16 %v2340, %v2340
  %v2343 = vpack.c.bf16 %v2341, %v2341
  %s2344 = scalar_lea.vmem %s3, 768
  %v2345 = vld [vmem:[%s2344] sm:$0xf]
  %v2346 = vld [vmem:[%s2344 + $0x4] sm:$0xf]
  %v2347 = vld [vmem:[%s2344 + $0x8] sm:$0xf]
  %v2348 = vld [vmem:[%s2344 + $0xc] sm:$0xf]
  %v2349 = vld [vmem:[%s2344 + $0x10] sm:$0xf]
  %v2350 = vld [vmem:[%s2344 + $0x14] sm:$0xf]
  %v2351 = vld [vmem:[%s2344 + $0x18] sm:$0xf]
  %v2352 = vld [vmem:[%s2344 + $0x1c] sm:$0xf]
  %v2353 = vld [vmem:[%s2344 + $0x20] sm:$0xf]
  %v2354 = vld [vmem:[%s2344 + $0x24] sm:$0xf]
  %v2355 = vld [vmem:[%s2344 + $0x28] sm:$0xf]
  %v2356 = vld [vmem:[%s2344 + $0x2c] sm:$0xf]
  %v2357 = vld [vmem:[%s2344 + $0x30] sm:$0xf]
  %v2358 = vld [vmem:[%s2344 + $0x34] sm:$0xf]
  %v2359 = vld [vmem:[%s2344 + $0x38] sm:$0xf]
  %v2360 = vld [vmem:[%s2344 + $0x3c] sm:$0xf]
  %v2361 = vld [vmem:[%s2344 + $0x40] sm:$0xf]
  %v2362 = vld [vmem:[%s2344 + $0x44] sm:$0xf]
  %v2363 = vld [vmem:[%s2344 + $0x48] sm:$0xf]
  %v2364 = vld [vmem:[%s2344 + $0x4c] sm:$0xf]
  %v2365 = vld [vmem:[%s2344 + $0x50] sm:$0xf]
  %v2366 = vld [vmem:[%s2344 + $0x54] sm:$0xf]
  %v2367 = vld [vmem:[%s2344 + $0x58] sm:$0xf]
  %v2368 = vld [vmem:[%s2344 + $0x5c] sm:$0xf]
  %v2369 = vld [vmem:[%s2344 + $0x60] sm:$0xf]
  %v2370 = vld [vmem:[%s2344 + $0x64] sm:$0xf]
  %v2371 = vld [vmem:[%s2344 + $0x68] sm:$0xf]
  %v2372 = vld [vmem:[%s2344 + $0x6c] sm:$0xf]
  %v2373 = vld [vmem:[%s2344 + $0x70] sm:$0xf]
  %v2374 = vld [vmem:[%s2344 + $0x74] sm:$0xf]
  %v2375 = vld [vmem:[%s2344 + $0x78] sm:$0xf]
  %v2376 = vld [vmem:[%s2344 + $0x7c] sm:$0xf]
  %v2379 = vrot.slane %v2342, 2
  %v2380 = vrot.slane %v2343, 2
  %v2415 = vunpack.c.l.b16 %v2345
  %v2416 = vunpack.c.l.b16 %v2346
  %v2417 = vunpack.c.l.b16 %v2347
  %v2418 = vunpack.c.l.b16 %v2348
  %v2419 = vunpack.c.l.b16 %v2349
  %v2420 = vunpack.c.l.b16 %v2350
  %v2421 = vunpack.c.l.b16 %v2351
  %v2422 = vunpack.c.l.b16 %v2352
  %v2423 = vunpack.c.l.b16 %v2353
  %v2424 = vunpack.c.l.b16 %v2354
  %v2425 = vunpack.c.l.b16 %v2355
  %v2426 = vunpack.c.l.b16 %v2356
  %v2427 = vunpack.c.l.b16 %v2357
  %v2428 = vunpack.c.l.b16 %v2358
  %v2429 = vunpack.c.l.b16 %v2359
  %v2430 = vunpack.c.l.b16 %v2360
  %v2431 = vunpack.c.l.b16 %v2361
  %v2432 = vunpack.c.l.b16 %v2362
  %v2433 = vunpack.c.l.b16 %v2363
  %v2434 = vunpack.c.l.b16 %v2364
  %v2435 = vunpack.c.l.b16 %v2365
  %v2436 = vunpack.c.l.b16 %v2366
  %v2437 = vunpack.c.l.b16 %v2367
  %v2438 = vunpack.c.l.b16 %v2368
  %v2439 = vunpack.c.l.b16 %v2369
  %v2440 = vunpack.c.l.b16 %v2370
  %v2441 = vunpack.c.l.b16 %v2371
  %v2442 = vunpack.c.l.b16 %v2372
  %v2443 = vunpack.c.l.b16 %v2373
  %v2444 = vunpack.c.l.b16 %v2374
  %v2445 = vunpack.c.l.b16 %v2375
  %v2446 = vunpack.c.l.b16 %v2376
  %v2447 = vpack.c.b16 %v2416, %v2415
  %v2448 = vpack.c.b16 %v2418, %v2417
  %v2449 = vpack.c.b16 %v2420, %v2419
  %v2450 = vpack.c.b16 %v2422, %v2421
  %v2451 = vpack.c.b16 %v2424, %v2423
  %v2452 = vpack.c.b16 %v2426, %v2425
  %v2453 = vpack.c.b16 %v2428, %v2427
  %v2454 = vpack.c.b16 %v2430, %v2429
  %v2455 = vpack.c.b16 %v2432, %v2431
  %v2456 = vpack.c.b16 %v2434, %v2433
  %v2457 = vpack.c.b16 %v2436, %v2435
  %v2458 = vpack.c.b16 %v2438, %v2437
  %v2459 = vpack.c.b16 %v2440, %v2439
  %v2460 = vpack.c.b16 %v2442, %v2441
  %v2461 = vpack.c.b16 %v2444, %v2443
  %v2462 = vpack.c.b16 %v2446, %v2445
  %2479 = vmatpush.bf16.msra.mxu0 %v2454
  %2480 = vmatpush.bf16.msra.mxu0 %v2453
  %2481 = vmatpush.bf16.msra.mxu0 %v2452
  %2482 = vmatpush.bf16.msra.mxu0 %v2451
  %2483 = vmatpush.bf16.msra.mxu0 %v2450
  %2484 = vmatpush.bf16.msra.mxu0 %v2449
  %2485 = vmatpush.bf16.msra.mxu0 %v2448
  %2486 = vmatpush.bf16.msra.mxu0 %v2447
  %2487 = vmatmul.bf16.gmra.mxu0 %v2379
  %v2488 = vpop.f32.mrf.mxu0
  %v2489 = vadd.f32 0.0, %v2488
  %v2490 = vpop.f32.mrf.mxu0
  %2491 = vdwg.mxu0
  %2492 = vmatpush.bf16.msra.mxu0 %v2462
  %2493 = vmatpush.bf16.msra.mxu0 %v2461
  %2494 = vmatpush.bf16.msra.mxu0 %v2460
  %2495 = vmatpush.bf16.msra.mxu0 %v2459
  %2496 = vmatpush.bf16.msra.mxu0 %v2458
  %2497 = vmatpush.bf16.msra.mxu0 %v2457
  %2498 = vmatpush.bf16.msra.mxu0 %v2456
  %2499 = vmatpush.bf16.msra.mxu0 %v2455
  %2500 = vmatmul.bf16.gmra.mxu0 %v2380
  %v2501 = vpop.f32.mrf.mxu0
  %v2502 = vadd.f32 %v2489, %v2501
  %v2503 = vpop.f32.mrf.mxu0
  %2504 = vdwg.mxu0
  %v2505 = vadd.f32 %v2339, %v2502
  %v2506 = vld [vmem:[#allocation2 + $0x10] sm:$0xc0]
  %v2507 = vld [vmem:[#allocation2 + $0x18] sm:$0xc0]
  %v2508 = vpack.c.bf16 %v2506, %v2506
  %v2509 = vpack.c.bf16 %v2507, %v2507
  %s2510 = scalar_lea.vmem %s3, 896
  %v2511 = vld [vmem:[%s2510] sm:$0xf]
  %v2512 = vld [vmem:[%s2510 + $0x4] sm:$0xf]
  %v2513 = vld [vmem:[%s2510 + $0x8] sm:$0xf]
  %v2514 = vld [vmem:[%s2510 + $0xc] sm:$0xf]
  %v2515 = vld [vmem:[%s2510 + $0x10] sm:$0xf]
  %v2516 = vld [vmem:[%s2510 + $0x14] sm:$0xf]
  %v2517 = vld [vmem:[%s2510 + $0x18] sm:$0xf]
  %v2518 = vld [vmem:[%s2510 + $0x1c] sm:$0xf]
  %v2519 = vld [vmem:[%s2510 + $0x20] sm:$0xf]
  %v2520 = vld [vmem:[%s2510 + $0x24] sm:$0xf]
  %v2521 = vld [vmem:[%s2510 + $0x28] sm:$0xf]
  %v2522 = vld [vmem:[%s2510 + $0x2c] sm:$0xf]
  %v2523 = vld [vmem:[%s2510 + $0x30] sm:$0xf]
  %v2524 = vld [vmem:[%s2510 + $0x34] sm:$0xf]
  %v2525 = vld [vmem:[%s2510 + $0x38] sm:$0xf]
  %v2526 = vld [vmem:[%s2510 + $0x3c] sm:$0xf]
  %v2527 = vld [vmem:[%s2510 + $0x40] sm:$0xf]
  %v2528 = vld [vmem:[%s2510 + $0x44] sm:$0xf]
  %v2529 = vld [vmem:[%s2510 + $0x48] sm:$0xf]
  %v2530 = vld [vmem:[%s2510 + $0x4c] sm:$0xf]
  %v2531 = vld [vmem:[%s2510 + $0x50] sm:$0xf]
  %v2532 = vld [vmem:[%s2510 + $0x54] sm:$0xf]
  %v2533 = vld [vmem:[%s2510 + $0x58] sm:$0xf]
  %v2534 = vld [vmem:[%s2510 + $0x5c] sm:$0xf]
  %v2535 = vld [vmem:[%s2510 + $0x60] sm:$0xf]
  %v2536 = vld [vmem:[%s2510 + $0x64] sm:$0xf]
  %v2537 = vld [vmem:[%s2510 + $0x68] sm:$0xf]
  %v2538 = vld [vmem:[%s2510 + $0x6c] sm:$0xf]
  %v2539 = vld [vmem:[%s2510 + $0x70] sm:$0xf]
  %v2540 = vld [vmem:[%s2510 + $0x74] sm:$0xf]
  %v2541 = vld [vmem:[%s2510 + $0x78] sm:$0xf]
  %v2542 = vld [vmem:[%s2510 + $0x7c] sm:$0xf]
  %v2545 = vrot.slane %v2508, 3
  %v2546 = vrot.slane %v2509, 3
  %v2581 = vunpack.c.l.b16 %v2511
  %v2582 = vunpack.c.l.b16 %v2512
  %v2583 = vunpack.c.l.b16 %v2513
  %v2584 = vunpack.c.l.b16 %v2514
  %v2585 = vunpack.c.l.b16 %v2515
  %v2586 = vunpack.c.l.b16 %v2516
  %v2587 = vunpack.c.l.b16 %v2517
  %v2588 = vunpack.c.l.b16 %v2518
  %v2589 = vunpack.c.l.b16 %v2519
  %v2590 = vunpack.c.l.b16 %v2520
  %v2591 = vunpack.c.l.b16 %v2521
  %v2592 = vunpack.c.l.b16 %v2522
  %v2593 = vunpack.c.l.b16 %v2523
  %v2594 = vunpack.c.l.b16 %v2524
  %v2595 = vunpack.c.l.b16 %v2525
  %v2596 = vunpack.c.l.b16 %v2526
  %v2597 = vunpack.c.l.b16 %v2527
  %v2598 = vunpack.c.l.b16 %v2528
  %v2599 = vunpack.c.l.b16 %v2529
  %v2600 = vunpack.c.l.b16 %v2530
  %v2601 = vunpack.c.l.b16 %v2531
  %v2602 = vunpack.c.l.b16 %v2532
  %v2603 = vunpack.c.l.b16 %v2533
  %v2604 = vunpack.c.l.b16 %v2534
  %v2605 = vunpack.c.l.b16 %v2535
  %v2606 = vunpack.c.l.b16 %v2536
  %v2607 = vunpack.c.l.b16 %v2537
  %v2608 = vunpack.c.l.b16 %v2538
  %v2609 = vunpack.c.l.b16 %v2539
  %v2610 = vunpack.c.l.b16 %v2540
  %v2611 = vunpack.c.l.b16 %v2541
  %v2612 = vunpack.c.l.b16 %v2542
  %v2613 = vpack.c.b16 %v2582, %v2581
  %v2614 = vpack.c.b16 %v2584, %v2583
  %v2615 = vpack.c.b16 %v2586, %v2585
  %v2616 = vpack.c.b16 %v2588, %v2587
  %v2617 = vpack.c.b16 %v2590, %v2589
  %v2618 = vpack.c.b16 %v2592, %v2591
  %v2619 = vpack.c.b16 %v2594, %v2593
  %v2620 = vpack.c.b16 %v2596, %v2595
  %v2621 = vpack.c.b16 %v2598, %v2597
  %v2622 = vpack.c.b16 %v2600, %v2599
  %v2623 = vpack.c.b16 %v2602, %v2601
  %v2624 = vpack.c.b16 %v2604, %v2603
  %v2625 = vpack.c.b16 %v2606, %v2605
  %v2626 = vpack.c.b16 %v2608, %v2607
  %v2627 = vpack.c.b16 %v2610, %v2609
  %v2628 = vpack.c.b16 %v2612, %v2611
  %2645 = vmatpush.bf16.msra.mxu0 %v2620
  %2646 = vmatpush.bf16.msra.mxu0 %v2619
  %2647 = vmatpush.bf16.msra.mxu0 %v2618
  %2648 = vmatpush.bf16.msra.mxu0 %v2617
  %2649 = vmatpush.bf16.msra.mxu0 %v2616
  %2650 = vmatpush.bf16.msra.mxu0 %v2615
  %2651 = vmatpush.bf16.msra.mxu0 %v2614
  %2652 = vmatpush.bf16.msra.mxu0 %v2613
  %2653 = vmatmul.bf16.gmra.mxu0 %v2545
  %v2654 = vpop.f32.mrf.mxu0
  %v2655 = vadd.f32 0.0, %v2654
  %v2656 = vpop.f32.mrf.mxu0
  %2657 = vdwg.mxu0
  %2658 = vmatpush.bf16.msra.mxu0 %v2628
  %2659 = vmatpush.bf16.msra.mxu0 %v2627
  %2660 = vmatpush.bf16.msra.mxu0 %v2626
  %2661 = vmatpush.bf16.msra.mxu0 %v2625
  %2662 = vmatpush.bf16.msra.mxu0 %v2624
  %2663 = vmatpush.bf16.msra.mxu0 %v2623
  %2664 = vmatpush.bf16.msra.mxu0 %v2622
  %2665 = vmatpush.bf16.msra.mxu0 %v2621
  %2666 = vmatmul.bf16.gmra.mxu0 %v2546
  %v2667 = vpop.f32.mrf.mxu0
  %v2668 = vadd.f32 %v2655, %v2667
  %v2669 = vpop.f32.mrf.mxu0
  %2670 = vdwg.mxu0
  %v2671 = vadd.f32 %v2505, %v2668
  %v2672 = vld [vmem:[#allocation2 + $0x20] sm:$0x3]
  %v2673 = vld [vmem:[#allocation2 + $0x28] sm:$0x3]
  %v2674 = vpack.c.bf16 %v2672, %v2672
  %v2675 = vpack.c.bf16 %v2673, %v2673
  %s2676 = scalar_lea.vmem %s3, 1024
  %v2677 = vld [vmem:[%s2676] sm:$0xf]
  %v2678 = vld [vmem:[%s2676 + $0x4] sm:$0xf]
  %v2679 = vld [vmem:[%s2676 + $0x8] sm:$0xf]
  %v2680 = vld [vmem:[%s2676 + $0xc] sm:$0xf]
  %v2681 = vld [vmem:[%s2676 + $0x10] sm:$0xf]
  %v2682 = vld [vmem:[%s2676 + $0x14] sm:$0xf]
  %v2683 = vld [vmem:[%s2676 + $0x18] sm:$0xf]
  %v2684 = vld [vmem:[%s2676 + $0x1c] sm:$0xf]
  %v2685 = vld [vmem:[%s2676 + $0x20] sm:$0xf]
  %v2686 = vld [vmem:[%s2676 + $0x24] sm:$0xf]
  %v2687 = vld [vmem:[%s2676 + $0x28] sm:$0xf]
  %v2688 = vld [vmem:[%s2676 + $0x2c] sm:$0xf]
  %v2689 = vld [vmem:[%s2676 + $0x30] sm:$0xf]
  %v2690 = vld [vmem:[%s2676 + $0x34] sm:$0xf]
  %v2691 = vld [vmem:[%s2676 + $0x38] sm:$0xf]
  %v2692 = vld [vmem:[%s2676 + $0x3c] sm:$0xf]
  %v2693 = vld [vmem:[%s2676 + $0x40] sm:$0xf]
  %v2694 = vld [vmem:[%s2676 + $0x44] sm:$0xf]
  %v2695 = vld [vmem:[%s2676 + $0x48] sm:$0xf]
  %v2696 = vld [vmem:[%s2676 + $0x4c] sm:$0xf]
  %v2697 = vld [vmem:[%s2676 + $0x50] sm:$0xf]
  %v2698 = vld [vmem:[%s2676 + $0x54] sm:$0xf]
  %v2699 = vld [vmem:[%s2676 + $0x58] sm:$0xf]
  %v2700 = vld [vmem:[%s2676 + $0x5c] sm:$0xf]
  %v2701 = vld [vmem:[%s2676 + $0x60] sm:$0xf]
  %v2702 = vld [vmem:[%s2676 + $0x64] sm:$0xf]
  %v2703 = vld [vmem:[%s2676 + $0x68] sm:$0xf]
  %v2704 = vld [vmem:[%s2676 + $0x6c] sm:$0xf]
  %v2705 = vld [vmem:[%s2676 + $0x70] sm:$0xf]
  %v2706 = vld [vmem:[%s2676 + $0x74] sm:$0xf]
  %v2707 = vld [vmem:[%s2676 + $0x78] sm:$0xf]
  %v2708 = vld [vmem:[%s2676 + $0x7c] sm:$0xf]
  %v2741 = vunpack.c.l.b16 %v2677
  %v2742 = vunpack.c.l.b16 %v2678
  %v2743 = vunpack.c.l.b16 %v2679
  %v2744 = vunpack.c.l.b16 %v2680
  %v2745 = vunpack.c.l.b16 %v2681
  %v2746 = vunpack.c.l.b16 %v2682
  %v2747 = vunpack.c.l.b16 %v2683
  %v2748 = vunpack.c.l.b16 %v2684
  %v2749 = vunpack.c.l.b16 %v2685
  %v2750 = vunpack.c.l.b16 %v2686
  %v2751 = vunpack.c.l.b16 %v2687
  %v2752 = vunpack.c.l.b16 %v2688
  %v2753 = vunpack.c.l.b16 %v2689
  %v2754 = vunpack.c.l.b16 %v2690
  %v2755 = vunpack.c.l.b16 %v2691
  %v2756 = vunpack.c.l.b16 %v2692
  %v2757 = vunpack.c.l.b16 %v2693
  %v2758 = vunpack.c.l.b16 %v2694
  %v2759 = vunpack.c.l.b16 %v2695
  %v2760 = vunpack.c.l.b16 %v2696
  %v2761 = vunpack.c.l.b16 %v2697
  %v2762 = vunpack.c.l.b16 %v2698
  %v2763 = vunpack.c.l.b16 %v2699
  %v2764 = vunpack.c.l.b16 %v2700
  %v2765 = vunpack.c.l.b16 %v2701
  %v2766 = vunpack.c.l.b16 %v2702
  %v2767 = vunpack.c.l.b16 %v2703
  %v2768 = vunpack.c.l.b16 %v2704
  %v2769 = vunpack.c.l.b16 %v2705
  %v2770 = vunpack.c.l.b16 %v2706
  %v2771 = vunpack.c.l.b16 %v2707
  %v2772 = vunpack.c.l.b16 %v2708
  %v2773 = vpack.c.b16 %v2742, %v2741
  %v2774 = vpack.c.b16 %v2744, %v2743
  %v2775 = vpack.c.b16 %v2746, %v2745
  %v2776 = vpack.c.b16 %v2748, %v2747
  %v2777 = vpack.c.b16 %v2750, %v2749
  %v2778 = vpack.c.b16 %v2752, %v2751
  %v2779 = vpack.c.b16 %v2754, %v2753
  %v2780 = vpack.c.b16 %v2756, %v2755
  %v2781 = vpack.c.b16 %v2758, %v2757
  %v2782 = vpack.c.b16 %v2760, %v2759
  %v2783 = vpack.c.b16 %v2762, %v2761
  %v2784 = vpack.c.b16 %v2764, %v2763
  %v2785 = vpack.c.b16 %v2766, %v2765
  %v2786 = vpack.c.b16 %v2768, %v2767
  %v2787 = vpack.c.b16 %v2770, %v2769
  %v2788 = vpack.c.b16 %v2772, %v2771
  %2805 = vmatpush.bf16.msra.mxu0 %v2780
  %2806 = vmatpush.bf16.msra.mxu0 %v2779
  %2807 = vmatpush.bf16.msra.mxu0 %v2778
  %2808 = vmatpush.bf16.msra.mxu0 %v2777
  %2809 = vmatpush.bf16.msra.mxu0 %v2776
  %2810 = vmatpush.bf16.msra.mxu0 %v2775
  %2811 = vmatpush.bf16.msra.mxu0 %v2774
  %2812 = vmatpush.bf16.msra.mxu0 %v2773
  %2813 = vmatmul.bf16.gmra.mxu0 %v2674
  %v2814 = vpop.f32.mrf.mxu0
  %v2815 = vadd.f32 0.0, %v2814
  %v2816 = vpop.f32.mrf.mxu0
  %2817 = vdwg.mxu0
  %2818 = vmatpush.bf16.msra.mxu0 %v2788
  %2819 = vmatpush.bf16.msra.mxu0 %v2787
  %2820 = vmatpush.bf16.msra.mxu0 %v2786
  %2821 = vmatpush.bf16.msra.mxu0 %v2785
  %2822 = vmatpush.bf16.msra.mxu0 %v2784
  %2823 = vmatpush.bf16.msra.mxu0 %v2783
  %2824 = vmatpush.bf16.msra.mxu0 %v2782
  %2825 = vmatpush.bf16.msra.mxu0 %v2781
  %2826 = vmatmul.bf16.gmra.mxu0 %v2675
  %v2827 = vpop.f32.mrf.mxu0
  %v2828 = vadd.f32 %v2815, %v2827
  %v2829 = vpop.f32.mrf.mxu0
  %2830 = vdwg.mxu0
  %v2831 = vadd.f32 %v2671, %v2828
  %v2832 = vld [vmem:[#allocation2 + $0x20] sm:$0xc]
  %v2833 = vld [vmem:[#allocation2 + $0x28] sm:$0xc]
  %v2834 = vpack.c.bf16 %v2832, %v2832
  %v2835 = vpack.c.bf16 %v2833, %v2833
  %s2836 = scalar_lea.vmem %s3, 1152
  %v2837 = vld [vmem:[%s2836] sm:$0xf]
  %v2838 = vld [vmem:[%s2836 + $0x4] sm:$0xf]
  %v2839 = vld [vmem:[%s2836 + $0x8] sm:$0xf]
  %v2840 = vld [vmem:[%s2836 + $0xc] sm:$0xf]
  %v2841 = vld [vmem:[%s2836 + $0x10] sm:$0xf]
  %v2842 = vld [vmem:[%s2836 + $0x14] sm:$0xf]
  %v2843 = vld [vmem:[%s2836 + $0x18] sm:$0xf]
  %v2844 = vld [vmem:[%s2836 + $0x1c] sm:$0xf]
  %v2845 = vld [vmem:[%s2836 + $0x20] sm:$0xf]
  %v2846 = vld [vmem:[%s2836 + $0x24] sm:$0xf]
  %v2847 = vld [vmem:[%s2836 + $0x28] sm:$0xf]
  %v2848 = vld [vmem:[%s2836 + $0x2c] sm:$0xf]
  %v2849 = vld [vmem:[%s2836 + $0x30] sm:$0xf]
  %v2850 = vld [vmem:[%s2836 + $0x34] sm:$0xf]
  %v2851 = vld [vmem:[%s2836 + $0x38] sm:$0xf]
  %v2852 = vld [vmem:[%s2836 + $0x3c] sm:$0xf]
  %v2853 = vld [vmem:[%s2836 + $0x40] sm:$0xf]
  %v2854 = vld [vmem:[%s2836 + $0x44] sm:$0xf]
  %v2855 = vld [vmem:[%s2836 + $0x48] sm:$0xf]
  %v2856 = vld [vmem:[%s2836 + $0x4c] sm:$0xf]
  %v2857 = vld [vmem:[%s2836 + $0x50] sm:$0xf]
  %v2858 = vld [vmem:[%s2836 + $0x54] sm:$0xf]
  %v2859 = vld [vmem:[%s2836 + $0x58] sm:$0xf]
  %v2860 = vld [vmem:[%s2836 + $0x5c] sm:$0xf]
  %v2861 = vld [vmem:[%s2836 + $0x60] sm:$0xf]
  %v2862 = vld [vmem:[%s2836 + $0x64] sm:$0xf]
  %v2863 = vld [vmem:[%s2836 + $0x68] sm:$0xf]
  %v2864 = vld [vmem:[%s2836 + $0x6c] sm:$0xf]
  %v2865 = vld [vmem:[%s2836 + $0x70] sm:$0xf]
  %v2866 = vld [vmem:[%s2836 + $0x74] sm:$0xf]
  %v2867 = vld [vmem:[%s2836 + $0x78] sm:$0xf]
  %v2868 = vld [vmem:[%s2836 + $0x7c] sm:$0xf]
  %v2871 = vrot.slane %v2834, 1
  %v2872 = vrot.slane %v2835, 1
  %v2907 = vunpack.c.l.b16 %v2837
  %v2908 = vunpack.c.l.b16 %v2838
  %v2909 = vunpack.c.l.b16 %v2839
  %v2910 = vunpack.c.l.b16 %v2840
  %v2911 = vunpack.c.l.b16 %v2841
  %v2912 = vunpack.c.l.b16 %v2842
  %v2913 = vunpack.c.l.b16 %v2843
  %v2914 = vunpack.c.l.b16 %v2844
  %v2915 = vunpack.c.l.b16 %v2845
  %v2916 = vunpack.c.l.b16 %v2846
  %v2917 = vunpack.c.l.b16 %v2847
  %v2918 = vunpack.c.l.b16 %v2848
  %v2919 = vunpack.c.l.b16 %v2849
  %v2920 = vunpack.c.l.b16 %v2850
  %v2921 = vunpack.c.l.b16 %v2851
  %v2922 = vunpack.c.l.b16 %v2852
  %v2923 = vunpack.c.l.b16 %v2853
  %v2924 = vunpack.c.l.b16 %v2854
  %v2925 = vunpack.c.l.b16 %v2855
  %v2926 = vunpack.c.l.b16 %v2856
  %v2927 = vunpack.c.l.b16 %v2857
  %v2928 = vunpack.c.l.b16 %v2858
  %v2929 = vunpack.c.l.b16 %v2859
  %v2930 = vunpack.c.l.b16 %v2860
  %v2931 = vunpack.c.l.b16 %v2861
  %v2932 = vunpack.c.l.b16 %v2862
  %v2933 = vunpack.c.l.b16 %v2863
  %v2934 = vunpack.c.l.b16 %v2864
  %v2935 = vunpack.c.l.b16 %v2865
  %v2936 = vunpack.c.l.b16 %v2866
  %v2937 = vunpack.c.l.b16 %v2867
  %v2938 = vunpack.c.l.b16 %v2868
  %v2939 = vpack.c.b16 %v2908, %v2907
  %v2940 = vpack.c.b16 %v2910, %v2909
  %v2941 = vpack.c.b16 %v2912, %v2911
  %v2942 = vpack.c.b16 %v2914, %v2913
  %v2943 = vpack.c.b16 %v2916, %v2915
  %v2944 = vpack.c.b16 %v2918, %v2917
  %v2945 = vpack.c.b16 %v2920, %v2919
  %v2946 = vpack.c.b16 %v2922, %v2921
  %v2947 = vpack.c.b16 %v2924, %v2923
  %v2948 = vpack.c.b16 %v2926, %v2925
  %v2949 = vpack.c.b16 %v2928, %v2927
  %v2950 = vpack.c.b16 %v2930, %v2929
  %v2951 = vpack.c.b16 %v2932, %v2931
  %v2952 = vpack.c.b16 %v2934, %v2933
  %v2953 = vpack.c.b16 %v2936, %v2935
  %v2954 = vpack.c.b16 %v2938, %v2937
  %2971 = vmatpush.bf16.msra.mxu0 %v2946
  %2972 = vmatpush.bf16.msra.mxu0 %v2945
  %2973 = vmatpush.bf16.msra.mxu0 %v2944
  %2974 = vmatpush.bf16.msra.mxu0 %v2943
  %2975 = vmatpush.bf16.msra.mxu0 %v2942
  %2976 = vmatpush.bf16.msra.mxu0 %v2941
  %2977 = vmatpush.bf16.msra.mxu0 %v2940
  %2978 = vmatpush.bf16.msra.mxu0 %v2939
  %2979 = vmatmul.bf16.gmra.mxu0 %v2871
  %v2980 = vpop.f32.mrf.mxu0
  %v2981 = vadd.f32 0.0, %v2980
  %v2982 = vpop.f32.mrf.mxu0
  %2983 = vdwg.mxu0
  %2984 = vmatpush.bf16.msra.mxu0 %v2954
  %2985 = vmatpush.bf16.msra.mxu0 %v2953
  %2986 = vmatpush.bf16.msra.mxu0 %v2952
  %2987 = vmatpush.bf16.msra.mxu0 %v2951
  %2988 = vmatpush.bf16.msra.mxu0 %v2950
  %2989 = vmatpush.bf16.msra.mxu0 %v2949
  %2990 = vmatpush.bf16.msra.mxu0 %v2948
  %2991 = vmatpush.bf16.msra.mxu0 %v2947
  %2992 = vmatmul.bf16.gmra.mxu0 %v2872
  %v2993 = vpop.f32.mrf.mxu0
  %v2994 = vadd.f32 %v2981, %v2993
  %v2995 = vpop.f32.mrf.mxu0
  %2996 = vdwg.mxu0
  %v2997 = vadd.f32 %v2831, %v2994
  %v2998 = vld [vmem:[#allocation2 + $0x20] sm:$0x30]
  %v2999 = vld [vmem:[#allocation2 + $0x28] sm:$0x30]
  %v3000 = vpack.c.bf16 %v2998, %v2998
  %v3001 = vpack.c.bf16 %v2999, %v2999
  %s3002 = scalar_lea.vmem %s3, 1280
  %v3003 = vld [vmem:[%s3002] sm:$0xf]
  %v3004 = vld [vmem:[%s3002 + $0x4] sm:$0xf]
  %v3005 = vld [vmem:[%s3002 + $0x8] sm:$0xf]
  %v3006 = vld [vmem:[%s3002 + $0xc] sm:$0xf]
  %v3007 = vld [vmem:[%s3002 + $0x10] sm:$0xf]
  %v3008 = vld [vmem:[%s3002 + $0x14] sm:$0xf]
  %v3009 = vld [vmem:[%s3002 + $0x18] sm:$0xf]
  %v3010 = vld [vmem:[%s3002 + $0x1c] sm:$0xf]
  %v3011 = vld [vmem:[%s3002 + $0x20] sm:$0xf]
  %v3012 = vld [vmem:[%s3002 + $0x24] sm:$0xf]
  %v3013 = vld [vmem:[%s3002 + $0x28] sm:$0xf]
  %v3014 = vld [vmem:[%s3002 + $0x2c] sm:$0xf]
  %v3015 = vld [vmem:[%s3002 + $0x30] sm:$0xf]
  %v3016 = vld [vmem:[%s3002 + $0x34] sm:$0xf]
  %v3017 = vld [vmem:[%s3002 + $0x38] sm:$0xf]
  %v3018 = vld [vmem:[%s3002 + $0x3c] sm:$0xf]
  %v3019 = vld [vmem:[%s3002 + $0x40] sm:$0xf]
  %v3020 = vld [vmem:[%s3002 + $0x44] sm:$0xf]
  %v3021 = vld [vmem:[%s3002 + $0x48] sm:$0xf]
  %v3022 = vld [vmem:[%s3002 + $0x4c] sm:$0xf]
  %v3023 = vld [vmem:[%s3002 + $0x50] sm:$0xf]
  %v3024 = vld [vmem:[%s3002 + $0x54] sm:$0xf]
  %v3025 = vld [vmem:[%s3002 + $0x58] sm:$0xf]
  %v3026 = vld [vmem:[%s3002 + $0x5c] sm:$0xf]
  %v3027 = vld [vmem:[%s3002 + $0x60] sm:$0xf]
  %v3028 = vld [vmem:[%s3002 + $0x64] sm:$0xf]
  %v3029 = vld [vmem:[%s3002 + $0x68] sm:$0xf]
  %v3030 = vld [vmem:[%s3002 + $0x6c] sm:$0xf]
  %v3031 = vld [vmem:[%s3002 + $0x70] sm:$0xf]
  %v3032 = vld [vmem:[%s3002 + $0x74] sm:$0xf]
  %v3033 = vld [vmem:[%s3002 + $0x78] sm:$0xf]
  %v3034 = vld [vmem:[%s3002 + $0x7c] sm:$0xf]
  %v3037 = vrot.slane %v3000, 2
  %v3038 = vrot.slane %v3001, 2
  %v3073 = vunpack.c.l.b16 %v3003
  %v3074 = vunpack.c.l.b16 %v3004
  %v3075 = vunpack.c.l.b16 %v3005
  %v3076 = vunpack.c.l.b16 %v3006
  %v3077 = vunpack.c.l.b16 %v3007
  %v3078 = vunpack.c.l.b16 %v3008
  %v3079 = vunpack.c.l.b16 %v3009
  %v3080 = vunpack.c.l.b16 %v3010
  %v3081 = vunpack.c.l.b16 %v3011
  %v3082 = vunpack.c.l.b16 %v3012
  %v3083 = vunpack.c.l.b16 %v3013
  %v3084 = vunpack.c.l.b16 %v3014
  %v3085 = vunpack.c.l.b16 %v3015
  %v3086 = vunpack.c.l.b16 %v3016
  %v3087 = vunpack.c.l.b16 %v3017
  %v3088 = vunpack.c.l.b16 %v3018
  %v3089 = vunpack.c.l.b16 %v3019
  %v3090 = vunpack.c.l.b16 %v3020
  %v3091 = vunpack.c.l.b16 %v3021
  %v3092 = vunpack.c.l.b16 %v3022
  %v3093 = vunpack.c.l.b16 %v3023
  %v3094 = vunpack.c.l.b16 %v3024
  %v3095 = vunpack.c.l.b16 %v3025
  %v3096 = vunpack.c.l.b16 %v3026
  %v3097 = vunpack.c.l.b16 %v3027
  %v3098 = vunpack.c.l.b16 %v3028
  %v3099 = vunpack.c.l.b16 %v3029
  %v3100 = vunpack.c.l.b16 %v3030
  %v3101 = vunpack.c.l.b16 %v3031
  %v3102 = vunpack.c.l.b16 %v3032
  %v3103 = vunpack.c.l.b16 %v3033
  %v3104 = vunpack.c.l.b16 %v3034
  %v3105 = vpack.c.b16 %v3074, %v3073
  %v3106 = vpack.c.b16 %v3076, %v3075
  %v3107 = vpack.c.b16 %v3078, %v3077
  %v3108 = vpack.c.b16 %v3080, %v3079
  %v3109 = vpack.c.b16 %v3082, %v3081
  %v3110 = vpack.c.b16 %v3084, %v3083
  %v3111 = vpack.c.b16 %v3086, %v3085
  %v3112 = vpack.c.b16 %v3088, %v3087
  %v3113 = vpack.c.b16 %v3090, %v3089
  %v3114 = vpack.c.b16 %v3092, %v3091
  %v3115 = vpack.c.b16 %v3094, %v3093
  %v3116 = vpack.c.b16 %v3096, %v3095
  %v3117 = vpack.c.b16 %v3098, %v3097
  %v3118 = vpack.c.b16 %v3100, %v3099
  %v3119 = vpack.c.b16 %v3102, %v3101
  %v3120 = vpack.c.b16 %v3104, %v3103
  %3137 = vmatpush.bf16.msra.mxu0 %v3112
  %3138 = vmatpush.bf16.msra.mxu0 %v3111
  %3139 = vmatpush.bf16.msra.mxu0 %v3110
  %3140 = vmatpush.bf16.msra.mxu0 %v3109
  %3141 = vmatpush.bf16.msra.mxu0 %v3108
  %3142 = vmatpush.bf16.msra.mxu0 %v3107
  %3143 = vmatpush.bf16.msra.mxu0 %v3106
  %3144 = vmatpush.bf16.msra.mxu0 %v3105
  %3145 = vmatmul.bf16.gmra.mxu0 %v3037
  %v3146 = vpop.f32.mrf.mxu0
  %v3147 = vadd.f32 0.0, %v3146
  %v3148 = vpop.f32.mrf.mxu0
  %3149 = vdwg.mxu0
  %3150 = vmatpush.bf16.msra.mxu0 %v3120
  %3151 = vmatpush.bf16.msra.mxu0 %v3119
  %3152 = vmatpush.bf16.msra.mxu0 %v3118
  %3153 = vmatpush.bf16.msra.mxu0 %v3117
  %3154 = vmatpush.bf16.msra.mxu0 %v3116
  %3155 = vmatpush.bf16.msra.mxu0 %v3115
  %3156 = vmatpush.bf16.msra.mxu0 %v3114
  %3157 = vmatpush.bf16.msra.mxu0 %v3113
  %3158 = vmatmul.bf16.gmra.mxu0 %v3038
  %v3159 = vpop.f32.mrf.mxu0
  %v3160 = vadd.f32 %v3147, %v3159
  %v3161 = vpop.f32.mrf.mxu0
  %3162 = vdwg.mxu0
  %v3163 = vadd.f32 %v2997, %v3160
  %v3164 = vld [vmem:[#allocation2 + $0x20] sm:$0xc0]
  %v3165 = vld [vmem:[#allocation2 + $0x28] sm:$0xc0]
  %v3166 = vpack.c.bf16 %v3164, %v3164
  %v3167 = vpack.c.bf16 %v3165, %v3165
  %s3168 = scalar_lea.vmem %s3, 1408
  %v3169 = vld [vmem:[%s3168] sm:$0xf]
  %v3170 = vld [vmem:[%s3168 + $0x4] sm:$0xf]
  %v3171 = vld [vmem:[%s3168 + $0x8] sm:$0xf]
  %v3172 = vld [vmem:[%s3168 + $0xc] sm:$0xf]
  %v3173 = vld [vmem:[%s3168 + $0x10] sm:$0xf]
  %v3174 = vld [vmem:[%s3168 + $0x14] sm:$0xf]
  %v3175 = vld [vmem:[%s3168 + $0x18] sm:$0xf]
  %v3176 = vld [vmem:[%s3168 + $0x1c] sm:$0xf]
  %v3177 = vld [vmem:[%s3168 + $0x20] sm:$0xf]
  %v3178 = vld [vmem:[%s3168 + $0x24] sm:$0xf]
  %v3179 = vld [vmem:[%s3168 + $0x28] sm:$0xf]
  %v3180 = vld [vmem:[%s3168 + $0x2c] sm:$0xf]
  %v3181 = vld [vmem:[%s3168 + $0x30] sm:$0xf]
  %v3182 = vld [vmem:[%s3168 + $0x34] sm:$0xf]
  %v3183 = vld [vmem:[%s3168 + $0x38] sm:$0xf]
  %v3184 = vld [vmem:[%s3168 + $0x3c] sm:$0xf]
  %v3185 = vld [vmem:[%s3168 + $0x40] sm:$0xf]
  %v3186 = vld [vmem:[%s3168 + $0x44] sm:$0xf]
  %v3187 = vld [vmem:[%s3168 + $0x48] sm:$0xf]
  %v3188 = vld [vmem:[%s3168 + $0x4c] sm:$0xf]
  %v3189 = vld [vmem:[%s3168 + $0x50] sm:$0xf]
  %v3190 = vld [vmem:[%s3168 + $0x54] sm:$0xf]
  %v3191 = vld [vmem:[%s3168 + $0x58] sm:$0xf]
  %v3192 = vld [vmem:[%s3168 + $0x5c] sm:$0xf]
  %v3193 = vld [vmem:[%s3168 + $0x60] sm:$0xf]
  %v3194 = vld [vmem:[%s3168 + $0x64] sm:$0xf]
  %v3195 = vld [vmem:[%s3168 + $0x68] sm:$0xf]
  %v3196 = vld [vmem:[%s3168 + $0x6c] sm:$0xf]
  %v3197 = vld [vmem:[%s3168 + $0x70] sm:$0xf]
  %v3198 = vld [vmem:[%s3168 + $0x74] sm:$0xf]
  %v3199 = vld [vmem:[%s3168 + $0x78] sm:$0xf]
  %v3200 = vld [vmem:[%s3168 + $0x7c] sm:$0xf]
  %v3203 = vrot.slane %v3166, 3
  %v3204 = vrot.slane %v3167, 3
  %v3239 = vunpack.c.l.b16 %v3169
  %v3240 = vunpack.c.l.b16 %v3170
  %v3241 = vunpack.c.l.b16 %v3171
  %v3242 = vunpack.c.l.b16 %v3172
  %v3243 = vunpack.c.l.b16 %v3173
  %v3244 = vunpack.c.l.b16 %v3174
  %v3245 = vunpack.c.l.b16 %v3175
  %v3246 = vunpack.c.l.b16 %v3176
  %v3247 = vunpack.c.l.b16 %v3177
  %v3248 = vunpack.c.l.b16 %v3178
  %v3249 = vunpack.c.l.b16 %v3179
  %v3250 = vunpack.c.l.b16 %v3180
  %v3251 = vunpack.c.l.b16 %v3181
  %v3252 = vunpack.c.l.b16 %v3182
  %v3253 = vunpack.c.l.b16 %v3183
  %v3254 = vunpack.c.l.b16 %v3184
  %v3255 = vunpack.c.l.b16 %v3185
  %v3256 = vunpack.c.l.b16 %v3186
  %v3257 = vunpack.c.l.b16 %v3187
  %v3258 = vunpack.c.l.b16 %v3188
  %v3259 = vunpack.c.l.b16 %v3189
  %v3260 = vunpack.c.l.b16 %v3190
  %v3261 = vunpack.c.l.b16 %v3191
  %v3262 = vunpack.c.l.b16 %v3192
  %v3263 = vunpack.c.l.b16 %v3193
  %v3264 = vunpack.c.l.b16 %v3194
  %v3265 = vunpack.c.l.b16 %v3195
  %v3266 = vunpack.c.l.b16 %v3196
  %v3267 = vunpack.c.l.b16 %v3197
  %v3268 = vunpack.c.l.b16 %v3198
  %v3269 = vunpack.c.l.b16 %v3199
  %v3270 = vunpack.c.l.b16 %v3200
  %v3271 = vpack.c.b16 %v3240, %v3239
  %v3272 = vpack.c.b16 %v3242, %v3241
  %v3273 = vpack.c.b16 %v3244, %v3243
  %v3274 = vpack.c.b16 %v3246, %v3245
  %v3275 = vpack.c.b16 %v3248, %v3247
  %v3276 = vpack.c.b16 %v3250, %v3249
  %v3277 = vpack.c.b16 %v3252, %v3251
  %v3278 = vpack.c.b16 %v3254, %v3253
  %v3279 = vpack.c.b16 %v3256, %v3255
  %v3280 = vpack.c.b16 %v3258, %v3257
  %v3281 = vpack.c.b16 %v3260, %v3259
  %v3282 = vpack.c.b16 %v3262, %v3261
  %v3283 = vpack.c.b16 %v3264, %v3263
  %v3284 = vpack.c.b16 %v3266, %v3265
  %v3285 = vpack.c.b16 %v3268, %v3267
  %v3286 = vpack.c.b16 %v3270, %v3269
  %3303 = vmatpush.bf16.msra.mxu0 %v3278
  %3304 = vmatpush.bf16.msra.mxu0 %v3277
  %3305 = vmatpush.bf16.msra.mxu0 %v3276
  %3306 = vmatpush.bf16.msra.mxu0 %v3275
  %3307 = vmatpush.bf16.msra.mxu0 %v3274
  %3308 = vmatpush.bf16.msra.mxu0 %v3273
  %3309 = vmatpush.bf16.msra.mxu0 %v3272
  %3310 = vmatpush.bf16.msra.mxu0 %v3271
  %3311 = vmatmul.bf16.gmra.mxu0 %v3203
  %v3312 = vpop.f32.mrf.mxu0
  %v3313 = vadd.f32 0.0, %v3312
  %v3314 = vpop.f32.mrf.mxu0
  %3315 = vdwg.mxu0
  %3316 = vmatpush.bf16.msra.mxu0 %v3286
  %3317 = vmatpush.bf16.msra.mxu0 %v3285
  %3318 = vmatpush.bf16.msra.mxu0 %v3284
  %3319 = vmatpush.bf16.msra.mxu0 %v3283
  %3320 = vmatpush.bf16.msra.mxu0 %v3282
  %3321 = vmatpush.bf16.msra.mxu0 %v3281
  %3322 = vmatpush.bf16.msra.mxu0 %v3280
  %3323 = vmatpush.bf16.msra.mxu0 %v3279
  %3324 = vmatmul.bf16.gmra.mxu0 %v3204
  %v3325 = vpop.f32.mrf.mxu0
  %v3326 = vadd.f32 %v3313, %v3325
  %v3327 = vpop.f32.mrf.mxu0
  %3328 = vdwg.mxu0
  %v3329 = vadd.f32 %v3163, %v3326
  %v3330 = vld [vmem:[#allocation2 + $0x30] sm:$0x3]
  %v3331 = vld [vmem:[#allocation2 + $0x38] sm:$0x3]
  %v3332 = vpack.c.bf16 %v3330, %v3330
  %v3333 = vpack.c.bf16 %v3331, %v3331
  %s3334 = scalar_lea.vmem %s3, 1536
  %v3335 = vld [vmem:[%s3334] sm:$0xf]
  %v3336 = vld [vmem:[%s3334 + $0x4] sm:$0xf]
  %v3337 = vld [vmem:[%s3334 + $0x8] sm:$0xf]
  %v3338 = vld [vmem:[%s3334 + $0xc] sm:$0xf]
  %v3339 = vld [vmem:[%s3334 + $0x10] sm:$0xf]
  %v3340 = vld [vmem:[%s3334 + $0x14] sm:$0xf]
  %v3341 = vld [vmem:[%s3334 + $0x18] sm:$0xf]
  %v3342 = vld [vmem:[%s3334 + $0x1c] sm:$0xf]
  %v3343 = vld [vmem:[%s3334 + $0x20] sm:$0xf]
  %v3344 = vld [vmem:[%s3334 + $0x24] sm:$0xf]
  %v3345 = vld [vmem:[%s3334 + $0x28] sm:$0xf]
  %v3346 = vld [vmem:[%s3334 + $0x2c] sm:$0xf]
  %v3347 = vld [vmem:[%s3334 + $0x30] sm:$0xf]
  %v3348 = vld [vmem:[%s3334 + $0x34] sm:$0xf]
  %v3349 = vld [vmem:[%s3334 + $0x38] sm:$0xf]
  %v3350 = vld [vmem:[%s3334 + $0x3c] sm:$0xf]
  %v3351 = vld [vmem:[%s3334 + $0x40] sm:$0xf]
  %v3352 = vld [vmem:[%s3334 + $0x44] sm:$0xf]
  %v3353 = vld [vmem:[%s3334 + $0x48] sm:$0xf]
  %v3354 = vld [vmem:[%s3334 + $0x4c] sm:$0xf]
  %v3355 = vld [vmem:[%s3334 + $0x50] sm:$0xf]
  %v3356 = vld [vmem:[%s3334 + $0x54] sm:$0xf]
  %v3357 = vld [vmem:[%s3334 + $0x58] sm:$0xf]
  %v3358 = vld [vmem:[%s3334 + $0x5c] sm:$0xf]
  %v3359 = vld [vmem:[%s3334 + $0x60] sm:$0xf]
  %v3360 = vld [vmem:[%s3334 + $0x64] sm:$0xf]
  %v3361 = vld [vmem:[%s3334 + $0x68] sm:$0xf]
  %v3362 = vld [vmem:[%s3334 + $0x6c] sm:$0xf]
  %v3363 = vld [vmem:[%s3334 + $0x70] sm:$0xf]
  %v3364 = vld [vmem:[%s3334 + $0x74] sm:$0xf]
  %v3365 = vld [vmem:[%s3334 + $0x78] sm:$0xf]
  %v3366 = vld [vmem:[%s3334 + $0x7c] sm:$0xf]
  %v3399 = vunpack.c.l.b16 %v3335
  %v3400 = vunpack.c.l.b16 %v3336
  %v3401 = vunpack.c.l.b16 %v3337
  %v3402 = vunpack.c.l.b16 %v3338
  %v3403 = vunpack.c.l.b16 %v3339
  %v3404 = vunpack.c.l.b16 %v3340
  %v3405 = vunpack.c.l.b16 %v3341
  %v3406 = vunpack.c.l.b16 %v3342
  %v3407 = vunpack.c.l.b16 %v3343
  %v3408 = vunpack.c.l.b16 %v3344
  %v3409 = vunpack.c.l.b16 %v3345
  %v3410 = vunpack.c.l.b16 %v3346
  %v3411 = vunpack.c.l.b16 %v3347
  %v3412 = vunpack.c.l.b16 %v3348
  %v3413 = vunpack.c.l.b16 %v3349
  %v3414 = vunpack.c.l.b16 %v3350
  %v3415 = vunpack.c.l.b16 %v3351
  %v3416 = vunpack.c.l.b16 %v3352
  %v3417 = vunpack.c.l.b16 %v3353
  %v3418 = vunpack.c.l.b16 %v3354
  %v3419 = vunpack.c.l.b16 %v3355
  %v3420 = vunpack.c.l.b16 %v3356
  %v3421 = vunpack.c.l.b16 %v3357
  %v3422 = vunpack.c.l.b16 %v3358
  %v3423 = vunpack.c.l.b16 %v3359
  %v3424 = vunpack.c.l.b16 %v3360
  %v3425 = vunpack.c.l.b16 %v3361
  %v3426 = vunpack.c.l.b16 %v3362
  %v3427 = vunpack.c.l.b16 %v3363
  %v3428 = vunpack.c.l.b16 %v3364
  %v3429 = vunpack.c.l.b16 %v3365
  %v3430 = vunpack.c.l.b16 %v3366
  %v3431 = vpack.c.b16 %v3400, %v3399
  %v3432 = vpack.c.b16 %v3402, %v3401
  %v3433 = vpack.c.b16 %v3404, %v3403
  %v3434 = vpack.c.b16 %v3406, %v3405
  %v3435 = vpack.c.b16 %v3408, %v3407
  %v3436 = vpack.c.b16 %v3410, %v3409
  %v3437 = vpack.c.b16 %v3412, %v3411
  %v3438 = vpack.c.b16 %v3414, %v3413
  %v3439 = vpack.c.b16 %v3416, %v3415
  %v3440 = vpack.c.b16 %v3418, %v3417
  %v3441 = vpack.c.b16 %v3420, %v3419
  %v3442 = vpack.c.b16 %v3422, %v3421
  %v3443 = vpack.c.b16 %v3424, %v3423
  %v3444 = vpack.c.b16 %v3426, %v3425
  %v3445 = vpack.c.b16 %v3428, %v3427
  %v3446 = vpack.c.b16 %v3430, %v3429
  %3463 = vmatpush.bf16.msra.mxu0 %v3438
  %3464 = vmatpush.bf16.msra.mxu0 %v3437
  %3465 = vmatpush.bf16.msra.mxu0 %v3436
  %3466 = vmatpush.bf16.msra.mxu0 %v3435
  %3467 = vmatpush.bf16.msra.mxu0 %v3434
  %3468 = vmatpush.bf16.msra.mxu0 %v3433
  %3469 = vmatpush.bf16.msra.mxu0 %v3432
  %3470 = vmatpush.bf16.msra.mxu0 %v3431
  %3471 = vmatmul.bf16.gmra.mxu0 %v3332
  %v3472 = vpop.f32.mrf.mxu0
  %v3473 = vadd.f32 0.0, %v3472
  %v3474 = vpop.f32.mrf.mxu0
  %3475 = vdwg.mxu0
  %3476 = vmatpush.bf16.msra.mxu0 %v3446
  %3477 = vmatpush.bf16.msra.mxu0 %v3445
  %3478 = vmatpush.bf16.msra.mxu0 %v3444
  %3479 = vmatpush.bf16.msra.mxu0 %v3443
  %3480 = vmatpush.bf16.msra.mxu0 %v3442
  %3481 = vmatpush.bf16.msra.mxu0 %v3441
  %3482 = vmatpush.bf16.msra.mxu0 %v3440
  %3483 = vmatpush.bf16.msra.mxu0 %v3439
  %3484 = vmatmul.bf16.gmra.mxu0 %v3333
  %v3485 = vpop.f32.mrf.mxu0
  %v3486 = vadd.f32 %v3473, %v3485
  %v3487 = vpop.f32.mrf.mxu0
  %3488 = vdwg.mxu0
  %v3489 = vadd.f32 %v3329, %v3486
  %v3490 = vld [vmem:[#allocation2 + $0x30] sm:$0xc]
  %v3491 = vld [vmem:[#allocation2 + $0x38] sm:$0xc]
  %v3492 = vpack.c.bf16 %v3490, %v3490
  %v3493 = vpack.c.bf16 %v3491, %v3491
  %s3494 = scalar_lea.vmem %s3, 1664
  %v3495 = vld [vmem:[%s3494] sm:$0xf]
  %v3496 = vld [vmem:[%s3494 + $0x4] sm:$0xf]
  %v3497 = vld [vmem:[%s3494 + $0x8] sm:$0xf]
  %v3498 = vld [vmem:[%s3494 + $0xc] sm:$0xf]
  %v3499 = vld [vmem:[%s3494 + $0x10] sm:$0xf]
  %v3500 = vld [vmem:[%s3494 + $0x14] sm:$0xf]
  %v3501 = vld [vmem:[%s3494 + $0x18] sm:$0xf]
  %v3502 = vld [vmem:[%s3494 + $0x1c] sm:$0xf]
  %v3503 = vld [vmem:[%s3494 + $0x20] sm:$0xf]
  %v3504 = vld [vmem:[%s3494 + $0x24] sm:$0xf]
  %v3505 = vld [vmem:[%s3494 + $0x28] sm:$0xf]
  %v3506 = vld [vmem:[%s3494 + $0x2c] sm:$0xf]
  %v3507 = vld [vmem:[%s3494 + $0x30] sm:$0xf]
  %v3508 = vld [vmem:[%s3494 + $0x34] sm:$0xf]
  %v3509 = vld [vmem:[%s3494 + $0x38] sm:$0xf]
  %v3510 = vld [vmem:[%s3494 + $0x3c] sm:$0xf]
  %v3511 = vld [vmem:[%s3494 + $0x40] sm:$0xf]
  %v3512 = vld [vmem:[%s3494 + $0x44] sm:$0xf]
  %v3513 = vld [vmem:[%s3494 + $0x48] sm:$0xf]
  %v3514 = vld [vmem:[%s3494 + $0x4c] sm:$0xf]
  %v3515 = vld [vmem:[%s3494 + $0x50] sm:$0xf]
  %v3516 = vld [vmem:[%s3494 + $0x54] sm:$0xf]
  %v3517 = vld [vmem:[%s3494 + $0x58] sm:$0xf]
  %v3518 = vld [vmem:[%s3494 + $0x5c] sm:$0xf]
  %v3519 = vld [vmem:[%s3494 + $0x60] sm:$0xf]
  %v3520 = vld [vmem:[%s3494 + $0x64] sm:$0xf]
  %v3521 = vld [vmem:[%s3494 + $0x68] sm:$0xf]
  %v3522 = vld [vmem:[%s3494 + $0x6c] sm:$0xf]
  %v3523 = vld [vmem:[%s3494 + $0x70] sm:$0xf]
  %v3524 = vld [vmem:[%s3494 + $0x74] sm:$0xf]
  %v3525 = vld [vmem:[%s3494 + $0x78] sm:$0xf]
  %v3526 = vld [vmem:[%s3494 + $0x7c] sm:$0xf]
  %v3529 = vrot.slane %v3492, 1
  %v3530 = vrot.slane %v3493, 1
  %v3565 = vunpack.c.l.b16 %v3495
  %v3566 = vunpack.c.l.b16 %v3496
  %v3567 = vunpack.c.l.b16 %v3497
  %v3568 = vunpack.c.l.b16 %v3498
  %v3569 = vunpack.c.l.b16 %v3499
  %v3570 = vunpack.c.l.b16 %v3500
  %v3571 = vunpack.c.l.b16 %v3501
  %v3572 = vunpack.c.l.b16 %v3502
  %v3573 = vunpack.c.l.b16 %v3503
  %v3574 = vunpack.c.l.b16 %v3504
  %v3575 = vunpack.c.l.b16 %v3505
  %v3576 = vunpack.c.l.b16 %v3506
  %v3577 = vunpack.c.l.b16 %v3507
  %v3578 = vunpack.c.l.b16 %v3508
  %v3579 = vunpack.c.l.b16 %v3509
  %v3580 = vunpack.c.l.b16 %v3510
  %v3581 = vunpack.c.l.b16 %v3511
  %v3582 = vunpack.c.l.b16 %v3512
  %v3583 = vunpack.c.l.b16 %v3513
  %v3584 = vunpack.c.l.b16 %v3514
  %v3585 = vunpack.c.l.b16 %v3515
  %v3586 = vunpack.c.l.b16 %v3516
  %v3587 = vunpack.c.l.b16 %v3517
  %v3588 = vunpack.c.l.b16 %v3518
  %v3589 = vunpack.c.l.b16 %v3519
  %v3590 = vunpack.c.l.b16 %v3520
  %v3591 = vunpack.c.l.b16 %v3521
  %v3592 = vunpack.c.l.b16 %v3522
  %v3593 = vunpack.c.l.b16 %v3523
  %v3594 = vunpack.c.l.b16 %v3524
  %v3595 = vunpack.c.l.b16 %v3525
  %v3596 = vunpack.c.l.b16 %v3526
  %v3597 = vpack.c.b16 %v3566, %v3565
  %v3598 = vpack.c.b16 %v3568, %v3567
  %v3599 = vpack.c.b16 %v3570, %v3569
  %v3600 = vpack.c.b16 %v3572, %v3571
  %v3601 = vpack.c.b16 %v3574, %v3573
  %v3602 = vpack.c.b16 %v3576, %v3575
  %v3603 = vpack.c.b16 %v3578, %v3577
  %v3604 = vpack.c.b16 %v3580, %v3579
  %v3605 = vpack.c.b16 %v3582, %v3581
  %v3606 = vpack.c.b16 %v3584, %v3583
  %v3607 = vpack.c.b16 %v3586, %v3585
  %v3608 = vpack.c.b16 %v3588, %v3587
  %v3609 = vpack.c.b16 %v3590, %v3589
  %v3610 = vpack.c.b16 %v3592, %v3591
  %v3611 = vpack.c.b16 %v3594, %v3593
  %v3612 = vpack.c.b16 %v3596, %v3595
  %3629 = vmatpush.bf16.msra.mxu0 %v3604
  %3630 = vmatpush.bf16.msra.mxu0 %v3603
  %3631 = vmatpush.bf16.msra.mxu0 %v3602
  %3632 = vmatpush.bf16.msra.mxu0 %v3601
  %3633 = vmatpush.bf16.msra.mxu0 %v3600
  %3634 = vmatpush.bf16.msra.mxu0 %v3599
  %3635 = vmatpush.bf16.msra.mxu0 %v3598
  %3636 = vmatpush.bf16.msra.mxu0 %v3597
  %3637 = vmatmul.bf16.gmra.mxu0 %v3529
  %v3638 = vpop.f32.mrf.mxu0
  %v3639 = vadd.f32 0.0, %v3638
  %v3640 = vpop.f32.mrf.mxu0
  %3641 = vdwg.mxu0
  %3642 = vmatpush.bf16.msra.mxu0 %v3612
  %3643 = vmatpush.bf16.msra.mxu0 %v3611
  %3644 = vmatpush.bf16.msra.mxu0 %v3610
  %3645 = vmatpush.bf16.msra.mxu0 %v3609
  %3646 = vmatpush.bf16.msra.mxu0 %v3608
  %3647 = vmatpush.bf16.msra.mxu0 %v3607
  %3648 = vmatpush.bf16.msra.mxu0 %v3606
  %3649 = vmatpush.bf16.msra.mxu0 %v3605
  %3650 = vmatmul.bf16.gmra.mxu0 %v3530
  %v3651 = vpop.f32.mrf.mxu0
  %v3652 = vadd.f32 %v3639, %v3651
  %v3653 = vpop.f32.mrf.mxu0
  %3654 = vdwg.mxu0
  %v3655 = vadd.f32 %v3489, %v3652
  %v3656 = vld [vmem:[#allocation2 + $0x30] sm:$0x30]
  %v3657 = vld [vmem:[#allocation2 + $0x38] sm:$0x30]
  %v3658 = vpack.c.bf16 %v3656, %v3656
  %v3659 = vpack.c.bf16 %v3657, %v3657
  %s3660 = scalar_lea.vmem %s3, 1792
  %v3661 = vld [vmem:[%s3660] sm:$0xf]
  %v3662 = vld [vmem:[%s3660 + $0x4] sm:$0xf]
  %v3663 = vld [vmem:[%s3660 + $0x8] sm:$0xf]
  %v3664 = vld [vmem:[%s3660 + $0xc] sm:$0xf]
  %v3665 = vld [vmem:[%s3660 + $0x10] sm:$0xf]
  %v3666 = vld [vmem:[%s3660 + $0x14] sm:$0xf]
  %v3667 = vld [vmem:[%s3660 + $0x18] sm:$0xf]
  %v3668 = vld [vmem:[%s3660 + $0x1c] sm:$0xf]
  %v3669 = vld [vmem:[%s3660 + $0x20] sm:$0xf]
  %v3670 = vld [vmem:[%s3660 + $0x24] sm:$0xf]
  %v3671 = vld [vmem:[%s3660 + $0x28] sm:$0xf]
  %v3672 = vld [vmem:[%s3660 + $0x2c] sm:$0xf]
  %v3673 = vld [vmem:[%s3660 + $0x30] sm:$0xf]
  %v3674 = vld [vmem:[%s3660 + $0x34] sm:$0xf]
  %v3675 = vld [vmem:[%s3660 + $0x38] sm:$0xf]
  %v3676 = vld [vmem:[%s3660 + $0x3c] sm:$0xf]
  %v3677 = vld [vmem:[%s3660 + $0x40] sm:$0xf]
  %v3678 = vld [vmem:[%s3660 + $0x44] sm:$0xf]
  %v3679 = vld [vmem:[%s3660 + $0x48] sm:$0xf]
  %v3680 = vld [vmem:[%s3660 + $0x4c] sm:$0xf]
  %v3681 = vld [vmem:[%s3660 + $0x50] sm:$0xf]
  %v3682 = vld [vmem:[%s3660 + $0x54] sm:$0xf]
  %v3683 = vld [vmem:[%s3660 + $0x58] sm:$0xf]
  %v3684 = vld [vmem:[%s3660 + $0x5c] sm:$0xf]
  %v3685 = vld [vmem:[%s3660 + $0x60] sm:$0xf]
  %v3686 = vld [vmem:[%s3660 + $0x64] sm:$0xf]
  %v3687 = vld [vmem:[%s3660 + $0x68] sm:$0xf]
  %v3688 = vld [vmem:[%s3660 + $0x6c] sm:$0xf]
  %v3689 = vld [vmem:[%s3660 + $0x70] sm:$0xf]
  %v3690 = vld [vmem:[%s3660 + $0x74] sm:$0xf]
  %v3691 = vld [vmem:[%s3660 + $0x78] sm:$0xf]
  %v3692 = vld [vmem:[%s3660 + $0x7c] sm:$0xf]
  %v3695 = vrot.slane %v3658, 2
  %v3696 = vrot.slane %v3659, 2
  %v3731 = vunpack.c.l.b16 %v3661
  %v3732 = vunpack.c.l.b16 %v3662
  %v3733 = vunpack.c.l.b16 %v3663
  %v3734 = vunpack.c.l.b16 %v3664
  %v3735 = vunpack.c.l.b16 %v3665
  %v3736 = vunpack.c.l.b16 %v3666
  %v3737 = vunpack.c.l.b16 %v3667
  %v3738 = vunpack.c.l.b16 %v3668
  %v3739 = vunpack.c.l.b16 %v3669
  %v3740 = vunpack.c.l.b16 %v3670
  %v3741 = vunpack.c.l.b16 %v3671
  %v3742 = vunpack.c.l.b16 %v3672
  %v3743 = vunpack.c.l.b16 %v3673
  %v3744 = vunpack.c.l.b16 %v3674
  %v3745 = vunpack.c.l.b16 %v3675
  %v3746 = vunpack.c.l.b16 %v3676
  %v3747 = vunpack.c.l.b16 %v3677
  %v3748 = vunpack.c.l.b16 %v3678
  %v3749 = vunpack.c.l.b16 %v3679
  %v3750 = vunpack.c.l.b16 %v3680
  %v3751 = vunpack.c.l.b16 %v3681
  %v3752 = vunpack.c.l.b16 %v3682
  %v3753 = vunpack.c.l.b16 %v3683
  %v3754 = vunpack.c.l.b16 %v3684
  %v3755 = vunpack.c.l.b16 %v3685
  %v3756 = vunpack.c.l.b16 %v3686
  %v3757 = vunpack.c.l.b16 %v3687
  %v3758 = vunpack.c.l.b16 %v3688
  %v3759 = vunpack.c.l.b16 %v3689
  %v3760 = vunpack.c.l.b16 %v3690
  %v3761 = vunpack.c.l.b16 %v3691
  %v3762 = vunpack.c.l.b16 %v3692
  %v3763 = vpack.c.b16 %v3732, %v3731
  %v3764 = vpack.c.b16 %v3734, %v3733
  %v3765 = vpack.c.b16 %v3736, %v3735
  %v3766 = vpack.c.b16 %v3738, %v3737
  %v3767 = vpack.c.b16 %v3740, %v3739
  %v3768 = vpack.c.b16 %v3742, %v3741
  %v3769 = vpack.c.b16 %v3744, %v3743
  %v3770 = vpack.c.b16 %v3746, %v3745
  %v3771 = vpack.c.b16 %v3748, %v3747
  %v3772 = vpack.c.b16 %v3750, %v3749
  %v3773 = vpack.c.b16 %v3752, %v3751
  %v3774 = vpack.c.b16 %v3754, %v3753
  %v3775 = vpack.c.b16 %v3756, %v3755
  %v3776 = vpack.c.b16 %v3758, %v3757
  %v3777 = vpack.c.b16 %v3760, %v3759
  %v3778 = vpack.c.b16 %v3762, %v3761
  %3795 = vmatpush.bf16.msra.mxu0 %v3770
  %3796 = vmatpush.bf16.msra.mxu0 %v3769
  %3797 = vmatpush.bf16.msra.mxu0 %v3768
  %3798 = vmatpush.bf16.msra.mxu0 %v3767
  %3799 = vmatpush.bf16.msra.mxu0 %v3766
  %3800 = vmatpush.bf16.msra.mxu0 %v3765
  %3801 = vmatpush.bf16.msra.mxu0 %v3764
  %3802 = vmatpush.bf16.msra.mxu0 %v3763
  %3803 = vmatmul.bf16.gmra.mxu0 %v3695
  %v3804 = vpop.f32.mrf.mxu0
  %v3805 = vadd.f32 0.0, %v3804
  %v3806 = vpop.f32.mrf.mxu0
  %3807 = vdwg.mxu0
  %3808 = vmatpush.bf16.msra.mxu0 %v3778
  %3809 = vmatpush.bf16.msra.mxu0 %v3777
  %3810 = vmatpush.bf16.msra.mxu0 %v3776
  %3811 = vmatpush.bf16.msra.mxu0 %v3775
  %3812 = vmatpush.bf16.msra.mxu0 %v3774
  %3813 = vmatpush.bf16.msra.mxu0 %v3773
  %3814 = vmatpush.bf16.msra.mxu0 %v3772
  %3815 = vmatpush.bf16.msra.mxu0 %v3771
  %3816 = vmatmul.bf16.gmra.mxu0 %v3696
  %v3817 = vpop.f32.mrf.mxu0
  %v3818 = vadd.f32 %v3805, %v3817
  %v3819 = vpop.f32.mrf.mxu0
  %3820 = vdwg.mxu0
  %v3821 = vadd.f32 %v3655, %v3818
  %v3822 = vld [vmem:[#allocation2 + $0x30] sm:$0xc0]
  %v3823 = vld [vmem:[#allocation2 + $0x38] sm:$0xc0]
  %v3824 = vpack.c.bf16 %v3822, %v3822
  %v3825 = vpack.c.bf16 %v3823, %v3823
  %s3826 = scalar_lea.vmem %s3, 1920
  %v3827 = vld [vmem:[%s3826] sm:$0xf]
  %v3828 = vld [vmem:[%s3826 + $0x4] sm:$0xf]
  %v3829 = vld [vmem:[%s3826 + $0x8] sm:$0xf]
  %v3830 = vld [vmem:[%s3826 + $0xc] sm:$0xf]
  %v3831 = vld [vmem:[%s3826 + $0x10] sm:$0xf]
  %v3832 = vld [vmem:[%s3826 + $0x14] sm:$0xf]
  %v3833 = vld [vmem:[%s3826 + $0x18] sm:$0xf]
  %v3834 = vld [vmem:[%s3826 + $0x1c] sm:$0xf]
  %v3835 = vld [vmem:[%s3826 + $0x20] sm:$0xf]
  %v3836 = vld [vmem:[%s3826 + $0x24] sm:$0xf]
  %v3837 = vld [vmem:[%s3826 + $0x28] sm:$0xf]
  %v3838 = vld [vmem:[%s3826 + $0x2c] sm:$0xf]
  %v3839 = vld [vmem:[%s3826 + $0x30] sm:$0xf]
  %v3840 = vld [vmem:[%s3826 + $0x34] sm:$0xf]
  %v3841 = vld [vmem:[%s3826 + $0x38] sm:$0xf]
  %v3842 = vld [vmem:[%s3826 + $0x3c] sm:$0xf]
  %v3843 = vld [vmem:[%s3826 + $0x40] sm:$0xf]
  %v3844 = vld [vmem:[%s3826 + $0x44] sm:$0xf]
  %v3845 = vld [vmem:[%s3826 + $0x48] sm:$0xf]
  %v3846 = vld [vmem:[%s3826 + $0x4c] sm:$0xf]
  %v3847 = vld [vmem:[%s3826 + $0x50] sm:$0xf]
  %v3848 = vld [vmem:[%s3826 + $0x54] sm:$0xf]
  %v3849 = vld [vmem:[%s3826 + $0x58] sm:$0xf]
  %v3850 = vld [vmem:[%s3826 + $0x5c] sm:$0xf]
  %v3851 = vld [vmem:[%s3826 + $0x60] sm:$0xf]
  %v3852 = vld [vmem:[%s3826 + $0x64] sm:$0xf]
  %v3853 = vld [vmem:[%s3826 + $0x68] sm:$0xf]
  %v3854 = vld [vmem:[%s3826 + $0x6c] sm:$0xf]
  %v3855 = vld [vmem:[%s3826 + $0x70] sm:$0xf]
  %v3856 = vld [vmem:[%s3826 + $0x74] sm:$0xf]
  %v3857 = vld [vmem:[%s3826 + $0x78] sm:$0xf]
  %v3858 = vld [vmem:[%s3826 + $0x7c] sm:$0xf]
  %v3861 = vrot.slane %v3824, 3
  %v3862 = vrot.slane %v3825, 3
  %v3897 = vunpack.c.l.b16 %v3827
  %v3898 = vunpack.c.l.b16 %v3828
  %v3899 = vunpack.c.l.b16 %v3829
  %v3900 = vunpack.c.l.b16 %v3830
  %v3901 = vunpack.c.l.b16 %v3831
  %v3902 = vunpack.c.l.b16 %v3832
  %v3903 = vunpack.c.l.b16 %v3833
  %v3904 = vunpack.c.l.b16 %v3834
  %v3905 = vunpack.c.l.b16 %v3835
  %v3906 = vunpack.c.l.b16 %v3836
  %v3907 = vunpack.c.l.b16 %v3837
  %v3908 = vunpack.c.l.b16 %v3838
  %v3909 = vunpack.c.l.b16 %v3839
  %v3910 = vunpack.c.l.b16 %v3840
  %v3911 = vunpack.c.l.b16 %v3841
  %v3912 = vunpack.c.l.b16 %v3842
  %v3913 = vunpack.c.l.b16 %v3843
  %v3914 = vunpack.c.l.b16 %v3844
  %v3915 = vunpack.c.l.b16 %v3845
  %v3916 = vunpack.c.l.b16 %v3846
  %v3917 = vunpack.c.l.b16 %v3847
  %v3918 = vunpack.c.l.b16 %v3848
  %v3919 = vunpack.c.l.b16 %v3849
  %v3920 = vunpack.c.l.b16 %v3850
  %v3921 = vunpack.c.l.b16 %v3851
  %v3922 = vunpack.c.l.b16 %v3852
  %v3923 = vunpack.c.l.b16 %v3853
  %v3924 = vunpack.c.l.b16 %v3854
  %v3925 = vunpack.c.l.b16 %v3855
  %v3926 = vunpack.c.l.b16 %v3856
  %v3927 = vunpack.c.l.b16 %v3857
  %v3928 = vunpack.c.l.b16 %v3858
  %v3929 = vpack.c.b16 %v3898, %v3897
  %v3930 = vpack.c.b16 %v3900, %v3899
  %v3931 = vpack.c.b16 %v3902, %v3901
  %v3932 = vpack.c.b16 %v3904, %v3903
  %v3933 = vpack.c.b16 %v3906, %v3905
  %v3934 = vpack.c.b16 %v3908, %v3907
  %v3935 = vpack.c.b16 %v3910, %v3909
  %v3936 = vpack.c.b16 %v3912, %v3911
  %v3937 = vpack.c.b16 %v3914, %v3913
  %v3938 = vpack.c.b16 %v3916, %v3915
  %v3939 = vpack.c.b16 %v3918, %v3917
  %v3940 = vpack.c.b16 %v3920, %v3919
  %v3941 = vpack.c.b16 %v3922, %v3921
  %v3942 = vpack.c.b16 %v3924, %v3923
  %v3943 = vpack.c.b16 %v3926, %v3925
  %v3944 = vpack.c.b16 %v3928, %v3927
  %3961 = vmatpush.bf16.msra.mxu0 %v3936
  %3962 = vmatpush.bf16.msra.mxu0 %v3935
  %3963 = vmatpush.bf16.msra.mxu0 %v3934
  %3964 = vmatpush.bf16.msra.mxu0 %v3933
  %3965 = vmatpush.bf16.msra.mxu0 %v3932
  %3966 = vmatpush.bf16.msra.mxu0 %v3931
  %3967 = vmatpush.bf16.msra.mxu0 %v3930
  %3968 = vmatpush.bf16.msra.mxu0 %v3929
  %3969 = vmatmul.bf16.gmra.mxu0 %v3861
  %v3970 = vpop.f32.mrf.mxu0
  %v3971 = vadd.f32 0.0, %v3970
  %v3972 = vpop.f32.mrf.mxu0
  %3973 = vdwg.mxu0
  %3974 = vmatpush.bf16.msra.mxu0 %v3944
  %3975 = vmatpush.bf16.msra.mxu0 %v3943
  %3976 = vmatpush.bf16.msra.mxu0 %v3942
  %3977 = vmatpush.bf16.msra.mxu0 %v3941
  %3978 = vmatpush.bf16.msra.mxu0 %v3940
  %3979 = vmatpush.bf16.msra.mxu0 %v3939
  %3980 = vmatpush.bf16.msra.mxu0 %v3938
  %3981 = vmatpush.bf16.msra.mxu0 %v3937
  %3982 = vmatmul.bf16.gmra.mxu0 %v3862
  %v3983 = vpop.f32.mrf.mxu0
  %v3984 = vadd.f32 %v3971, %v3983
  %v3985 = vpop.f32.mrf.mxu0
  %3986 = vdwg.mxu0
  %v3987 = vadd.f32 %v3821, %v3984
  %v3988 = vld [vmem:[%s4] sm:$0x1]
  %v3990 = vperm.slane %v3988, 0
  %v3992 = vadd.f32 %v3987, %v3990
  %v3993 = vpack.c.bf16 %v3992, %v3992
  %v3994 = vld [vmem:[%s5] sm:$0xf]
  %v3995 = vld [vmem:[%s5 + $0x4] sm:$0xf]
  %v3996 = vld [vmem:[%s5 + $0x8] sm:$0xf]
  %v3997 = vld [vmem:[%s5 + $0xc] sm:$0xf]
  %v3998 = vld [vmem:[%s6] sm:$0x1]
  %v4000 = vperm.slane %v3998, 0
  %v4006 = vunpack.c.l.b16 %v3994
  %v4007 = vunpack.c.l.b16 %v3995
  %v4008 = vunpack.c.l.b16 %v3996
  %v4009 = vunpack.c.l.b16 %v3997
  %v4010 = vpack.c.b16 %v4007, %v4006
  %v4011 = vpack.c.b16 %v4009, %v4008
  %vm4014 = vcmask 261120
  %v4016 = vsel %vm4014, %v3993, 0
  %4018 = vmatpush.bf16.msra.mxu0 0
  %4019 = vmatpush.bf16.msra.mxu0 0
  %4020 = vmatpush.bf16.msra.mxu0 0
  %4021 = vmatpush.bf16.msra.mxu0 0
  %4022 = vmatpush.bf16.msra.mxu0 0
  %4023 = vmatpush.bf16.msra.mxu0 0
  %4024 = vmatpush.bf16.msra.mxu0 %v4011
  %4025 = vmatpush.bf16.msra.mxu0 %v4010
  %4026 = vmatmul.bf16.gmra.mxu0 %v4016
  %v4027 = vpop.f32.mrf.mxu0
  %v4028 = vadd.f32 %v4000, %v4027
  %v4029 = vpop.f32.mrf.mxu0
  %4030 = vdwg.mxu0
  %vm4031 = vcmask 517120
  %4032 = vst.msk [vmem:[%s7] sm:$0x3] %vm4031, %v4028
  // Predicated region
  $region30: #{vae_encoder_forward.7} parent=0 // pred_check
    _
  $region31: #{vae_encoder_forward.7} parent=0 // pred_check_branch
    %4034 = sbr.rel (0) target = $region33
  $region32: #{vae_encoder_forward.7} parent=0 // pred_region
    _
  $region33: #{vae_encoder_forward.7} parent=0 // pred_fallthru
    _
  // Predicated region
  $region34: #{vae_encoder_forward.7} parent=0 // pred_check
    _
  $region35: #{vae_encoder_forward.7} parent=0 // pred_check_branch
    %4036 = sbr.rel (0) target = $region37
  $region36: #{vae_encoder_forward.7} parent=0 // pred_region
    _
  $region37: #{vae_encoder_forward.7} parent=0 // pred_fallthru
    _

</llo_original>
